<compile_context>
chip_gen: v6e
topology: v6e:2x2x1
jax: 0.10.0
libtpu: 0.0.40
codegen_flags: <defaults>
</compile_context>

<pallas_src>
import functools

import jax
import jax.numpy as jnp
from jax.experimental import pallas as pl
from jax.experimental.pallas import tpu as pltpu

# ---------------- model hyper-params (small, synthetic) ----------------
PATCH = 4
EMBED_DIM = 32
NUM_HEADS = 4
HEAD_DIM = EMBED_DIM // NUM_HEADS
MLP_HIDDEN = 4 * EMBED_DIM
NUM_CLASSES = 10
TOKENS = 16          # 4x4 token grid per frame (single Swin window)
LN_EPS = 1e-5
VEC_LANES = 128      # lane width of the packed bias/LN table and the head out

# rows of the packed (len(_VEC_NAMES), 128) bias / LayerNorm table
_VEC_NAMES = ("b_embed", "ln0_g", "ln0_b", "ln1_g", "ln1_b", "b_qkv",
              "b_proj", "ln2_g", "ln2_b", "b_mlp1", "b_mlp2", "ln3_g",
              "ln3_b", "b_head")
_VIDX = {n: i for i, n in enumerate(_VEC_NAMES)}


# ---------------- in-kernel helpers (operate on VMEM values) ----------------
def _dot_bf16(a, w):
    # bf16 operands, f32 accumulation: v6e/v7x MXU fast path, harmless on v5e.
    return jnp.dot(a.astype(jnp.bfloat16), w.astype(jnp.bfloat16),
                   preferred_element_type=jnp.float32)


def _ln(x, g, b):
    mu = jnp.mean(x, axis=-1, keepdims=True)
    var = jnp.mean(jnp.square(x - mu), axis=-1, keepdims=True)
    return (x - mu) * jax.lax.rsqrt(var + LN_EPS) * g + b


# ---------------- fused per-frame-block kernel ----------------
def _swin_frame_kernel(
    patches_ref,
    w_embed_ref, w_qkv_ref, rel_bias_ref, w_proj_ref,
    w_mlp1_ref, w_mlp2_ref, w_head_ref,
    vecs_ref,
    o_ref,
    *, fb, scale,
):
    D, Dh, H, T = EMBED_DIM, HEAD_DIM, NUM_HEADS, TOKENS
    rows = fb * T

    def vec(name, n=D):
        # one row of the packed bias/LN table, first n lanes
        return vecs_ref[_VIDX[name], :n]

    x = patches_ref[0]  # (rows, patch_dim) f32

    # Patch embedding (stride-4 conv as matmul) + LN.
    tokens = _dot_bf16(x, w_embed_ref[...]) + vec("b_embed")
    tokens = _ln(tokens, vec("ln0_g"), vec("ln0_b"))

    # ---- window MHSA (one 4x4 window == whole token grid), heads batched ----
    h1 = _ln(tokens, vec("ln1_g"), vec("ln1_b"))
    qkv = _dot_bf16(h1, w_qkv_ref[...]) + vec("b_qkv", 3 * D)   # (rows, 3D) f32
    qkv3 = qkv.reshape(fb, T, 3 * D)                            # one row split

    # Heads stacked head-major on the leading (batch) axis -> (H*fb, T, Dh).
    def split_heads(off):
        return jnp.concatenate(
            [qkv3[:, :, off + h * Dh: off + (h + 1) * Dh] for h in range(H)],
            axis=0)

    q = split_heads(0)
    k = split_heads(D)
    v = split_heads(2 * D)

    # One batched score einsum + ONE softmax over all heads and frames.
    s = jnp.einsum("gtd,gsd->gts", q, k,
                   preferred_element_type=jnp.float32) * scale   # (H*fb, T, T)
    bias = jnp.concatenate(
        [jnp.broadcast_to(rel_bias_ref[h], (fb, T, T)) for h in range(H)],
        axis=0)
    s = s + bias
    s = s - jnp.max(s, axis=-1, keepdims=True)
    p = jnp.exp(s)
    p = p / jnp.sum(p, axis=-1, keepdims=True)
    ctx = jnp.einsum("gts,gsd->gtd", p, v,
                     preferred_element_type=jnp.float32)         # (H*fb, T, Dh)

    # Reassemble lane-contiguous (rows, D) in [head*Dh + d] order and apply the
    # output projection as ONE matmul (contraction depth 32 instead of 4x8).
    ctx = ctx.reshape(H, rows, Dh)
    ctx = jnp.concatenate([ctx[h] for h in range(H)], axis=-1)   # (rows, D)
    tokens = tokens + jnp.dot(ctx, w_proj_ref[...],
                              preferred_element_type=jnp.float32) + vec("b_proj")

    # ---- MLP block ----
    h2 = _ln(tokens, vec("ln2_g"), vec("ln2_b"))
    hid = _dot_bf16(h2, w_mlp1_ref[...]) + vec("b_mlp1", MLP_HIDDEN)
    # TODO(synk): HF/PyTorch Swin uses exact erf GELU; tanh approximation kept.
    hid = jax.nn.gelu(hid, approximate=True)
    tokens = tokens + _dot_bf16(hid, w_mlp2_ref[...]) + vec("b_mlp2")

    # ---- final LN, per-frame token mean-pool, lane-dense classification head ----
    tokens = _ln(tokens, vec("ln3_g"), vec("ln3_b"))
    pooled = jnp.mean(tokens.reshape(fb, T, D), axis=1)          # (fb, D)
    # (fb, 128) full-lane store; wrapper keeps the first NUM_CLASSES lanes.
    o_ref[0] = _dot_bf16(pooled, w_head_ref[...]) + vec("b_head", VEC_LANES)


# ---------------- parameters ----------------
def init_params(key, in_channels):
    patch_dim = in_channels * PATCH * PATCH
    ks = jax.random.split(key, 8)
    s = 0.02
    D = EMBED_DIM
    params = {
        "w_embed": s * jax.random.normal(ks[0], (patch_dim, D), jnp.float32),
        "b_embed": jnp.zeros((D,), jnp.float32),
        "ln0_g": jnp.ones((D,), jnp.float32),
        "ln0_b": jnp.zeros((D,), jnp.float32),
        "ln1_g": jnp.ones((D,), jnp.float32),
        "ln1_b": jnp.zeros((D,), jnp.float32),
        "w_qkv": s * jax.random.normal(ks[1], (D, 3 * D), jnp.float32),
        "b_qkv": jnp.zeros((3 * D,), jnp.float32),
        # TODO(synk): real Swin uses a relative-position-bias table indexed by
        # pairwise offsets; here a dense (heads, T, T) bias tensor is used.
        "rel_bias": s * jax.random.normal(ks[2], (NUM_HEADS, TOKENS, TOKENS),
                                          jnp.float32),
        "w_proj": s * jax.random.normal(ks[3], (D, D), jnp.float32),
        "b_proj": jnp.zeros((D,), jnp.float32),
        "ln2_g": jnp.ones((D,), jnp.float32),
        "ln2_b": jnp.zeros((D,), jnp.float32),
        "w_mlp1": s * jax.random.normal(ks[4], (D, MLP_HIDDEN), jnp.float32),
        "b_mlp1": jnp.zeros((MLP_HIDDEN,), jnp.float32),
        "w_mlp2": s * jax.random.normal(ks[5], (MLP_HIDDEN, D), jnp.float32),
        "b_mlp2": jnp.zeros((D,), jnp.float32),
        "ln3_g": jnp.ones((D,), jnp.float32),
        "ln3_b": jnp.zeros((D,), jnp.float32),
        "w_head": s * jax.random.normal(ks[6], (D, NUM_CLASSES), jnp.float32),
        "b_head": jnp.zeros((NUM_CLASSES,), jnp.float32),
    }
    return params


# ---------------- wrapper helpers ----------------
def _pack_vecs(params):
    # One (len(_VEC_NAMES), 128) f32 table: each bias / LN vector is one
    # zero-padded row -> a single constant BlockSpec / DMA descriptor.
    rows = []
    for name in _VEC_NAMES:
        v = params[name].astype(jnp.float32).reshape(-1)
        rows.append(jnp.pad(v, (0, VEC_LANES - v.shape[0])))
    return jnp.stack(rows, axis=0)


def _frames_per_block(n):
    # Overhead-bound kernel: prefer a SINGLE grid step (one prologue DMA, one
    # per-step overhead) -- best on v5e/v6e's single TensorCore.  Only split
    # once a step would exceed ~512 rows (32 frames); a multi-step "parallel"
    # grid then also lets v7x's two TensorCores share the frames.
    max_fb = max(1, 512 // TOKENS)
    if n <= max_fb:
        return n
    for fb in range(max_fb, 0, -1):
        if n % fb == 0:
            return fb
    return 1


def _const_spec(a):
    # Full-array, constant-index block: weight stays VMEM-resident across steps.
    zeros = (0,) * a.ndim
    return pl.BlockSpec(a.shape, lambda i, z=zeros: z)


# ---------------- forward ----------------
def swin_video_forward(x, params):
    # x: (B, T, C, H, W) float32 — PyTorch NCHW per frame.
    B, T_, C, H, W = x.shape
    N = B * T_
    p = PATCH
    nH, nW = H // p, W // p
    assert nH * nW == TOKENS, "synthetic model assumes a single 4x4 token window"
    patch_dim = C * p * p

    fb = _frames_per_block(N)
    nb = N // fb

    # x.view(B*T, C, H, W) and patchify (glue; conv-as-matmul input prep),
    # grouped into nb blocks of fb frames for the kernel grid.
    patches = (
        x.reshape(N, C, nH, p, nW, p)
        .transpose(0, 2, 4, 1, 3, 5)
        .reshape(nb, fb * TOKENS, patch_dim)
    )

    bf16 = jnp.bfloat16
    D = EMBED_DIM
    # lane-dense head: pad classes 10 -> 128 with zeros
    w_head_pad = jnp.zeros((D, VEC_LANES), jnp.float32)
    w_head_pad = w_head_pad.at[:, :NUM_CLASSES].set(params["w_head"])

    weights = (
        params["w_embed"].astype(bf16),
        params["w_qkv"].astype(bf16),
        params["rel_bias"],
        params["w_proj"],                 # tiny f32 proj, single dot in-kernel
        params["w_mlp1"].astype(bf16),
        params["w_mlp2"].astype(bf16),
        w_head_pad.astype(bf16),
        _pack_vecs(params),               # all biases / LN vectors, one array
    )

    in_specs = [pl.BlockSpec((1, fb * TOKENS, patch_dim), lambda i: (i, 0, 0))]
    in_specs += [_const_spec(w) for w in weights]

    kern = functools.partial(_swin_frame_kernel, fb=fb,
                             scale=1.0 / (HEAD_DIM ** 0.5))

    # Advisory cost estimate so XLA can overlap the patchify transpose / final
    # mean with the kernel.
    rows_total = N * TOKENS
    flops = int(
        2 * rows_total * (patch_dim * D + D * 3 * D + D * D
                          + D * MLP_HIDDEN + MLP_HIDDEN * D)
        + 4 * NUM_HEADS * N * TOKENS * TOKENS * HEAD_DIM      # scores + p@v
        + 2 * N * D * VEC_LANES)                               # padded head
    transcendentals = int(NUM_HEADS * N * TOKENS * TOKENS
                          + rows_total * MLP_HIDDEN)
    bytes_accessed = int(
        patches.size * 4
        + sum(int(w.size) * jnp.dtype(w.dtype).itemsize for w in weights)
        + N * VEC_LANES * 4)

    out = pl.pallas_call(
        kern,
        out_shape=jax.ShapeDtypeStruct((nb, fb, VEC_LANES), jnp.float32),
        grid=(nb,),
        in_specs=in_specs,
        out_specs=pl.BlockSpec((1, fb, VEC_LANES), lambda i: (i, 0, 0)),
        compiler_params=pltpu.CompilerParams(
            dimension_semantics=("parallel",)),
        cost_estimate=pl.CostEstimate(
            flops=flops, transcendentals=transcendentals,
            bytes_accessed=bytes_accessed),
    )(patches, *weights)

    # Keep the real classes, then logits.view(B, T, -1).mean(dim=1): 80 floats,
    # plain jnp so XLA fuses it (a dedicated pallas_call is pure launch cost).
    logits = out[:, :, :NUM_CLASSES].reshape(N, NUM_CLASSES)
    return jnp.mean(logits.reshape(B, T_, NUM_CLASSES), axis=1)


if __name__ == "__main__":
    key = jax.random.PRNGKey(0)
    k_x, k_p = jax.random.split(key)
    B, T, C, H, W = 2, 4, 3, 16, 16
    x = jax.random.normal(k_x, (B, T, C, H, W), jnp.float32)
    params = init_params(k_p, C)

    out = jax.jit(swin_video_forward)(x, params)
    out = jax.block_until_ready(out)
    assert out.shape == (B, NUM_CLASSES), out.shape
    assert jnp.all(jnp.isfinite(out))
    print("KERNEL_OK")
</pallas_src>

<mosaic_0001>
module attributes {stable_mosaic.version = 11 : i64} {
  func.func @_swin_frame_kernel(%arg0: i32, %arg1: memref<1x128x48xf32, #tpu.memory_space<vmem>>, %arg2: memref<48x32xbf16, #tpu.memory_space<vmem>>, %arg3: memref<32x96xbf16, #tpu.memory_space<vmem>>, %arg4: memref<4x16x16xf32, #tpu.memory_space<vmem>>, %arg5: memref<32x32xf32, #tpu.memory_space<vmem>>, %arg6: memref<32x128xbf16, #tpu.memory_space<vmem>>, %arg7: memref<128x32xbf16, #tpu.memory_space<vmem>>, %arg8: memref<32x128xbf16, #tpu.memory_space<vmem>>, %arg9: memref<14x128xf32, #tpu.memory_space<vmem>>, %arg10: memref<1x8x128xf32, #tpu.memory_space<vmem>>) attributes {dimension_semantics = [#tpu.dimension_semantics<parallel>], iteration_bounds = array<i64: 1>, scalar_prefetch = 0 : i64, scratch_operands = 0 : i64, tpu.core_type = #tpu.core_type<tc>, window_params = [{transform_indices = @transform_0, window_bounds = array<i64: 1, 128, 48>}, {pipeline_mode = #tpu.pipeline_mode<synchronous>, transform_indices = @transform_1, window_bounds = array<i64: 48, 32>}, {pipeline_mode = #tpu.pipeline_mode<synchronous>, transform_indices = @transform_2, window_bounds = array<i64: 32, 96>}, {pipeline_mode = #tpu.pipeline_mode<synchronous>, transform_indices = @transform_3, window_bounds = array<i64: 4, 16, 16>}, {pipeline_mode = #tpu.pipeline_mode<synchronous>, transform_indices = @transform_4, window_bounds = array<i64: 32, 32>}, {pipeline_mode = #tpu.pipeline_mode<synchronous>, transform_indices = @transform_5, window_bounds = array<i64: 32, 128>}, {pipeline_mode = #tpu.pipeline_mode<synchronous>, transform_indices = @transform_6, window_bounds = array<i64: 128, 32>}, {pipeline_mode = #tpu.pipeline_mode<synchronous>, transform_indices = @transform_7, window_bounds = array<i64: 32, 128>}, {pipeline_mode = #tpu.pipeline_mode<synchronous>, transform_indices = @transform_8, window_bounds = array<i64: 14, 128>}, {transform_indices = @transform_9, window_bounds = array<i64: 1, 8, 128>}]} {
    %c0 = arith.constant 0 : index
    %c0_0 = arith.constant 0 : index
    %c0_1 = arith.constant 0 : index
    %0 = vector.load %arg1[%c0, %c0_0, %c0_1] : memref<1x128x48xf32, #tpu.memory_space<vmem>>, vector<1x128x48xf32>
    %1 = vector.shape_cast %0 : vector<1x128x48xf32> to vector<128x48xf32>
    %c0_2 = arith.constant 0 : index
    %c0_3 = arith.constant 0 : index
    %2 = vector.load %arg2[%c0_2, %c0_3] : memref<48x32xbf16, #tpu.memory_space<vmem>>, vector<48x32xbf16>
    %3 = arith.truncf %1 : vector<128x48xf32> to vector<128x48xbf16>
    %cst = arith.constant dense<0.000000e+00> : vector<128x32xf32>
    %4 = tpu.matmul %3, %2, %cst {dimension_numbers = #tpu.dot_dimension_numbers<[1], [0], [0], [1], [0, 0, 1, 1], [], []>} : vector<128x48xbf16>, vector<48x32xbf16>, vector<128x32xf32> -> vector<128x32xf32>
    %c0_4 = arith.constant 0 : index
    %c0_5 = arith.constant 0 : index
    %5 = vector.load %arg9[%c0_4, %c0_5] : memref<14x128xf32, #tpu.memory_space<vmem>>, vector<1x32xf32>
    %6 = vector.shape_cast %5 : vector<1x32xf32> to vector<32xf32>
    %7 = vector.shape_cast %6 : vector<32xf32> to vector<1x32xf32>
    %8 = vector.broadcast %7 : vector<1x32xf32> to vector<128x32xf32>
    %9 = arith.addf %4, %8 : vector<128x32xf32>
    %c1 = arith.constant 1 : index
    %c0_6 = arith.constant 0 : index
    %10 = vector.load %arg9[%c1, %c0_6] : memref<14x128xf32, #tpu.memory_space<vmem>>, vector<1x32xf32>
    %11 = vector.shape_cast %10 : vector<1x32xf32> to vector<32xf32>
    %c2 = arith.constant 2 : index
    %c0_7 = arith.constant 0 : index
    %12 = vector.load %arg9[%c2, %c0_7] : memref<14x128xf32, #tpu.memory_space<vmem>>, vector<1x32xf32>
    %13 = vector.shape_cast %12 : vector<1x32xf32> to vector<32xf32>
    %cst_8 = arith.constant dense<0.000000e+00> : vector<128xf32>
    %14 = vector.multi_reduction <add>, %9, %cst_8 [1] : vector<128x32xf32> to vector<128xf32>
    %15 = vector.shape_cast %14 : vector<128xf32> to vector<128x1xf32>
    %cst_9 = arith.constant 3.200000e+01 : f32
    %16 = vector.broadcast %cst_9 : f32 to vector<128x1xf32>
    %17 = arith.divf %15, %16 : vector<128x1xf32>
    %18 = vector.broadcast %17 : vector<128x1xf32> to vector<128x32xf32>
    %19 = arith.subf %9, %18 : vector<128x32xf32>
    %20 = arith.mulf %19, %19 : vector<128x32xf32>
    %cst_10 = arith.constant dense<0.000000e+00> : vector<128xf32>
    %21 = vector.multi_reduction <add>, %20, %cst_10 [1] : vector<128x32xf32> to vector<128xf32>
    %22 = vector.shape_cast %21 : vector<128xf32> to vector<128x1xf32>
    %cst_11 = arith.constant 3.200000e+01 : f32
    %23 = vector.broadcast %cst_11 : f32 to vector<128x1xf32>
    %24 = arith.divf %22, %23 : vector<128x1xf32>
    %25 = vector.broadcast %17 : vector<128x1xf32> to vector<128x32xf32>
    %26 = arith.subf %9, %25 : vector<128x32xf32>
    %cst_12 = arith.constant 9.99999974E-6 : f32
    %27 = vector.broadcast %cst_12 : f32 to vector<128x1xf32>
    %28 = arith.addf %24, %27 : vector<128x1xf32>
    %29 = math.rsqrt %28 : vector<128x1xf32>
    %30 = vector.broadcast %29 : vector<128x1xf32> to vector<128x32xf32>
    %31 = arith.mulf %26, %30 : vector<128x32xf32>
    %32 = vector.shape_cast %11 : vector<32xf32> to vector<1x32xf32>
    %33 = vector.broadcast %32 : vector<1x32xf32> to vector<128x32xf32>
    %34 = arith.mulf %31, %33 : vector<128x32xf32>
    %35 = vector.shape_cast %13 : vector<32xf32> to vector<1x32xf32>
    %36 = vector.broadcast %35 : vector<1x32xf32> to vector<128x32xf32>
    %37 = arith.addf %34, %36 : vector<128x32xf32>
    %c3 = arith.constant 3 : index
    %c0_13 = arith.constant 0 : index
    %38 = vector.load %arg9[%c3, %c0_13] : memref<14x128xf32, #tpu.memory_space<vmem>>, vector<1x32xf32>
    %39 = vector.shape_cast %38 : vector<1x32xf32> to vector<32xf32>
    %c4 = arith.constant 4 : index
    %c0_14 = arith.constant 0 : index
    %40 = vector.load %arg9[%c4, %c0_14] : memref<14x128xf32, #tpu.memory_space<vmem>>, vector<1x32xf32>
    %41 = vector.shape_cast %40 : vector<1x32xf32> to vector<32xf32>
    %cst_15 = arith.constant dense<0.000000e+00> : vector<128xf32>
    %42 = vector.multi_reduction <add>, %37, %cst_15 [1] : vector<128x32xf32> to vector<128xf32>
    %43 = vector.shape_cast %42 : vector<128xf32> to vector<128x1xf32>
    %cst_16 = arith.constant 3.200000e+01 : f32
    %44 = vector.broadcast %cst_16 : f32 to vector<128x1xf32>
    %45 = arith.divf %43, %44 : vector<128x1xf32>
    %46 = vector.broadcast %45 : vector<128x1xf32> to vector<128x32xf32>
    %47 = arith.subf %37, %46 : vector<128x32xf32>
    %48 = arith.mulf %47, %47 : vector<128x32xf32>
    %cst_17 = arith.constant dense<0.000000e+00> : vector<128xf32>
    %49 = vector.multi_reduction <add>, %48, %cst_17 [1] : vector<128x32xf32> to vector<128xf32>
    %50 = vector.shape_cast %49 : vector<128xf32> to vector<128x1xf32>
    %cst_18 = arith.constant 3.200000e+01 : f32
    %51 = vector.broadcast %cst_18 : f32 to vector<128x1xf32>
    %52 = arith.divf %50, %51 : vector<128x1xf32>
    %53 = vector.broadcast %45 : vector<128x1xf32> to vector<128x32xf32>
    %54 = arith.subf %37, %53 : vector<128x32xf32>
    %cst_19 = arith.constant 9.99999974E-6 : f32
    %55 = vector.broadcast %cst_19 : f32 to vector<128x1xf32>
    %56 = arith.addf %52, %55 : vector<128x1xf32>
    %57 = math.rsqrt %56 : vector<128x1xf32>
    %58 = vector.broadcast %57 : vector<128x1xf32> to vector<128x32xf32>
    %59 = arith.mulf %54, %58 : vector<128x32xf32>
    %60 = vector.shape_cast %39 : vector<32xf32> to vector<1x32xf32>
    %61 = vector.broadcast %60 : vector<1x32xf32> to vector<128x32xf32>
    %62 = arith.mulf %59, %61 : vector<128x32xf32>
    %63 = vector.shape_cast %41 : vector<32xf32> to vector<1x32xf32>
    %64 = vector.broadcast %63 : vector<1x32xf32> to vector<128x32xf32>
    %65 = arith.addf %62, %64 : vector<128x32xf32>
    %c0_20 = arith.constant 0 : index
    %c0_21 = arith.constant 0 : index
    %66 = vector.load %arg3[%c0_20, %c0_21] : memref<32x96xbf16, #tpu.memory_space<vmem>>, vector<32x96xbf16>
    %67 = arith.truncf %65 : vector<128x32xf32> to vector<128x32xbf16>
    %cst_22 = arith.constant dense<0.000000e+00> : vector<128x96xf32>
    %68 = tpu.matmul %67, %66, %cst_22 {dimension_numbers = #tpu.dot_dimension_numbers<[1], [0], [0], [1], [0, 0, 1, 1], [], []>} : vector<128x32xbf16>, vector<32x96xbf16>, vector<128x96xf32> -> vector<128x96xf32>
    %c5 = arith.constant 5 : index
    %c0_23 = arith.constant 0 : index
    %69 = vector.load %arg9[%c5, %c0_23] : memref<14x128xf32, #tpu.memory_space<vmem>>, vector<1x96xf32>
    %70 = vector.shape_cast %69 : vector<1x96xf32> to vector<96xf32>
    %71 = vector.shape_cast %70 : vector<96xf32> to vector<1x96xf32>
    %72 = vector.broadcast %71 : vector<1x96xf32> to vector<128x96xf32>
    %73 = arith.addf %68, %72 : vector<128x96xf32>
    %74 = vector.shape_cast %73 : vector<128x96xf32> to vector<8x16x96xf32>
    %75 = vector.extract_strided_slice %74 {offsets = [0, 0, 0], sizes = [8, 16, 8], strides = [1, 1, 1]} : vector<8x16x96xf32> to vector<8x16x8xf32>
    %76 = vector.extract_strided_slice %74 {offsets = [0, 0, 8], sizes = [8, 16, 8], strides = [1, 1, 1]} : vector<8x16x96xf32> to vector<8x16x8xf32>
    %77 = vector.extract_strided_slice %74 {offsets = [0, 0, 16], sizes = [8, 16, 8], strides = [1, 1, 1]} : vector<8x16x96xf32> to vector<8x16x8xf32>
    %78 = vector.extract_strided_slice %74 {offsets = [0, 0, 24], sizes = [8, 16, 8], strides = [1, 1, 1]} : vector<8x16x96xf32> to vector<8x16x8xf32>
    %79 = tpu.concatenate %75, %76, %77, %78 in 0 : vector<8x16x8xf32>, vector<8x16x8xf32>, vector<8x16x8xf32>, vector<8x16x8xf32> -> vector<32x16x8xf32>
    %80 = vector.extract_strided_slice %74 {offsets = [0, 0, 32], sizes = [8, 16, 8], strides = [1, 1, 1]} : vector<8x16x96xf32> to vector<8x16x8xf32>
    %81 = vector.extract_strided_slice %74 {offsets = [0, 0, 40], sizes = [8, 16, 8], strides = [1, 1, 1]} : vector<8x16x96xf32> to vector<8x16x8xf32>
    %82 = vector.extract_strided_slice %74 {offsets = [0, 0, 48], sizes = [8, 16, 8], strides = [1, 1, 1]} : vector<8x16x96xf32> to vector<8x16x8xf32>
    %83 = vector.extract_strided_slice %74 {offsets = [0, 0, 56], sizes = [8, 16, 8], strides = [1, 1, 1]} : vector<8x16x96xf32> to vector<8x16x8xf32>
    %84 = tpu.concatenate %80, %81, %82, %83 in 0 : vector<8x16x8xf32>, vector<8x16x8xf32>, vector<8x16x8xf32>, vector<8x16x8xf32> -> vector<32x16x8xf32>
    %85 = vector.extract_strided_slice %74 {offsets = [0, 0, 64], sizes = [8, 16, 8], strides = [1, 1, 1]} : vector<8x16x96xf32> to vector<8x16x8xf32>
    %86 = vector.extract_strided_slice %74 {offsets = [0, 0, 72], sizes = [8, 16, 8], strides = [1, 1, 1]} : vector<8x16x96xf32> to vector<8x16x8xf32>
    %87 = vector.extract_strided_slice %74 {offsets = [0, 0, 80], sizes = [8, 16, 8], strides = [1, 1, 1]} : vector<8x16x96xf32> to vector<8x16x8xf32>
    %88 = vector.extract_strided_slice %74 {offsets = [0, 0, 88], sizes = [8, 16, 8], strides = [1, 1, 1]} : vector<8x16x96xf32> to vector<8x16x8xf32>
    %89 = tpu.concatenate %85, %86, %87, %88 in 0 : vector<8x16x8xf32>, vector<8x16x8xf32>, vector<8x16x8xf32>, vector<8x16x8xf32> -> vector<32x16x8xf32>
    "tpu.trace_start"() <{level = 10 : i32, message = "gtd,gsd->gts"}> : () -> ()
    %cst_24 = arith.constant dense<0.000000e+00> : vector<32x16x16xf32>
    %90 = tpu.matmul %79, %84, %cst_24 {dimension_numbers = #tpu.dot_dimension_numbers<[2], [2], [1], [1], [0, 0, 0, 1, 1, 1], [0], [0]>} : vector<32x16x8xf32>, vector<32x16x8xf32>, vector<32x16x16xf32> -> vector<32x16x16xf32>
    "tpu.trace_stop"() : () -> ()
    %cst_25 = arith.constant 0.353553385 : f32
    %91 = vector.broadcast %cst_25 : f32 to vector<32x16x16xf32>
    %92 = arith.mulf %90, %91 : vector<32x16x16xf32>
    %c0_26 = arith.constant 0 : index
    %c0_27 = arith.constant 0 : index
    %c0_28 = arith.constant 0 : index
    %93 = vector.load %arg4[%c0_26, %c0_27, %c0_28] : memref<4x16x16xf32, #tpu.memory_space<vmem>>, vector<1x16x16xf32>
    %94 = vector.shape_cast %93 : vector<1x16x16xf32> to vector<16x16xf32>
    %95 = vector.shape_cast %94 : vector<16x16xf32> to vector<1x16x16xf32>
    %96 = vector.broadcast %95 : vector<1x16x16xf32> to vector<8x16x16xf32>
    %c1_29 = arith.constant 1 : index
    %c0_30 = arith.constant 0 : index
    %c0_31 = arith.constant 0 : index
    %97 = vector.load %arg4[%c1_29, %c0_30, %c0_31] : memref<4x16x16xf32, #tpu.memory_space<vmem>>, vector<1x16x16xf32>
    %98 = vector.shape_cast %97 : vector<1x16x16xf32> to vector<16x16xf32>
    %99 = vector.shape_cast %98 : vector<16x16xf32> to vector<1x16x16xf32>
    %100 = vector.broadcast %99 : vector<1x16x16xf32> to vector<8x16x16xf32>
    %c2_32 = arith.constant 2 : index
    %c0_33 = arith.constant 0 : index
    %c0_34 = arith.constant 0 : index
    %101 = vector.load %arg4[%c2_32, %c0_33, %c0_34] : memref<4x16x16xf32, #tpu.memory_space<vmem>>, vector<1x16x16xf32>
    %102 = vector.shape_cast %101 : vector<1x16x16xf32> to vector<16x16xf32>
    %103 = vector.shape_cast %102 : vector<16x16xf32> to vector<1x16x16xf32>
    %104 = vector.broadcast %103 : vector<1x16x16xf32> to vector<8x16x16xf32>
    %c3_35 = arith.constant 3 : index
    %c0_36 = arith.constant 0 : index
    %c0_37 = arith.constant 0 : index
    %105 = vector.load %arg4[%c3_35, %c0_36, %c0_37] : memref<4x16x16xf32, #tpu.memory_space<vmem>>, vector<1x16x16xf32>
    %106 = vector.shape_cast %105 : vector<1x16x16xf32> to vector<16x16xf32>
    %107 = vector.shape_cast %106 : vector<16x16xf32> to vector<1x16x16xf32>
    %108 = vector.broadcast %107 : vector<1x16x16xf32> to vector<8x16x16xf32>
    %109 = tpu.concatenate %96, %100, %104, %108 in 0 : vector<8x16x16xf32>, vector<8x16x16xf32>, vector<8x16x16xf32>, vector<8x16x16xf32> -> vector<32x16x16xf32>
    %110 = arith.addf %92, %109 : vector<32x16x16xf32>
    %cst_38 = arith.constant dense<0xFF800000> : vector<32x16xf32>
    %111 = vector.multi_reduction <maximumf>, %110, %cst_38 [2] : vector<32x16x16xf32> to vector<32x16xf32>
    %112 = vector.shape_cast %111 : vector<32x16xf32> to vector<32x16x1xf32>
    %113 = vector.broadcast %112 : vector<32x16x1xf32> to vector<32x16x16xf32>
    %114 = arith.subf %110, %113 : vector<32x16x16xf32>
    %115 = math.exp %114 : vector<32x16x16xf32>
    %cst_39 = arith.constant dense<0.000000e+00> : vector<32x16xf32>
    %116 = vector.multi_reduction <add>, %115, %cst_39 [2] : vector<32x16x16xf32> to vector<32x16xf32>
    %117 = vector.shape_cast %116 : vector<32x16xf32> to vector<32x16x1xf32>
    %118 = vector.broadcast %117 : vector<32x16x1xf32> to vector<32x16x16xf32>
    %119 = arith.divf %115, %118 : vector<32x16x16xf32>
    "tpu.trace_start"() <{level = 10 : i32, message = "gts,gsd->gtd"}> : () -> ()
    %cst_40 = arith.constant dense<0.000000e+00> : vector<32x16x8xf32>
    %120 = tpu.matmul %119, %89, %cst_40 {dimension_numbers = #tpu.dot_dimension_numbers<[2], [1], [1], [2], [0, 0, 0, 1, 1, 2], [0], [0]>} : vector<32x16x16xf32>, vector<32x16x8xf32>, vector<32x16x8xf32> -> vector<32x16x8xf32>
    "tpu.trace_stop"() : () -> ()
    %121 = vector.shape_cast %120 : vector<32x16x8xf32> to vector<4x128x8xf32>
    %122 = vector.extract_strided_slice %121 {offsets = [0, 0, 0], sizes = [1, 128, 8], strides = [1, 1, 1]} : vector<4x128x8xf32> to vector<1x128x8xf32>
    %123 = vector.shape_cast %122 : vector<1x128x8xf32> to vector<128x8xf32>
    %124 = vector.extract_strided_slice %121 {offsets = [1, 0, 0], sizes = [1, 128, 8], strides = [1, 1, 1]} : vector<4x128x8xf32> to vector<1x128x8xf32>
    %125 = vector.shape_cast %124 : vector<1x128x8xf32> to vector<128x8xf32>
    %126 = vector.extract_strided_slice %121 {offsets = [2, 0, 0], sizes = [1, 128, 8], strides = [1, 1, 1]} : vector<4x128x8xf32> to vector<1x128x8xf32>
    %127 = vector.shape_cast %126 : vector<1x128x8xf32> to vector<128x8xf32>
    %128 = vector.extract_strided_slice %121 {offsets = [3, 0, 0], sizes = [1, 128, 8], strides = [1, 1, 1]} : vector<4x128x8xf32> to vector<1x128x8xf32>
    %129 = vector.shape_cast %128 : vector<1x128x8xf32> to vector<128x8xf32>
    %130 = tpu.concatenate %123, %125, %127, %129 in 1 : vector<128x8xf32>, vector<128x8xf32>, vector<128x8xf32>, vector<128x8xf32> -> vector<128x32xf32>
    %c0_41 = arith.constant 0 : index
    %c0_42 = arith.constant 0 : index
    %131 = vector.load %arg5[%c0_41, %c0_42] : memref<32x32xf32, #tpu.memory_space<vmem>>, vector<32x32xf32>
    %cst_43 = arith.constant dense<0.000000e+00> : vector<128x32xf32>
    %132 = tpu.matmul %130, %131, %cst_43 {dimension_numbers = #tpu.dot_dimension_numbers<[1], [0], [0], [1], [0, 0, 1, 1], [], []>} : vector<128x32xf32>, vector<32x32xf32>, vector<128x32xf32> -> vector<128x32xf32>
    %133 = arith.addf %37, %132 : vector<128x32xf32>
    %c6 = arith.constant 6 : index
    %c0_44 = arith.constant 0 : index
    %134 = vector.load %arg9[%c6, %c0_44] : memref<14x128xf32, #tpu.memory_space<vmem>>, vector<1x32xf32>
    %135 = vector.shape_cast %134 : vector<1x32xf32> to vector<32xf32>
    %136 = vector.shape_cast %135 : vector<32xf32> to vector<1x32xf32>
    %137 = vector.broadcast %136 : vector<1x32xf32> to vector<128x32xf32>
    %138 = arith.addf %133, %137 : vector<128x32xf32>
    %c7 = arith.constant 7 : index
    %c0_45 = arith.constant 0 : index
    %139 = vector.load %arg9[%c7, %c0_45] : memref<14x128xf32, #tpu.memory_space<vmem>>, vector<1x32xf32>
    %140 = vector.shape_cast %139 : vector<1x32xf32> to vector<32xf32>
    %c8 = arith.constant 8 : index
    %c0_46 = arith.constant 0 : index
    %141 = vector.load %arg9[%c8, %c0_46] : memref<14x128xf32, #tpu.memory_space<vmem>>, vector<1x32xf32>
    %142 = vector.shape_cast %141 : vector<1x32xf32> to vector<32xf32>
    %cst_47 = arith.constant dense<0.000000e+00> : vector<128xf32>
    %143 = vector.multi_reduction <add>, %138, %cst_47 [1] : vector<128x32xf32> to vector<128xf32>
    %144 = vector.shape_cast %143 : vector<128xf32> to vector<128x1xf32>
    %cst_48 = arith.constant 3.200000e+01 : f32
    %145 = vector.broadcast %cst_48 : f32 to vector<128x1xf32>
    %146 = arith.divf %144, %145 : vector<128x1xf32>
    %147 = vector.broadcast %146 : vector<128x1xf32> to vector<128x32xf32>
    %148 = arith.subf %138, %147 : vector<128x32xf32>
    %149 = arith.mulf %148, %148 : vector<128x32xf32>
    %cst_49 = arith.constant dense<0.000000e+00> : vector<128xf32>
    %150 = vector.multi_reduction <add>, %149, %cst_49 [1] : vector<128x32xf32> to vector<128xf32>
    %151 = vector.shape_cast %150 : vector<128xf32> to vector<128x1xf32>
    %cst_50 = arith.constant 3.200000e+01 : f32
    %152 = vector.broadcast %cst_50 : f32 to vector<128x1xf32>
    %153 = arith.divf %151, %152 : vector<128x1xf32>
    %154 = vector.broadcast %146 : vector<128x1xf32> to vector<128x32xf32>
    %155 = arith.subf %138, %154 : vector<128x32xf32>
    %cst_51 = arith.constant 9.99999974E-6 : f32
    %156 = vector.broadcast %cst_51 : f32 to vector<128x1xf32>
    %157 = arith.addf %153, %156 : vector<128x1xf32>
    %158 = math.rsqrt %157 : vector<128x1xf32>
    %159 = vector.broadcast %158 : vector<128x1xf32> to vector<128x32xf32>
    %160 = arith.mulf %155, %159 : vector<128x32xf32>
    %161 = vector.shape_cast %140 : vector<32xf32> to vector<1x32xf32>
    %162 = vector.broadcast %161 : vector<1x32xf32> to vector<128x32xf32>
    %163 = arith.mulf %160, %162 : vector<128x32xf32>
    %164 = vector.shape_cast %142 : vector<32xf32> to vector<1x32xf32>
    %165 = vector.broadcast %164 : vector<1x32xf32> to vector<128x32xf32>
    %166 = arith.addf %163, %165 : vector<128x32xf32>
    %c0_52 = arith.constant 0 : index
    %c0_53 = arith.constant 0 : index
    %167 = vector.load %arg6[%c0_52, %c0_53] : memref<32x128xbf16, #tpu.memory_space<vmem>>, vector<32x128xbf16>
    %168 = arith.truncf %166 : vector<128x32xf32> to vector<128x32xbf16>
    %cst_54 = arith.constant dense<0.000000e+00> : vector<128x128xf32>
    %169 = tpu.matmul %168, %167, %cst_54 {dimension_numbers = #tpu.dot_dimension_numbers<[1], [0], [0], [1], [0, 0, 1, 1], [], []>} : vector<128x32xbf16>, vector<32x128xbf16>, vector<128x128xf32> -> vector<128x128xf32>
    %c9 = arith.constant 9 : index
    %c0_55 = arith.constant 0 : index
    %170 = vector.load %arg9[%c9, %c0_55] : memref<14x128xf32, #tpu.memory_space<vmem>>, vector<1x128xf32>
    %171 = vector.shape_cast %170 : vector<1x128xf32> to vector<128xf32>
    %172 = vector.shape_cast %171 : vector<128xf32> to vector<1x128xf32>
    %173 = vector.broadcast %172 : vector<1x128xf32> to vector<128x128xf32>
    %174 = arith.addf %169, %173 : vector<128x128xf32>
    %175 = arith.mulf %174, %174 : vector<128x128xf32>
    %176 = arith.mulf %174, %175 : vector<128x128xf32>
    %cst_56 = arith.constant 4.471500e-02 : f32
    %177 = vector.broadcast %cst_56 : f32 to vector<128x128xf32>
    %178 = arith.mulf %177, %176 : vector<128x128xf32>
    %179 = arith.addf %174, %178 : vector<128x128xf32>
    %cst_57 = arith.constant 0.797884583 : f32
    %180 = vector.broadcast %cst_57 : f32 to vector<128x128xf32>
    %181 = arith.mulf %180, %179 : vector<128x128xf32>
    %182 = math.tanh %181 : vector<128x128xf32>
    %cst_58 = arith.constant 1.000000e+00 : f32
    %183 = vector.broadcast %cst_58 : f32 to vector<128x128xf32>
    %184 = arith.addf %183, %182 : vector<128x128xf32>
    %cst_59 = arith.constant 5.000000e-01 : f32
    %185 = vector.broadcast %cst_59 : f32 to vector<128x128xf32>
    %186 = arith.mulf %185, %184 : vector<128x128xf32>
    %187 = arith.mulf %174, %186 : vector<128x128xf32>
    %c0_60 = arith.constant 0 : index
    %c0_61 = arith.constant 0 : index
    %188 = vector.load %arg7[%c0_60, %c0_61] : memref<128x32xbf16, #tpu.memory_space<vmem>>, vector<128x32xbf16>
    %189 = arith.truncf %187 : vector<128x128xf32> to vector<128x128xbf16>
    %cst_62 = arith.constant dense<0.000000e+00> : vector<128x32xf32>
    %190 = tpu.matmul %189, %188, %cst_62 {dimension_numbers = #tpu.dot_dimension_numbers<[1], [0], [0], [1], [0, 0, 1, 1], [], []>} : vector<128x128xbf16>, vector<128x32xbf16>, vector<128x32xf32> -> vector<128x32xf32>
    %191 = arith.addf %138, %190 : vector<128x32xf32>
    %c10 = arith.constant 10 : index
    %c0_63 = arith.constant 0 : index
    %192 = vector.load %arg9[%c10, %c0_63] : memref<14x128xf32, #tpu.memory_space<vmem>>, vector<1x32xf32>
    %193 = vector.shape_cast %192 : vector<1x32xf32> to vector<32xf32>
    %194 = vector.shape_cast %193 : vector<32xf32> to vector<1x32xf32>
    %195 = vector.broadcast %194 : vector<1x32xf32> to vector<128x32xf32>
    %196 = arith.addf %191, %195 : vector<128x32xf32>
    %c11 = arith.constant 11 : index
    %c0_64 = arith.constant 0 : index
    %197 = vector.load %arg9[%c11, %c0_64] : memref<14x128xf32, #tpu.memory_space<vmem>>, vector<1x32xf32>
    %198 = vector.shape_cast %197 : vector<1x32xf32> to vector<32xf32>
    %c12 = arith.constant 12 : index
    %c0_65 = arith.constant 0 : index
    %199 = vector.load %arg9[%c12, %c0_65] : memref<14x128xf32, #tpu.memory_space<vmem>>, vector<1x32xf32>
    %200 = vector.shape_cast %199 : vector<1x32xf32> to vector<32xf32>
    %cst_66 = arith.constant dense<0.000000e+00> : vector<128xf32>
    %201 = vector.multi_reduction <add>, %196, %cst_66 [1] : vector<128x32xf32> to vector<128xf32>
    %202 = vector.shape_cast %201 : vector<128xf32> to vector<128x1xf32>
    %cst_67 = arith.constant 3.200000e+01 : f32
    %203 = vector.broadcast %cst_67 : f32 to vector<128x1xf32>
    %204 = arith.divf %202, %203 : vector<128x1xf32>
    %205 = vector.broadcast %204 : vector<128x1xf32> to vector<128x32xf32>
    %206 = arith.subf %196, %205 : vector<128x32xf32>
    %207 = arith.mulf %206, %206 : vector<128x32xf32>
    %cst_68 = arith.constant dense<0.000000e+00> : vector<128xf32>
    %208 = vector.multi_reduction <add>, %207, %cst_68 [1] : vector<128x32xf32> to vector<128xf32>
    %209 = vector.shape_cast %208 : vector<128xf32> to vector<128x1xf32>
    %cst_69 = arith.constant 3.200000e+01 : f32
    %210 = vector.broadcast %cst_69 : f32 to vector<128x1xf32>
    %211 = arith.divf %209, %210 : vector<128x1xf32>
    %212 = vector.broadcast %204 : vector<128x1xf32> to vector<128x32xf32>
    %213 = arith.subf %196, %212 : vector<128x32xf32>
    %cst_70 = arith.constant 9.99999974E-6 : f32
    %214 = vector.broadcast %cst_70 : f32 to vector<128x1xf32>
    %215 = arith.addf %211, %214 : vector<128x1xf32>
    %216 = math.rsqrt %215 : vector<128x1xf32>
    %217 = vector.broadcast %216 : vector<128x1xf32> to vector<128x32xf32>
    %218 = arith.mulf %213, %217 : vector<128x32xf32>
    %219 = vector.shape_cast %198 : vector<32xf32> to vector<1x32xf32>
    %220 = vector.broadcast %219 : vector<1x32xf32> to vector<128x32xf32>
    %221 = arith.mulf %218, %220 : vector<128x32xf32>
    %222 = vector.shape_cast %200 : vector<32xf32> to vector<1x32xf32>
    %223 = vector.broadcast %222 : vector<1x32xf32> to vector<128x32xf32>
    %224 = arith.addf %221, %223 : vector<128x32xf32>
    %225 = vector.shape_cast %224 : vector<128x32xf32> to vector<8x16x32xf32>
    %cst_71 = arith.constant dense<0.000000e+00> : vector<8x32xf32>
    %226 = vector.multi_reduction <add>, %225, %cst_71 [1] : vector<8x16x32xf32> to vector<8x32xf32>
    %cst_72 = arith.constant 1.600000e+01 : f32
    %227 = vector.broadcast %cst_72 : f32 to vector<8x32xf32>
    %228 = arith.divf %226, %227 : vector<8x32xf32>
    %c0_73 = arith.constant 0 : index
    %c0_74 = arith.constant 0 : index
    %229 = vector.load %arg8[%c0_73, %c0_74] : memref<32x128xbf16, #tpu.memory_space<vmem>>, vector<32x128xbf16>
    %230 = arith.truncf %228 : vector<8x32xf32> to vector<8x32xbf16>
    %cst_75 = arith.constant dense<0.000000e+00> : vector<8x128xf32>
    %231 = tpu.matmul %230, %229, %cst_75 {dimension_numbers = #tpu.dot_dimension_numbers<[1], [0], [0], [1], [0, 0, 1, 1], [], []>} : vector<8x32xbf16>, vector<32x128xbf16>, vector<8x128xf32> -> vector<8x128xf32>
    %c13 = arith.constant 13 : index
    %c0_76 = arith.constant 0 : index
    %232 = vector.load %arg9[%c13, %c0_76] : memref<14x128xf32, #tpu.memory_space<vmem>>, vector<1x128xf32>
    %233 = vector.shape_cast %232 : vector<1x128xf32> to vector<128xf32>
    %234 = vector.shape_cast %233 : vector<128xf32> to vector<1x128xf32>
    %235 = vector.broadcast %234 : vector<1x128xf32> to vector<8x128xf32>
    %236 = arith.addf %231, %235 : vector<8x128xf32>
    %c0_77 = arith.constant 0 : index
    %c0_78 = arith.constant 0 : index
    %c0_79 = arith.constant 0 : index
    %237 = vector.load %arg10[%c0_77, %c0_78, %c0_79] : memref<1x8x128xf32, #tpu.memory_space<vmem>>, vector<1x8x128xf32>
    %238 = vector.shape_cast %237 : vector<1x8x128xf32> to vector<8x128xf32>
    %239 = vector.shape_cast %236 : vector<8x128xf32> to vector<1x8x128xf32>
    tpu.vector_store %arg10[%c0_77, %c0_78, %c0_79], %239 {strides = array<i32>} : memref<1x8x128xf32, #tpu.memory_space<vmem>>, vector<1x8x128xf32>,
    return
  }
  func.func @transform_0(%arg0: i32) -> (i32, i32, i32) {
    %c0_i32 = arith.constant 0 : i32
    %c0_i32_0 = arith.constant 0 : i32
    %c0_i32_1 = arith.constant 0 : i32
    return %arg0, %c0_i32, %c0_i32_0 : i32, i32, i32
  }
  func.func @transform_1(%arg0: i32) -> (i32, i32) {
    %c0_i32 = arith.constant 0 : i32
    %c0_i32_0 = arith.constant 0 : i32
    %c0_i32_1 = arith.constant 0 : i32
    return %c0_i32, %c0_i32_0 : i32, i32
  }
  func.func @transform_2(%arg0: i32) -> (i32, i32) {
    %c0_i32 = arith.constant 0 : i32
    %c0_i32_0 = arith.constant 0 : i32
    %c0_i32_1 = arith.constant 0 : i32
    return %c0_i32, %c0_i32_0 : i32, i32
  }
  func.func @transform_3(%arg0: i32) -> (i32, i32, i32) {
    %c0_i32 = arith.constant 0 : i32
    %c0_i32_0 = arith.constant 0 : i32
    %c0_i32_1 = arith.constant 0 : i32
    %c0_i32_2 = arith.constant 0 : i32
    return %c0_i32, %c0_i32_0, %c0_i32_1 : i32, i32, i32
  }
  func.func @transform_4(%arg0: i32) -> (i32, i32) {
    %c0_i32 = arith.constant 0 : i32
    %c0_i32_0 = arith.constant 0 : i32
    %c0_i32_1 = arith.constant 0 : i32
    return %c0_i32, %c0_i32_0 : i32, i32
  }
  func.func @transform_5(%arg0: i32) -> (i32, i32) {
    %c0_i32 = arith.constant 0 : i32
    %c0_i32_0 = arith.constant 0 : i32
    %c0_i32_1 = arith.constant 0 : i32
    return %c0_i32, %c0_i32_0 : i32, i32
  }
  func.func @transform_6(%arg0: i32) -> (i32, i32) {
    %c0_i32 = arith.constant 0 : i32
    %c0_i32_0 = arith.constant 0 : i32
    %c0_i32_1 = arith.constant 0 : i32
    return %c0_i32, %c0_i32_0 : i32, i32
  }
  func.func @transform_7(%arg0: i32) -> (i32, i32) {
    %c0_i32 = arith.constant 0 : i32
    %c0_i32_0 = arith.constant 0 : i32
    %c0_i32_1 = arith.constant 0 : i32
    return %c0_i32, %c0_i32_0 : i32, i32
  }
  func.func @transform_8(%arg0: i32) -> (i32, i32) {
    %c0_i32 = arith.constant 0 : i32
    %c0_i32_0 = arith.constant 0 : i32
    %c0_i32_1 = arith.constant 0 : i32
    return %c0_i32, %c0_i32_0 : i32, i32
  }
  func.func @transform_9(%arg0: i32) -> (i32, i32, i32) {
    %c0_i32 = arith.constant 0 : i32
    %c0_i32_0 = arith.constant 0 : i32
    %c0_i32_1 = arith.constant 0 : i32
    return %arg0, %c0_i32, %c0_i32_0 : i32, i32, i32
  }
}

</mosaic_0001>

<llo_original>
// kernel: swin_video_forward.1
$region0: #{swin_video_forward.1}
  #allocation0 [shape = 'u32[]', space=smem, size = 0x4, offset = 0x4, fixed_abs, tag = 'smem constant byte address 0x4 - core index']
  #allocation1 [shape = 'u32[144,128]{1,0:T(1,128)}', space=vmem, size = 0x12000, scoped, tag = 'internal scratch']
  %s0 = inlined_call_operand.vmem [shape: f32[1,128,48], index: 0, kind: input, shape index: {}]
  %s1 = inlined_call_operand.vmem [shape: bf16[48,32], index: 1, kind: input, shape index: {}]
  %s2 = inlined_call_operand.vmem [shape: bf16[32,96], index: 2, kind: input, shape index: {}]
  %s3 = inlined_call_operand.vmem [shape: f32[4,16,16], index: 3, kind: input, shape index: {}]
  %s4 = inlined_call_operand.vmem [shape: f32[32,32], index: 4, kind: input, shape index: {}]
  %s5 = inlined_call_operand.vmem [shape: bf16[32,128], index: 5, kind: input, shape index: {}]
  %s6 = inlined_call_operand.vmem [shape: bf16[128,32], index: 6, kind: input, shape index: {}]
  %s7 = inlined_call_operand.vmem [shape: bf16[32,128], index: 7, kind: input, shape index: {}]
  %s8 = inlined_call_operand.vmem [shape: f32[14,128], index: 8, kind: input, shape index: {}]
  %s9 = inlined_call_operand.vmem [shape: f32[1,8,128], index: 9, kind: output, shape index: {}]
  %s10 = sld [smem:[#allocation0]]
  $region46: #{swin_video_forward.1} parent=0
    _
  %s12 = ssub.s32 1, %s10
  %s13 = scalar_select 0, %s12, %s10
  // Predicated region
  $region2: #{swin_video_forward.1} parent=0 // pred_check
    _
  $region3: #{swin_video_forward.1} parent=0 // pred_check_branch
    %15 = sbr.rel (0) target = $region5
  $region4: #{swin_video_forward.1} parent=0 // pred_region
    _
  $region5: #{swin_video_forward.1} parent=0 // pred_fallthru
    _
  // Predicated region
  $region6: #{swin_video_forward.1} parent=0 // pred_check
    _
  $region7: #{swin_video_forward.1} parent=0 // pred_check_branch
    %17 = sbr.rel (0) target = $region9
  $region8: #{swin_video_forward.1} parent=0 // pred_region
    _
  $region9: #{swin_video_forward.1} parent=0 // pred_fallthru
    _
  // Predicated region
  $region10: #{swin_video_forward.1} parent=0 // pred_check
    _
  $region11: #{swin_video_forward.1} parent=0 // pred_check_branch
    %19 = sbr.rel (0) target = $region13
  $region12: #{swin_video_forward.1} parent=0 // pred_region
    _
  $region13: #{swin_video_forward.1} parent=0 // pred_fallthru
    _
  // Predicated region
  $region14: #{swin_video_forward.1} parent=0 // pred_check
    _
  $region15: #{swin_video_forward.1} parent=0 // pred_check_branch
    %21 = sbr.rel (0) target = $region17
  $region16: #{swin_video_forward.1} parent=0 // pred_region
    _
  $region17: #{swin_video_forward.1} parent=0 // pred_fallthru
    _
  // Predicated region
  $region18: #{swin_video_forward.1} parent=0 // pred_check
    _
  $region19: #{swin_video_forward.1} parent=0 // pred_check_branch
    %23 = sbr.rel (0) target = $region21
  $region20: #{swin_video_forward.1} parent=0 // pred_region
    _
  $region21: #{swin_video_forward.1} parent=0 // pred_fallthru
    _
  // Predicated region
  $region22: #{swin_video_forward.1} parent=0 // pred_check
    _
  $region23: #{swin_video_forward.1} parent=0 // pred_check_branch
    %25 = sbr.rel (0) target = $region25
  $region24: #{swin_video_forward.1} parent=0 // pred_region
    _
  $region25: #{swin_video_forward.1} parent=0 // pred_fallthru
    _
  // Predicated region
  $region26: #{swin_video_forward.1} parent=0 // pred_check
    _
  $region27: #{swin_video_forward.1} parent=0 // pred_check_branch
    %27 = sbr.rel (0) target = $region29
  $region28: #{swin_video_forward.1} parent=0 // pred_region
    _
  $region29: #{swin_video_forward.1} parent=0 // pred_fallthru
    _
  // Predicated region
  $region30: #{swin_video_forward.1} parent=0 // pred_check
    _
  $region31: #{swin_video_forward.1} parent=0 // pred_check_branch
    %29 = sbr.rel (0) target = $region33
  $region32: #{swin_video_forward.1} parent=0 // pred_region
    _
  $region33: #{swin_video_forward.1} parent=0 // pred_fallthru
    _
  // Predicated region
  $region34: #{swin_video_forward.1} parent=0 // pred_check
    _
  $region35: #{swin_video_forward.1} parent=0 // pred_check_branch
    %31 = sbr.rel (0) target = $region37
  $region36: #{swin_video_forward.1} parent=0 // pred_region
    _
  $region37: #{swin_video_forward.1} parent=0 // pred_fallthru
    _
  %v33 = vld [vmem:[%s0] sm:$0xff]
  %v34 = vld [vmem:[%s0 + $0x8] sm:$0xff]
  %v35 = vld [vmem:[%s0 + $0x10] sm:$0xff]
  %v36 = vld [vmem:[%s0 + $0x18] sm:$0xff]
  %v37 = vld [vmem:[%s0 + $0x20] sm:$0xff]
  %v38 = vld [vmem:[%s0 + $0x28] sm:$0xff]
  %v39 = vld [vmem:[%s0 + $0x30] sm:$0xff]
  %v40 = vld [vmem:[%s0 + $0x38] sm:$0xff]
  %v41 = vld [vmem:[%s0 + $0x40] sm:$0xff]
  %v42 = vld [vmem:[%s0 + $0x48] sm:$0xff]
  %v43 = vld [vmem:[%s0 + $0x50] sm:$0xff]
  %v44 = vld [vmem:[%s0 + $0x58] sm:$0xff]
  %v45 = vld [vmem:[%s0 + $0x60] sm:$0xff]
  %v46 = vld [vmem:[%s0 + $0x68] sm:$0xff]
  %v47 = vld [vmem:[%s0 + $0x70] sm:$0xff]
  %v48 = vld [vmem:[%s0 + $0x78] sm:$0xff]
  %v49 = vld [vmem:[%s1] sm:$0xf]
  %v50 = vld [vmem:[%s1 + $0x4] sm:$0xf]
  %v51 = vld [vmem:[%s1 + $0x8] sm:$0xf]
  %v52 = vld [vmem:[%s1 + $0xc] sm:$0xf]
  %v53 = vld [vmem:[%s1 + $0x10] sm:$0xf]
  %v54 = vld [vmem:[%s1 + $0x14] sm:$0xf]
  %v55 = vpack.c.bf16 %v34, %v33
  %v56 = vpack.c.bf16 %v36, %v35
  %v57 = vpack.c.bf16 %v38, %v37
  %v58 = vpack.c.bf16 %v40, %v39
  %v59 = vpack.c.bf16 %v42, %v41
  %v60 = vpack.c.bf16 %v44, %v43
  %v61 = vpack.c.bf16 %v46, %v45
  %v62 = vpack.c.bf16 %v48, %v47
  %v63 = vld [vmem:[%s8] sm:$0x1]
  %v64 = vlaneseq
  %v65 = vshrl.u32 %v64, 7
  %v66 = vsub.s32 0, %v65
  %v67 = vrot.slane %v63, %v66
  %v74 = vunpack.c.l.b16 %v49
  %v75 = vunpack.c.l.b16 %v50
  %v76 = vunpack.c.l.b16 %v51
  %v77 = vunpack.c.l.b16 %v52
  %v78 = vunpack.c.l.b16 %v53
  %v79 = vunpack.c.l.b16 %v54
  %v80 = vpack.c.b16 %v75, %v74
  %v81 = vpack.c.b16 %v77, %v76
  %v82 = vpack.c.b16 %v79, %v78
  %vm86 = vcmask 392192
  %v88 = vsel %vm86, %v55, 0
  %v91 = vsel %vm86, %v56, 0
  %v94 = vsel %vm86, %v57, 0
  %v97 = vsel %vm86, %v58, 0
  %v100 = vsel %vm86, %v59, 0
  %v103 = vsel %vm86, %v60, 0
  %v106 = vsel %vm86, %v61, 0
  %v109 = vsel %vm86, %v62, 0
  %111 = vmatprep.subr.bf16.mxu0 0
  %112 = vmatpush1.bf16.msra.mxu0 0
  %113 = vmatprep.subr.bf16.mxu0 0
  %114 = vmatpush1.bf16.msra.mxu0 0
  %115 = vmatprep.subr.bf16.mxu0 0
  %116 = vmatpush1.bf16.msra.mxu0 0
  %117 = vmatprep.subr.bf16.mxu0 0
  %118 = vmatpush1.bf16.msra.mxu0 0
  %119 = vmatprep.subr.bf16.mxu0 0
  %120 = vmatpush1.bf16.msra.mxu0 0
  %121 = vmatprep.subr.bf16.mxu0 0
  %122 = vmatpush1.bf16.msra.mxu0 %v82
  %123 = vmatprep.subr.bf16.mxu0 0
  %124 = vmatpush1.bf16.msra.mxu0 %v81
  %125 = vmatprep.subr.bf16.mxu0 0
  %126 = vmatpush1.bf16.msra.mxu0 %v80
  %127 = vmatprep.subr.bf16.mxu0 0
  %128 = vmatpush2.bf16.msra.mxu0 0
  %129 = vmatprep.subr.bf16.mxu0 0
  %130 = vmatpush2.bf16.msra.mxu0 0
  %131 = vmatprep.subr.bf16.mxu0 0
  %132 = vmatpush2.bf16.msra.mxu0 0
  %133 = vmatprep.subr.bf16.mxu0 0
  %134 = vmatpush2.bf16.msra.mxu0 0
  %135 = vmatprep.subr.bf16.mxu0 0
  %136 = vmatpush2.bf16.msra.mxu0 0
  %137 = vmatprep.subr.bf16.mxu0 0
  %138 = vmatpush2.bf16.msra.mxu0 0
  %139 = vmatprep.subr.bf16.mxu0 0
  %140 = vmatpush2.bf16.msra.mxu0 0
  %141 = vmatprep.subr.bf16.mxu0 0
  %142 = vmatpush2.bf16.msra.mxu0 0
  %143 = vmatprep.mubr.bf16.mxu0 0
  %144 = vmatmul.mubr.bf16.gmra.mxu0 %v88
  %v145 = vpop.f32.mrf.mxu0
  %v146 = vadd.f32 %v67, %v145
  %v147 = vpop.f32.mrf.mxu0
  %v148 = vpop.f32.mrf.mxu0
  %v149 = vadd.f32 %v67, %v148
  %v150 = vpop.f32.mrf.mxu0
  %151 = vmatprep.mubr.bf16.mxu0 0
  %152 = vmatmul.mubr.bf16.gmra.mxu0 %v91
  %v153 = vpop.f32.mrf.mxu0
  %v154 = vadd.f32 %v67, %v153
  %v155 = vpop.f32.mrf.mxu0
  %v156 = vpop.f32.mrf.mxu0
  %v157 = vadd.f32 %v67, %v156
  %v158 = vpop.f32.mrf.mxu0
  %159 = vmatprep.mubr.bf16.mxu0 0
  %160 = vmatmul.mubr.bf16.gmra.mxu0 %v94
  %v161 = vpop.f32.mrf.mxu0
  %v162 = vadd.f32 %v67, %v161
  %v163 = vpop.f32.mrf.mxu0
  %v164 = vpop.f32.mrf.mxu0
  %v165 = vadd.f32 %v67, %v164
  %v166 = vpop.f32.mrf.mxu0
  %167 = vmatprep.mubr.bf16.mxu0 0
  %168 = vmatmul.mubr.bf16.gmra.mxu0 %v97
  %v169 = vpop.f32.mrf.mxu0
  %v170 = vadd.f32 %v67, %v169
  %v171 = vpop.f32.mrf.mxu0
  %v172 = vpop.f32.mrf.mxu0
  %v173 = vadd.f32 %v67, %v172
  %v174 = vpop.f32.mrf.mxu0
  %175 = vmatprep.mubr.bf16.mxu0 0
  %176 = vmatmul.mubr.bf16.gmra.mxu0 %v100
  %v177 = vpop.f32.mrf.mxu0
  %v178 = vadd.f32 %v67, %v177
  %v179 = vpop.f32.mrf.mxu0
  %v180 = vpop.f32.mrf.mxu0
  %v181 = vadd.f32 %v67, %v180
  %v182 = vpop.f32.mrf.mxu0
  %183 = vmatprep.mubr.bf16.mxu0 0
  %184 = vmatmul.mubr.bf16.gmra.mxu0 %v103
  %v185 = vpop.f32.mrf.mxu0
  %v186 = vadd.f32 %v67, %v185
  %v187 = vpop.f32.mrf.mxu0
  %v188 = vpop.f32.mrf.mxu0
  %v189 = vadd.f32 %v67, %v188
  %v190 = vpop.f32.mrf.mxu0
  %191 = vmatprep.mubr.bf16.mxu0 0
  %192 = vmatmul.mubr.bf16.gmra.mxu0 %v106
  %v193 = vpop.f32.mrf.mxu0
  %v194 = vadd.f32 %v67, %v193
  %v195 = vpop.f32.mrf.mxu0
  %v196 = vpop.f32.mrf.mxu0
  %v197 = vadd.f32 %v67, %v196
  %v198 = vpop.f32.mrf.mxu0
  %199 = vmatprep.mubr.bf16.mxu0 0
  %200 = vmatmul.mubr.bf16.gmra.mxu0 %v109
  %v201 = vpop.f32.mrf.mxu0
  %v202 = vadd.f32 %v67, %v201
  %v203 = vpop.f32.mrf.mxu0
  %v204 = vpop.f32.mrf.mxu0
  %v205 = vadd.f32 %v67, %v204
  %v206 = vpop.f32.mrf.mxu0
  %207 = vdwg.mxu0
  %v208 = vld [vmem:[%s8 + $0x1] sm:$0x1]
  %v209 = vld [vmem:[%s8 + $0x2] sm:$0x1]
  %vm210 = vcmask 261120
  %v211 = vsel %vm210, %v146, 0.0
  %212 = vadd.xlane.f32.xlu0 %v211
  %v213 = vpop.xlane.xlu0 %212
  %v214 = vsel %vm210, %v149, 0.0
  %215 = vadd.xlane.f32.xlu0 %v214
  %v216 = vpop.xlane.xlu0 %215
  %v217 = vsel %vm210, %v154, 0.0
  %218 = vadd.xlane.f32.xlu0 %v217
  %v219 = vpop.xlane.xlu0 %218
  %v220 = vsel %vm210, %v157, 0.0
  %221 = vadd.xlane.f32.xlu0 %v220
  %v222 = vpop.xlane.xlu0 %221
  %v223 = vsel %vm210, %v162, 0.0
  %224 = vadd.xlane.f32.xlu0 %v223
  %v225 = vpop.xlane.xlu0 %224
  %v226 = vsel %vm210, %v165, 0.0
  %227 = vadd.xlane.f32.xlu0 %v226
  %v228 = vpop.xlane.xlu0 %227
  %v229 = vsel %vm210, %v170, 0.0
  %230 = vadd.xlane.f32.xlu0 %v229
  %v231 = vpop.xlane.xlu0 %230
  %v232 = vsel %vm210, %v173, 0.0
  %233 = vadd.xlane.f32.xlu0 %v232
  %v234 = vpop.xlane.xlu0 %233
  %v235 = vsel %vm210, %v178, 0.0
  %236 = vadd.xlane.f32.xlu0 %v235
  %v237 = vpop.xlane.xlu0 %236
  %v238 = vsel %vm210, %v181, 0.0
  %239 = vadd.xlane.f32.xlu0 %v238
  %v240 = vpop.xlane.xlu0 %239
  %v241 = vsel %vm210, %v186, 0.0
  %242 = vadd.xlane.f32.xlu0 %v241
  %v243 = vpop.xlane.xlu0 %242
  %v244 = vsel %vm210, %v189, 0.0
  %245 = vadd.xlane.f32.xlu0 %v244
  %v246 = vpop.xlane.xlu0 %245
  %v247 = vsel %vm210, %v194, 0.0
  %248 = vadd.xlane.f32.xlu0 %v247
  %v249 = vpop.xlane.xlu0 %248
  %v250 = vsel %vm210, %v197, 0.0
  %251 = vadd.xlane.f32.xlu0 %v250
  %v252 = vpop.xlane.xlu0 %251
  %v253 = vsel %vm210, %v202, 0.0
  %254 = vadd.xlane.f32.xlu0 %v253
  %v255 = vpop.xlane.xlu0 %254
  %v256 = vsel %vm210, %v205, 0.0
  %257 = vadd.xlane.f32.xlu0 %v256
  %v258 = vpop.xlane.xlu0 %257
  %v259 = vrcp.pop 32.0
  %v260 = vmul.f32 %v213, %v259
  %v261 = vmul.f32 %v216, %v259
  %v262 = vmul.f32 %v219, %v259
  %v263 = vmul.f32 %v222, %v259
  %v264 = vmul.f32 %v225, %v259
  %v265 = vmul.f32 %v228, %v259
  %v266 = vmul.f32 %v231, %v259
  %v267 = vmul.f32 %v234, %v259
  %v268 = vmul.f32 %v237, %v259
  %v269 = vmul.f32 %v240, %v259
  %v270 = vmul.f32 %v243, %v259
  %v271 = vmul.f32 %v246, %v259
  %v272 = vmul.f32 %v249, %v259
  %v273 = vmul.f32 %v252, %v259
  %v274 = vmul.f32 %v255, %v259
  %v275 = vmul.f32 %v258, %v259
  %v276 = vsub.f32 %v146, %v260
  %v277 = vsub.f32 %v149, %v261
  %v278 = vsub.f32 %v154, %v262
  %v279 = vsub.f32 %v157, %v263
  %v280 = vsub.f32 %v162, %v264
  %v281 = vsub.f32 %v165, %v265
  %v282 = vsub.f32 %v170, %v266
  %v283 = vsub.f32 %v173, %v267
  %v284 = vsub.f32 %v178, %v268
  %v285 = vsub.f32 %v181, %v269
  %v286 = vsub.f32 %v186, %v270
  %v287 = vsub.f32 %v189, %v271
  %v288 = vsub.f32 %v194, %v272
  %v289 = vsub.f32 %v197, %v273
  %v290 = vsub.f32 %v202, %v274
  %v291 = vsub.f32 %v205, %v275
  %v292 = vmul.f32 %v276, %v276
  %v293 = vmul.f32 %v277, %v277
  %v294 = vmul.f32 %v278, %v278
  %v295 = vmul.f32 %v279, %v279
  %v296 = vmul.f32 %v280, %v280
  %v297 = vmul.f32 %v281, %v281
  %v298 = vmul.f32 %v282, %v282
  %v299 = vmul.f32 %v283, %v283
  %v300 = vmul.f32 %v284, %v284
  %v301 = vmul.f32 %v285, %v285
  %v302 = vmul.f32 %v286, %v286
  %v303 = vmul.f32 %v287, %v287
  %v304 = vmul.f32 %v288, %v288
  %v305 = vmul.f32 %v289, %v289
  %v306 = vmul.f32 %v290, %v290
  %v307 = vmul.f32 %v291, %v291
  %v308 = vsel %vm210, %v292, 0.0
  %309 = vadd.xlane.f32.xlu0 %v308
  %v310 = vpop.xlane.xlu0 %309
  %v311 = vsel %vm210, %v293, 0.0
  %312 = vadd.xlane.f32.xlu0 %v311
  %v313 = vpop.xlane.xlu0 %312
  %v314 = vsel %vm210, %v294, 0.0
  %315 = vadd.xlane.f32.xlu0 %v314
  %v316 = vpop.xlane.xlu0 %315
  %v317 = vsel %vm210, %v295, 0.0
  %318 = vadd.xlane.f32.xlu0 %v317
  %v319 = vpop.xlane.xlu0 %318
  %v320 = vsel %vm210, %v296, 0.0
  %321 = vadd.xlane.f32.xlu0 %v320
  %v322 = vpop.xlane.xlu0 %321
  %v323 = vsel %vm210, %v297, 0.0
  %324 = vadd.xlane.f32.xlu0 %v323
  %v325 = vpop.xlane.xlu0 %324
  %v326 = vsel %vm210, %v298, 0.0
  %327 = vadd.xlane.f32.xlu0 %v326
  %v328 = vpop.xlane.xlu0 %327
  %v329 = vsel %vm210, %v299, 0.0
  %330 = vadd.xlane.f32.xlu0 %v329
  %v331 = vpop.xlane.xlu0 %330
  %v332 = vsel %vm210, %v300, 0.0
  %333 = vadd.xlane.f32.xlu0 %v332
  %v334 = vpop.xlane.xlu0 %333
  %v335 = vsel %vm210, %v301, 0.0
  %336 = vadd.xlane.f32.xlu0 %v335
  %v337 = vpop.xlane.xlu0 %336
  %v338 = vsel %vm210, %v302, 0.0
  %339 = vadd.xlane.f32.xlu0 %v338
  %v340 = vpop.xlane.xlu0 %339
  %v341 = vsel %vm210, %v303, 0.0
  %342 = vadd.xlane.f32.xlu0 %v341
  %v343 = vpop.xlane.xlu0 %342
  %v344 = vsel %vm210, %v304, 0.0
  %345 = vadd.xlane.f32.xlu0 %v344
  %v346 = vpop.xlane.xlu0 %345
  %v347 = vsel %vm210, %v305, 0.0
  %348 = vadd.xlane.f32.xlu0 %v347
  %v349 = vpop.xlane.xlu0 %348
  %v350 = vsel %vm210, %v306, 0.0
  %351 = vadd.xlane.f32.xlu0 %v350
  %v352 = vpop.xlane.xlu0 %351
  %v353 = vsel %vm210, %v307, 0.0
  %354 = vadd.xlane.f32.xlu0 %v353
  %v355 = vpop.xlane.xlu0 %354
  %v356 = vmul.f32 %v310, %v259
  %v357 = vmul.f32 %v313, %v259
  %v358 = vmul.f32 %v316, %v259
  %v359 = vmul.f32 %v319, %v259
  %v360 = vmul.f32 %v322, %v259
  %v361 = vmul.f32 %v325, %v259
  %v362 = vmul.f32 %v328, %v259
  %v363 = vmul.f32 %v331, %v259
  %v364 = vmul.f32 %v334, %v259
  %v365 = vmul.f32 %v337, %v259
  %v366 = vmul.f32 %v340, %v259
  %v367 = vmul.f32 %v343, %v259
  %v368 = vmul.f32 %v346, %v259
  %v369 = vmul.f32 %v349, %v259
  %v370 = vmul.f32 %v352, %v259
  %v371 = vmul.f32 %v355, %v259
  %v372 = vadd.f32 %v356, 1e-05
  %v373 = vadd.f32 %v357, 1e-05
  %v374 = vadd.f32 %v358, 1e-05
  %v375 = vadd.f32 %v359, 1e-05
  %v376 = vadd.f32 %v360, 1e-05
  %v377 = vadd.f32 %v361, 1e-05
  %v378 = vadd.f32 %v362, 1e-05
  %v379 = vadd.f32 %v363, 1e-05
  %v380 = vadd.f32 %v364, 1e-05
  %v381 = vadd.f32 %v365, 1e-05
  %v382 = vadd.f32 %v366, 1e-05
  %v383 = vadd.f32 %v367, 1e-05
  %v384 = vadd.f32 %v368, 1e-05
  %v385 = vadd.f32 %v369, 1e-05
  %v386 = vadd.f32 %v370, 1e-05
  %v387 = vadd.f32 %v371, 1e-05
  %v388 = vrsqrt.pop %v372
  %v389 = vrsqrt.pop %v373
  %v390 = vrsqrt.pop %v374
  %v391 = vrsqrt.pop %v375
  %v392 = vrsqrt.pop %v376
  %v393 = vrsqrt.pop %v377
  %v394 = vrsqrt.pop %v378
  %v395 = vrsqrt.pop %v379
  %v396 = vrsqrt.pop %v380
  %v397 = vrsqrt.pop %v381
  %v398 = vrsqrt.pop %v382
  %v399 = vrsqrt.pop %v383
  %v400 = vrsqrt.pop %v384
  %v401 = vrsqrt.pop %v385
  %v402 = vrsqrt.pop %v386
  %v403 = vrsqrt.pop %v387
  %v404 = vmul.f32 %v276, %v388
  %v405 = vmul.f32 %v277, %v389
  %v406 = vmul.f32 %v278, %v390
  %v407 = vmul.f32 %v279, %v391
  %v408 = vmul.f32 %v280, %v392
  %v409 = vmul.f32 %v281, %v393
  %v410 = vmul.f32 %v282, %v394
  %v411 = vmul.f32 %v283, %v395
  %v412 = vmul.f32 %v284, %v396
  %v413 = vmul.f32 %v285, %v397
  %v414 = vmul.f32 %v286, %v398
  %v415 = vmul.f32 %v287, %v399
  %v416 = vmul.f32 %v288, %v400
  %v417 = vmul.f32 %v289, %v401
  %v418 = vmul.f32 %v290, %v402
  %v419 = vmul.f32 %v291, %v403
  %v420 = vlaneseq
  %v421 = vshrl.u32 %v420, 7
  %v422 = vsub.s32 0, %v421
  %v423 = vrot.slane %v208, %v422
  %v424 = vmul.f32 %v404, %v423
  %v425 = vmul.f32 %v405, %v423
  %v426 = vmul.f32 %v406, %v423
  %v427 = vmul.f32 %v407, %v423
  %v428 = vmul.f32 %v408, %v423
  %v429 = vmul.f32 %v409, %v423
  %v430 = vmul.f32 %v410, %v423
  %v431 = vmul.f32 %v411, %v423
  %v432 = vmul.f32 %v412, %v423
  %v433 = vmul.f32 %v413, %v423
  %v434 = vmul.f32 %v414, %v423
  %v435 = vmul.f32 %v415, %v423
  %v436 = vmul.f32 %v416, %v423
  %v437 = vmul.f32 %v417, %v423
  %v438 = vmul.f32 %v418, %v423
  %v439 = vmul.f32 %v419, %v423
  %v440 = vlaneseq
  %v441 = vshrl.u32 %v440, 7
  %v442 = vsub.s32 0, %v441
  %v443 = vrot.slane %v209, %v442
  %v444 = vadd.f32 %v424, %v443
  %v445 = vadd.f32 %v425, %v443
  %v446 = vadd.f32 %v426, %v443
  %v447 = vadd.f32 %v427, %v443
  %v448 = vadd.f32 %v428, %v443
  %v449 = vadd.f32 %v429, %v443
  %v450 = vadd.f32 %v430, %v443
  %v451 = vadd.f32 %v431, %v443
  %v452 = vadd.f32 %v432, %v443
  %v453 = vadd.f32 %v433, %v443
  %v454 = vadd.f32 %v434, %v443
  %v455 = vadd.f32 %v435, %v443
  %v456 = vadd.f32 %v436, %v443
  %v457 = vadd.f32 %v437, %v443
  %v458 = vadd.f32 %v438, %v443
  %v459 = vadd.f32 %v439, %v443
  %v460 = vld [vmem:[%s8 + $0x3] sm:$0x1]
  %v461 = vld [vmem:[%s8 + $0x4] sm:$0x1]
  %v462 = vsel %vm210, %v444, 0.0
  %463 = vadd.xlane.f32.xlu0 %v462
  %v464 = vpop.xlane.xlu0 %463
  %v465 = vsel %vm210, %v445, 0.0
  %466 = vadd.xlane.f32.xlu0 %v465
  %v467 = vpop.xlane.xlu0 %466
  %v468 = vsel %vm210, %v446, 0.0
  %469 = vadd.xlane.f32.xlu0 %v468
  %v470 = vpop.xlane.xlu0 %469
  %v471 = vsel %vm210, %v447, 0.0
  %472 = vadd.xlane.f32.xlu0 %v471
  %v473 = vpop.xlane.xlu0 %472
  %v474 = vsel %vm210, %v448, 0.0
  %475 = vadd.xlane.f32.xlu0 %v474
  %v476 = vpop.xlane.xlu0 %475
  %v477 = vsel %vm210, %v449, 0.0
  %478 = vadd.xlane.f32.xlu0 %v477
  %v479 = vpop.xlane.xlu0 %478
  %v480 = vsel %vm210, %v450, 0.0
  %481 = vadd.xlane.f32.xlu0 %v480
  %v482 = vpop.xlane.xlu0 %481
  %v483 = vsel %vm210, %v451, 0.0
  %484 = vadd.xlane.f32.xlu0 %v483
  %v485 = vpop.xlane.xlu0 %484
  %v486 = vsel %vm210, %v452, 0.0
  %487 = vadd.xlane.f32.xlu0 %v486
  %v488 = vpop.xlane.xlu0 %487
  %v489 = vsel %vm210, %v453, 0.0
  %490 = vadd.xlane.f32.xlu0 %v489
  %v491 = vpop.xlane.xlu0 %490
  %v492 = vsel %vm210, %v454, 0.0
  %493 = vadd.xlane.f32.xlu0 %v492
  %v494 = vpop.xlane.xlu0 %493
  %v495 = vsel %vm210, %v455, 0.0
  %496 = vadd.xlane.f32.xlu0 %v495
  %v497 = vpop.xlane.xlu0 %496
  %v498 = vsel %vm210, %v456, 0.0
  %499 = vadd.xlane.f32.xlu0 %v498
  %v500 = vpop.xlane.xlu0 %499
  %v501 = vsel %vm210, %v457, 0.0
  %502 = vadd.xlane.f32.xlu0 %v501
  %v503 = vpop.xlane.xlu0 %502
  %v504 = vsel %vm210, %v458, 0.0
  %505 = vadd.xlane.f32.xlu0 %v504
  %v506 = vpop.xlane.xlu0 %505
  %v507 = vsel %vm210, %v459, 0.0
  %508 = vadd.xlane.f32.xlu0 %v507
  %v509 = vpop.xlane.xlu0 %508
  %v510 = vmul.f32 %v464, %v259
  %v511 = vmul.f32 %v467, %v259
  %v512 = vmul.f32 %v470, %v259
  %v513 = vmul.f32 %v473, %v259
  %v514 = vmul.f32 %v476, %v259
  %v515 = vmul.f32 %v479, %v259
  %v516 = vmul.f32 %v482, %v259
  %v517 = vmul.f32 %v485, %v259
  %v518 = vmul.f32 %v488, %v259
  %v519 = vmul.f32 %v491, %v259
  %v520 = vmul.f32 %v494, %v259
  %v521 = vmul.f32 %v497, %v259
  %v522 = vmul.f32 %v500, %v259
  %v523 = vmul.f32 %v503, %v259
  %v524 = vmul.f32 %v506, %v259
  %v525 = vmul.f32 %v509, %v259
  %v526 = vsub.f32 %v444, %v510
  %v527 = vsub.f32 %v445, %v511
  %v528 = vsub.f32 %v446, %v512
  %v529 = vsub.f32 %v447, %v513
  %v530 = vsub.f32 %v448, %v514
  %v531 = vsub.f32 %v449, %v515
  %v532 = vsub.f32 %v450, %v516
  %v533 = vsub.f32 %v451, %v517
  %v534 = vsub.f32 %v452, %v518
  %v535 = vsub.f32 %v453, %v519
  %v536 = vsub.f32 %v454, %v520
  %v537 = vsub.f32 %v455, %v521
  %v538 = vsub.f32 %v456, %v522
  %v539 = vsub.f32 %v457, %v523
  %v540 = vsub.f32 %v458, %v524
  %v541 = vsub.f32 %v459, %v525
  %v542 = vmul.f32 %v526, %v526
  %v543 = vmul.f32 %v527, %v527
  %v544 = vmul.f32 %v528, %v528
  %v545 = vmul.f32 %v529, %v529
  %v546 = vmul.f32 %v530, %v530
  %v547 = vmul.f32 %v531, %v531
  %v548 = vmul.f32 %v532, %v532
  %v549 = vmul.f32 %v533, %v533
  %v550 = vmul.f32 %v534, %v534
  %v551 = vmul.f32 %v535, %v535
  %v552 = vmul.f32 %v536, %v536
  %v553 = vmul.f32 %v537, %v537
  %v554 = vmul.f32 %v538, %v538
  %v555 = vmul.f32 %v539, %v539
  %v556 = vmul.f32 %v540, %v540
  %v557 = vmul.f32 %v541, %v541
  %v558 = vsel %vm210, %v542, 0.0
  %559 = vadd.xlane.f32.xlu0 %v558
  %v560 = vpop.xlane.xlu0 %559
  %v561 = vsel %vm210, %v543, 0.0
  %562 = vadd.xlane.f32.xlu0 %v561
  %v563 = vpop.xlane.xlu0 %562
  %v564 = vsel %vm210, %v544, 0.0
  %565 = vadd.xlane.f32.xlu0 %v564
  %v566 = vpop.xlane.xlu0 %565
  %v567 = vsel %vm210, %v545, 0.0
  %568 = vadd.xlane.f32.xlu0 %v567
  %v569 = vpop.xlane.xlu0 %568
  %v570 = vsel %vm210, %v546, 0.0
  %571 = vadd.xlane.f32.xlu0 %v570
  %v572 = vpop.xlane.xlu0 %571
  %v573 = vsel %vm210, %v547, 0.0
  %574 = vadd.xlane.f32.xlu0 %v573
  %v575 = vpop.xlane.xlu0 %574
  %v576 = vsel %vm210, %v548, 0.0
  %577 = vadd.xlane.f32.xlu0 %v576
  %v578 = vpop.xlane.xlu0 %577
  %v579 = vsel %vm210, %v549, 0.0
  %580 = vadd.xlane.f32.xlu0 %v579
  %v581 = vpop.xlane.xlu0 %580
  %v582 = vsel %vm210, %v550, 0.0
  %583 = vadd.xlane.f32.xlu0 %v582
  %v584 = vpop.xlane.xlu0 %583
  %v585 = vsel %vm210, %v551, 0.0
  %586 = vadd.xlane.f32.xlu0 %v585
  %v587 = vpop.xlane.xlu0 %586
  %v588 = vsel %vm210, %v552, 0.0
  %589 = vadd.xlane.f32.xlu0 %v588
  %v590 = vpop.xlane.xlu0 %589
  %v591 = vsel %vm210, %v553, 0.0
  %592 = vadd.xlane.f32.xlu0 %v591
  %v593 = vpop.xlane.xlu0 %592
  %v594 = vsel %vm210, %v554, 0.0
  %595 = vadd.xlane.f32.xlu0 %v594
  %v596 = vpop.xlane.xlu0 %595
  %v597 = vsel %vm210, %v555, 0.0
  %598 = vadd.xlane.f32.xlu0 %v597
  %v599 = vpop.xlane.xlu0 %598
  %v600 = vsel %vm210, %v556, 0.0
  %601 = vadd.xlane.f32.xlu0 %v600
  %v602 = vpop.xlane.xlu0 %601
  %v603 = vsel %vm210, %v557, 0.0
  %604 = vadd.xlane.f32.xlu0 %v603
  %v605 = vpop.xlane.xlu0 %604
  %v606 = vmul.f32 %v560, %v259
  %v607 = vmul.f32 %v563, %v259
  %v608 = vmul.f32 %v566, %v259
  %v609 = vmul.f32 %v569, %v259
  %v610 = vmul.f32 %v572, %v259
  %v611 = vmul.f32 %v575, %v259
  %v612 = vmul.f32 %v578, %v259
  %v613 = vmul.f32 %v581, %v259
  %v614 = vmul.f32 %v584, %v259
  %v615 = vmul.f32 %v587, %v259
  %v616 = vmul.f32 %v590, %v259
  %v617 = vmul.f32 %v593, %v259
  %v618 = vmul.f32 %v596, %v259
  %v619 = vmul.f32 %v599, %v259
  %v620 = vmul.f32 %v602, %v259
  %v621 = vmul.f32 %v605, %v259
  %v622 = vadd.f32 %v606, 1e-05
  %v623 = vadd.f32 %v607, 1e-05
  %v624 = vadd.f32 %v608, 1e-05
  %v625 = vadd.f32 %v609, 1e-05
  %v626 = vadd.f32 %v610, 1e-05
  %v627 = vadd.f32 %v611, 1e-05
  %v628 = vadd.f32 %v612, 1e-05
  %v629 = vadd.f32 %v613, 1e-05
  %v630 = vadd.f32 %v614, 1e-05
  %v631 = vadd.f32 %v615, 1e-05
  %v632 = vadd.f32 %v616, 1e-05
  %v633 = vadd.f32 %v617, 1e-05
  %v634 = vadd.f32 %v618, 1e-05
  %v635 = vadd.f32 %v619, 1e-05
  %v636 = vadd.f32 %v620, 1e-05
  %v637 = vadd.f32 %v621, 1e-05
  %v638 = vrsqrt.pop %v622
  %v639 = vrsqrt.pop %v623
  %v640 = vrsqrt.pop %v624
  %v641 = vrsqrt.pop %v625
  %v642 = vrsqrt.pop %v626
  %v643 = vrsqrt.pop %v627
  %v644 = vrsqrt.pop %v628
  %v645 = vrsqrt.pop %v629
  %v646 = vrsqrt.pop %v630
  %v647 = vrsqrt.pop %v631
  %v648 = vrsqrt.pop %v632
  %v649 = vrsqrt.pop %v633
  %v650 = vrsqrt.pop %v634
  %v651 = vrsqrt.pop %v635
  %v652 = vrsqrt.pop %v636
  %v653 = vrsqrt.pop %v637
  %v654 = vmul.f32 %v526, %v638
  %v655 = vmul.f32 %v527, %v639
  %v656 = vmul.f32 %v528, %v640
  %v657 = vmul.f32 %v529, %v641
  %v658 = vmul.f32 %v530, %v642
  %v659 = vmul.f32 %v531, %v643
  %v660 = vmul.f32 %v532, %v644
  %v661 = vmul.f32 %v533, %v645
  %v662 = vmul.f32 %v534, %v646
  %v663 = vmul.f32 %v535, %v647
  %v664 = vmul.f32 %v536, %v648
  %v665 = vmul.f32 %v537, %v649
  %v666 = vmul.f32 %v538, %v650
  %v667 = vmul.f32 %v539, %v651
  %v668 = vmul.f32 %v540, %v652
  %v669 = vmul.f32 %v541, %v653
  %v670 = vlaneseq
  %v671 = vshrl.u32 %v670, 7
  %v672 = vsub.s32 0, %v671
  %v673 = vrot.slane %v460, %v672
  %v674 = vmul.f32 %v654, %v673
  %v675 = vmul.f32 %v655, %v673
  %v676 = vmul.f32 %v656, %v673
  %v677 = vmul.f32 %v657, %v673
  %v678 = vmul.f32 %v658, %v673
  %v679 = vmul.f32 %v659, %v673
  %v680 = vmul.f32 %v660, %v673
  %v681 = vmul.f32 %v661, %v673
  %v682 = vmul.f32 %v662, %v673
  %v683 = vmul.f32 %v663, %v673
  %v684 = vmul.f32 %v664, %v673
  %v685 = vmul.f32 %v665, %v673
  %v686 = vmul.f32 %v666, %v673
  %v687 = vmul.f32 %v667, %v673
  %v688 = vmul.f32 %v668, %v673
  %v689 = vmul.f32 %v669, %v673
  %v690 = vlaneseq
  %v691 = vshrl.u32 %v690, 7
  %v692 = vsub.s32 0, %v691
  %v693 = vrot.slane %v461, %v692
  %v694 = vadd.f32 %v674, %v693
  %v695 = vadd.f32 %v675, %v693
  %v696 = vadd.f32 %v676, %v693
  %v697 = vadd.f32 %v677, %v693
  %v698 = vadd.f32 %v678, %v693
  %v699 = vadd.f32 %v679, %v693
  %v700 = vadd.f32 %v680, %v693
  %v701 = vadd.f32 %v681, %v693
  %v702 = vadd.f32 %v682, %v693
  %v703 = vadd.f32 %v683, %v693
  %v704 = vadd.f32 %v684, %v693
  %v705 = vadd.f32 %v685, %v693
  %v706 = vadd.f32 %v686, %v693
  %v707 = vadd.f32 %v687, %v693
  %v708 = vadd.f32 %v688, %v693
  %v709 = vadd.f32 %v689, %v693
  %v710 = vld [vmem:[%s2] sm:$0xf]
  %v711 = vld [vmem:[%s2 + $0x4] sm:$0xf]
  %v712 = vld [vmem:[%s2 + $0x8] sm:$0xf]
  %v713 = vld [vmem:[%s2 + $0xc] sm:$0xf]
  %v714 = vpack.c.bf16 %v695, %v694
  %v715 = vpack.c.bf16 %v697, %v696
  %v716 = vpack.c.bf16 %v699, %v698
  %v717 = vpack.c.bf16 %v701, %v700
  %v718 = vpack.c.bf16 %v703, %v702
  %v719 = vpack.c.bf16 %v705, %v704
  %v720 = vpack.c.bf16 %v707, %v706
  %v721 = vpack.c.bf16 %v709, %v708
  %v722 = vld [vmem:[%s8 + $0x5] sm:$0x1]
  %v723 = vlaneseq
  %v724 = vshrl.u32 %v723, 7
  %v725 = vsub.s32 0, %v724
  %v726 = vrot.slane %v722, %v725
  %v731 = vunpack.c.l.b16 %v710
  %v732 = vunpack.c.l.b16 %v711
  %v733 = vunpack.c.l.b16 %v712
  %v734 = vunpack.c.l.b16 %v713
  %v735 = vpack.c.b16 %v732, %v731
  %v736 = vpack.c.b16 %v734, %v733
  %v740 = vsel %vm210, %v714, 0
  %v743 = vsel %vm210, %v715, 0
  %v746 = vsel %vm210, %v716, 0
  %v749 = vsel %vm210, %v717, 0
  %v752 = vsel %vm210, %v718, 0
  %v755 = vsel %vm210, %v719, 0
  %v758 = vsel %vm210, %v720, 0
  %v761 = vsel %vm210, %v721, 0
  %763 = vmatprep.subr.bf16.mxu0 0
  %764 = vmatpush1.bf16.msra.mxu0 0
  %765 = vmatprep.subr.bf16.mxu0 0
  %766 = vmatpush1.bf16.msra.mxu0 0
  %767 = vmatprep.subr.bf16.mxu0 0
  %768 = vmatpush1.bf16.msra.mxu0 0
  %769 = vmatprep.subr.bf16.mxu0 0
  %770 = vmatpush1.bf16.msra.mxu0 0
  %771 = vmatprep.subr.bf16.mxu0 0
  %772 = vmatpush1.bf16.msra.mxu0 0
  %773 = vmatprep.subr.bf16.mxu0 0
  %774 = vmatpush1.bf16.msra.mxu0 0
  %775 = vmatprep.subr.bf16.mxu0 0
  %776 = vmatpush1.bf16.msra.mxu0 %v736
  %777 = vmatprep.subr.bf16.mxu0 0
  %778 = vmatpush1.bf16.msra.mxu0 %v735
  %779 = vmatprep.subr.bf16.mxu0 0
  %780 = vmatpush2.bf16.msra.mxu0 0
  %781 = vmatprep.subr.bf16.mxu0 0
  %782 = vmatpush2.bf16.msra.mxu0 0
  %783 = vmatprep.subr.bf16.mxu0 0
  %784 = vmatpush2.bf16.msra.mxu0 0
  %785 = vmatprep.subr.bf16.mxu0 0
  %786 = vmatpush2.bf16.msra.mxu0 0
  %787 = vmatprep.subr.bf16.mxu0 0
  %788 = vmatpush2.bf16.msra.mxu0 0
  %789 = vmatprep.subr.bf16.mxu0 0
  %790 = vmatpush2.bf16.msra.mxu0 0
  %791 = vmatprep.subr.bf16.mxu0 0
  %792 = vmatpush2.bf16.msra.mxu0 0
  %793 = vmatprep.subr.bf16.mxu0 0
  %794 = vmatpush2.bf16.msra.mxu0 0
  %795 = vmatprep.mubr.bf16.mxu0 0
  %796 = vmatmul.mubr.bf16.gmra.mxu0 %v740
  %v797 = vpop.f32.mrf.mxu0
  %v798 = vadd.f32 %v726, %v797
  %v799 = vpop.f32.mrf.mxu0
  %v800 = vpop.f32.mrf.mxu0
  %v801 = vadd.f32 %v726, %v800
  %v802 = vpop.f32.mrf.mxu0
  %803 = vmatprep.mubr.bf16.mxu0 0
  %804 = vmatmul.mubr.bf16.gmra.mxu0 %v743
  %v805 = vpop.f32.mrf.mxu0
  %v806 = vadd.f32 %v726, %v805
  %v807 = vpop.f32.mrf.mxu0
  %v808 = vpop.f32.mrf.mxu0
  %v809 = vadd.f32 %v726, %v808
  %v810 = vpop.f32.mrf.mxu0
  %811 = vmatprep.mubr.bf16.mxu0 0
  %812 = vmatmul.mubr.bf16.gmra.mxu0 %v746
  %v813 = vpop.f32.mrf.mxu0
  %v814 = vadd.f32 %v726, %v813
  %v815 = vpop.f32.mrf.mxu0
  %v816 = vpop.f32.mrf.mxu0
  %v817 = vadd.f32 %v726, %v816
  %v818 = vpop.f32.mrf.mxu0
  %819 = vmatprep.mubr.bf16.mxu0 0
  %820 = vmatmul.mubr.bf16.gmra.mxu0 %v749
  %v821 = vpop.f32.mrf.mxu0
  %v822 = vadd.f32 %v726, %v821
  %v823 = vpop.f32.mrf.mxu0
  %v824 = vpop.f32.mrf.mxu0
  %v825 = vadd.f32 %v726, %v824
  %v826 = vpop.f32.mrf.mxu0
  %827 = vmatprep.mubr.bf16.mxu0 0
  %828 = vmatmul.mubr.bf16.gmra.mxu0 %v752
  %v829 = vpop.f32.mrf.mxu0
  %v830 = vadd.f32 %v726, %v829
  %v831 = vpop.f32.mrf.mxu0
  %v832 = vpop.f32.mrf.mxu0
  %v833 = vadd.f32 %v726, %v832
  %v834 = vpop.f32.mrf.mxu0
  %835 = vmatprep.mubr.bf16.mxu0 0
  %836 = vmatmul.mubr.bf16.gmra.mxu0 %v755
  %v837 = vpop.f32.mrf.mxu0
  %v838 = vadd.f32 %v726, %v837
  %v839 = vpop.f32.mrf.mxu0
  %v840 = vpop.f32.mrf.mxu0
  %v841 = vadd.f32 %v726, %v840
  %v842 = vpop.f32.mrf.mxu0
  %843 = vmatprep.mubr.bf16.mxu0 0
  %844 = vmatmul.mubr.bf16.gmra.mxu0 %v758
  %v845 = vpop.f32.mrf.mxu0
  %v846 = vadd.f32 %v726, %v845
  %v847 = vpop.f32.mrf.mxu0
  %v848 = vpop.f32.mrf.mxu0
  %v849 = vadd.f32 %v726, %v848
  %v850 = vpop.f32.mrf.mxu0
  %851 = vmatprep.mubr.bf16.mxu0 0
  %852 = vmatmul.mubr.bf16.gmra.mxu0 %v761
  %v853 = vpop.f32.mrf.mxu0
  %v854 = vadd.f32 %v726, %v853
  %v855 = vpop.f32.mrf.mxu0
  %v856 = vpop.f32.mrf.mxu0
  %v857 = vadd.f32 %v726, %v856
  %v858 = vpop.f32.mrf.mxu0
  %859 = vdwg.mxu0
  %876 = vrot.lane.b32.xlu0 %v798, 120
  %v877 = vpop.permute.xlu0 %876
  %878 = vrot.lane.b32.xlu0 %v801, 120
  %v879 = vpop.permute.xlu0 %878
  %880 = vrot.lane.b32.xlu0 %v806, 120
  %v881 = vpop.permute.xlu0 %880
  %882 = vrot.lane.b32.xlu0 %v809, 120
  %v883 = vpop.permute.xlu0 %882
  %884 = vrot.lane.b32.xlu0 %v814, 120
  %v885 = vpop.permute.xlu0 %884
  %886 = vrot.lane.b32.xlu0 %v817, 120
  %v887 = vpop.permute.xlu0 %886
  %888 = vrot.lane.b32.xlu0 %v822, 120
  %v889 = vpop.permute.xlu0 %888
  %890 = vrot.lane.b32.xlu0 %v825, 120
  %v891 = vpop.permute.xlu0 %890
  %892 = vrot.lane.b32.xlu0 %v830, 120
  %v893 = vpop.permute.xlu0 %892
  %894 = vrot.lane.b32.xlu0 %v833, 120
  %v895 = vpop.permute.xlu0 %894
  %896 = vrot.lane.b32.xlu0 %v838, 120
  %v897 = vpop.permute.xlu0 %896
  %898 = vrot.lane.b32.xlu0 %v841, 120
  %v899 = vpop.permute.xlu0 %898
  %900 = vrot.lane.b32.xlu0 %v846, 120
  %v901 = vpop.permute.xlu0 %900
  %902 = vrot.lane.b32.xlu0 %v849, 120
  %v903 = vpop.permute.xlu0 %902
  %904 = vrot.lane.b32.xlu0 %v854, 120
  %v905 = vpop.permute.xlu0 %904
  %906 = vrot.lane.b32.xlu0 %v857, 120
  %v907 = vpop.permute.xlu0 %906
  %908 = vrot.lane.b32.xlu0 %v798, 112
  %v909 = vpop.permute.xlu0 %908
  %910 = vrot.lane.b32.xlu0 %v801, 112
  %v911 = vpop.permute.xlu0 %910
  %912 = vrot.lane.b32.xlu0 %v806, 112
  %v913 = vpop.permute.xlu0 %912
  %914 = vrot.lane.b32.xlu0 %v809, 112
  %v915 = vpop.permute.xlu0 %914
  %916 = vrot.lane.b32.xlu0 %v814, 112
  %v917 = vpop.permute.xlu0 %916
  %918 = vrot.lane.b32.xlu0 %v817, 112
  %v919 = vpop.permute.xlu0 %918
  %920 = vrot.lane.b32.xlu0 %v822, 112
  %v921 = vpop.permute.xlu0 %920
  %922 = vrot.lane.b32.xlu0 %v825, 112
  %v923 = vpop.permute.xlu0 %922
  %924 = vrot.lane.b32.xlu0 %v830, 112
  %v925 = vpop.permute.xlu0 %924
  %926 = vrot.lane.b32.xlu0 %v833, 112
  %v927 = vpop.permute.xlu0 %926
  %928 = vrot.lane.b32.xlu0 %v838, 112
  %v929 = vpop.permute.xlu0 %928
  %930 = vrot.lane.b32.xlu0 %v841, 112
  %v931 = vpop.permute.xlu0 %930
  %932 = vrot.lane.b32.xlu0 %v846, 112
  %v933 = vpop.permute.xlu0 %932
  %934 = vrot.lane.b32.xlu0 %v849, 112
  %v935 = vpop.permute.xlu0 %934
  %936 = vrot.lane.b32.xlu0 %v854, 112
  %v937 = vpop.permute.xlu0 %936
  %938 = vrot.lane.b32.xlu0 %v857, 112
  %v939 = vpop.permute.xlu0 %938
  %940 = vrot.lane.b32.xlu0 %v798, 104
  %v941 = vpop.permute.xlu0 %940
  %942 = vrot.lane.b32.xlu0 %v801, 104
  %v943 = vpop.permute.xlu0 %942
  %944 = vrot.lane.b32.xlu0 %v806, 104
  %v945 = vpop.permute.xlu0 %944
  %946 = vrot.lane.b32.xlu0 %v809, 104
  %v947 = vpop.permute.xlu0 %946
  %948 = vrot.lane.b32.xlu0 %v814, 104
  %v949 = vpop.permute.xlu0 %948
  %950 = vrot.lane.b32.xlu0 %v817, 104
  %v951 = vpop.permute.xlu0 %950
  %952 = vrot.lane.b32.xlu0 %v822, 104
  %v953 = vpop.permute.xlu0 %952
  %954 = vrot.lane.b32.xlu0 %v825, 104
  %v955 = vpop.permute.xlu0 %954
  %956 = vrot.lane.b32.xlu0 %v830, 104
  %v957 = vpop.permute.xlu0 %956
  %958 = vrot.lane.b32.xlu0 %v833, 104
  %v959 = vpop.permute.xlu0 %958
  %960 = vrot.lane.b32.xlu0 %v838, 104
  %v961 = vpop.permute.xlu0 %960
  %962 = vrot.lane.b32.xlu0 %v841, 104
  %v963 = vpop.permute.xlu0 %962
  %964 = vrot.lane.b32.xlu0 %v846, 104
  %v965 = vpop.permute.xlu0 %964
  %966 = vrot.lane.b32.xlu0 %v849, 104
  %v967 = vpop.permute.xlu0 %966
  %968 = vrot.lane.b32.xlu0 %v854, 104
  %v969 = vpop.permute.xlu0 %968
  %970 = vrot.lane.b32.xlu0 %v857, 104
  %v971 = vpop.permute.xlu0 %970
  %972 = vrot.lane.b32.xlu0 %v798, 96
  %v973 = vpop.permute.xlu0 %972
  %974 = vrot.lane.b32.xlu0 %v801, 96
  %v975 = vpop.permute.xlu0 %974
  %vm976 = vcmask 64512
  %v977 = vsel %vm976, %v798, 0
  %v979 = vsel %vm976, %v801, 0
  %v981 = vsel %vm976, %v973, 0
  %v983 = vsel %vm976, %v975, 0
  %985 = vmatprep.subr.mxu0 0.0
  %986 = vmatpush1.xpose.msra.mxu0 0.0
  %987 = vmatprep.subr.mxu0 0.0
  %988 = vmatpush1.xpose.msra.mxu0 0.0
  %989 = vmatprep.subr.mxu0 0.0
  %990 = vmatpush1.xpose.msra.mxu0 0.0
  %991 = vmatprep.subr.mxu0 0.0
  %992 = vmatpush1.xpose.msra.mxu0 0.0
  %993 = vmatprep.subr.mxu0 0.0
  %994 = vmatpush1.xpose.msra.mxu0 0.0
  %995 = vmatprep.subr.mxu0 0.0
  %996 = vmatpush1.xpose.msra.mxu0 0.0
  %997 = vmatprep.subr.mxu0 0.0
  %998 = vmatpush1.xpose.msra.mxu0 0.0
  %999 = vmatprep.subr.mxu0 0.0
  %1000 = vmatpush1.xpose.msra.mxu0 0.0
  %1001 = vmatprep.subr.mxu0 0.0
  %1002 = vmatpush1.xpose.msra.mxu0 0.0
  %1003 = vmatprep.subr.mxu0 0.0
  %1004 = vmatpush1.xpose.msra.mxu0 0.0
  %1005 = vmatprep.subr.mxu0 0.0
  %1006 = vmatpush1.xpose.msra.mxu0 0.0
  %1007 = vmatprep.subr.mxu0 0.0
  %1008 = vmatpush1.xpose.msra.mxu0 0.0
  %1009 = vmatprep.subr.mxu0 0.0
  %1010 = vmatpush1.xpose.msra.mxu0 0.0
  %1011 = vmatprep.subr.mxu0 0.0
  %1012 = vmatpush1.xpose.msra.mxu0 0.0
  %1013 = vmatprep.subr.mxu0 0.0
  %1014 = vmatpush1.xpose.msra.mxu0 %v983
  %1015 = vmatprep.subr.mxu0 0.0
  %1016 = vmatpush1.xpose.msra.mxu0 %v981
  %1017 = vmatprep.subr.mxu0 0.0
  %1018 = vmatpush2.xpose.msra.mxu0 0.0
  %1019 = vmatprep.subr.mxu0 0.0
  %1020 = vmatpush2.xpose.msra.mxu0 0.0
  %1021 = vmatprep.subr.mxu0 0.0
  %1022 = vmatpush2.xpose.msra.mxu0 0.0
  %1023 = vmatprep.subr.mxu0 0.0
  %1024 = vmatpush2.xpose.msra.mxu0 0.0
  %1025 = vmatprep.subr.mxu0 0.0
  %1026 = vmatpush2.xpose.msra.mxu0 0.0
  %1027 = vmatprep.subr.mxu0 0.0
  %1028 = vmatpush2.xpose.msra.mxu0 0.0
  %1029 = vmatprep.subr.mxu0 0.0
  %1030 = vmatpush2.xpose.msra.mxu0 0.0
  %1031 = vmatprep.subr.mxu0 0.0
  %1032 = vmatpush2.xpose.msra.mxu0 0.0
  %1033 = vmatprep.subr.mxu0 0.0
  %1034 = vmatpush2.xpose.msra.mxu0 0.0
  %1035 = vmatprep.subr.mxu0 0.0
  %1036 = vmatpush2.xpose.msra.mxu0 0.0
  %1037 = vmatprep.subr.mxu0 0.0
  %1038 = vmatpush2.xpose.msra.mxu0 0.0
  %1039 = vmatprep.subr.mxu0 0.0
  %1040 = vmatpush2.xpose.msra.mxu0 0.0
  %1041 = vmatprep.subr.mxu0 0.0
  %1042 = vmatpush2.xpose.msra.mxu0 0.0
  %1043 = vmatprep.subr.mxu0 0.0
  %1044 = vmatpush2.xpose.msra.mxu0 0.0
  %1045 = vmatprep.subr.mxu0 0.0
  %1046 = vmatpush2.xpose.msra.mxu0 0.0
  %1047 = vmatprep.subr.mxu0 0.0
  %1048 = vmatpush2.xpose.msra.mxu0 0.0
  %1049 = vmatprep.mubr.f32.mxu0 0.0
  %1050 = vmatmul.mubr.f32.gmra.mxu0 %v977
  %v1051 = vpop.f32.mrf.mxu0
  %v1052 = vadd.f32 0.0, %v1051
  %v1053 = vpop.f32.mrf.mxu0
  %1054 = vmatprep.mubr.f32.mxu0 0.0
  %1055 = vmatmul.mubr.f32.gmra.mxu0 %v979
  %v1056 = vpop.f32.mrf.mxu0
  %v1057 = vadd.f32 0.0, %v1056
  %v1058 = vpop.f32.mrf.mxu0
  %1059 = vdwg.mxu0
  %1060 = vrot.lane.b32.xlu0 %v806, 96
  %v1061 = vpop.permute.xlu0 %1060
  %1062 = vrot.lane.b32.xlu0 %v809, 96
  %v1063 = vpop.permute.xlu0 %1062
  %v1064 = vsel %vm976, %v806, 0
  %v1066 = vsel %vm976, %v809, 0
  %v1068 = vsel %vm976, %v1061, 0
  %v1070 = vsel %vm976, %v1063, 0
  %1072 = vmatprep.subr.mxu0 0.0
  %1073 = vmatpush1.xpose.msra.mxu0 0.0
  %1074 = vmatprep.subr.mxu0 0.0
  %1075 = vmatpush1.xpose.msra.mxu0 0.0
  %1076 = vmatprep.subr.mxu0 0.0
  %1077 = vmatpush1.xpose.msra.mxu0 0.0
  %1078 = vmatprep.subr.mxu0 0.0
  %1079 = vmatpush1.xpose.msra.mxu0 0.0
  %1080 = vmatprep.subr.mxu0 0.0
  %1081 = vmatpush1.xpose.msra.mxu0 0.0
  %1082 = vmatprep.subr.mxu0 0.0
  %1083 = vmatpush1.xpose.msra.mxu0 0.0
  %1084 = vmatprep.subr.mxu0 0.0
  %1085 = vmatpush1.xpose.msra.mxu0 0.0
  %1086 = vmatprep.subr.mxu0 0.0
  %1087 = vmatpush1.xpose.msra.mxu0 0.0
  %1088 = vmatprep.subr.mxu0 0.0
  %1089 = vmatpush1.xpose.msra.mxu0 0.0
  %1090 = vmatprep.subr.mxu0 0.0
  %1091 = vmatpush1.xpose.msra.mxu0 0.0
  %1092 = vmatprep.subr.mxu0 0.0
  %1093 = vmatpush1.xpose.msra.mxu0 0.0
  %1094 = vmatprep.subr.mxu0 0.0
  %1095 = vmatpush1.xpose.msra.mxu0 0.0
  %1096 = vmatprep.subr.mxu0 0.0
  %1097 = vmatpush1.xpose.msra.mxu0 0.0
  %1098 = vmatprep.subr.mxu0 0.0
  %1099 = vmatpush1.xpose.msra.mxu0 0.0
  %1100 = vmatprep.subr.mxu0 0.0
  %1101 = vmatpush1.xpose.msra.mxu0 %v1070
  %1102 = vmatprep.subr.mxu0 0.0
  %1103 = vmatpush1.xpose.msra.mxu0 %v1068
  %1104 = vmatprep.subr.mxu0 0.0
  %1105 = vmatpush2.xpose.msra.mxu0 0.0
  %1106 = vmatprep.subr.mxu0 0.0
  %1107 = vmatpush2.xpose.msra.mxu0 0.0
  %1108 = vmatprep.subr.mxu0 0.0
  %1109 = vmatpush2.xpose.msra.mxu0 0.0
  %1110 = vmatprep.subr.mxu0 0.0
  %1111 = vmatpush2.xpose.msra.mxu0 0.0
  %1112 = vmatprep.subr.mxu0 0.0
  %1113 = vmatpush2.xpose.msra.mxu0 0.0
  %1114 = vmatprep.subr.mxu0 0.0
  %1115 = vmatpush2.xpose.msra.mxu0 0.0
  %1116 = vmatprep.subr.mxu0 0.0
  %1117 = vmatpush2.xpose.msra.mxu0 0.0
  %1118 = vmatprep.subr.mxu0 0.0
  %1119 = vmatpush2.xpose.msra.mxu0 0.0
  %1120 = vmatprep.subr.mxu0 0.0
  %1121 = vmatpush2.xpose.msra.mxu0 0.0
  %1122 = vmatprep.subr.mxu0 0.0
  %1123 = vmatpush2.xpose.msra.mxu0 0.0
  %1124 = vmatprep.subr.mxu0 0.0
  %1125 = vmatpush2.xpose.msra.mxu0 0.0
  %1126 = vmatprep.subr.mxu0 0.0
  %1127 = vmatpush2.xpose.msra.mxu0 0.0
  %1128 = vmatprep.subr.mxu0 0.0
  %1129 = vmatpush2.xpose.msra.mxu0 0.0
  %1130 = vmatprep.subr.mxu0 0.0
  %1131 = vmatpush2.xpose.msra.mxu0 0.0
  %1132 = vmatprep.subr.mxu0 0.0
  %1133 = vmatpush2.xpose.msra.mxu0 0.0
  %1134 = vmatprep.subr.mxu0 0.0
  %1135 = vmatpush2.xpose.msra.mxu0 0.0
  %1136 = vmatprep.mubr.f32.mxu0 0.0
  %1137 = vmatmul.mubr.f32.gmra.mxu0 %v1064
  %v1138 = vpop.f32.mrf.mxu0
  %v1139 = vadd.f32 0.0, %v1138
  %v1140 = vpop.f32.mrf.mxu0
  %1141 = vmatprep.mubr.f32.mxu0 0.0
  %1142 = vmatmul.mubr.f32.gmra.mxu0 %v1066
  %v1143 = vpop.f32.mrf.mxu0
  %v1144 = vadd.f32 0.0, %v1143
  %v1145 = vpop.f32.mrf.mxu0
  %1146 = vdwg.mxu0
  %1147 = vrot.lane.b32.xlu0 %v814, 96
  %v1148 = vpop.permute.xlu0 %1147
  %1149 = vrot.lane.b32.xlu0 %v817, 96
  %v1150 = vpop.permute.xlu0 %1149
  %v1151 = vsel %vm976, %v814, 0
  %v1153 = vsel %vm976, %v817, 0
  %v1155 = vsel %vm976, %v1148, 0
  %v1157 = vsel %vm976, %v1150, 0
  %1159 = vmatprep.subr.mxu0 0.0
  %1160 = vmatpush1.xpose.msra.mxu0 0.0
  %1161 = vmatprep.subr.mxu0 0.0
  %1162 = vmatpush1.xpose.msra.mxu0 0.0
  %1163 = vmatprep.subr.mxu0 0.0
  %1164 = vmatpush1.xpose.msra.mxu0 0.0
  %1165 = vmatprep.subr.mxu0 0.0
  %1166 = vmatpush1.xpose.msra.mxu0 0.0
  %1167 = vmatprep.subr.mxu0 0.0
  %1168 = vmatpush1.xpose.msra.mxu0 0.0
  %1169 = vmatprep.subr.mxu0 0.0
  %1170 = vmatpush1.xpose.msra.mxu0 0.0
  %1171 = vmatprep.subr.mxu0 0.0
  %1172 = vmatpush1.xpose.msra.mxu0 0.0
  %1173 = vmatprep.subr.mxu0 0.0
  %1174 = vmatpush1.xpose.msra.mxu0 0.0
  %1175 = vmatprep.subr.mxu0 0.0
  %1176 = vmatpush1.xpose.msra.mxu0 0.0
  %1177 = vmatprep.subr.mxu0 0.0
  %1178 = vmatpush1.xpose.msra.mxu0 0.0
  %1179 = vmatprep.subr.mxu0 0.0
  %1180 = vmatpush1.xpose.msra.mxu0 0.0
  %1181 = vmatprep.subr.mxu0 0.0
  %1182 = vmatpush1.xpose.msra.mxu0 0.0
  %1183 = vmatprep.subr.mxu0 0.0
  %1184 = vmatpush1.xpose.msra.mxu0 0.0
  %1185 = vmatprep.subr.mxu0 0.0
  %1186 = vmatpush1.xpose.msra.mxu0 0.0
  %1187 = vmatprep.subr.mxu0 0.0
  %1188 = vmatpush1.xpose.msra.mxu0 %v1157
  %1189 = vmatprep.subr.mxu0 0.0
  %1190 = vmatpush1.xpose.msra.mxu0 %v1155
  %1191 = vmatprep.subr.mxu0 0.0
  %1192 = vmatpush2.xpose.msra.mxu0 0.0
  %1193 = vmatprep.subr.mxu0 0.0
  %1194 = vmatpush2.xpose.msra.mxu0 0.0
  %1195 = vmatprep.subr.mxu0 0.0
  %1196 = vmatpush2.xpose.msra.mxu0 0.0
  %1197 = vmatprep.subr.mxu0 0.0
  %1198 = vmatpush2.xpose.msra.mxu0 0.0
  %1199 = vmatprep.subr.mxu0 0.0
  %1200 = vmatpush2.xpose.msra.mxu0 0.0
  %1201 = vmatprep.subr.mxu0 0.0
  %1202 = vmatpush2.xpose.msra.mxu0 0.0
  %1203 = vmatprep.subr.mxu0 0.0
  %1204 = vmatpush2.xpose.msra.mxu0 0.0
  %1205 = vmatprep.subr.mxu0 0.0
  %1206 = vmatpush2.xpose.msra.mxu0 0.0
  %1207 = vmatprep.subr.mxu0 0.0
  %1208 = vmatpush2.xpose.msra.mxu0 0.0
  %1209 = vmatprep.subr.mxu0 0.0
  %1210 = vmatpush2.xpose.msra.mxu0 0.0
  %1211 = vmatprep.subr.mxu0 0.0
  %1212 = vmatpush2.xpose.msra.mxu0 0.0
  %1213 = vmatprep.subr.mxu0 0.0
  %1214 = vmatpush2.xpose.msra.mxu0 0.0
  %1215 = vmatprep.subr.mxu0 0.0
  %1216 = vmatpush2.xpose.msra.mxu0 0.0
  %1217 = vmatprep.subr.mxu0 0.0
  %1218 = vmatpush2.xpose.msra.mxu0 0.0
  %1219 = vmatprep.subr.mxu0 0.0
  %1220 = vmatpush2.xpose.msra.mxu0 0.0
  %1221 = vmatprep.subr.mxu0 0.0
  %1222 = vmatpush2.xpose.msra.mxu0 0.0
  %1223 = vmatprep.mubr.f32.mxu0 0.0
  %1224 = vmatmul.mubr.f32.gmra.mxu0 %v1151
  %v1225 = vpop.f32.mrf.mxu0
  %v1226 = vadd.f32 0.0, %v1225
  %v1227 = vpop.f32.mrf.mxu0
  %1228 = vmatprep.mubr.f32.mxu0 0.0
  %1229 = vmatmul.mubr.f32.gmra.mxu0 %v1153
  %v1230 = vpop.f32.mrf.mxu0
  %v1231 = vadd.f32 0.0, %v1230
  %v1232 = vpop.f32.mrf.mxu0
  %1233 = vdwg.mxu0
  %1234 = vrot.lane.b32.xlu0 %v822, 96
  %v1235 = vpop.permute.xlu0 %1234
  %1236 = vrot.lane.b32.xlu0 %v825, 96
  %v1237 = vpop.permute.xlu0 %1236
  %v1238 = vsel %vm976, %v822, 0
  %v1240 = vsel %vm976, %v825, 0
  %v1242 = vsel %vm976, %v1235, 0
  %v1244 = vsel %vm976, %v1237, 0
  %1246 = vmatprep.subr.mxu0 0.0
  %1247 = vmatpush1.xpose.msra.mxu0 0.0
  %1248 = vmatprep.subr.mxu0 0.0
  %1249 = vmatpush1.xpose.msra.mxu0 0.0
  %1250 = vmatprep.subr.mxu0 0.0
  %1251 = vmatpush1.xpose.msra.mxu0 0.0
  %1252 = vmatprep.subr.mxu0 0.0
  %1253 = vmatpush1.xpose.msra.mxu0 0.0
  %1254 = vmatprep.subr.mxu0 0.0
  %1255 = vmatpush1.xpose.msra.mxu0 0.0
  %1256 = vmatprep.subr.mxu0 0.0
  %1257 = vmatpush1.xpose.msra.mxu0 0.0
  %1258 = vmatprep.subr.mxu0 0.0
  %1259 = vmatpush1.xpose.msra.mxu0 0.0
  %1260 = vmatprep.subr.mxu0 0.0
  %1261 = vmatpush1.xpose.msra.mxu0 0.0
  %1262 = vmatprep.subr.mxu0 0.0
  %1263 = vmatpush1.xpose.msra.mxu0 0.0
  %1264 = vmatprep.subr.mxu0 0.0
  %1265 = vmatpush1.xpose.msra.mxu0 0.0
  %1266 = vmatprep.subr.mxu0 0.0
  %1267 = vmatpush1.xpose.msra.mxu0 0.0
  %1268 = vmatprep.subr.mxu0 0.0
  %1269 = vmatpush1.xpose.msra.mxu0 0.0
  %1270 = vmatprep.subr.mxu0 0.0
  %1271 = vmatpush1.xpose.msra.mxu0 0.0
  %1272 = vmatprep.subr.mxu0 0.0
  %1273 = vmatpush1.xpose.msra.mxu0 0.0
  %1274 = vmatprep.subr.mxu0 0.0
  %1275 = vmatpush1.xpose.msra.mxu0 %v1244
  %1276 = vmatprep.subr.mxu0 0.0
  %1277 = vmatpush1.xpose.msra.mxu0 %v1242
  %1278 = vmatprep.subr.mxu0 0.0
  %1279 = vmatpush2.xpose.msra.mxu0 0.0
  %1280 = vmatprep.subr.mxu0 0.0
  %1281 = vmatpush2.xpose.msra.mxu0 0.0
  %1282 = vmatprep.subr.mxu0 0.0
  %1283 = vmatpush2.xpose.msra.mxu0 0.0
  %1284 = vmatprep.subr.mxu0 0.0
  %1285 = vmatpush2.xpose.msra.mxu0 0.0
  %1286 = vmatprep.subr.mxu0 0.0
  %1287 = vmatpush2.xpose.msra.mxu0 0.0
  %1288 = vmatprep.subr.mxu0 0.0
  %1289 = vmatpush2.xpose.msra.mxu0 0.0
  %1290 = vmatprep.subr.mxu0 0.0
  %1291 = vmatpush2.xpose.msra.mxu0 0.0
  %1292 = vmatprep.subr.mxu0 0.0
  %1293 = vmatpush2.xpose.msra.mxu0 0.0
  %1294 = vmatprep.subr.mxu0 0.0
  %1295 = vmatpush2.xpose.msra.mxu0 0.0
  %1296 = vmatprep.subr.mxu0 0.0
  %1297 = vmatpush2.xpose.msra.mxu0 0.0
  %1298 = vmatprep.subr.mxu0 0.0
  %1299 = vmatpush2.xpose.msra.mxu0 0.0
  %1300 = vmatprep.subr.mxu0 0.0
  %1301 = vmatpush2.xpose.msra.mxu0 0.0
  %1302 = vmatprep.subr.mxu0 0.0
  %1303 = vmatpush2.xpose.msra.mxu0 0.0
  %1304 = vmatprep.subr.mxu0 0.0
  %1305 = vmatpush2.xpose.msra.mxu0 0.0
  %1306 = vmatprep.subr.mxu0 0.0
  %1307 = vmatpush2.xpose.msra.mxu0 0.0
  %1308 = vmatprep.subr.mxu0 0.0
  %1309 = vmatpush2.xpose.msra.mxu0 0.0
  %1310 = vmatprep.mubr.f32.mxu0 0.0
  %1311 = vmatmul.mubr.f32.gmra.mxu0 %v1238
  %v1312 = vpop.f32.mrf.mxu0
  %v1313 = vadd.f32 0.0, %v1312
  %v1314 = vpop.f32.mrf.mxu0
  %1315 = vmatprep.mubr.f32.mxu0 0.0
  %1316 = vmatmul.mubr.f32.gmra.mxu0 %v1240
  %v1317 = vpop.f32.mrf.mxu0
  %v1318 = vadd.f32 0.0, %v1317
  %v1319 = vpop.f32.mrf.mxu0
  %1320 = vdwg.mxu0
  %1321 = vrot.lane.b32.xlu0 %v830, 96
  %v1322 = vpop.permute.xlu0 %1321
  %1323 = vrot.lane.b32.xlu0 %v833, 96
  %v1324 = vpop.permute.xlu0 %1323
  %v1325 = vsel %vm976, %v830, 0
  %v1327 = vsel %vm976, %v833, 0
  %v1329 = vsel %vm976, %v1322, 0
  %v1331 = vsel %vm976, %v1324, 0
  %1333 = vmatprep.subr.mxu0 0.0
  %1334 = vmatpush1.xpose.msra.mxu0 0.0
  %1335 = vmatprep.subr.mxu0 0.0
  %1336 = vmatpush1.xpose.msra.mxu0 0.0
  %1337 = vmatprep.subr.mxu0 0.0
  %1338 = vmatpush1.xpose.msra.mxu0 0.0
  %1339 = vmatprep.subr.mxu0 0.0
  %1340 = vmatpush1.xpose.msra.mxu0 0.0
  %1341 = vmatprep.subr.mxu0 0.0
  %1342 = vmatpush1.xpose.msra.mxu0 0.0
  %1343 = vmatprep.subr.mxu0 0.0
  %1344 = vmatpush1.xpose.msra.mxu0 0.0
  %1345 = vmatprep.subr.mxu0 0.0
  %1346 = vmatpush1.xpose.msra.mxu0 0.0
  %1347 = vmatprep.subr.mxu0 0.0
  %1348 = vmatpush1.xpose.msra.mxu0 0.0
  %1349 = vmatprep.subr.mxu0 0.0
  %1350 = vmatpush1.xpose.msra.mxu0 0.0
  %1351 = vmatprep.subr.mxu0 0.0
  %1352 = vmatpush1.xpose.msra.mxu0 0.0
  %1353 = vmatprep.subr.mxu0 0.0
  %1354 = vmatpush1.xpose.msra.mxu0 0.0
  %1355 = vmatprep.subr.mxu0 0.0
  %1356 = vmatpush1.xpose.msra.mxu0 0.0
  %1357 = vmatprep.subr.mxu0 0.0
  %1358 = vmatpush1.xpose.msra.mxu0 0.0
  %1359 = vmatprep.subr.mxu0 0.0
  %1360 = vmatpush1.xpose.msra.mxu0 0.0
  %1361 = vmatprep.subr.mxu0 0.0
  %1362 = vmatpush1.xpose.msra.mxu0 %v1331
  %1363 = vmatprep.subr.mxu0 0.0
  %1364 = vmatpush1.xpose.msra.mxu0 %v1329
  %1365 = vmatprep.subr.mxu0 0.0
  %1366 = vmatpush2.xpose.msra.mxu0 0.0
  %1367 = vmatprep.subr.mxu0 0.0
  %1368 = vmatpush2.xpose.msra.mxu0 0.0
  %1369 = vmatprep.subr.mxu0 0.0
  %1370 = vmatpush2.xpose.msra.mxu0 0.0
  %1371 = vmatprep.subr.mxu0 0.0
  %1372 = vmatpush2.xpose.msra.mxu0 0.0
  %1373 = vmatprep.subr.mxu0 0.0
  %1374 = vmatpush2.xpose.msra.mxu0 0.0
  %1375 = vmatprep.subr.mxu0 0.0
  %1376 = vmatpush2.xpose.msra.mxu0 0.0
  %1377 = vmatprep.subr.mxu0 0.0
  %1378 = vmatpush2.xpose.msra.mxu0 0.0
  %1379 = vmatprep.subr.mxu0 0.0
  %1380 = vmatpush2.xpose.msra.mxu0 0.0
  %1381 = vmatprep.subr.mxu0 0.0
  %1382 = vmatpush2.xpose.msra.mxu0 0.0
  %1383 = vmatprep.subr.mxu0 0.0
  %1384 = vmatpush2.xpose.msra.mxu0 0.0
  %1385 = vmatprep.subr.mxu0 0.0
  %1386 = vmatpush2.xpose.msra.mxu0 0.0
  %1387 = vmatprep.subr.mxu0 0.0
  %1388 = vmatpush2.xpose.msra.mxu0 0.0
  %1389 = vmatprep.subr.mxu0 0.0
  %1390 = vmatpush2.xpose.msra.mxu0 0.0
  %1391 = vmatprep.subr.mxu0 0.0
  %1392 = vmatpush2.xpose.msra.mxu0 0.0
  %1393 = vmatprep.subr.mxu0 0.0
  %1394 = vmatpush2.xpose.msra.mxu0 0.0
  %1395 = vmatprep.subr.mxu0 0.0
  %1396 = vmatpush2.xpose.msra.mxu0 0.0
  %1397 = vmatprep.mubr.f32.mxu0 0.0
  %1398 = vmatmul.mubr.f32.gmra.mxu0 %v1325
  %v1399 = vpop.f32.mrf.mxu0
  %v1400 = vadd.f32 0.0, %v1399
  %v1401 = vpop.f32.mrf.mxu0
  %1402 = vmatprep.mubr.f32.mxu0 0.0
  %1403 = vmatmul.mubr.f32.gmra.mxu0 %v1327
  %v1404 = vpop.f32.mrf.mxu0
  %v1405 = vadd.f32 0.0, %v1404
  %v1406 = vpop.f32.mrf.mxu0
  %1407 = vdwg.mxu0
  %1408 = vrot.lane.b32.xlu0 %v838, 96
  %v1409 = vpop.permute.xlu0 %1408
  %1410 = vrot.lane.b32.xlu0 %v841, 96
  %v1411 = vpop.permute.xlu0 %1410
  %v1412 = vsel %vm976, %v838, 0
  %v1414 = vsel %vm976, %v841, 0
  %v1416 = vsel %vm976, %v1409, 0
  %v1418 = vsel %vm976, %v1411, 0
  %1420 = vmatprep.subr.mxu0 0.0
  %1421 = vmatpush1.xpose.msra.mxu0 0.0
  %1422 = vmatprep.subr.mxu0 0.0
  %1423 = vmatpush1.xpose.msra.mxu0 0.0
  %1424 = vmatprep.subr.mxu0 0.0
  %1425 = vmatpush1.xpose.msra.mxu0 0.0
  %1426 = vmatprep.subr.mxu0 0.0
  %1427 = vmatpush1.xpose.msra.mxu0 0.0
  %1428 = vmatprep.subr.mxu0 0.0
  %1429 = vmatpush1.xpose.msra.mxu0 0.0
  %1430 = vmatprep.subr.mxu0 0.0
  %1431 = vmatpush1.xpose.msra.mxu0 0.0
  %1432 = vmatprep.subr.mxu0 0.0
  %1433 = vmatpush1.xpose.msra.mxu0 0.0
  %1434 = vmatprep.subr.mxu0 0.0
  %1435 = vmatpush1.xpose.msra.mxu0 0.0
  %1436 = vmatprep.subr.mxu0 0.0
  %1437 = vmatpush1.xpose.msra.mxu0 0.0
  %1438 = vmatprep.subr.mxu0 0.0
  %1439 = vmatpush1.xpose.msra.mxu0 0.0
  %1440 = vmatprep.subr.mxu0 0.0
  %1441 = vmatpush1.xpose.msra.mxu0 0.0
  %1442 = vmatprep.subr.mxu0 0.0
  %1443 = vmatpush1.xpose.msra.mxu0 0.0
  %1444 = vmatprep.subr.mxu0 0.0
  %1445 = vmatpush1.xpose.msra.mxu0 0.0
  %1446 = vmatprep.subr.mxu0 0.0
  %1447 = vmatpush1.xpose.msra.mxu0 0.0
  %1448 = vmatprep.subr.mxu0 0.0
  %1449 = vmatpush1.xpose.msra.mxu0 %v1418
  %1450 = vmatprep.subr.mxu0 0.0
  %1451 = vmatpush1.xpose.msra.mxu0 %v1416
  %1452 = vmatprep.subr.mxu0 0.0
  %1453 = vmatpush2.xpose.msra.mxu0 0.0
  %1454 = vmatprep.subr.mxu0 0.0
  %1455 = vmatpush2.xpose.msra.mxu0 0.0
  %1456 = vmatprep.subr.mxu0 0.0
  %1457 = vmatpush2.xpose.msra.mxu0 0.0
  %1458 = vmatprep.subr.mxu0 0.0
  %1459 = vmatpush2.xpose.msra.mxu0 0.0
  %1460 = vmatprep.subr.mxu0 0.0
  %1461 = vmatpush2.xpose.msra.mxu0 0.0
  %1462 = vmatprep.subr.mxu0 0.0
  %1463 = vmatpush2.xpose.msra.mxu0 0.0
  %1464 = vmatprep.subr.mxu0 0.0
  %1465 = vmatpush2.xpose.msra.mxu0 0.0
  %1466 = vmatprep.subr.mxu0 0.0
  %1467 = vmatpush2.xpose.msra.mxu0 0.0
  %1468 = vmatprep.subr.mxu0 0.0
  %1469 = vmatpush2.xpose.msra.mxu0 0.0
  %1470 = vmatprep.subr.mxu0 0.0
  %1471 = vmatpush2.xpose.msra.mxu0 0.0
  %1472 = vmatprep.subr.mxu0 0.0
  %1473 = vmatpush2.xpose.msra.mxu0 0.0
  %1474 = vmatprep.subr.mxu0 0.0
  %1475 = vmatpush2.xpose.msra.mxu0 0.0
  %1476 = vmatprep.subr.mxu0 0.0
  %1477 = vmatpush2.xpose.msra.mxu0 0.0
  %1478 = vmatprep.subr.mxu0 0.0
  %1479 = vmatpush2.xpose.msra.mxu0 0.0
  %1480 = vmatprep.subr.mxu0 0.0
  %1481 = vmatpush2.xpose.msra.mxu0 0.0
  %1482 = vmatprep.subr.mxu0 0.0
  %1483 = vmatpush2.xpose.msra.mxu0 0.0
  %1484 = vmatprep.mubr.f32.mxu0 0.0
  %1485 = vmatmul.mubr.f32.gmra.mxu0 %v1412
  %v1486 = vpop.f32.mrf.mxu0
  %v1487 = vadd.f32 0.0, %v1486
  %v1488 = vpop.f32.mrf.mxu0
  %1489 = vmatprep.mubr.f32.mxu0 0.0
  %1490 = vmatmul.mubr.f32.gmra.mxu0 %v1414
  %v1491 = vpop.f32.mrf.mxu0
  %v1492 = vadd.f32 0.0, %v1491
  %v1493 = vpop.f32.mrf.mxu0
  %1494 = vdwg.mxu0
  %1495 = vrot.lane.b32.xlu0 %v846, 96
  %v1496 = vpop.permute.xlu0 %1495
  %1497 = vrot.lane.b32.xlu0 %v849, 96
  %v1498 = vpop.permute.xlu0 %1497
  %v1499 = vsel %vm976, %v846, 0
  %v1501 = vsel %vm976, %v849, 0
  %v1503 = vsel %vm976, %v1496, 0
  %v1505 = vsel %vm976, %v1498, 0
  %1507 = vmatprep.subr.mxu0 0.0
  %1508 = vmatpush1.xpose.msra.mxu0 0.0
  %1509 = vmatprep.subr.mxu0 0.0
  %1510 = vmatpush1.xpose.msra.mxu0 0.0
  %1511 = vmatprep.subr.mxu0 0.0
  %1512 = vmatpush1.xpose.msra.mxu0 0.0
  %1513 = vmatprep.subr.mxu0 0.0
  %1514 = vmatpush1.xpose.msra.mxu0 0.0
  %1515 = vmatprep.subr.mxu0 0.0
  %1516 = vmatpush1.xpose.msra.mxu0 0.0
  %1517 = vmatprep.subr.mxu0 0.0
  %1518 = vmatpush1.xpose.msra.mxu0 0.0
  %1519 = vmatprep.subr.mxu0 0.0
  %1520 = vmatpush1.xpose.msra.mxu0 0.0
  %1521 = vmatprep.subr.mxu0 0.0
  %1522 = vmatpush1.xpose.msra.mxu0 0.0
  %1523 = vmatprep.subr.mxu0 0.0
  %1524 = vmatpush1.xpose.msra.mxu0 0.0
  %1525 = vmatprep.subr.mxu0 0.0
  %1526 = vmatpush1.xpose.msra.mxu0 0.0
  %1527 = vmatprep.subr.mxu0 0.0
  %1528 = vmatpush1.xpose.msra.mxu0 0.0
  %1529 = vmatprep.subr.mxu0 0.0
  %1530 = vmatpush1.xpose.msra.mxu0 0.0
  %1531 = vmatprep.subr.mxu0 0.0
  %1532 = vmatpush1.xpose.msra.mxu0 0.0
  %1533 = vmatprep.subr.mxu0 0.0
  %1534 = vmatpush1.xpose.msra.mxu0 0.0
  %1535 = vmatprep.subr.mxu0 0.0
  %1536 = vmatpush1.xpose.msra.mxu0 %v1505
  %1537 = vmatprep.subr.mxu0 0.0
  %1538 = vmatpush1.xpose.msra.mxu0 %v1503
  %1539 = vmatprep.subr.mxu0 0.0
  %1540 = vmatpush2.xpose.msra.mxu0 0.0
  %1541 = vmatprep.subr.mxu0 0.0
  %1542 = vmatpush2.xpose.msra.mxu0 0.0
  %1543 = vmatprep.subr.mxu0 0.0
  %1544 = vmatpush2.xpose.msra.mxu0 0.0
  %1545 = vmatprep.subr.mxu0 0.0
  %1546 = vmatpush2.xpose.msra.mxu0 0.0
  %1547 = vmatprep.subr.mxu0 0.0
  %1548 = vmatpush2.xpose.msra.mxu0 0.0
  %1549 = vmatprep.subr.mxu0 0.0
  %1550 = vmatpush2.xpose.msra.mxu0 0.0
  %1551 = vmatprep.subr.mxu0 0.0
  %1552 = vmatpush2.xpose.msra.mxu0 0.0
  %1553 = vmatprep.subr.mxu0 0.0
  %1554 = vmatpush2.xpose.msra.mxu0 0.0
  %1555 = vmatprep.subr.mxu0 0.0
  %1556 = vmatpush2.xpose.msra.mxu0 0.0
  %1557 = vmatprep.subr.mxu0 0.0
  %1558 = vmatpush2.xpose.msra.mxu0 0.0
  %1559 = vmatprep.subr.mxu0 0.0
  %1560 = vmatpush2.xpose.msra.mxu0 0.0
  %1561 = vmatprep.subr.mxu0 0.0
  %1562 = vmatpush2.xpose.msra.mxu0 0.0
  %1563 = vmatprep.subr.mxu0 0.0
  %1564 = vmatpush2.xpose.msra.mxu0 0.0
  %1565 = vmatprep.subr.mxu0 0.0
  %1566 = vmatpush2.xpose.msra.mxu0 0.0
  %1567 = vmatprep.subr.mxu0 0.0
  %1568 = vmatpush2.xpose.msra.mxu0 0.0
  %1569 = vmatprep.subr.mxu0 0.0
  %1570 = vmatpush2.xpose.msra.mxu0 0.0
  %1571 = vmatprep.mubr.f32.mxu0 0.0
  %1572 = vmatmul.mubr.f32.gmra.mxu0 %v1499
  %v1573 = vpop.f32.mrf.mxu0
  %v1574 = vadd.f32 0.0, %v1573
  %v1575 = vpop.f32.mrf.mxu0
  %1576 = vmatprep.mubr.f32.mxu0 0.0
  %1577 = vmatmul.mubr.f32.gmra.mxu0 %v1501
  %v1578 = vpop.f32.mrf.mxu0
  %v1579 = vadd.f32 0.0, %v1578
  %v1580 = vpop.f32.mrf.mxu0
  %1581 = vdwg.mxu0
  %1582 = vrot.lane.b32.xlu0 %v854, 96
  %v1583 = vpop.permute.xlu0 %1582
  %1584 = vrot.lane.b32.xlu0 %v857, 96
  %v1585 = vpop.permute.xlu0 %1584
  %v1586 = vsel %vm976, %v854, 0
  %v1588 = vsel %vm976, %v857, 0
  %v1590 = vsel %vm976, %v1583, 0
  %v1592 = vsel %vm976, %v1585, 0
  %1594 = vmatprep.subr.mxu0 0.0
  %1595 = vmatpush1.xpose.msra.mxu0 0.0
  %1596 = vmatprep.subr.mxu0 0.0
  %1597 = vmatpush1.xpose.msra.mxu0 0.0
  %1598 = vmatprep.subr.mxu0 0.0
  %1599 = vmatpush1.xpose.msra.mxu0 0.0
  %1600 = vmatprep.subr.mxu0 0.0
  %1601 = vmatpush1.xpose.msra.mxu0 0.0
  %1602 = vmatprep.subr.mxu0 0.0
  %1603 = vmatpush1.xpose.msra.mxu0 0.0
  %1604 = vmatprep.subr.mxu0 0.0
  %1605 = vmatpush1.xpose.msra.mxu0 0.0
  %1606 = vmatprep.subr.mxu0 0.0
  %1607 = vmatpush1.xpose.msra.mxu0 0.0
  %1608 = vmatprep.subr.mxu0 0.0
  %1609 = vmatpush1.xpose.msra.mxu0 0.0
  %1610 = vmatprep.subr.mxu0 0.0
  %1611 = vmatpush1.xpose.msra.mxu0 0.0
  %1612 = vmatprep.subr.mxu0 0.0
  %1613 = vmatpush1.xpose.msra.mxu0 0.0
  %1614 = vmatprep.subr.mxu0 0.0
  %1615 = vmatpush1.xpose.msra.mxu0 0.0
  %1616 = vmatprep.subr.mxu0 0.0
  %1617 = vmatpush1.xpose.msra.mxu0 0.0
  %1618 = vmatprep.subr.mxu0 0.0
  %1619 = vmatpush1.xpose.msra.mxu0 0.0
  %1620 = vmatprep.subr.mxu0 0.0
  %1621 = vmatpush1.xpose.msra.mxu0 0.0
  %1622 = vmatprep.subr.mxu0 0.0
  %1623 = vmatpush1.xpose.msra.mxu0 %v1592
  %1624 = vmatprep.subr.mxu0 0.0
  %1625 = vmatpush1.xpose.msra.mxu0 %v1590
  %1626 = vmatprep.subr.mxu0 0.0
  %1627 = vmatpush2.xpose.msra.mxu0 0.0
  %1628 = vmatprep.subr.mxu0 0.0
  %1629 = vmatpush2.xpose.msra.mxu0 0.0
  %1630 = vmatprep.subr.mxu0 0.0
  %1631 = vmatpush2.xpose.msra.mxu0 0.0
  %1632 = vmatprep.subr.mxu0 0.0
  %1633 = vmatpush2.xpose.msra.mxu0 0.0
  %1634 = vmatprep.subr.mxu0 0.0
  %1635 = vmatpush2.xpose.msra.mxu0 0.0
  %1636 = vmatprep.subr.mxu0 0.0
  %1637 = vmatpush2.xpose.msra.mxu0 0.0
  %1638 = vmatprep.subr.mxu0 0.0
  %1639 = vmatpush2.xpose.msra.mxu0 0.0
  %1640 = vmatprep.subr.mxu0 0.0
  %1641 = vmatpush2.xpose.msra.mxu0 0.0
  %1642 = vmatprep.subr.mxu0 0.0
  %1643 = vmatpush2.xpose.msra.mxu0 0.0
  %1644 = vmatprep.subr.mxu0 0.0
  %1645 = vmatpush2.xpose.msra.mxu0 0.0
  %1646 = vmatprep.subr.mxu0 0.0
  %1647 = vmatpush2.xpose.msra.mxu0 0.0
  %1648 = vmatprep.subr.mxu0 0.0
  %1649 = vmatpush2.xpose.msra.mxu0 0.0
  %1650 = vmatprep.subr.mxu0 0.0
  %1651 = vmatpush2.xpose.msra.mxu0 0.0
  %1652 = vmatprep.subr.mxu0 0.0
  %1653 = vmatpush2.xpose.msra.mxu0 0.0
  %1654 = vmatprep.subr.mxu0 0.0
  %1655 = vmatpush2.xpose.msra.mxu0 0.0
  %1656 = vmatprep.subr.mxu0 0.0
  %1657 = vmatpush2.xpose.msra.mxu0 0.0
  %1658 = vmatprep.mubr.f32.mxu0 0.0
  %1659 = vmatmul.mubr.f32.gmra.mxu0 %v1586
  %v1660 = vpop.f32.mrf.mxu0
  %v1661 = vadd.f32 0.0, %v1660
  %v1662 = vpop.f32.mrf.mxu0
  %1663 = vmatprep.mubr.f32.mxu0 0.0
  %1664 = vmatmul.mubr.f32.gmra.mxu0 %v1588
  %v1665 = vpop.f32.mrf.mxu0
  %v1666 = vadd.f32 0.0, %v1665
  %v1667 = vpop.f32.mrf.mxu0
  %1668 = vdwg.mxu0
  %1669 = vrot.lane.b32.xlu0 %v877, 96
  %v1670 = vpop.permute.xlu0 %1669
  %1671 = vrot.lane.b32.xlu0 %v879, 96
  %v1672 = vpop.permute.xlu0 %1671
  %v1673 = vsel %vm976, %v877, 0
  %v1675 = vsel %vm976, %v879, 0
  %v1677 = vsel %vm976, %v1670, 0
  %v1679 = vsel %vm976, %v1672, 0
  %1681 = vmatprep.subr.mxu0 0.0
  %1682 = vmatpush1.xpose.msra.mxu0 0.0
  %1683 = vmatprep.subr.mxu0 0.0
  %1684 = vmatpush1.xpose.msra.mxu0 0.0
  %1685 = vmatprep.subr.mxu0 0.0
  %1686 = vmatpush1.xpose.msra.mxu0 0.0
  %1687 = vmatprep.subr.mxu0 0.0
  %1688 = vmatpush1.xpose.msra.mxu0 0.0
  %1689 = vmatprep.subr.mxu0 0.0
  %1690 = vmatpush1.xpose.msra.mxu0 0.0
  %1691 = vmatprep.subr.mxu0 0.0
  %1692 = vmatpush1.xpose.msra.mxu0 0.0
  %1693 = vmatprep.subr.mxu0 0.0
  %1694 = vmatpush1.xpose.msra.mxu0 0.0
  %1695 = vmatprep.subr.mxu0 0.0
  %1696 = vmatpush1.xpose.msra.mxu0 0.0
  %1697 = vmatprep.subr.mxu0 0.0
  %1698 = vmatpush1.xpose.msra.mxu0 0.0
  %1699 = vmatprep.subr.mxu0 0.0
  %1700 = vmatpush1.xpose.msra.mxu0 0.0
  %1701 = vmatprep.subr.mxu0 0.0
  %1702 = vmatpush1.xpose.msra.mxu0 0.0
  %1703 = vmatprep.subr.mxu0 0.0
  %1704 = vmatpush1.xpose.msra.mxu0 0.0
  %1705 = vmatprep.subr.mxu0 0.0
  %1706 = vmatpush1.xpose.msra.mxu0 0.0
  %1707 = vmatprep.subr.mxu0 0.0
  %1708 = vmatpush1.xpose.msra.mxu0 0.0
  %1709 = vmatprep.subr.mxu0 0.0
  %1710 = vmatpush1.xpose.msra.mxu0 %v1679
  %1711 = vmatprep.subr.mxu0 0.0
  %1712 = vmatpush1.xpose.msra.mxu0 %v1677
  %1713 = vmatprep.subr.mxu0 0.0
  %1714 = vmatpush2.xpose.msra.mxu0 0.0
  %1715 = vmatprep.subr.mxu0 0.0
  %1716 = vmatpush2.xpose.msra.mxu0 0.0
  %1717 = vmatprep.subr.mxu0 0.0
  %1718 = vmatpush2.xpose.msra.mxu0 0.0
  %1719 = vmatprep.subr.mxu0 0.0
  %1720 = vmatpush2.xpose.msra.mxu0 0.0
  %1721 = vmatprep.subr.mxu0 0.0
  %1722 = vmatpush2.xpose.msra.mxu0 0.0
  %1723 = vmatprep.subr.mxu0 0.0
  %1724 = vmatpush2.xpose.msra.mxu0 0.0
  %1725 = vmatprep.subr.mxu0 0.0
  %1726 = vmatpush2.xpose.msra.mxu0 0.0
  %1727 = vmatprep.subr.mxu0 0.0
  %1728 = vmatpush2.xpose.msra.mxu0 0.0
  %1729 = vmatprep.subr.mxu0 0.0
  %1730 = vmatpush2.xpose.msra.mxu0 0.0
  %1731 = vmatprep.subr.mxu0 0.0
  %1732 = vmatpush2.xpose.msra.mxu0 0.0
  %1733 = vmatprep.subr.mxu0 0.0
  %1734 = vmatpush2.xpose.msra.mxu0 0.0
  %1735 = vmatprep.subr.mxu0 0.0
  %1736 = vmatpush2.xpose.msra.mxu0 0.0
  %1737 = vmatprep.subr.mxu0 0.0
  %1738 = vmatpush2.xpose.msra.mxu0 0.0
  %1739 = vmatprep.subr.mxu0 0.0
  %1740 = vmatpush2.xpose.msra.mxu0 0.0
  %1741 = vmatprep.subr.mxu0 0.0
  %1742 = vmatpush2.xpose.msra.mxu0 0.0
  %1743 = vmatprep.subr.mxu0 0.0
  %1744 = vmatpush2.xpose.msra.mxu0 0.0
  %1745 = vmatprep.mubr.f32.mxu0 0.0
  %1746 = vmatmul.mubr.f32.gmra.mxu0 %v1673
  %v1747 = vpop.f32.mrf.mxu0
  %v1748 = vadd.f32 0.0, %v1747
  %v1749 = vpop.f32.mrf.mxu0
  %1750 = vmatprep.mubr.f32.mxu0 0.0
  %1751 = vmatmul.mubr.f32.gmra.mxu0 %v1675
  %v1752 = vpop.f32.mrf.mxu0
  %v1753 = vadd.f32 0.0, %v1752
  %v1754 = vpop.f32.mrf.mxu0
  %1755 = vdwg.mxu0
  %1756 = vrot.lane.b32.xlu0 %v881, 96
  %v1757 = vpop.permute.xlu0 %1756
  %1758 = vrot.lane.b32.xlu0 %v883, 96
  %v1759 = vpop.permute.xlu0 %1758
  %v1760 = vsel %vm976, %v881, 0
  %v1762 = vsel %vm976, %v883, 0
  %v1764 = vsel %vm976, %v1757, 0
  %v1766 = vsel %vm976, %v1759, 0
  %1768 = vmatprep.subr.mxu0 0.0
  %1769 = vmatpush1.xpose.msra.mxu0 0.0
  %1770 = vmatprep.subr.mxu0 0.0
  %1771 = vmatpush1.xpose.msra.mxu0 0.0
  %1772 = vmatprep.subr.mxu0 0.0
  %1773 = vmatpush1.xpose.msra.mxu0 0.0
  %1774 = vmatprep.subr.mxu0 0.0
  %1775 = vmatpush1.xpose.msra.mxu0 0.0
  %1776 = vmatprep.subr.mxu0 0.0
  %1777 = vmatpush1.xpose.msra.mxu0 0.0
  %1778 = vmatprep.subr.mxu0 0.0
  %1779 = vmatpush1.xpose.msra.mxu0 0.0
  %1780 = vmatprep.subr.mxu0 0.0
  %1781 = vmatpush1.xpose.msra.mxu0 0.0
  %1782 = vmatprep.subr.mxu0 0.0
  %1783 = vmatpush1.xpose.msra.mxu0 0.0
  %1784 = vmatprep.subr.mxu0 0.0
  %1785 = vmatpush1.xpose.msra.mxu0 0.0
  %1786 = vmatprep.subr.mxu0 0.0
  %1787 = vmatpush1.xpose.msra.mxu0 0.0
  %1788 = vmatprep.subr.mxu0 0.0
  %1789 = vmatpush1.xpose.msra.mxu0 0.0
  %1790 = vmatprep.subr.mxu0 0.0
  %1791 = vmatpush1.xpose.msra.mxu0 0.0
  %1792 = vmatprep.subr.mxu0 0.0
  %1793 = vmatpush1.xpose.msra.mxu0 0.0
  %1794 = vmatprep.subr.mxu0 0.0
  %1795 = vmatpush1.xpose.msra.mxu0 0.0
  %1796 = vmatprep.subr.mxu0 0.0
  %1797 = vmatpush1.xpose.msra.mxu0 %v1766
  %1798 = vmatprep.subr.mxu0 0.0
  %1799 = vmatpush1.xpose.msra.mxu0 %v1764
  %1800 = vmatprep.subr.mxu0 0.0
  %1801 = vmatpush2.xpose.msra.mxu0 0.0
  %1802 = vmatprep.subr.mxu0 0.0
  %1803 = vmatpush2.xpose.msra.mxu0 0.0
  %1804 = vmatprep.subr.mxu0 0.0
  %1805 = vmatpush2.xpose.msra.mxu0 0.0
  %1806 = vmatprep.subr.mxu0 0.0
  %1807 = vmatpush2.xpose.msra.mxu0 0.0
  %1808 = vmatprep.subr.mxu0 0.0
  %1809 = vmatpush2.xpose.msra.mxu0 0.0
  %1810 = vmatprep.subr.mxu0 0.0
  %1811 = vmatpush2.xpose.msra.mxu0 0.0
  %1812 = vmatprep.subr.mxu0 0.0
  %1813 = vmatpush2.xpose.msra.mxu0 0.0
  %1814 = vmatprep.subr.mxu0 0.0
  %1815 = vmatpush2.xpose.msra.mxu0 0.0
  %1816 = vmatprep.subr.mxu0 0.0
  %1817 = vmatpush2.xpose.msra.mxu0 0.0
  %1818 = vmatprep.subr.mxu0 0.0
  %1819 = vmatpush2.xpose.msra.mxu0 0.0
  %1820 = vmatprep.subr.mxu0 0.0
  %1821 = vmatpush2.xpose.msra.mxu0 0.0
  %1822 = vmatprep.subr.mxu0 0.0
  %1823 = vmatpush2.xpose.msra.mxu0 0.0
  %1824 = vmatprep.subr.mxu0 0.0
  %1825 = vmatpush2.xpose.msra.mxu0 0.0
  %1826 = vmatprep.subr.mxu0 0.0
  %1827 = vmatpush2.xpose.msra.mxu0 0.0
  %1828 = vmatprep.subr.mxu0 0.0
  %1829 = vmatpush2.xpose.msra.mxu0 0.0
  %1830 = vmatprep.subr.mxu0 0.0
  %1831 = vmatpush2.xpose.msra.mxu0 0.0
  %1832 = vmatprep.mubr.f32.mxu0 0.0
  %1833 = vmatmul.mubr.f32.gmra.mxu0 %v1760
  %v1834 = vpop.f32.mrf.mxu0
  %v1835 = vadd.f32 0.0, %v1834
  %v1836 = vpop.f32.mrf.mxu0
  %1837 = vmatprep.mubr.f32.mxu0 0.0
  %1838 = vmatmul.mubr.f32.gmra.mxu0 %v1762
  %v1839 = vpop.f32.mrf.mxu0
  %v1840 = vadd.f32 0.0, %v1839
  %v1841 = vpop.f32.mrf.mxu0
  %1842 = vdwg.mxu0
  %1843 = vrot.lane.b32.xlu0 %v885, 96
  %v1844 = vpop.permute.xlu0 %1843
  %1845 = vrot.lane.b32.xlu0 %v887, 96
  %v1846 = vpop.permute.xlu0 %1845
  %v1847 = vsel %vm976, %v885, 0
  %v1849 = vsel %vm976, %v887, 0
  %v1851 = vsel %vm976, %v1844, 0
  %v1853 = vsel %vm976, %v1846, 0
  %1855 = vmatprep.subr.mxu0 0.0
  %1856 = vmatpush1.xpose.msra.mxu0 0.0
  %1857 = vmatprep.subr.mxu0 0.0
  %1858 = vmatpush1.xpose.msra.mxu0 0.0
  %1859 = vmatprep.subr.mxu0 0.0
  %1860 = vmatpush1.xpose.msra.mxu0 0.0
  %1861 = vmatprep.subr.mxu0 0.0
  %1862 = vmatpush1.xpose.msra.mxu0 0.0
  %1863 = vmatprep.subr.mxu0 0.0
  %1864 = vmatpush1.xpose.msra.mxu0 0.0
  %1865 = vmatprep.subr.mxu0 0.0
  %1866 = vmatpush1.xpose.msra.mxu0 0.0
  %1867 = vmatprep.subr.mxu0 0.0
  %1868 = vmatpush1.xpose.msra.mxu0 0.0
  %1869 = vmatprep.subr.mxu0 0.0
  %1870 = vmatpush1.xpose.msra.mxu0 0.0
  %1871 = vmatprep.subr.mxu0 0.0
  %1872 = vmatpush1.xpose.msra.mxu0 0.0
  %1873 = vmatprep.subr.mxu0 0.0
  %1874 = vmatpush1.xpose.msra.mxu0 0.0
  %1875 = vmatprep.subr.mxu0 0.0
  %1876 = vmatpush1.xpose.msra.mxu0 0.0
  %1877 = vmatprep.subr.mxu0 0.0
  %1878 = vmatpush1.xpose.msra.mxu0 0.0
  %1879 = vmatprep.subr.mxu0 0.0
  %1880 = vmatpush1.xpose.msra.mxu0 0.0
  %1881 = vmatprep.subr.mxu0 0.0
  %1882 = vmatpush1.xpose.msra.mxu0 0.0
  %1883 = vmatprep.subr.mxu0 0.0
  %1884 = vmatpush1.xpose.msra.mxu0 %v1853
  %1885 = vmatprep.subr.mxu0 0.0
  %1886 = vmatpush1.xpose.msra.mxu0 %v1851
  %1887 = vmatprep.subr.mxu0 0.0
  %1888 = vmatpush2.xpose.msra.mxu0 0.0
  %1889 = vmatprep.subr.mxu0 0.0
  %1890 = vmatpush2.xpose.msra.mxu0 0.0
  %1891 = vmatprep.subr.mxu0 0.0
  %1892 = vmatpush2.xpose.msra.mxu0 0.0
  %1893 = vmatprep.subr.mxu0 0.0
  %1894 = vmatpush2.xpose.msra.mxu0 0.0
  %1895 = vmatprep.subr.mxu0 0.0
  %1896 = vmatpush2.xpose.msra.mxu0 0.0
  %1897 = vmatprep.subr.mxu0 0.0
  %1898 = vmatpush2.xpose.msra.mxu0 0.0
  %1899 = vmatprep.subr.mxu0 0.0
  %1900 = vmatpush2.xpose.msra.mxu0 0.0
  %1901 = vmatprep.subr.mxu0 0.0
  %1902 = vmatpush2.xpose.msra.mxu0 0.0
  %1903 = vmatprep.subr.mxu0 0.0
  %1904 = vmatpush2.xpose.msra.mxu0 0.0
  %1905 = vmatprep.subr.mxu0 0.0
  %1906 = vmatpush2.xpose.msra.mxu0 0.0
  %1907 = vmatprep.subr.mxu0 0.0
  %1908 = vmatpush2.xpose.msra.mxu0 0.0
  %1909 = vmatprep.subr.mxu0 0.0
  %1910 = vmatpush2.xpose.msra.mxu0 0.0
  %1911 = vmatprep.subr.mxu0 0.0
  %1912 = vmatpush2.xpose.msra.mxu0 0.0
  %1913 = vmatprep.subr.mxu0 0.0
  %1914 = vmatpush2.xpose.msra.mxu0 0.0
  %1915 = vmatprep.subr.mxu0 0.0
  %1916 = vmatpush2.xpose.msra.mxu0 0.0
  %1917 = vmatprep.subr.mxu0 0.0
  %1918 = vmatpush2.xpose.msra.mxu0 0.0
  %1919 = vmatprep.mubr.f32.mxu0 0.0
  %1920 = vmatmul.mubr.f32.gmra.mxu0 %v1847
  %v1921 = vpop.f32.mrf.mxu0
  %v1922 = vadd.f32 0.0, %v1921
  %v1923 = vpop.f32.mrf.mxu0
  %1924 = vmatprep.mubr.f32.mxu0 0.0
  %1925 = vmatmul.mubr.f32.gmra.mxu0 %v1849
  %v1926 = vpop.f32.mrf.mxu0
  %v1927 = vadd.f32 0.0, %v1926
  %v1928 = vpop.f32.mrf.mxu0
  %1929 = vdwg.mxu0
  %1930 = vrot.lane.b32.xlu0 %v889, 96
  %v1931 = vpop.permute.xlu0 %1930
  %1932 = vrot.lane.b32.xlu0 %v891, 96
  %v1933 = vpop.permute.xlu0 %1932
  %v1934 = vsel %vm976, %v889, 0
  %v1936 = vsel %vm976, %v891, 0
  %v1938 = vsel %vm976, %v1931, 0
  %v1940 = vsel %vm976, %v1933, 0
  %1942 = vmatprep.subr.mxu0 0.0
  %1943 = vmatpush1.xpose.msra.mxu0 0.0
  %1944 = vmatprep.subr.mxu0 0.0
  %1945 = vmatpush1.xpose.msra.mxu0 0.0
  %1946 = vmatprep.subr.mxu0 0.0
  %1947 = vmatpush1.xpose.msra.mxu0 0.0
  %1948 = vmatprep.subr.mxu0 0.0
  %1949 = vmatpush1.xpose.msra.mxu0 0.0
  %1950 = vmatprep.subr.mxu0 0.0
  %1951 = vmatpush1.xpose.msra.mxu0 0.0
  %1952 = vmatprep.subr.mxu0 0.0
  %1953 = vmatpush1.xpose.msra.mxu0 0.0
  %1954 = vmatprep.subr.mxu0 0.0
  %1955 = vmatpush1.xpose.msra.mxu0 0.0
  %1956 = vmatprep.subr.mxu0 0.0
  %1957 = vmatpush1.xpose.msra.mxu0 0.0
  %1958 = vmatprep.subr.mxu0 0.0
  %1959 = vmatpush1.xpose.msra.mxu0 0.0
  %1960 = vmatprep.subr.mxu0 0.0
  %1961 = vmatpush1.xpose.msra.mxu0 0.0
  %1962 = vmatprep.subr.mxu0 0.0
  %1963 = vmatpush1.xpose.msra.mxu0 0.0
  %1964 = vmatprep.subr.mxu0 0.0
  %1965 = vmatpush1.xpose.msra.mxu0 0.0
  %1966 = vmatprep.subr.mxu0 0.0
  %1967 = vmatpush1.xpose.msra.mxu0 0.0
  %1968 = vmatprep.subr.mxu0 0.0
  %1969 = vmatpush1.xpose.msra.mxu0 0.0
  %1970 = vmatprep.subr.mxu0 0.0
  %1971 = vmatpush1.xpose.msra.mxu0 %v1940
  %1972 = vmatprep.subr.mxu0 0.0
  %1973 = vmatpush1.xpose.msra.mxu0 %v1938
  %1974 = vmatprep.subr.mxu0 0.0
  %1975 = vmatpush2.xpose.msra.mxu0 0.0
  %1976 = vmatprep.subr.mxu0 0.0
  %1977 = vmatpush2.xpose.msra.mxu0 0.0
  %1978 = vmatprep.subr.mxu0 0.0
  %1979 = vmatpush2.xpose.msra.mxu0 0.0
  %1980 = vmatprep.subr.mxu0 0.0
  %1981 = vmatpush2.xpose.msra.mxu0 0.0
  %1982 = vmatprep.subr.mxu0 0.0
  %1983 = vmatpush2.xpose.msra.mxu0 0.0
  %1984 = vmatprep.subr.mxu0 0.0
  %1985 = vmatpush2.xpose.msra.mxu0 0.0
  %1986 = vmatprep.subr.mxu0 0.0
  %1987 = vmatpush2.xpose.msra.mxu0 0.0
  %1988 = vmatprep.subr.mxu0 0.0
  %1989 = vmatpush2.xpose.msra.mxu0 0.0
  %1990 = vmatprep.subr.mxu0 0.0
  %1991 = vmatpush2.xpose.msra.mxu0 0.0
  %1992 = vmatprep.subr.mxu0 0.0
  %1993 = vmatpush2.xpose.msra.mxu0 0.0
  %1994 = vmatprep.subr.mxu0 0.0
  %1995 = vmatpush2.xpose.msra.mxu0 0.0
  %1996 = vmatprep.subr.mxu0 0.0
  %1997 = vmatpush2.xpose.msra.mxu0 0.0
  %1998 = vmatprep.subr.mxu0 0.0
  %1999 = vmatpush2.xpose.msra.mxu0 0.0
  %2000 = vmatprep.subr.mxu0 0.0
  %2001 = vmatpush2.xpose.msra.mxu0 0.0
  %2002 = vmatprep.subr.mxu0 0.0
  %2003 = vmatpush2.xpose.msra.mxu0 0.0
  %2004 = vmatprep.subr.mxu0 0.0
  %2005 = vmatpush2.xpose.msra.mxu0 0.0
  %2006 = vmatprep.mubr.f32.mxu0 0.0
  %2007 = vmatmul.mubr.f32.gmra.mxu0 %v1934
  %v2008 = vpop.f32.mrf.mxu0
  %v2009 = vadd.f32 0.0, %v2008
  %v2010 = vpop.f32.mrf.mxu0
  %2011 = vmatprep.mubr.f32.mxu0 0.0
  %2012 = vmatmul.mubr.f32.gmra.mxu0 %v1936
  %v2013 = vpop.f32.mrf.mxu0
  %v2014 = vadd.f32 0.0, %v2013
  %v2015 = vpop.f32.mrf.mxu0
  %2016 = vdwg.mxu0
  %2017 = vrot.lane.b32.xlu0 %v893, 96
  %v2018 = vpop.permute.xlu0 %2017
  %2019 = vrot.lane.b32.xlu0 %v895, 96
  %v2020 = vpop.permute.xlu0 %2019
  %v2021 = vsel %vm976, %v893, 0
  %v2023 = vsel %vm976, %v895, 0
  %v2025 = vsel %vm976, %v2018, 0
  %v2027 = vsel %vm976, %v2020, 0
  %2029 = vmatprep.subr.mxu0 0.0
  %2030 = vmatpush1.xpose.msra.mxu0 0.0
  %2031 = vmatprep.subr.mxu0 0.0
  %2032 = vmatpush1.xpose.msra.mxu0 0.0
  %2033 = vmatprep.subr.mxu0 0.0
  %2034 = vmatpush1.xpose.msra.mxu0 0.0
  %2035 = vmatprep.subr.mxu0 0.0
  %2036 = vmatpush1.xpose.msra.mxu0 0.0
  %2037 = vmatprep.subr.mxu0 0.0
  %2038 = vmatpush1.xpose.msra.mxu0 0.0
  %2039 = vmatprep.subr.mxu0 0.0
  %2040 = vmatpush1.xpose.msra.mxu0 0.0
  %2041 = vmatprep.subr.mxu0 0.0
  %2042 = vmatpush1.xpose.msra.mxu0 0.0
  %2043 = vmatprep.subr.mxu0 0.0
  %2044 = vmatpush1.xpose.msra.mxu0 0.0
  %2045 = vmatprep.subr.mxu0 0.0
  %2046 = vmatpush1.xpose.msra.mxu0 0.0
  %2047 = vmatprep.subr.mxu0 0.0
  %2048 = vmatpush1.xpose.msra.mxu0 0.0
  %2049 = vmatprep.subr.mxu0 0.0
  %2050 = vmatpush1.xpose.msra.mxu0 0.0
  %2051 = vmatprep.subr.mxu0 0.0
  %2052 = vmatpush1.xpose.msra.mxu0 0.0
  %2053 = vmatprep.subr.mxu0 0.0
  %2054 = vmatpush1.xpose.msra.mxu0 0.0
  %2055 = vmatprep.subr.mxu0 0.0
  %2056 = vmatpush1.xpose.msra.mxu0 0.0
  %2057 = vmatprep.subr.mxu0 0.0
  %2058 = vmatpush1.xpose.msra.mxu0 %v2027
  %2059 = vmatprep.subr.mxu0 0.0
  %2060 = vmatpush1.xpose.msra.mxu0 %v2025
  %2061 = vmatprep.subr.mxu0 0.0
  %2062 = vmatpush2.xpose.msra.mxu0 0.0
  %2063 = vmatprep.subr.mxu0 0.0
  %2064 = vmatpush2.xpose.msra.mxu0 0.0
  %2065 = vmatprep.subr.mxu0 0.0
  %2066 = vmatpush2.xpose.msra.mxu0 0.0
  %2067 = vmatprep.subr.mxu0 0.0
  %2068 = vmatpush2.xpose.msra.mxu0 0.0
  %2069 = vmatprep.subr.mxu0 0.0
  %2070 = vmatpush2.xpose.msra.mxu0 0.0
  %2071 = vmatprep.subr.mxu0 0.0
  %2072 = vmatpush2.xpose.msra.mxu0 0.0
  %2073 = vmatprep.subr.mxu0 0.0
  %2074 = vmatpush2.xpose.msra.mxu0 0.0
  %2075 = vmatprep.subr.mxu0 0.0
  %2076 = vmatpush2.xpose.msra.mxu0 0.0
  %2077 = vmatprep.subr.mxu0 0.0
  %2078 = vmatpush2.xpose.msra.mxu0 0.0
  %2079 = vmatprep.subr.mxu0 0.0
  %2080 = vmatpush2.xpose.msra.mxu0 0.0
  %2081 = vmatprep.subr.mxu0 0.0
  %2082 = vmatpush2.xpose.msra.mxu0 0.0
  %2083 = vmatprep.subr.mxu0 0.0
  %2084 = vmatpush2.xpose.msra.mxu0 0.0
  %2085 = vmatprep.subr.mxu0 0.0
  %2086 = vmatpush2.xpose.msra.mxu0 0.0
  %2087 = vmatprep.subr.mxu0 0.0
  %2088 = vmatpush2.xpose.msra.mxu0 0.0
  %2089 = vmatprep.subr.mxu0 0.0
  %2090 = vmatpush2.xpose.msra.mxu0 0.0
  %2091 = vmatprep.subr.mxu0 0.0
  %2092 = vmatpush2.xpose.msra.mxu0 0.0
  %2093 = vmatprep.mubr.f32.mxu0 0.0
  %2094 = vmatmul.mubr.f32.gmra.mxu0 %v2021
  %v2095 = vpop.f32.mrf.mxu0
  %v2096 = vadd.f32 0.0, %v2095
  %v2097 = vpop.f32.mrf.mxu0
  %2098 = vmatprep.mubr.f32.mxu0 0.0
  %2099 = vmatmul.mubr.f32.gmra.mxu0 %v2023
  %v2100 = vpop.f32.mrf.mxu0
  %v2101 = vadd.f32 0.0, %v2100
  %v2102 = vpop.f32.mrf.mxu0
  %2103 = vdwg.mxu0
  %2104 = vrot.lane.b32.xlu0 %v897, 96
  %v2105 = vpop.permute.xlu0 %2104
  %2106 = vrot.lane.b32.xlu0 %v899, 96
  %v2107 = vpop.permute.xlu0 %2106
  %v2108 = vsel %vm976, %v897, 0
  %v2110 = vsel %vm976, %v899, 0
  %v2112 = vsel %vm976, %v2105, 0
  %v2114 = vsel %vm976, %v2107, 0
  %2116 = vmatprep.subr.mxu0 0.0
  %2117 = vmatpush1.xpose.msra.mxu0 0.0
  %2118 = vmatprep.subr.mxu0 0.0
  %2119 = vmatpush1.xpose.msra.mxu0 0.0
  %2120 = vmatprep.subr.mxu0 0.0
  %2121 = vmatpush1.xpose.msra.mxu0 0.0
  %2122 = vmatprep.subr.mxu0 0.0
  %2123 = vmatpush1.xpose.msra.mxu0 0.0
  %2124 = vmatprep.subr.mxu0 0.0
  %2125 = vmatpush1.xpose.msra.mxu0 0.0
  %2126 = vmatprep.subr.mxu0 0.0
  %2127 = vmatpush1.xpose.msra.mxu0 0.0
  %2128 = vmatprep.subr.mxu0 0.0
  %2129 = vmatpush1.xpose.msra.mxu0 0.0
  %2130 = vmatprep.subr.mxu0 0.0
  %2131 = vmatpush1.xpose.msra.mxu0 0.0
  %2132 = vmatprep.subr.mxu0 0.0
  %2133 = vmatpush1.xpose.msra.mxu0 0.0
  %2134 = vmatprep.subr.mxu0 0.0
  %2135 = vmatpush1.xpose.msra.mxu0 0.0
  %2136 = vmatprep.subr.mxu0 0.0
  %2137 = vmatpush1.xpose.msra.mxu0 0.0
  %2138 = vmatprep.subr.mxu0 0.0
  %2139 = vmatpush1.xpose.msra.mxu0 0.0
  %2140 = vmatprep.subr.mxu0 0.0
  %2141 = vmatpush1.xpose.msra.mxu0 0.0
  %2142 = vmatprep.subr.mxu0 0.0
  %2143 = vmatpush1.xpose.msra.mxu0 0.0
  %2144 = vmatprep.subr.mxu0 0.0
  %2145 = vmatpush1.xpose.msra.mxu0 %v2114
  %2146 = vmatprep.subr.mxu0 0.0
  %2147 = vmatpush1.xpose.msra.mxu0 %v2112
  %2148 = vmatprep.subr.mxu0 0.0
  %2149 = vmatpush2.xpose.msra.mxu0 0.0
  %2150 = vmatprep.subr.mxu0 0.0
  %2151 = vmatpush2.xpose.msra.mxu0 0.0
  %2152 = vmatprep.subr.mxu0 0.0
  %2153 = vmatpush2.xpose.msra.mxu0 0.0
  %2154 = vmatprep.subr.mxu0 0.0
  %2155 = vmatpush2.xpose.msra.mxu0 0.0
  %2156 = vmatprep.subr.mxu0 0.0
  %2157 = vmatpush2.xpose.msra.mxu0 0.0
  %2158 = vmatprep.subr.mxu0 0.0
  %2159 = vmatpush2.xpose.msra.mxu0 0.0
  %2160 = vmatprep.subr.mxu0 0.0
  %2161 = vmatpush2.xpose.msra.mxu0 0.0
  %2162 = vmatprep.subr.mxu0 0.0
  %2163 = vmatpush2.xpose.msra.mxu0 0.0
  %2164 = vmatprep.subr.mxu0 0.0
  %2165 = vmatpush2.xpose.msra.mxu0 0.0
  %2166 = vmatprep.subr.mxu0 0.0
  %2167 = vmatpush2.xpose.msra.mxu0 0.0
  %2168 = vmatprep.subr.mxu0 0.0
  %2169 = vmatpush2.xpose.msra.mxu0 0.0
  %2170 = vmatprep.subr.mxu0 0.0
  %2171 = vmatpush2.xpose.msra.mxu0 0.0
  %2172 = vmatprep.subr.mxu0 0.0
  %2173 = vmatpush2.xpose.msra.mxu0 0.0
  %2174 = vmatprep.subr.mxu0 0.0
  %2175 = vmatpush2.xpose.msra.mxu0 0.0
  %2176 = vmatprep.subr.mxu0 0.0
  %2177 = vmatpush2.xpose.msra.mxu0 0.0
  %2178 = vmatprep.subr.mxu0 0.0
  %2179 = vmatpush2.xpose.msra.mxu0 0.0
  %2180 = vmatprep.mubr.f32.mxu0 0.0
  %2181 = vmatmul.mubr.f32.gmra.mxu0 %v2108
  %v2182 = vpop.f32.mrf.mxu0
  %v2183 = vadd.f32 0.0, %v2182
  %v2184 = vpop.f32.mrf.mxu0
  %2185 = vmatprep.mubr.f32.mxu0 0.0
  %2186 = vmatmul.mubr.f32.gmra.mxu0 %v2110
  %v2187 = vpop.f32.mrf.mxu0
  %v2188 = vadd.f32 0.0, %v2187
  %v2189 = vpop.f32.mrf.mxu0
  %2190 = vdwg.mxu0
  %2191 = vrot.lane.b32.xlu0 %v901, 96
  %v2192 = vpop.permute.xlu0 %2191
  %2193 = vrot.lane.b32.xlu0 %v903, 96
  %v2194 = vpop.permute.xlu0 %2193
  %v2195 = vsel %vm976, %v901, 0
  %v2197 = vsel %vm976, %v903, 0
  %v2199 = vsel %vm976, %v2192, 0
  %v2201 = vsel %vm976, %v2194, 0
  %2203 = vmatprep.subr.mxu0 0.0
  %2204 = vmatpush1.xpose.msra.mxu0 0.0
  %2205 = vmatprep.subr.mxu0 0.0
  %2206 = vmatpush1.xpose.msra.mxu0 0.0
  %2207 = vmatprep.subr.mxu0 0.0
  %2208 = vmatpush1.xpose.msra.mxu0 0.0
  %2209 = vmatprep.subr.mxu0 0.0
  %2210 = vmatpush1.xpose.msra.mxu0 0.0
  %2211 = vmatprep.subr.mxu0 0.0
  %2212 = vmatpush1.xpose.msra.mxu0 0.0
  %2213 = vmatprep.subr.mxu0 0.0
  %2214 = vmatpush1.xpose.msra.mxu0 0.0
  %2215 = vmatprep.subr.mxu0 0.0
  %2216 = vmatpush1.xpose.msra.mxu0 0.0
  %2217 = vmatprep.subr.mxu0 0.0
  %2218 = vmatpush1.xpose.msra.mxu0 0.0
  %2219 = vmatprep.subr.mxu0 0.0
  %2220 = vmatpush1.xpose.msra.mxu0 0.0
  %2221 = vmatprep.subr.mxu0 0.0
  %2222 = vmatpush1.xpose.msra.mxu0 0.0
  %2223 = vmatprep.subr.mxu0 0.0
  %2224 = vmatpush1.xpose.msra.mxu0 0.0
  %2225 = vmatprep.subr.mxu0 0.0
  %2226 = vmatpush1.xpose.msra.mxu0 0.0
  %2227 = vmatprep.subr.mxu0 0.0
  %2228 = vmatpush1.xpose.msra.mxu0 0.0
  %2229 = vmatprep.subr.mxu0 0.0
  %2230 = vmatpush1.xpose.msra.mxu0 0.0
  %2231 = vmatprep.subr.mxu0 0.0
  %2232 = vmatpush1.xpose.msra.mxu0 %v2201
  %2233 = vmatprep.subr.mxu0 0.0
  %2234 = vmatpush1.xpose.msra.mxu0 %v2199
  %2235 = vmatprep.subr.mxu0 0.0
  %2236 = vmatpush2.xpose.msra.mxu0 0.0
  %2237 = vmatprep.subr.mxu0 0.0
  %2238 = vmatpush2.xpose.msra.mxu0 0.0
  %2239 = vmatprep.subr.mxu0 0.0
  %2240 = vmatpush2.xpose.msra.mxu0 0.0
  %2241 = vmatprep.subr.mxu0 0.0
  %2242 = vmatpush2.xpose.msra.mxu0 0.0
  %2243 = vmatprep.subr.mxu0 0.0
  %2244 = vmatpush2.xpose.msra.mxu0 0.0
  %2245 = vmatprep.subr.mxu0 0.0
  %2246 = vmatpush2.xpose.msra.mxu0 0.0
  %2247 = vmatprep.subr.mxu0 0.0
  %2248 = vmatpush2.xpose.msra.mxu0 0.0
  %2249 = vmatprep.subr.mxu0 0.0
  %2250 = vmatpush2.xpose.msra.mxu0 0.0
  %2251 = vmatprep.subr.mxu0 0.0
  %2252 = vmatpush2.xpose.msra.mxu0 0.0
  %2253 = vmatprep.subr.mxu0 0.0
  %2254 = vmatpush2.xpose.msra.mxu0 0.0
  %2255 = vmatprep.subr.mxu0 0.0
  %2256 = vmatpush2.xpose.msra.mxu0 0.0
  %2257 = vmatprep.subr.mxu0 0.0
  %2258 = vmatpush2.xpose.msra.mxu0 0.0
  %2259 = vmatprep.subr.mxu0 0.0
  %2260 = vmatpush2.xpose.msra.mxu0 0.0
  %2261 = vmatprep.subr.mxu0 0.0
  %2262 = vmatpush2.xpose.msra.mxu0 0.0
  %2263 = vmatprep.subr.mxu0 0.0
  %2264 = vmatpush2.xpose.msra.mxu0 0.0
  %2265 = vmatprep.subr.mxu0 0.0
  %2266 = vmatpush2.xpose.msra.mxu0 0.0
  %2267 = vmatprep.mubr.f32.mxu0 0.0
  %2268 = vmatmul.mubr.f32.gmra.mxu0 %v2195
  %v2269 = vpop.f32.mrf.mxu0
  %v2270 = vadd.f32 0.0, %v2269
  %v2271 = vpop.f32.mrf.mxu0
  %2272 = vmatprep.mubr.f32.mxu0 0.0
  %2273 = vmatmul.mubr.f32.gmra.mxu0 %v2197
  %v2274 = vpop.f32.mrf.mxu0
  %v2275 = vadd.f32 0.0, %v2274
  %v2276 = vpop.f32.mrf.mxu0
  %2277 = vdwg.mxu0
  %2278 = vrot.lane.b32.xlu0 %v905, 96
  %v2279 = vpop.permute.xlu0 %2278
  %2280 = vrot.lane.b32.xlu0 %v907, 96
  %v2281 = vpop.permute.xlu0 %2280
  %v2282 = vsel %vm976, %v905, 0
  %v2284 = vsel %vm976, %v907, 0
  %v2286 = vsel %vm976, %v2279, 0
  %v2288 = vsel %vm976, %v2281, 0
  %2290 = vmatprep.subr.mxu0 0.0
  %2291 = vmatpush1.xpose.msra.mxu0 0.0
  %2292 = vmatprep.subr.mxu0 0.0
  %2293 = vmatpush1.xpose.msra.mxu0 0.0
  %2294 = vmatprep.subr.mxu0 0.0
  %2295 = vmatpush1.xpose.msra.mxu0 0.0
  %2296 = vmatprep.subr.mxu0 0.0
  %2297 = vmatpush1.xpose.msra.mxu0 0.0
  %2298 = vmatprep.subr.mxu0 0.0
  %2299 = vmatpush1.xpose.msra.mxu0 0.0
  %2300 = vmatprep.subr.mxu0 0.0
  %2301 = vmatpush1.xpose.msra.mxu0 0.0
  %2302 = vmatprep.subr.mxu0 0.0
  %2303 = vmatpush1.xpose.msra.mxu0 0.0
  %2304 = vmatprep.subr.mxu0 0.0
  %2305 = vmatpush1.xpose.msra.mxu0 0.0
  %2306 = vmatprep.subr.mxu0 0.0
  %2307 = vmatpush1.xpose.msra.mxu0 0.0
  %2308 = vmatprep.subr.mxu0 0.0
  %2309 = vmatpush1.xpose.msra.mxu0 0.0
  %2310 = vmatprep.subr.mxu0 0.0
  %2311 = vmatpush1.xpose.msra.mxu0 0.0
  %2312 = vmatprep.subr.mxu0 0.0
  %2313 = vmatpush1.xpose.msra.mxu0 0.0
  %2314 = vmatprep.subr.mxu0 0.0
  %2315 = vmatpush1.xpose.msra.mxu0 0.0
  %2316 = vmatprep.subr.mxu0 0.0
  %2317 = vmatpush1.xpose.msra.mxu0 0.0
  %2318 = vmatprep.subr.mxu0 0.0
  %2319 = vmatpush1.xpose.msra.mxu0 %v2288
  %2320 = vmatprep.subr.mxu0 0.0
  %2321 = vmatpush1.xpose.msra.mxu0 %v2286
  %2322 = vmatprep.subr.mxu0 0.0
  %2323 = vmatpush2.xpose.msra.mxu0 0.0
  %2324 = vmatprep.subr.mxu0 0.0
  %2325 = vmatpush2.xpose.msra.mxu0 0.0
  %2326 = vmatprep.subr.mxu0 0.0
  %2327 = vmatpush2.xpose.msra.mxu0 0.0
  %2328 = vmatprep.subr.mxu0 0.0
  %2329 = vmatpush2.xpose.msra.mxu0 0.0
  %2330 = vmatprep.subr.mxu0 0.0
  %2331 = vmatpush2.xpose.msra.mxu0 0.0
  %2332 = vmatprep.subr.mxu0 0.0
  %2333 = vmatpush2.xpose.msra.mxu0 0.0
  %2334 = vmatprep.subr.mxu0 0.0
  %2335 = vmatpush2.xpose.msra.mxu0 0.0
  %2336 = vmatprep.subr.mxu0 0.0
  %2337 = vmatpush2.xpose.msra.mxu0 0.0
  %2338 = vmatprep.subr.mxu0 0.0
  %2339 = vmatpush2.xpose.msra.mxu0 0.0
  %2340 = vmatprep.subr.mxu0 0.0
  %2341 = vmatpush2.xpose.msra.mxu0 0.0
  %2342 = vmatprep.subr.mxu0 0.0
  %2343 = vmatpush2.xpose.msra.mxu0 0.0
  %2344 = vmatprep.subr.mxu0 0.0
  %2345 = vmatpush2.xpose.msra.mxu0 0.0
  %2346 = vmatprep.subr.mxu0 0.0
  %2347 = vmatpush2.xpose.msra.mxu0 0.0
  %2348 = vmatprep.subr.mxu0 0.0
  %2349 = vmatpush2.xpose.msra.mxu0 0.0
  %2350 = vmatprep.subr.mxu0 0.0
  %2351 = vmatpush2.xpose.msra.mxu0 0.0
  %2352 = vmatprep.subr.mxu0 0.0
  %2353 = vmatpush2.xpose.msra.mxu0 0.0
  %2354 = vmatprep.mubr.f32.mxu0 0.0
  %2355 = vmatmul.mubr.f32.gmra.mxu0 %v2282
  %v2356 = vpop.f32.mrf.mxu0
  %v2357 = vadd.f32 0.0, %v2356
  %v2358 = vpop.f32.mrf.mxu0
  %2359 = vmatprep.mubr.f32.mxu0 0.0
  %2360 = vmatmul.mubr.f32.gmra.mxu0 %v2284
  %v2361 = vpop.f32.mrf.mxu0
  %v2362 = vadd.f32 0.0, %v2361
  %v2363 = vpop.f32.mrf.mxu0
  %2364 = vdwg.mxu0
  %2365 = vrot.lane.b32.xlu0 %v909, 96
  %v2366 = vpop.permute.xlu0 %2365
  %2367 = vrot.lane.b32.xlu0 %v911, 96
  %v2368 = vpop.permute.xlu0 %2367
  %v2369 = vsel %vm976, %v909, 0
  %v2371 = vsel %vm976, %v911, 0
  %v2373 = vsel %vm976, %v2366, 0
  %v2375 = vsel %vm976, %v2368, 0
  %2377 = vmatprep.subr.mxu0 0.0
  %2378 = vmatpush1.xpose.msra.mxu0 0.0
  %2379 = vmatprep.subr.mxu0 0.0
  %2380 = vmatpush1.xpose.msra.mxu0 0.0
  %2381 = vmatprep.subr.mxu0 0.0
  %2382 = vmatpush1.xpose.msra.mxu0 0.0
  %2383 = vmatprep.subr.mxu0 0.0
  %2384 = vmatpush1.xpose.msra.mxu0 0.0
  %2385 = vmatprep.subr.mxu0 0.0
  %2386 = vmatpush1.xpose.msra.mxu0 0.0
  %2387 = vmatprep.subr.mxu0 0.0
  %2388 = vmatpush1.xpose.msra.mxu0 0.0
  %2389 = vmatprep.subr.mxu0 0.0
  %2390 = vmatpush1.xpose.msra.mxu0 0.0
  %2391 = vmatprep.subr.mxu0 0.0
  %2392 = vmatpush1.xpose.msra.mxu0 0.0
  %2393 = vmatprep.subr.mxu0 0.0
  %2394 = vmatpush1.xpose.msra.mxu0 0.0
  %2395 = vmatprep.subr.mxu0 0.0
  %2396 = vmatpush1.xpose.msra.mxu0 0.0
  %2397 = vmatprep.subr.mxu0 0.0
  %2398 = vmatpush1.xpose.msra.mxu0 0.0
  %2399 = vmatprep.subr.mxu0 0.0
  %2400 = vmatpush1.xpose.msra.mxu0 0.0
  %2401 = vmatprep.subr.mxu0 0.0
  %2402 = vmatpush1.xpose.msra.mxu0 0.0
  %2403 = vmatprep.subr.mxu0 0.0
  %2404 = vmatpush1.xpose.msra.mxu0 0.0
  %2405 = vmatprep.subr.mxu0 0.0
  %2406 = vmatpush1.xpose.msra.mxu0 %v2375
  %2407 = vmatprep.subr.mxu0 0.0
  %2408 = vmatpush1.xpose.msra.mxu0 %v2373
  %2409 = vmatprep.subr.mxu0 0.0
  %2410 = vmatpush2.xpose.msra.mxu0 0.0
  %2411 = vmatprep.subr.mxu0 0.0
  %2412 = vmatpush2.xpose.msra.mxu0 0.0
  %2413 = vmatprep.subr.mxu0 0.0
  %2414 = vmatpush2.xpose.msra.mxu0 0.0
  %2415 = vmatprep.subr.mxu0 0.0
  %2416 = vmatpush2.xpose.msra.mxu0 0.0
  %2417 = vmatprep.subr.mxu0 0.0
  %2418 = vmatpush2.xpose.msra.mxu0 0.0
  %2419 = vmatprep.subr.mxu0 0.0
  %2420 = vmatpush2.xpose.msra.mxu0 0.0
  %2421 = vmatprep.subr.mxu0 0.0
  %2422 = vmatpush2.xpose.msra.mxu0 0.0
  %2423 = vmatprep.subr.mxu0 0.0
  %2424 = vmatpush2.xpose.msra.mxu0 0.0
  %2425 = vmatprep.subr.mxu0 0.0
  %2426 = vmatpush2.xpose.msra.mxu0 0.0
  %2427 = vmatprep.subr.mxu0 0.0
  %2428 = vmatpush2.xpose.msra.mxu0 0.0
  %2429 = vmatprep.subr.mxu0 0.0
  %2430 = vmatpush2.xpose.msra.mxu0 0.0
  %2431 = vmatprep.subr.mxu0 0.0
  %2432 = vmatpush2.xpose.msra.mxu0 0.0
  %2433 = vmatprep.subr.mxu0 0.0
  %2434 = vmatpush2.xpose.msra.mxu0 0.0
  %2435 = vmatprep.subr.mxu0 0.0
  %2436 = vmatpush2.xpose.msra.mxu0 0.0
  %2437 = vmatprep.subr.mxu0 0.0
  %2438 = vmatpush2.xpose.msra.mxu0 0.0
  %2439 = vmatprep.subr.mxu0 0.0
  %2440 = vmatpush2.xpose.msra.mxu0 0.0
  %2441 = vmatprep.mubr.f32.mxu0 0.0
  %2442 = vmatmul.mubr.f32.gmra.mxu0 %v2369
  %v2443 = vpop.f32.mrf.mxu0
  %v2444 = vadd.f32 0.0, %v2443
  %v2445 = vpop.f32.mrf.mxu0
  %2446 = vmatprep.mubr.f32.mxu0 0.0
  %2447 = vmatmul.mubr.f32.gmra.mxu0 %v2371
  %v2448 = vpop.f32.mrf.mxu0
  %v2449 = vadd.f32 0.0, %v2448
  %v2450 = vpop.f32.mrf.mxu0
  %2451 = vdwg.mxu0
  %2452 = vrot.lane.b32.xlu0 %v913, 96
  %v2453 = vpop.permute.xlu0 %2452
  %2454 = vrot.lane.b32.xlu0 %v915, 96
  %v2455 = vpop.permute.xlu0 %2454
  %v2456 = vsel %vm976, %v913, 0
  %v2458 = vsel %vm976, %v915, 0
  %v2460 = vsel %vm976, %v2453, 0
  %v2462 = vsel %vm976, %v2455, 0
  %2464 = vmatprep.subr.mxu0 0.0
  %2465 = vmatpush1.xpose.msra.mxu0 0.0
  %2466 = vmatprep.subr.mxu0 0.0
  %2467 = vmatpush1.xpose.msra.mxu0 0.0
  %2468 = vmatprep.subr.mxu0 0.0
  %2469 = vmatpush1.xpose.msra.mxu0 0.0
  %2470 = vmatprep.subr.mxu0 0.0
  %2471 = vmatpush1.xpose.msra.mxu0 0.0
  %2472 = vmatprep.subr.mxu0 0.0
  %2473 = vmatpush1.xpose.msra.mxu0 0.0
  %2474 = vmatprep.subr.mxu0 0.0
  %2475 = vmatpush1.xpose.msra.mxu0 0.0
  %2476 = vmatprep.subr.mxu0 0.0
  %2477 = vmatpush1.xpose.msra.mxu0 0.0
  %2478 = vmatprep.subr.mxu0 0.0
  %2479 = vmatpush1.xpose.msra.mxu0 0.0
  %2480 = vmatprep.subr.mxu0 0.0
  %2481 = vmatpush1.xpose.msra.mxu0 0.0
  %2482 = vmatprep.subr.mxu0 0.0
  %2483 = vmatpush1.xpose.msra.mxu0 0.0
  %2484 = vmatprep.subr.mxu0 0.0
  %2485 = vmatpush1.xpose.msra.mxu0 0.0
  %2486 = vmatprep.subr.mxu0 0.0
  %2487 = vmatpush1.xpose.msra.mxu0 0.0
  %2488 = vmatprep.subr.mxu0 0.0
  %2489 = vmatpush1.xpose.msra.mxu0 0.0
  %2490 = vmatprep.subr.mxu0 0.0
  %2491 = vmatpush1.xpose.msra.mxu0 0.0
  %2492 = vmatprep.subr.mxu0 0.0
  %2493 = vmatpush1.xpose.msra.mxu0 %v2462
  %2494 = vmatprep.subr.mxu0 0.0
  %2495 = vmatpush1.xpose.msra.mxu0 %v2460
  %2496 = vmatprep.subr.mxu0 0.0
  %2497 = vmatpush2.xpose.msra.mxu0 0.0
  %2498 = vmatprep.subr.mxu0 0.0
  %2499 = vmatpush2.xpose.msra.mxu0 0.0
  %2500 = vmatprep.subr.mxu0 0.0
  %2501 = vmatpush2.xpose.msra.mxu0 0.0
  %2502 = vmatprep.subr.mxu0 0.0
  %2503 = vmatpush2.xpose.msra.mxu0 0.0
  %2504 = vmatprep.subr.mxu0 0.0
  %2505 = vmatpush2.xpose.msra.mxu0 0.0
  %2506 = vmatprep.subr.mxu0 0.0
  %2507 = vmatpush2.xpose.msra.mxu0 0.0
  %2508 = vmatprep.subr.mxu0 0.0
  %2509 = vmatpush2.xpose.msra.mxu0 0.0
  %2510 = vmatprep.subr.mxu0 0.0
  %2511 = vmatpush2.xpose.msra.mxu0 0.0
  %2512 = vmatprep.subr.mxu0 0.0
  %2513 = vmatpush2.xpose.msra.mxu0 0.0
  %2514 = vmatprep.subr.mxu0 0.0
  %2515 = vmatpush2.xpose.msra.mxu0 0.0
  %2516 = vmatprep.subr.mxu0 0.0
  %2517 = vmatpush2.xpose.msra.mxu0 0.0
  %2518 = vmatprep.subr.mxu0 0.0
  %2519 = vmatpush2.xpose.msra.mxu0 0.0
  %2520 = vmatprep.subr.mxu0 0.0
  %2521 = vmatpush2.xpose.msra.mxu0 0.0
  %2522 = vmatprep.subr.mxu0 0.0
  %2523 = vmatpush2.xpose.msra.mxu0 0.0
  %2524 = vmatprep.subr.mxu0 0.0
  %2525 = vmatpush2.xpose.msra.mxu0 0.0
  %2526 = vmatprep.subr.mxu0 0.0
  %2527 = vmatpush2.xpose.msra.mxu0 0.0
  %2528 = vmatprep.mubr.f32.mxu0 0.0
  %2529 = vmatmul.mubr.f32.gmra.mxu0 %v2456
  %v2530 = vpop.f32.mrf.mxu0
  %v2531 = vadd.f32 0.0, %v2530
  %v2532 = vpop.f32.mrf.mxu0
  %2533 = vmatprep.mubr.f32.mxu0 0.0
  %2534 = vmatmul.mubr.f32.gmra.mxu0 %v2458
  %v2535 = vpop.f32.mrf.mxu0
  %v2536 = vadd.f32 0.0, %v2535
  %v2537 = vpop.f32.mrf.mxu0
  %2538 = vdwg.mxu0
  %2539 = vrot.lane.b32.xlu0 %v917, 96
  %v2540 = vpop.permute.xlu0 %2539
  %2541 = vrot.lane.b32.xlu0 %v919, 96
  %v2542 = vpop.permute.xlu0 %2541
  %v2543 = vsel %vm976, %v917, 0
  %v2545 = vsel %vm976, %v919, 0
  %v2547 = vsel %vm976, %v2540, 0
  %v2549 = vsel %vm976, %v2542, 0
  %2551 = vmatprep.subr.mxu0 0.0
  %2552 = vmatpush1.xpose.msra.mxu0 0.0
  %2553 = vmatprep.subr.mxu0 0.0
  %2554 = vmatpush1.xpose.msra.mxu0 0.0
  %2555 = vmatprep.subr.mxu0 0.0
  %2556 = vmatpush1.xpose.msra.mxu0 0.0
  %2557 = vmatprep.subr.mxu0 0.0
  %2558 = vmatpush1.xpose.msra.mxu0 0.0
  %2559 = vmatprep.subr.mxu0 0.0
  %2560 = vmatpush1.xpose.msra.mxu0 0.0
  %2561 = vmatprep.subr.mxu0 0.0
  %2562 = vmatpush1.xpose.msra.mxu0 0.0
  %2563 = vmatprep.subr.mxu0 0.0
  %2564 = vmatpush1.xpose.msra.mxu0 0.0
  %2565 = vmatprep.subr.mxu0 0.0
  %2566 = vmatpush1.xpose.msra.mxu0 0.0
  %2567 = vmatprep.subr.mxu0 0.0
  %2568 = vmatpush1.xpose.msra.mxu0 0.0
  %2569 = vmatprep.subr.mxu0 0.0
  %2570 = vmatpush1.xpose.msra.mxu0 0.0
  %2571 = vmatprep.subr.mxu0 0.0
  %2572 = vmatpush1.xpose.msra.mxu0 0.0
  %2573 = vmatprep.subr.mxu0 0.0
  %2574 = vmatpush1.xpose.msra.mxu0 0.0
  %2575 = vmatprep.subr.mxu0 0.0
  %2576 = vmatpush1.xpose.msra.mxu0 0.0
  %2577 = vmatprep.subr.mxu0 0.0
  %2578 = vmatpush1.xpose.msra.mxu0 0.0
  %2579 = vmatprep.subr.mxu0 0.0
  %2580 = vmatpush1.xpose.msra.mxu0 %v2549
  %2581 = vmatprep.subr.mxu0 0.0
  %2582 = vmatpush1.xpose.msra.mxu0 %v2547
  %2583 = vmatprep.subr.mxu0 0.0
  %2584 = vmatpush2.xpose.msra.mxu0 0.0
  %2585 = vmatprep.subr.mxu0 0.0
  %2586 = vmatpush2.xpose.msra.mxu0 0.0
  %2587 = vmatprep.subr.mxu0 0.0
  %2588 = vmatpush2.xpose.msra.mxu0 0.0
  %2589 = vmatprep.subr.mxu0 0.0
  %2590 = vmatpush2.xpose.msra.mxu0 0.0
  %2591 = vmatprep.subr.mxu0 0.0
  %2592 = vmatpush2.xpose.msra.mxu0 0.0
  %2593 = vmatprep.subr.mxu0 0.0
  %2594 = vmatpush2.xpose.msra.mxu0 0.0
  %2595 = vmatprep.subr.mxu0 0.0
  %2596 = vmatpush2.xpose.msra.mxu0 0.0
  %2597 = vmatprep.subr.mxu0 0.0
  %2598 = vmatpush2.xpose.msra.mxu0 0.0
  %2599 = vmatprep.subr.mxu0 0.0
  %2600 = vmatpush2.xpose.msra.mxu0 0.0
  %2601 = vmatprep.subr.mxu0 0.0
  %2602 = vmatpush2.xpose.msra.mxu0 0.0
  %2603 = vmatprep.subr.mxu0 0.0
  %2604 = vmatpush2.xpose.msra.mxu0 0.0
  %2605 = vmatprep.subr.mxu0 0.0
  %2606 = vmatpush2.xpose.msra.mxu0 0.0
  %2607 = vmatprep.subr.mxu0 0.0
  %2608 = vmatpush2.xpose.msra.mxu0 0.0
  %2609 = vmatprep.subr.mxu0 0.0
  %2610 = vmatpush2.xpose.msra.mxu0 0.0
  %2611 = vmatprep.subr.mxu0 0.0
  %2612 = vmatpush2.xpose.msra.mxu0 0.0
  %2613 = vmatprep.subr.mxu0 0.0
  %2614 = vmatpush2.xpose.msra.mxu0 0.0
  %2615 = vmatprep.mubr.f32.mxu0 0.0
  %2616 = vmatmul.mubr.f32.gmra.mxu0 %v2543
  %v2617 = vpop.f32.mrf.mxu0
  %v2618 = vadd.f32 0.0, %v2617
  %v2619 = vpop.f32.mrf.mxu0
  %2620 = vmatprep.mubr.f32.mxu0 0.0
  %2621 = vmatmul.mubr.f32.gmra.mxu0 %v2545
  %v2622 = vpop.f32.mrf.mxu0
  %v2623 = vadd.f32 0.0, %v2622
  %v2624 = vpop.f32.mrf.mxu0
  %2625 = vdwg.mxu0
  %2626 = vrot.lane.b32.xlu0 %v921, 96
  %v2627 = vpop.permute.xlu0 %2626
  %2628 = vrot.lane.b32.xlu0 %v923, 96
  %v2629 = vpop.permute.xlu0 %2628
  %v2630 = vsel %vm976, %v921, 0
  %v2632 = vsel %vm976, %v923, 0
  %v2634 = vsel %vm976, %v2627, 0
  %v2636 = vsel %vm976, %v2629, 0
  %2638 = vmatprep.subr.mxu0 0.0
  %2639 = vmatpush1.xpose.msra.mxu0 0.0
  %2640 = vmatprep.subr.mxu0 0.0
  %2641 = vmatpush1.xpose.msra.mxu0 0.0
  %2642 = vmatprep.subr.mxu0 0.0
  %2643 = vmatpush1.xpose.msra.mxu0 0.0
  %2644 = vmatprep.subr.mxu0 0.0
  %2645 = vmatpush1.xpose.msra.mxu0 0.0
  %2646 = vmatprep.subr.mxu0 0.0
  %2647 = vmatpush1.xpose.msra.mxu0 0.0
  %2648 = vmatprep.subr.mxu0 0.0
  %2649 = vmatpush1.xpose.msra.mxu0 0.0
  %2650 = vmatprep.subr.mxu0 0.0
  %2651 = vmatpush1.xpose.msra.mxu0 0.0
  %2652 = vmatprep.subr.mxu0 0.0
  %2653 = vmatpush1.xpose.msra.mxu0 0.0
  %2654 = vmatprep.subr.mxu0 0.0
  %2655 = vmatpush1.xpose.msra.mxu0 0.0
  %2656 = vmatprep.subr.mxu0 0.0
  %2657 = vmatpush1.xpose.msra.mxu0 0.0
  %2658 = vmatprep.subr.mxu0 0.0
  %2659 = vmatpush1.xpose.msra.mxu0 0.0
  %2660 = vmatprep.subr.mxu0 0.0
  %2661 = vmatpush1.xpose.msra.mxu0 0.0
  %2662 = vmatprep.subr.mxu0 0.0
  %2663 = vmatpush1.xpose.msra.mxu0 0.0
  %2664 = vmatprep.subr.mxu0 0.0
  %2665 = vmatpush1.xpose.msra.mxu0 0.0
  %2666 = vmatprep.subr.mxu0 0.0
  %2667 = vmatpush1.xpose.msra.mxu0 %v2636
  %2668 = vmatprep.subr.mxu0 0.0
  %2669 = vmatpush1.xpose.msra.mxu0 %v2634
  %2670 = vmatprep.subr.mxu0 0.0
  %2671 = vmatpush2.xpose.msra.mxu0 0.0
  %2672 = vmatprep.subr.mxu0 0.0
  %2673 = vmatpush2.xpose.msra.mxu0 0.0
  %2674 = vmatprep.subr.mxu0 0.0
  %2675 = vmatpush2.xpose.msra.mxu0 0.0
  %2676 = vmatprep.subr.mxu0 0.0
  %2677 = vmatpush2.xpose.msra.mxu0 0.0
  %2678 = vmatprep.subr.mxu0 0.0
  %2679 = vmatpush2.xpose.msra.mxu0 0.0
  %2680 = vmatprep.subr.mxu0 0.0
  %2681 = vmatpush2.xpose.msra.mxu0 0.0
  %2682 = vmatprep.subr.mxu0 0.0
  %2683 = vmatpush2.xpose.msra.mxu0 0.0
  %2684 = vmatprep.subr.mxu0 0.0
  %2685 = vmatpush2.xpose.msra.mxu0 0.0
  %2686 = vmatprep.subr.mxu0 0.0
  %2687 = vmatpush2.xpose.msra.mxu0 0.0
  %2688 = vmatprep.subr.mxu0 0.0
  %2689 = vmatpush2.xpose.msra.mxu0 0.0
  %2690 = vmatprep.subr.mxu0 0.0
  %2691 = vmatpush2.xpose.msra.mxu0 0.0
  %2692 = vmatprep.subr.mxu0 0.0
  %2693 = vmatpush2.xpose.msra.mxu0 0.0
  %2694 = vmatprep.subr.mxu0 0.0
  %2695 = vmatpush2.xpose.msra.mxu0 0.0
  %2696 = vmatprep.subr.mxu0 0.0
  %2697 = vmatpush2.xpose.msra.mxu0 0.0
  %2698 = vmatprep.subr.mxu0 0.0
  %2699 = vmatpush2.xpose.msra.mxu0 0.0
  %2700 = vmatprep.subr.mxu0 0.0
  %2701 = vmatpush2.xpose.msra.mxu0 0.0
  %2702 = vmatprep.mubr.f32.mxu0 0.0
  %2703 = vmatmul.mubr.f32.gmra.mxu0 %v2630
  %v2704 = vpop.f32.mrf.mxu0
  %v2705 = vadd.f32 0.0, %v2704
  %v2706 = vpop.f32.mrf.mxu0
  %2707 = vmatprep.mubr.f32.mxu0 0.0
  %2708 = vmatmul.mubr.f32.gmra.mxu0 %v2632
  %v2709 = vpop.f32.mrf.mxu0
  %v2710 = vadd.f32 0.0, %v2709
  %v2711 = vpop.f32.mrf.mxu0
  %2712 = vdwg.mxu0
  %2713 = vrot.lane.b32.xlu0 %v925, 96
  %v2714 = vpop.permute.xlu0 %2713
  %2715 = vrot.lane.b32.xlu0 %v927, 96
  %v2716 = vpop.permute.xlu0 %2715
  %v2717 = vsel %vm976, %v925, 0
  %v2719 = vsel %vm976, %v927, 0
  %v2721 = vsel %vm976, %v2714, 0
  %v2723 = vsel %vm976, %v2716, 0
  %2725 = vmatprep.subr.mxu0 0.0
  %2726 = vmatpush1.xpose.msra.mxu0 0.0
  %2727 = vmatprep.subr.mxu0 0.0
  %2728 = vmatpush1.xpose.msra.mxu0 0.0
  %2729 = vmatprep.subr.mxu0 0.0
  %2730 = vmatpush1.xpose.msra.mxu0 0.0
  %2731 = vmatprep.subr.mxu0 0.0
  %2732 = vmatpush1.xpose.msra.mxu0 0.0
  %2733 = vmatprep.subr.mxu0 0.0
  %2734 = vmatpush1.xpose.msra.mxu0 0.0
  %2735 = vmatprep.subr.mxu0 0.0
  %2736 = vmatpush1.xpose.msra.mxu0 0.0
  %2737 = vmatprep.subr.mxu0 0.0
  %2738 = vmatpush1.xpose.msra.mxu0 0.0
  %2739 = vmatprep.subr.mxu0 0.0
  %2740 = vmatpush1.xpose.msra.mxu0 0.0
  %2741 = vmatprep.subr.mxu0 0.0
  %2742 = vmatpush1.xpose.msra.mxu0 0.0
  %2743 = vmatprep.subr.mxu0 0.0
  %2744 = vmatpush1.xpose.msra.mxu0 0.0
  %2745 = vmatprep.subr.mxu0 0.0
  %2746 = vmatpush1.xpose.msra.mxu0 0.0
  %2747 = vmatprep.subr.mxu0 0.0
  %2748 = vmatpush1.xpose.msra.mxu0 0.0
  %2749 = vmatprep.subr.mxu0 0.0
  %2750 = vmatpush1.xpose.msra.mxu0 0.0
  %2751 = vmatprep.subr.mxu0 0.0
  %2752 = vmatpush1.xpose.msra.mxu0 0.0
  %2753 = vmatprep.subr.mxu0 0.0
  %2754 = vmatpush1.xpose.msra.mxu0 %v2723
  %2755 = vmatprep.subr.mxu0 0.0
  %2756 = vmatpush1.xpose.msra.mxu0 %v2721
  %2757 = vmatprep.subr.mxu0 0.0
  %2758 = vmatpush2.xpose.msra.mxu0 0.0
  %2759 = vmatprep.subr.mxu0 0.0
  %2760 = vmatpush2.xpose.msra.mxu0 0.0
  %2761 = vmatprep.subr.mxu0 0.0
  %2762 = vmatpush2.xpose.msra.mxu0 0.0
  %2763 = vmatprep.subr.mxu0 0.0
  %2764 = vmatpush2.xpose.msra.mxu0 0.0
  %2765 = vmatprep.subr.mxu0 0.0
  %2766 = vmatpush2.xpose.msra.mxu0 0.0
  %2767 = vmatprep.subr.mxu0 0.0
  %2768 = vmatpush2.xpose.msra.mxu0 0.0
  %2769 = vmatprep.subr.mxu0 0.0
  %2770 = vmatpush2.xpose.msra.mxu0 0.0
  %2771 = vmatprep.subr.mxu0 0.0
  %2772 = vmatpush2.xpose.msra.mxu0 0.0
  %2773 = vmatprep.subr.mxu0 0.0
  %2774 = vmatpush2.xpose.msra.mxu0 0.0
  %2775 = vmatprep.subr.mxu0 0.0
  %2776 = vmatpush2.xpose.msra.mxu0 0.0
  %2777 = vmatprep.subr.mxu0 0.0
  %2778 = vmatpush2.xpose.msra.mxu0 0.0
  %2779 = vmatprep.subr.mxu0 0.0
  %2780 = vmatpush2.xpose.msra.mxu0 0.0
  %2781 = vmatprep.subr.mxu0 0.0
  %2782 = vmatpush2.xpose.msra.mxu0 0.0
  %2783 = vmatprep.subr.mxu0 0.0
  %2784 = vmatpush2.xpose.msra.mxu0 0.0
  %2785 = vmatprep.subr.mxu0 0.0
  %2786 = vmatpush2.xpose.msra.mxu0 0.0
  %2787 = vmatprep.subr.mxu0 0.0
  %2788 = vmatpush2.xpose.msra.mxu0 0.0
  %2789 = vmatprep.mubr.f32.mxu0 0.0
  %2790 = vmatmul.mubr.f32.gmra.mxu0 %v2717
  %v2791 = vpop.f32.mrf.mxu0
  %v2792 = vadd.f32 0.0, %v2791
  %v2793 = vpop.f32.mrf.mxu0
  %2794 = vmatprep.mubr.f32.mxu0 0.0
  %2795 = vmatmul.mubr.f32.gmra.mxu0 %v2719
  %v2796 = vpop.f32.mrf.mxu0
  %v2797 = vadd.f32 0.0, %v2796
  %v2798 = vpop.f32.mrf.mxu0
  %2799 = vdwg.mxu0
  %2800 = vrot.lane.b32.xlu0 %v929, 96
  %v2801 = vpop.permute.xlu0 %2800
  %2802 = vrot.lane.b32.xlu0 %v931, 96
  %v2803 = vpop.permute.xlu0 %2802
  %v2804 = vsel %vm976, %v929, 0
  %v2806 = vsel %vm976, %v931, 0
  %v2808 = vsel %vm976, %v2801, 0
  %v2810 = vsel %vm976, %v2803, 0
  %2812 = vmatprep.subr.mxu0 0.0
  %2813 = vmatpush1.xpose.msra.mxu0 0.0
  %2814 = vmatprep.subr.mxu0 0.0
  %2815 = vmatpush1.xpose.msra.mxu0 0.0
  %2816 = vmatprep.subr.mxu0 0.0
  %2817 = vmatpush1.xpose.msra.mxu0 0.0
  %2818 = vmatprep.subr.mxu0 0.0
  %2819 = vmatpush1.xpose.msra.mxu0 0.0
  %2820 = vmatprep.subr.mxu0 0.0
  %2821 = vmatpush1.xpose.msra.mxu0 0.0
  %2822 = vmatprep.subr.mxu0 0.0
  %2823 = vmatpush1.xpose.msra.mxu0 0.0
  %2824 = vmatprep.subr.mxu0 0.0
  %2825 = vmatpush1.xpose.msra.mxu0 0.0
  %2826 = vmatprep.subr.mxu0 0.0
  %2827 = vmatpush1.xpose.msra.mxu0 0.0
  %2828 = vmatprep.subr.mxu0 0.0
  %2829 = vmatpush1.xpose.msra.mxu0 0.0
  %2830 = vmatprep.subr.mxu0 0.0
  %2831 = vmatpush1.xpose.msra.mxu0 0.0
  %2832 = vmatprep.subr.mxu0 0.0
  %2833 = vmatpush1.xpose.msra.mxu0 0.0
  %2834 = vmatprep.subr.mxu0 0.0
  %2835 = vmatpush1.xpose.msra.mxu0 0.0
  %2836 = vmatprep.subr.mxu0 0.0
  %2837 = vmatpush1.xpose.msra.mxu0 0.0
  %2838 = vmatprep.subr.mxu0 0.0
  %2839 = vmatpush1.xpose.msra.mxu0 0.0
  %2840 = vmatprep.subr.mxu0 0.0
  %2841 = vmatpush1.xpose.msra.mxu0 %v2810
  %2842 = vmatprep.subr.mxu0 0.0
  %2843 = vmatpush1.xpose.msra.mxu0 %v2808
  %2844 = vmatprep.subr.mxu0 0.0
  %2845 = vmatpush2.xpose.msra.mxu0 0.0
  %2846 = vmatprep.subr.mxu0 0.0
  %2847 = vmatpush2.xpose.msra.mxu0 0.0
  %2848 = vmatprep.subr.mxu0 0.0
  %2849 = vmatpush2.xpose.msra.mxu0 0.0
  %2850 = vmatprep.subr.mxu0 0.0
  %2851 = vmatpush2.xpose.msra.mxu0 0.0
  %2852 = vmatprep.subr.mxu0 0.0
  %2853 = vmatpush2.xpose.msra.mxu0 0.0
  %2854 = vmatprep.subr.mxu0 0.0
  %2855 = vmatpush2.xpose.msra.mxu0 0.0
  %2856 = vmatprep.subr.mxu0 0.0
  %2857 = vmatpush2.xpose.msra.mxu0 0.0
  %2858 = vmatprep.subr.mxu0 0.0
  %2859 = vmatpush2.xpose.msra.mxu0 0.0
  %2860 = vmatprep.subr.mxu0 0.0
  %2861 = vmatpush2.xpose.msra.mxu0 0.0
  %2862 = vmatprep.subr.mxu0 0.0
  %2863 = vmatpush2.xpose.msra.mxu0 0.0
  %2864 = vmatprep.subr.mxu0 0.0
  %2865 = vmatpush2.xpose.msra.mxu0 0.0
  %2866 = vmatprep.subr.mxu0 0.0
  %2867 = vmatpush2.xpose.msra.mxu0 0.0
  %2868 = vmatprep.subr.mxu0 0.0
  %2869 = vmatpush2.xpose.msra.mxu0 0.0
  %2870 = vmatprep.subr.mxu0 0.0
  %2871 = vmatpush2.xpose.msra.mxu0 0.0
  %2872 = vmatprep.subr.mxu0 0.0
  %2873 = vmatpush2.xpose.msra.mxu0 0.0
  %2874 = vmatprep.subr.mxu0 0.0
  %2875 = vmatpush2.xpose.msra.mxu0 0.0
  %2876 = vmatprep.mubr.f32.mxu0 0.0
  %2877 = vmatmul.mubr.f32.gmra.mxu0 %v2804
  %v2878 = vpop.f32.mrf.mxu0
  %v2879 = vadd.f32 0.0, %v2878
  %v2880 = vpop.f32.mrf.mxu0
  %2881 = vmatprep.mubr.f32.mxu0 0.0
  %2882 = vmatmul.mubr.f32.gmra.mxu0 %v2806
  %v2883 = vpop.f32.mrf.mxu0
  %v2884 = vadd.f32 0.0, %v2883
  %v2885 = vpop.f32.mrf.mxu0
  %2886 = vdwg.mxu0
  %2887 = vrot.lane.b32.xlu0 %v933, 96
  %v2888 = vpop.permute.xlu0 %2887
  %2889 = vrot.lane.b32.xlu0 %v935, 96
  %v2890 = vpop.permute.xlu0 %2889
  %v2891 = vsel %vm976, %v933, 0
  %v2893 = vsel %vm976, %v935, 0
  %v2895 = vsel %vm976, %v2888, 0
  %v2897 = vsel %vm976, %v2890, 0
  %2899 = vmatprep.subr.mxu0 0.0
  %2900 = vmatpush1.xpose.msra.mxu0 0.0
  %2901 = vmatprep.subr.mxu0 0.0
  %2902 = vmatpush1.xpose.msra.mxu0 0.0
  %2903 = vmatprep.subr.mxu0 0.0
  %2904 = vmatpush1.xpose.msra.mxu0 0.0
  %2905 = vmatprep.subr.mxu0 0.0
  %2906 = vmatpush1.xpose.msra.mxu0 0.0
  %2907 = vmatprep.subr.mxu0 0.0
  %2908 = vmatpush1.xpose.msra.mxu0 0.0
  %2909 = vmatprep.subr.mxu0 0.0
  %2910 = vmatpush1.xpose.msra.mxu0 0.0
  %2911 = vmatprep.subr.mxu0 0.0
  %2912 = vmatpush1.xpose.msra.mxu0 0.0
  %2913 = vmatprep.subr.mxu0 0.0
  %2914 = vmatpush1.xpose.msra.mxu0 0.0
  %2915 = vmatprep.subr.mxu0 0.0
  %2916 = vmatpush1.xpose.msra.mxu0 0.0
  %2917 = vmatprep.subr.mxu0 0.0
  %2918 = vmatpush1.xpose.msra.mxu0 0.0
  %2919 = vmatprep.subr.mxu0 0.0
  %2920 = vmatpush1.xpose.msra.mxu0 0.0
  %2921 = vmatprep.subr.mxu0 0.0
  %2922 = vmatpush1.xpose.msra.mxu0 0.0
  %2923 = vmatprep.subr.mxu0 0.0
  %2924 = vmatpush1.xpose.msra.mxu0 0.0
  %2925 = vmatprep.subr.mxu0 0.0
  %2926 = vmatpush1.xpose.msra.mxu0 0.0
  %2927 = vmatprep.subr.mxu0 0.0
  %2928 = vmatpush1.xpose.msra.mxu0 %v2897
  %2929 = vmatprep.subr.mxu0 0.0
  %2930 = vmatpush1.xpose.msra.mxu0 %v2895
  %2931 = vmatprep.subr.mxu0 0.0
  %2932 = vmatpush2.xpose.msra.mxu0 0.0
  %2933 = vmatprep.subr.mxu0 0.0
  %2934 = vmatpush2.xpose.msra.mxu0 0.0
  %2935 = vmatprep.subr.mxu0 0.0
  %2936 = vmatpush2.xpose.msra.mxu0 0.0
  %2937 = vmatprep.subr.mxu0 0.0
  %2938 = vmatpush2.xpose.msra.mxu0 0.0
  %2939 = vmatprep.subr.mxu0 0.0
  %2940 = vmatpush2.xpose.msra.mxu0 0.0
  %2941 = vmatprep.subr.mxu0 0.0
  %2942 = vmatpush2.xpose.msra.mxu0 0.0
  %2943 = vmatprep.subr.mxu0 0.0
  %2944 = vmatpush2.xpose.msra.mxu0 0.0
  %2945 = vmatprep.subr.mxu0 0.0
  %2946 = vmatpush2.xpose.msra.mxu0 0.0
  %2947 = vmatprep.subr.mxu0 0.0
  %2948 = vmatpush2.xpose.msra.mxu0 0.0
  %2949 = vmatprep.subr.mxu0 0.0
  %2950 = vmatpush2.xpose.msra.mxu0 0.0
  %2951 = vmatprep.subr.mxu0 0.0
  %2952 = vmatpush2.xpose.msra.mxu0 0.0
  %2953 = vmatprep.subr.mxu0 0.0
  %2954 = vmatpush2.xpose.msra.mxu0 0.0
  %2955 = vmatprep.subr.mxu0 0.0
  %2956 = vmatpush2.xpose.msra.mxu0 0.0
  %2957 = vmatprep.subr.mxu0 0.0
  %2958 = vmatpush2.xpose.msra.mxu0 0.0
  %2959 = vmatprep.subr.mxu0 0.0
  %2960 = vmatpush2.xpose.msra.mxu0 0.0
  %2961 = vmatprep.subr.mxu0 0.0
  %2962 = vmatpush2.xpose.msra.mxu0 0.0
  %2963 = vmatprep.mubr.f32.mxu0 0.0
  %2964 = vmatmul.mubr.f32.gmra.mxu0 %v2891
  %v2965 = vpop.f32.mrf.mxu0
  %v2966 = vadd.f32 0.0, %v2965
  %v2967 = vpop.f32.mrf.mxu0
  %2968 = vmatprep.mubr.f32.mxu0 0.0
  %2969 = vmatmul.mubr.f32.gmra.mxu0 %v2893
  %v2970 = vpop.f32.mrf.mxu0
  %v2971 = vadd.f32 0.0, %v2970
  %v2972 = vpop.f32.mrf.mxu0
  %2973 = vdwg.mxu0
  %2974 = vrot.lane.b32.xlu0 %v937, 96
  %v2975 = vpop.permute.xlu0 %2974
  %2976 = vrot.lane.b32.xlu0 %v939, 96
  %v2977 = vpop.permute.xlu0 %2976
  %v2978 = vsel %vm976, %v937, 0
  %v2980 = vsel %vm976, %v939, 0
  %v2982 = vsel %vm976, %v2975, 0
  %v2984 = vsel %vm976, %v2977, 0
  %2986 = vmatprep.subr.mxu0 0.0
  %2987 = vmatpush1.xpose.msra.mxu0 0.0
  %2988 = vmatprep.subr.mxu0 0.0
  %2989 = vmatpush1.xpose.msra.mxu0 0.0
  %2990 = vmatprep.subr.mxu0 0.0
  %2991 = vmatpush1.xpose.msra.mxu0 0.0
  %2992 = vmatprep.subr.mxu0 0.0
  %2993 = vmatpush1.xpose.msra.mxu0 0.0
  %2994 = vmatprep.subr.mxu0 0.0
  %2995 = vmatpush1.xpose.msra.mxu0 0.0
  %2996 = vmatprep.subr.mxu0 0.0
  %2997 = vmatpush1.xpose.msra.mxu0 0.0
  %2998 = vmatprep.subr.mxu0 0.0
  %2999 = vmatpush1.xpose.msra.mxu0 0.0
  %3000 = vmatprep.subr.mxu0 0.0
  %3001 = vmatpush1.xpose.msra.mxu0 0.0
  %3002 = vmatprep.subr.mxu0 0.0
  %3003 = vmatpush1.xpose.msra.mxu0 0.0
  %3004 = vmatprep.subr.mxu0 0.0
  %3005 = vmatpush1.xpose.msra.mxu0 0.0
  %3006 = vmatprep.subr.mxu0 0.0
  %3007 = vmatpush1.xpose.msra.mxu0 0.0
  %3008 = vmatprep.subr.mxu0 0.0
  %3009 = vmatpush1.xpose.msra.mxu0 0.0
  %3010 = vmatprep.subr.mxu0 0.0
  %3011 = vmatpush1.xpose.msra.mxu0 0.0
  %3012 = vmatprep.subr.mxu0 0.0
  %3013 = vmatpush1.xpose.msra.mxu0 0.0
  %3014 = vmatprep.subr.mxu0 0.0
  %3015 = vmatpush1.xpose.msra.mxu0 %v2984
  %3016 = vmatprep.subr.mxu0 0.0
  %3017 = vmatpush1.xpose.msra.mxu0 %v2982
  %3018 = vmatprep.subr.mxu0 0.0
  %3019 = vmatpush2.xpose.msra.mxu0 0.0
  %3020 = vmatprep.subr.mxu0 0.0
  %3021 = vmatpush2.xpose.msra.mxu0 0.0
  %3022 = vmatprep.subr.mxu0 0.0
  %3023 = vmatpush2.xpose.msra.mxu0 0.0
  %3024 = vmatprep.subr.mxu0 0.0
  %3025 = vmatpush2.xpose.msra.mxu0 0.0
  %3026 = vmatprep.subr.mxu0 0.0
  %3027 = vmatpush2.xpose.msra.mxu0 0.0
  %3028 = vmatprep.subr.mxu0 0.0
  %3029 = vmatpush2.xpose.msra.mxu0 0.0
  %3030 = vmatprep.subr.mxu0 0.0
  %3031 = vmatpush2.xpose.msra.mxu0 0.0
  %3032 = vmatprep.subr.mxu0 0.0
  %3033 = vmatpush2.xpose.msra.mxu0 0.0
  %3034 = vmatprep.subr.mxu0 0.0
  %3035 = vmatpush2.xpose.msra.mxu0 0.0
  %3036 = vmatprep.subr.mxu0 0.0
  %3037 = vmatpush2.xpose.msra.mxu0 0.0
  %3038 = vmatprep.subr.mxu0 0.0
  %3039 = vmatpush2.xpose.msra.mxu0 0.0
  %3040 = vmatprep.subr.mxu0 0.0
  %3041 = vmatpush2.xpose.msra.mxu0 0.0
  %3042 = vmatprep.subr.mxu0 0.0
  %3043 = vmatpush2.xpose.msra.mxu0 0.0
  %3044 = vmatprep.subr.mxu0 0.0
  %3045 = vmatpush2.xpose.msra.mxu0 0.0
  %3046 = vmatprep.subr.mxu0 0.0
  %3047 = vmatpush2.xpose.msra.mxu0 0.0
  %3048 = vmatprep.subr.mxu0 0.0
  %3049 = vmatpush2.xpose.msra.mxu0 0.0
  %3050 = vmatprep.mubr.f32.mxu0 0.0
  %3051 = vmatmul.mubr.f32.gmra.mxu0 %v2978
  %v3052 = vpop.f32.mrf.mxu0
  %v3053 = vadd.f32 0.0, %v3052
  %v3054 = vpop.f32.mrf.mxu0
  %3055 = vmatprep.mubr.f32.mxu0 0.0
  %3056 = vmatmul.mubr.f32.gmra.mxu0 %v2980
  %v3057 = vpop.f32.mrf.mxu0
  %v3058 = vadd.f32 0.0, %v3057
  %v3059 = vpop.f32.mrf.mxu0
  %3060 = vdwg.mxu0
  %3061 = vrot.lane.b32.xlu0 %v941, 96
  %v3062 = vpop.permute.xlu0 %3061
  %3063 = vrot.lane.b32.xlu0 %v943, 96
  %v3064 = vpop.permute.xlu0 %3063
  %v3065 = vsel %vm976, %v941, 0
  %v3067 = vsel %vm976, %v943, 0
  %v3069 = vsel %vm976, %v3062, 0
  %v3071 = vsel %vm976, %v3064, 0
  %3073 = vmatprep.subr.mxu0 0.0
  %3074 = vmatpush1.xpose.msra.mxu0 0.0
  %3075 = vmatprep.subr.mxu0 0.0
  %3076 = vmatpush1.xpose.msra.mxu0 0.0
  %3077 = vmatprep.subr.mxu0 0.0
  %3078 = vmatpush1.xpose.msra.mxu0 0.0
  %3079 = vmatprep.subr.mxu0 0.0
  %3080 = vmatpush1.xpose.msra.mxu0 0.0
  %3081 = vmatprep.subr.mxu0 0.0
  %3082 = vmatpush1.xpose.msra.mxu0 0.0
  %3083 = vmatprep.subr.mxu0 0.0
  %3084 = vmatpush1.xpose.msra.mxu0 0.0
  %3085 = vmatprep.subr.mxu0 0.0
  %3086 = vmatpush1.xpose.msra.mxu0 0.0
  %3087 = vmatprep.subr.mxu0 0.0
  %3088 = vmatpush1.xpose.msra.mxu0 0.0
  %3089 = vmatprep.subr.mxu0 0.0
  %3090 = vmatpush1.xpose.msra.mxu0 0.0
  %3091 = vmatprep.subr.mxu0 0.0
  %3092 = vmatpush1.xpose.msra.mxu0 0.0
  %3093 = vmatprep.subr.mxu0 0.0
  %3094 = vmatpush1.xpose.msra.mxu0 0.0
  %3095 = vmatprep.subr.mxu0 0.0
  %3096 = vmatpush1.xpose.msra.mxu0 0.0
  %3097 = vmatprep.subr.mxu0 0.0
  %3098 = vmatpush1.xpose.msra.mxu0 0.0
  %3099 = vmatprep.subr.mxu0 0.0
  %3100 = vmatpush1.xpose.msra.mxu0 0.0
  %3101 = vmatprep.subr.mxu0 0.0
  %3102 = vmatpush1.xpose.msra.mxu0 %v3071
  %3103 = vmatprep.subr.mxu0 0.0
  %3104 = vmatpush1.xpose.msra.mxu0 %v3069
  %3105 = vmatprep.subr.mxu0 0.0
  %3106 = vmatpush2.xpose.msra.mxu0 0.0
  %3107 = vmatprep.subr.mxu0 0.0
  %3108 = vmatpush2.xpose.msra.mxu0 0.0
  %3109 = vmatprep.subr.mxu0 0.0
  %3110 = vmatpush2.xpose.msra.mxu0 0.0
  %3111 = vmatprep.subr.mxu0 0.0
  %3112 = vmatpush2.xpose.msra.mxu0 0.0
  %3113 = vmatprep.subr.mxu0 0.0
  %3114 = vmatpush2.xpose.msra.mxu0 0.0
  %3115 = vmatprep.subr.mxu0 0.0
  %3116 = vmatpush2.xpose.msra.mxu0 0.0
  %3117 = vmatprep.subr.mxu0 0.0
  %3118 = vmatpush2.xpose.msra.mxu0 0.0
  %3119 = vmatprep.subr.mxu0 0.0
  %3120 = vmatpush2.xpose.msra.mxu0 0.0
  %3121 = vmatprep.subr.mxu0 0.0
  %3122 = vmatpush2.xpose.msra.mxu0 0.0
  %3123 = vmatprep.subr.mxu0 0.0
  %3124 = vmatpush2.xpose.msra.mxu0 0.0
  %3125 = vmatprep.subr.mxu0 0.0
  %3126 = vmatpush2.xpose.msra.mxu0 0.0
  %3127 = vmatprep.subr.mxu0 0.0
  %3128 = vmatpush2.xpose.msra.mxu0 0.0
  %3129 = vmatprep.subr.mxu0 0.0
  %3130 = vmatpush2.xpose.msra.mxu0 0.0
  %3131 = vmatprep.subr.mxu0 0.0
  %3132 = vmatpush2.xpose.msra.mxu0 0.0
  %3133 = vmatprep.subr.mxu0 0.0
  %3134 = vmatpush2.xpose.msra.mxu0 0.0
  %3135 = vmatprep.subr.mxu0 0.0
  %3136 = vmatpush2.xpose.msra.mxu0 0.0
  %3137 = vmatprep.mubr.f32.mxu0 0.0
  %3138 = vmatmul.mubr.f32.gmra.mxu0 %v3065
  %v3139 = vpop.f32.mrf.mxu0
  %v3140 = vadd.f32 0.0, %v3139
  %v3141 = vpop.f32.mrf.mxu0
  %3142 = vmatprep.mubr.f32.mxu0 0.0
  %3143 = vmatmul.mubr.f32.gmra.mxu0 %v3067
  %v3144 = vpop.f32.mrf.mxu0
  %v3145 = vadd.f32 0.0, %v3144
  %v3146 = vpop.f32.mrf.mxu0
  %3147 = vdwg.mxu0
  %3148 = vrot.lane.b32.xlu0 %v945, 96
  %v3149 = vpop.permute.xlu0 %3148
  %3150 = vrot.lane.b32.xlu0 %v947, 96
  %v3151 = vpop.permute.xlu0 %3150
  %v3152 = vsel %vm976, %v945, 0
  %v3154 = vsel %vm976, %v947, 0
  %v3156 = vsel %vm976, %v3149, 0
  %v3158 = vsel %vm976, %v3151, 0
  %3160 = vmatprep.subr.mxu0 0.0
  %3161 = vmatpush1.xpose.msra.mxu0 0.0
  %3162 = vmatprep.subr.mxu0 0.0
  %3163 = vmatpush1.xpose.msra.mxu0 0.0
  %3164 = vmatprep.subr.mxu0 0.0
  %3165 = vmatpush1.xpose.msra.mxu0 0.0
  %3166 = vmatprep.subr.mxu0 0.0
  %3167 = vmatpush1.xpose.msra.mxu0 0.0
  %3168 = vmatprep.subr.mxu0 0.0
  %3169 = vmatpush1.xpose.msra.mxu0 0.0
  %3170 = vmatprep.subr.mxu0 0.0
  %3171 = vmatpush1.xpose.msra.mxu0 0.0
  %3172 = vmatprep.subr.mxu0 0.0
  %3173 = vmatpush1.xpose.msra.mxu0 0.0
  %3174 = vmatprep.subr.mxu0 0.0
  %3175 = vmatpush1.xpose.msra.mxu0 0.0
  %3176 = vmatprep.subr.mxu0 0.0
  %3177 = vmatpush1.xpose.msra.mxu0 0.0
  %3178 = vmatprep.subr.mxu0 0.0
  %3179 = vmatpush1.xpose.msra.mxu0 0.0
  %3180 = vmatprep.subr.mxu0 0.0
  %3181 = vmatpush1.xpose.msra.mxu0 0.0
  %3182 = vmatprep.subr.mxu0 0.0
  %3183 = vmatpush1.xpose.msra.mxu0 0.0
  %3184 = vmatprep.subr.mxu0 0.0
  %3185 = vmatpush1.xpose.msra.mxu0 0.0
  %3186 = vmatprep.subr.mxu0 0.0
  %3187 = vmatpush1.xpose.msra.mxu0 0.0
  %3188 = vmatprep.subr.mxu0 0.0
  %3189 = vmatpush1.xpose.msra.mxu0 %v3158
  %3190 = vmatprep.subr.mxu0 0.0
  %3191 = vmatpush1.xpose.msra.mxu0 %v3156
  %3192 = vmatprep.subr.mxu0 0.0
  %3193 = vmatpush2.xpose.msra.mxu0 0.0
  %3194 = vmatprep.subr.mxu0 0.0
  %3195 = vmatpush2.xpose.msra.mxu0 0.0
  %3196 = vmatprep.subr.mxu0 0.0
  %3197 = vmatpush2.xpose.msra.mxu0 0.0
  %3198 = vmatprep.subr.mxu0 0.0
  %3199 = vmatpush2.xpose.msra.mxu0 0.0
  %3200 = vmatprep.subr.mxu0 0.0
  %3201 = vmatpush2.xpose.msra.mxu0 0.0
  %3202 = vmatprep.subr.mxu0 0.0
  %3203 = vmatpush2.xpose.msra.mxu0 0.0
  %3204 = vmatprep.subr.mxu0 0.0
  %3205 = vmatpush2.xpose.msra.mxu0 0.0
  %3206 = vmatprep.subr.mxu0 0.0
  %3207 = vmatpush2.xpose.msra.mxu0 0.0
  %3208 = vmatprep.subr.mxu0 0.0
  %3209 = vmatpush2.xpose.msra.mxu0 0.0
  %3210 = vmatprep.subr.mxu0 0.0
  %3211 = vmatpush2.xpose.msra.mxu0 0.0
  %3212 = vmatprep.subr.mxu0 0.0
  %3213 = vmatpush2.xpose.msra.mxu0 0.0
  %3214 = vmatprep.subr.mxu0 0.0
  %3215 = vmatpush2.xpose.msra.mxu0 0.0
  %3216 = vmatprep.subr.mxu0 0.0
  %3217 = vmatpush2.xpose.msra.mxu0 0.0
  %3218 = vmatprep.subr.mxu0 0.0
  %3219 = vmatpush2.xpose.msra.mxu0 0.0
  %3220 = vmatprep.subr.mxu0 0.0
  %3221 = vmatpush2.xpose.msra.mxu0 0.0
  %3222 = vmatprep.subr.mxu0 0.0
  %3223 = vmatpush2.xpose.msra.mxu0 0.0
  %3224 = vmatprep.mubr.f32.mxu0 0.0
  %3225 = vmatmul.mubr.f32.gmra.mxu0 %v3152
  %v3226 = vpop.f32.mrf.mxu0
  %v3227 = vadd.f32 0.0, %v3226
  %v3228 = vpop.f32.mrf.mxu0
  %3229 = vmatprep.mubr.f32.mxu0 0.0
  %3230 = vmatmul.mubr.f32.gmra.mxu0 %v3154
  %v3231 = vpop.f32.mrf.mxu0
  %v3232 = vadd.f32 0.0, %v3231
  %v3233 = vpop.f32.mrf.mxu0
  %3234 = vdwg.mxu0
  %3235 = vrot.lane.b32.xlu0 %v949, 96
  %v3236 = vpop.permute.xlu0 %3235
  %3237 = vrot.lane.b32.xlu0 %v951, 96
  %v3238 = vpop.permute.xlu0 %3237
  %v3239 = vsel %vm976, %v949, 0
  %v3241 = vsel %vm976, %v951, 0
  %v3243 = vsel %vm976, %v3236, 0
  %v3245 = vsel %vm976, %v3238, 0
  %3247 = vmatprep.subr.mxu0 0.0
  %3248 = vmatpush1.xpose.msra.mxu0 0.0
  %3249 = vmatprep.subr.mxu0 0.0
  %3250 = vmatpush1.xpose.msra.mxu0 0.0
  %3251 = vmatprep.subr.mxu0 0.0
  %3252 = vmatpush1.xpose.msra.mxu0 0.0
  %3253 = vmatprep.subr.mxu0 0.0
  %3254 = vmatpush1.xpose.msra.mxu0 0.0
  %3255 = vmatprep.subr.mxu0 0.0
  %3256 = vmatpush1.xpose.msra.mxu0 0.0
  %3257 = vmatprep.subr.mxu0 0.0
  %3258 = vmatpush1.xpose.msra.mxu0 0.0
  %3259 = vmatprep.subr.mxu0 0.0
  %3260 = vmatpush1.xpose.msra.mxu0 0.0
  %3261 = vmatprep.subr.mxu0 0.0
  %3262 = vmatpush1.xpose.msra.mxu0 0.0
  %3263 = vmatprep.subr.mxu0 0.0
  %3264 = vmatpush1.xpose.msra.mxu0 0.0
  %3265 = vmatprep.subr.mxu0 0.0
  %3266 = vmatpush1.xpose.msra.mxu0 0.0
  %3267 = vmatprep.subr.mxu0 0.0
  %3268 = vmatpush1.xpose.msra.mxu0 0.0
  %3269 = vmatprep.subr.mxu0 0.0
  %3270 = vmatpush1.xpose.msra.mxu0 0.0
  %3271 = vmatprep.subr.mxu0 0.0
  %3272 = vmatpush1.xpose.msra.mxu0 0.0
  %3273 = vmatprep.subr.mxu0 0.0
  %3274 = vmatpush1.xpose.msra.mxu0 0.0
  %3275 = vmatprep.subr.mxu0 0.0
  %3276 = vmatpush1.xpose.msra.mxu0 %v3245
  %3277 = vmatprep.subr.mxu0 0.0
  %3278 = vmatpush1.xpose.msra.mxu0 %v3243
  %3279 = vmatprep.subr.mxu0 0.0
  %3280 = vmatpush2.xpose.msra.mxu0 0.0
  %3281 = vmatprep.subr.mxu0 0.0
  %3282 = vmatpush2.xpose.msra.mxu0 0.0
  %3283 = vmatprep.subr.mxu0 0.0
  %3284 = vmatpush2.xpose.msra.mxu0 0.0
  %3285 = vmatprep.subr.mxu0 0.0
  %3286 = vmatpush2.xpose.msra.mxu0 0.0
  %3287 = vmatprep.subr.mxu0 0.0
  %3288 = vmatpush2.xpose.msra.mxu0 0.0
  %3289 = vmatprep.subr.mxu0 0.0
  %3290 = vmatpush2.xpose.msra.mxu0 0.0
  %3291 = vmatprep.subr.mxu0 0.0
  %3292 = vmatpush2.xpose.msra.mxu0 0.0
  %3293 = vmatprep.subr.mxu0 0.0
  %3294 = vmatpush2.xpose.msra.mxu0 0.0
  %3295 = vmatprep.subr.mxu0 0.0
  %3296 = vmatpush2.xpose.msra.mxu0 0.0
  %3297 = vmatprep.subr.mxu0 0.0
  %3298 = vmatpush2.xpose.msra.mxu0 0.0
  %3299 = vmatprep.subr.mxu0 0.0
  %3300 = vmatpush2.xpose.msra.mxu0 0.0
  %3301 = vmatprep.subr.mxu0 0.0
  %3302 = vmatpush2.xpose.msra.mxu0 0.0
  %3303 = vmatprep.subr.mxu0 0.0
  %3304 = vmatpush2.xpose.msra.mxu0 0.0
  %3305 = vmatprep.subr.mxu0 0.0
  %3306 = vmatpush2.xpose.msra.mxu0 0.0
  %3307 = vmatprep.subr.mxu0 0.0
  %3308 = vmatpush2.xpose.msra.mxu0 0.0
  %3309 = vmatprep.subr.mxu0 0.0
  %3310 = vmatpush2.xpose.msra.mxu0 0.0
  %3311 = vmatprep.mubr.f32.mxu0 0.0
  %3312 = vmatmul.mubr.f32.gmra.mxu0 %v3239
  %v3313 = vpop.f32.mrf.mxu0
  %v3314 = vadd.f32 0.0, %v3313
  %v3315 = vpop.f32.mrf.mxu0
  %3316 = vmatprep.mubr.f32.mxu0 0.0
  %3317 = vmatmul.mubr.f32.gmra.mxu0 %v3241
  %v3318 = vpop.f32.mrf.mxu0
  %v3319 = vadd.f32 0.0, %v3318
  %v3320 = vpop.f32.mrf.mxu0
  %3321 = vdwg.mxu0
  %3322 = vrot.lane.b32.xlu0 %v953, 96
  %v3323 = vpop.permute.xlu0 %3322
  %3324 = vrot.lane.b32.xlu0 %v955, 96
  %v3325 = vpop.permute.xlu0 %3324
  %v3326 = vsel %vm976, %v953, 0
  %v3328 = vsel %vm976, %v955, 0
  %v3330 = vsel %vm976, %v3323, 0
  %v3332 = vsel %vm976, %v3325, 0
  %3334 = vmatprep.subr.mxu0 0.0
  %3335 = vmatpush1.xpose.msra.mxu0 0.0
  %3336 = vmatprep.subr.mxu0 0.0
  %3337 = vmatpush1.xpose.msra.mxu0 0.0
  %3338 = vmatprep.subr.mxu0 0.0
  %3339 = vmatpush1.xpose.msra.mxu0 0.0
  %3340 = vmatprep.subr.mxu0 0.0
  %3341 = vmatpush1.xpose.msra.mxu0 0.0
  %3342 = vmatprep.subr.mxu0 0.0
  %3343 = vmatpush1.xpose.msra.mxu0 0.0
  %3344 = vmatprep.subr.mxu0 0.0
  %3345 = vmatpush1.xpose.msra.mxu0 0.0
  %3346 = vmatprep.subr.mxu0 0.0
  %3347 = vmatpush1.xpose.msra.mxu0 0.0
  %3348 = vmatprep.subr.mxu0 0.0
  %3349 = vmatpush1.xpose.msra.mxu0 0.0
  %3350 = vmatprep.subr.mxu0 0.0
  %3351 = vmatpush1.xpose.msra.mxu0 0.0
  %3352 = vmatprep.subr.mxu0 0.0
  %3353 = vmatpush1.xpose.msra.mxu0 0.0
  %3354 = vmatprep.subr.mxu0 0.0
  %3355 = vmatpush1.xpose.msra.mxu0 0.0
  %3356 = vmatprep.subr.mxu0 0.0
  %3357 = vmatpush1.xpose.msra.mxu0 0.0
  %3358 = vmatprep.subr.mxu0 0.0
  %3359 = vmatpush1.xpose.msra.mxu0 0.0
  %3360 = vmatprep.subr.mxu0 0.0
  %3361 = vmatpush1.xpose.msra.mxu0 0.0
  %3362 = vmatprep.subr.mxu0 0.0
  %3363 = vmatpush1.xpose.msra.mxu0 %v3332
  %3364 = vmatprep.subr.mxu0 0.0
  %3365 = vmatpush1.xpose.msra.mxu0 %v3330
  %3366 = vmatprep.subr.mxu0 0.0
  %3367 = vmatpush2.xpose.msra.mxu0 0.0
  %3368 = vmatprep.subr.mxu0 0.0
  %3369 = vmatpush2.xpose.msra.mxu0 0.0
  %3370 = vmatprep.subr.mxu0 0.0
  %3371 = vmatpush2.xpose.msra.mxu0 0.0
  %3372 = vmatprep.subr.mxu0 0.0
  %3373 = vmatpush2.xpose.msra.mxu0 0.0
  %3374 = vmatprep.subr.mxu0 0.0
  %3375 = vmatpush2.xpose.msra.mxu0 0.0
  %3376 = vmatprep.subr.mxu0 0.0
  %3377 = vmatpush2.xpose.msra.mxu0 0.0
  %3378 = vmatprep.subr.mxu0 0.0
  %3379 = vmatpush2.xpose.msra.mxu0 0.0
  %3380 = vmatprep.subr.mxu0 0.0
  %3381 = vmatpush2.xpose.msra.mxu0 0.0
  %3382 = vmatprep.subr.mxu0 0.0
  %3383 = vmatpush2.xpose.msra.mxu0 0.0
  %3384 = vmatprep.subr.mxu0 0.0
  %3385 = vmatpush2.xpose.msra.mxu0 0.0
  %3386 = vmatprep.subr.mxu0 0.0
  %3387 = vmatpush2.xpose.msra.mxu0 0.0
  %3388 = vmatprep.subr.mxu0 0.0
  %3389 = vmatpush2.xpose.msra.mxu0 0.0
  %3390 = vmatprep.subr.mxu0 0.0
  %3391 = vmatpush2.xpose.msra.mxu0 0.0
  %3392 = vmatprep.subr.mxu0 0.0
  %3393 = vmatpush2.xpose.msra.mxu0 0.0
  %3394 = vmatprep.subr.mxu0 0.0
  %3395 = vmatpush2.xpose.msra.mxu0 0.0
  %3396 = vmatprep.subr.mxu0 0.0
  %3397 = vmatpush2.xpose.msra.mxu0 0.0
  %3398 = vmatprep.mubr.f32.mxu0 0.0
  %3399 = vmatmul.mubr.f32.gmra.mxu0 %v3326
  %v3400 = vpop.f32.mrf.mxu0
  %v3401 = vadd.f32 0.0, %v3400
  %v3402 = vpop.f32.mrf.mxu0
  %3403 = vmatprep.mubr.f32.mxu0 0.0
  %3404 = vmatmul.mubr.f32.gmra.mxu0 %v3328
  %v3405 = vpop.f32.mrf.mxu0
  %v3406 = vadd.f32 0.0, %v3405
  %v3407 = vpop.f32.mrf.mxu0
  %3408 = vdwg.mxu0
  %3409 = vrot.lane.b32.xlu0 %v957, 96
  %v3410 = vpop.permute.xlu0 %3409
  %3411 = vrot.lane.b32.xlu0 %v959, 96
  %v3412 = vpop.permute.xlu0 %3411
  %v3413 = vsel %vm976, %v957, 0
  %v3415 = vsel %vm976, %v959, 0
  %v3417 = vsel %vm976, %v3410, 0
  %v3419 = vsel %vm976, %v3412, 0
  %3421 = vmatprep.subr.mxu0 0.0
  %3422 = vmatpush1.xpose.msra.mxu0 0.0
  %3423 = vmatprep.subr.mxu0 0.0
  %3424 = vmatpush1.xpose.msra.mxu0 0.0
  %3425 = vmatprep.subr.mxu0 0.0
  %3426 = vmatpush1.xpose.msra.mxu0 0.0
  %3427 = vmatprep.subr.mxu0 0.0
  %3428 = vmatpush1.xpose.msra.mxu0 0.0
  %3429 = vmatprep.subr.mxu0 0.0
  %3430 = vmatpush1.xpose.msra.mxu0 0.0
  %3431 = vmatprep.subr.mxu0 0.0
  %3432 = vmatpush1.xpose.msra.mxu0 0.0
  %3433 = vmatprep.subr.mxu0 0.0
  %3434 = vmatpush1.xpose.msra.mxu0 0.0
  %3435 = vmatprep.subr.mxu0 0.0
  %3436 = vmatpush1.xpose.msra.mxu0 0.0
  %3437 = vmatprep.subr.mxu0 0.0
  %3438 = vmatpush1.xpose.msra.mxu0 0.0
  %3439 = vmatprep.subr.mxu0 0.0
  %3440 = vmatpush1.xpose.msra.mxu0 0.0
  %3441 = vmatprep.subr.mxu0 0.0
  %3442 = vmatpush1.xpose.msra.mxu0 0.0
  %3443 = vmatprep.subr.mxu0 0.0
  %3444 = vmatpush1.xpose.msra.mxu0 0.0
  %3445 = vmatprep.subr.mxu0 0.0
  %3446 = vmatpush1.xpose.msra.mxu0 0.0
  %3447 = vmatprep.subr.mxu0 0.0
  %3448 = vmatpush1.xpose.msra.mxu0 0.0
  %3449 = vmatprep.subr.mxu0 0.0
  %3450 = vmatpush1.xpose.msra.mxu0 %v3419
  %3451 = vmatprep.subr.mxu0 0.0
  %3452 = vmatpush1.xpose.msra.mxu0 %v3417
  %3453 = vmatprep.subr.mxu0 0.0
  %3454 = vmatpush2.xpose.msra.mxu0 0.0
  %3455 = vmatprep.subr.mxu0 0.0
  %3456 = vmatpush2.xpose.msra.mxu0 0.0
  %3457 = vmatprep.subr.mxu0 0.0
  %3458 = vmatpush2.xpose.msra.mxu0 0.0
  %3459 = vmatprep.subr.mxu0 0.0
  %3460 = vmatpush2.xpose.msra.mxu0 0.0
  %3461 = vmatprep.subr.mxu0 0.0
  %3462 = vmatpush2.xpose.msra.mxu0 0.0
  %3463 = vmatprep.subr.mxu0 0.0
  %3464 = vmatpush2.xpose.msra.mxu0 0.0
  %3465 = vmatprep.subr.mxu0 0.0
  %3466 = vmatpush2.xpose.msra.mxu0 0.0
  %3467 = vmatprep.subr.mxu0 0.0
  %3468 = vmatpush2.xpose.msra.mxu0 0.0
  %3469 = vmatprep.subr.mxu0 0.0
  %3470 = vmatpush2.xpose.msra.mxu0 0.0
  %3471 = vmatprep.subr.mxu0 0.0
  %3472 = vmatpush2.xpose.msra.mxu0 0.0
  %3473 = vmatprep.subr.mxu0 0.0
  %3474 = vmatpush2.xpose.msra.mxu0 0.0
  %3475 = vmatprep.subr.mxu0 0.0
  %3476 = vmatpush2.xpose.msra.mxu0 0.0
  %3477 = vmatprep.subr.mxu0 0.0
  %3478 = vmatpush2.xpose.msra.mxu0 0.0
  %3479 = vmatprep.subr.mxu0 0.0
  %3480 = vmatpush2.xpose.msra.mxu0 0.0
  %3481 = vmatprep.subr.mxu0 0.0
  %3482 = vmatpush2.xpose.msra.mxu0 0.0
  %3483 = vmatprep.subr.mxu0 0.0
  %3484 = vmatpush2.xpose.msra.mxu0 0.0
  %3485 = vmatprep.mubr.f32.mxu0 0.0
  %3486 = vmatmul.mubr.f32.gmra.mxu0 %v3413
  %v3487 = vpop.f32.mrf.mxu0
  %v3488 = vadd.f32 0.0, %v3487
  %v3489 = vpop.f32.mrf.mxu0
  %3490 = vmatprep.mubr.f32.mxu0 0.0
  %3491 = vmatmul.mubr.f32.gmra.mxu0 %v3415
  %v3492 = vpop.f32.mrf.mxu0
  %v3493 = vadd.f32 0.0, %v3492
  %v3494 = vpop.f32.mrf.mxu0
  %3495 = vdwg.mxu0
  %3496 = vrot.lane.b32.xlu0 %v961, 96
  %v3497 = vpop.permute.xlu0 %3496
  %3498 = vrot.lane.b32.xlu0 %v963, 96
  %v3499 = vpop.permute.xlu0 %3498
  %v3500 = vsel %vm976, %v961, 0
  %v3502 = vsel %vm976, %v963, 0
  %v3504 = vsel %vm976, %v3497, 0
  %v3506 = vsel %vm976, %v3499, 0
  %3508 = vmatprep.subr.mxu0 0.0
  %3509 = vmatpush1.xpose.msra.mxu0 0.0
  %3510 = vmatprep.subr.mxu0 0.0
  %3511 = vmatpush1.xpose.msra.mxu0 0.0
  %3512 = vmatprep.subr.mxu0 0.0
  %3513 = vmatpush1.xpose.msra.mxu0 0.0
  %3514 = vmatprep.subr.mxu0 0.0
  %3515 = vmatpush1.xpose.msra.mxu0 0.0
  %3516 = vmatprep.subr.mxu0 0.0
  %3517 = vmatpush1.xpose.msra.mxu0 0.0
  %3518 = vmatprep.subr.mxu0 0.0
  %3519 = vmatpush1.xpose.msra.mxu0 0.0
  %3520 = vmatprep.subr.mxu0 0.0
  %3521 = vmatpush1.xpose.msra.mxu0 0.0
  %3522 = vmatprep.subr.mxu0 0.0
  %3523 = vmatpush1.xpose.msra.mxu0 0.0
  %3524 = vmatprep.subr.mxu0 0.0
  %3525 = vmatpush1.xpose.msra.mxu0 0.0
  %3526 = vmatprep.subr.mxu0 0.0
  %3527 = vmatpush1.xpose.msra.mxu0 0.0
  %3528 = vmatprep.subr.mxu0 0.0
  %3529 = vmatpush1.xpose.msra.mxu0 0.0
  %3530 = vmatprep.subr.mxu0 0.0
  %3531 = vmatpush1.xpose.msra.mxu0 0.0
  %3532 = vmatprep.subr.mxu0 0.0
  %3533 = vmatpush1.xpose.msra.mxu0 0.0
  %3534 = vmatprep.subr.mxu0 0.0
  %3535 = vmatpush1.xpose.msra.mxu0 0.0
  %3536 = vmatprep.subr.mxu0 0.0
  %3537 = vmatpush1.xpose.msra.mxu0 %v3506
  %3538 = vmatprep.subr.mxu0 0.0
  %3539 = vmatpush1.xpose.msra.mxu0 %v3504
  %3540 = vmatprep.subr.mxu0 0.0
  %3541 = vmatpush2.xpose.msra.mxu0 0.0
  %3542 = vmatprep.subr.mxu0 0.0
  %3543 = vmatpush2.xpose.msra.mxu0 0.0
  %3544 = vmatprep.subr.mxu0 0.0
  %3545 = vmatpush2.xpose.msra.mxu0 0.0
  %3546 = vmatprep.subr.mxu0 0.0
  %3547 = vmatpush2.xpose.msra.mxu0 0.0
  %3548 = vmatprep.subr.mxu0 0.0
  %3549 = vmatpush2.xpose.msra.mxu0 0.0
  %3550 = vmatprep.subr.mxu0 0.0
  %3551 = vmatpush2.xpose.msra.mxu0 0.0
  %3552 = vmatprep.subr.mxu0 0.0
  %3553 = vmatpush2.xpose.msra.mxu0 0.0
  %3554 = vmatprep.subr.mxu0 0.0
  %3555 = vmatpush2.xpose.msra.mxu0 0.0
  %3556 = vmatprep.subr.mxu0 0.0
  %3557 = vmatpush2.xpose.msra.mxu0 0.0
  %3558 = vmatprep.subr.mxu0 0.0
  %3559 = vmatpush2.xpose.msra.mxu0 0.0
  %3560 = vmatprep.subr.mxu0 0.0
  %3561 = vmatpush2.xpose.msra.mxu0 0.0
  %3562 = vmatprep.subr.mxu0 0.0
  %3563 = vmatpush2.xpose.msra.mxu0 0.0
  %3564 = vmatprep.subr.mxu0 0.0
  %3565 = vmatpush2.xpose.msra.mxu0 0.0
  %3566 = vmatprep.subr.mxu0 0.0
  %3567 = vmatpush2.xpose.msra.mxu0 0.0
  %3568 = vmatprep.subr.mxu0 0.0
  %3569 = vmatpush2.xpose.msra.mxu0 0.0
  %3570 = vmatprep.subr.mxu0 0.0
  %3571 = vmatpush2.xpose.msra.mxu0 0.0
  %3572 = vmatprep.mubr.f32.mxu0 0.0
  %3573 = vmatmul.mubr.f32.gmra.mxu0 %v3500
  %v3574 = vpop.f32.mrf.mxu0
  %v3575 = vadd.f32 0.0, %v3574
  %v3576 = vpop.f32.mrf.mxu0
  %3577 = vmatprep.mubr.f32.mxu0 0.0
  %3578 = vmatmul.mubr.f32.gmra.mxu0 %v3502
  %v3579 = vpop.f32.mrf.mxu0
  %v3580 = vadd.f32 0.0, %v3579
  %v3581 = vpop.f32.mrf.mxu0
  %3582 = vdwg.mxu0
  %3583 = vrot.lane.b32.xlu0 %v965, 96
  %v3584 = vpop.permute.xlu0 %3583
  %3585 = vrot.lane.b32.xlu0 %v967, 96
  %v3586 = vpop.permute.xlu0 %3585
  %v3587 = vsel %vm976, %v965, 0
  %v3589 = vsel %vm976, %v967, 0
  %v3591 = vsel %vm976, %v3584, 0
  %v3593 = vsel %vm976, %v3586, 0
  %3595 = vmatprep.subr.mxu0 0.0
  %3596 = vmatpush1.xpose.msra.mxu0 0.0
  %3597 = vmatprep.subr.mxu0 0.0
  %3598 = vmatpush1.xpose.msra.mxu0 0.0
  %3599 = vmatprep.subr.mxu0 0.0
  %3600 = vmatpush1.xpose.msra.mxu0 0.0
  %3601 = vmatprep.subr.mxu0 0.0
  %3602 = vmatpush1.xpose.msra.mxu0 0.0
  %3603 = vmatprep.subr.mxu0 0.0
  %3604 = vmatpush1.xpose.msra.mxu0 0.0
  %3605 = vmatprep.subr.mxu0 0.0
  %3606 = vmatpush1.xpose.msra.mxu0 0.0
  %3607 = vmatprep.subr.mxu0 0.0
  %3608 = vmatpush1.xpose.msra.mxu0 0.0
  %3609 = vmatprep.subr.mxu0 0.0
  %3610 = vmatpush1.xpose.msra.mxu0 0.0
  %3611 = vmatprep.subr.mxu0 0.0
  %3612 = vmatpush1.xpose.msra.mxu0 0.0
  %3613 = vmatprep.subr.mxu0 0.0
  %3614 = vmatpush1.xpose.msra.mxu0 0.0
  %3615 = vmatprep.subr.mxu0 0.0
  %3616 = vmatpush1.xpose.msra.mxu0 0.0
  %3617 = vmatprep.subr.mxu0 0.0
  %3618 = vmatpush1.xpose.msra.mxu0 0.0
  %3619 = vmatprep.subr.mxu0 0.0
  %3620 = vmatpush1.xpose.msra.mxu0 0.0
  %3621 = vmatprep.subr.mxu0 0.0
  %3622 = vmatpush1.xpose.msra.mxu0 0.0
  %3623 = vmatprep.subr.mxu0 0.0
  %3624 = vmatpush1.xpose.msra.mxu0 %v3593
  %3625 = vmatprep.subr.mxu0 0.0
  %3626 = vmatpush1.xpose.msra.mxu0 %v3591
  %3627 = vmatprep.subr.mxu0 0.0
  %3628 = vmatpush2.xpose.msra.mxu0 0.0
  %3629 = vmatprep.subr.mxu0 0.0
  %3630 = vmatpush2.xpose.msra.mxu0 0.0
  %3631 = vmatprep.subr.mxu0 0.0
  %3632 = vmatpush2.xpose.msra.mxu0 0.0
  %3633 = vmatprep.subr.mxu0 0.0
  %3634 = vmatpush2.xpose.msra.mxu0 0.0
  %3635 = vmatprep.subr.mxu0 0.0
  %3636 = vmatpush2.xpose.msra.mxu0 0.0
  %3637 = vmatprep.subr.mxu0 0.0
  %3638 = vmatpush2.xpose.msra.mxu0 0.0
  %3639 = vmatprep.subr.mxu0 0.0
  %3640 = vmatpush2.xpose.msra.mxu0 0.0
  %3641 = vmatprep.subr.mxu0 0.0
  %3642 = vmatpush2.xpose.msra.mxu0 0.0
  %3643 = vmatprep.subr.mxu0 0.0
  %3644 = vmatpush2.xpose.msra.mxu0 0.0
  %3645 = vmatprep.subr.mxu0 0.0
  %3646 = vmatpush2.xpose.msra.mxu0 0.0
  %3647 = vmatprep.subr.mxu0 0.0
  %3648 = vmatpush2.xpose.msra.mxu0 0.0
  %3649 = vmatprep.subr.mxu0 0.0
  %3650 = vmatpush2.xpose.msra.mxu0 0.0
  %3651 = vmatprep.subr.mxu0 0.0
  %3652 = vmatpush2.xpose.msra.mxu0 0.0
  %3653 = vmatprep.subr.mxu0 0.0
  %3654 = vmatpush2.xpose.msra.mxu0 0.0
  %3655 = vmatprep.subr.mxu0 0.0
  %3656 = vmatpush2.xpose.msra.mxu0 0.0
  %3657 = vmatprep.subr.mxu0 0.0
  %3658 = vmatpush2.xpose.msra.mxu0 0.0
  %3659 = vmatprep.mubr.f32.mxu0 0.0
  %3660 = vmatmul.mubr.f32.gmra.mxu0 %v3587
  %v3661 = vpop.f32.mrf.mxu0
  %v3662 = vadd.f32 0.0, %v3661
  %v3663 = vpop.f32.mrf.mxu0
  %3664 = vmatprep.mubr.f32.mxu0 0.0
  %3665 = vmatmul.mubr.f32.gmra.mxu0 %v3589
  %v3666 = vpop.f32.mrf.mxu0
  %v3667 = vadd.f32 0.0, %v3666
  %v3668 = vpop.f32.mrf.mxu0
  %3669 = vdwg.mxu0
  %3670 = vrot.lane.b32.xlu0 %v969, 96
  %v3671 = vpop.permute.xlu0 %3670
  %3672 = vrot.lane.b32.xlu0 %v971, 96
  %v3673 = vpop.permute.xlu0 %3672
  %v3674 = vsel %vm976, %v969, 0
  %v3676 = vsel %vm976, %v971, 0
  %v3678 = vsel %vm976, %v3671, 0
  %v3680 = vsel %vm976, %v3673, 0
  %3682 = vmatprep.subr.mxu0 0.0
  %3683 = vmatpush1.xpose.msra.mxu0 0.0
  %3684 = vmatprep.subr.mxu0 0.0
  %3685 = vmatpush1.xpose.msra.mxu0 0.0
  %3686 = vmatprep.subr.mxu0 0.0
  %3687 = vmatpush1.xpose.msra.mxu0 0.0
  %3688 = vmatprep.subr.mxu0 0.0
  %3689 = vmatpush1.xpose.msra.mxu0 0.0
  %3690 = vmatprep.subr.mxu0 0.0
  %3691 = vmatpush1.xpose.msra.mxu0 0.0
  %3692 = vmatprep.subr.mxu0 0.0
  %3693 = vmatpush1.xpose.msra.mxu0 0.0
  %3694 = vmatprep.subr.mxu0 0.0
  %3695 = vmatpush1.xpose.msra.mxu0 0.0
  %3696 = vmatprep.subr.mxu0 0.0
  %3697 = vmatpush1.xpose.msra.mxu0 0.0
  %3698 = vmatprep.subr.mxu0 0.0
  %3699 = vmatpush1.xpose.msra.mxu0 0.0
  %3700 = vmatprep.subr.mxu0 0.0
  %3701 = vmatpush1.xpose.msra.mxu0 0.0
  %3702 = vmatprep.subr.mxu0 0.0
  %3703 = vmatpush1.xpose.msra.mxu0 0.0
  %3704 = vmatprep.subr.mxu0 0.0
  %3705 = vmatpush1.xpose.msra.mxu0 0.0
  %3706 = vmatprep.subr.mxu0 0.0
  %3707 = vmatpush1.xpose.msra.mxu0 0.0
  %3708 = vmatprep.subr.mxu0 0.0
  %3709 = vmatpush1.xpose.msra.mxu0 0.0
  %3710 = vmatprep.subr.mxu0 0.0
  %3711 = vmatpush1.xpose.msra.mxu0 %v3680
  %3712 = vmatprep.subr.mxu0 0.0
  %3713 = vmatpush1.xpose.msra.mxu0 %v3678
  %3714 = vmatprep.subr.mxu0 0.0
  %3715 = vmatpush2.xpose.msra.mxu0 0.0
  %3716 = vmatprep.subr.mxu0 0.0
  %3717 = vmatpush2.xpose.msra.mxu0 0.0
  %3718 = vmatprep.subr.mxu0 0.0
  %3719 = vmatpush2.xpose.msra.mxu0 0.0
  %3720 = vmatprep.subr.mxu0 0.0
  %3721 = vmatpush2.xpose.msra.mxu0 0.0
  %3722 = vmatprep.subr.mxu0 0.0
  %3723 = vmatpush2.xpose.msra.mxu0 0.0
  %3724 = vmatprep.subr.mxu0 0.0
  %3725 = vmatpush2.xpose.msra.mxu0 0.0
  %3726 = vmatprep.subr.mxu0 0.0
  %3727 = vmatpush2.xpose.msra.mxu0 0.0
  %3728 = vmatprep.subr.mxu0 0.0
  %3729 = vmatpush2.xpose.msra.mxu0 0.0
  %3730 = vmatprep.subr.mxu0 0.0
  %3731 = vmatpush2.xpose.msra.mxu0 0.0
  %3732 = vmatprep.subr.mxu0 0.0
  %3733 = vmatpush2.xpose.msra.mxu0 0.0
  %3734 = vmatprep.subr.mxu0 0.0
  %3735 = vmatpush2.xpose.msra.mxu0 0.0
  %3736 = vmatprep.subr.mxu0 0.0
  %3737 = vmatpush2.xpose.msra.mxu0 0.0
  %3738 = vmatprep.subr.mxu0 0.0
  %3739 = vmatpush2.xpose.msra.mxu0 0.0
  %3740 = vmatprep.subr.mxu0 0.0
  %3741 = vmatpush2.xpose.msra.mxu0 0.0
  %3742 = vmatprep.subr.mxu0 0.0
  %3743 = vmatpush2.xpose.msra.mxu0 0.0
  %3744 = vmatprep.subr.mxu0 0.0
  %3745 = vmatpush2.xpose.msra.mxu0 0.0
  %3746 = vmatprep.mubr.f32.mxu0 0.0
  %3747 = vmatmul.mubr.f32.gmra.mxu0 %v3674
  %v3748 = vpop.f32.mrf.mxu0
  %v3749 = vadd.f32 0.0, %v3748
  %v3750 = vpop.f32.mrf.mxu0
  %3751 = vmatprep.mubr.f32.mxu0 0.0
  %3752 = vmatmul.mubr.f32.gmra.mxu0 %v3676
  %v3753 = vpop.f32.mrf.mxu0
  %v3754 = vadd.f32 0.0, %v3753
  %v3755 = vpop.f32.mrf.mxu0
  %3756 = vdwg.mxu0
  %v3757 = vmul.f32 %v1052, 0.35355338
  %v3758 = vmul.f32 %v1057, 0.35355338
  %v3759 = vmul.f32 %v1139, 0.35355338
  %v3760 = vmul.f32 %v1144, 0.35355338
  %v3761 = vmul.f32 %v1226, 0.35355338
  %v3762 = vmul.f32 %v1231, 0.35355338
  %v3763 = vmul.f32 %v1313, 0.35355338
  %v3764 = vmul.f32 %v1318, 0.35355338
  %v3765 = vmul.f32 %v1400, 0.35355338
  %v3766 = vmul.f32 %v1405, 0.35355338
  %v3767 = vmul.f32 %v1487, 0.35355338
  %v3768 = vmul.f32 %v1492, 0.35355338
  %v3769 = vmul.f32 %v1574, 0.35355338
  %v3770 = vmul.f32 %v1579, 0.35355338
  %v3771 = vmul.f32 %v1661, 0.35355338
  %v3772 = vmul.f32 %v1666, 0.35355338
  %v3773 = vmul.f32 %v1748, 0.35355338
  %v3774 = vmul.f32 %v1753, 0.35355338
  %v3775 = vmul.f32 %v1835, 0.35355338
  %v3776 = vmul.f32 %v1840, 0.35355338
  %v3777 = vmul.f32 %v1922, 0.35355338
  %v3778 = vmul.f32 %v1927, 0.35355338
  %v3779 = vmul.f32 %v2009, 0.35355338
  %v3780 = vmul.f32 %v2014, 0.35355338
  %v3781 = vmul.f32 %v2096, 0.35355338
  %v3782 = vmul.f32 %v2101, 0.35355338
  %v3783 = vmul.f32 %v2183, 0.35355338
  %v3784 = vmul.f32 %v2188, 0.35355338
  %v3785 = vmul.f32 %v2270, 0.35355338
  %v3786 = vmul.f32 %v2275, 0.35355338
  %v3787 = vmul.f32 %v2357, 0.35355338
  %v3788 = vmul.f32 %v2362, 0.35355338
  %v3789 = vmul.f32 %v2444, 0.35355338
  %v3790 = vmul.f32 %v2449, 0.35355338
  %v3791 = vmul.f32 %v2531, 0.35355338
  %v3792 = vmul.f32 %v2536, 0.35355338
  %v3793 = vmul.f32 %v2618, 0.35355338
  %v3794 = vmul.f32 %v2623, 0.35355338
  %v3795 = vmul.f32 %v2705, 0.35355338
  %v3796 = vmul.f32 %v2710, 0.35355338
  %v3797 = vmul.f32 %v2792, 0.35355338
  %v3798 = vmul.f32 %v2797, 0.35355338
  %v3799 = vmul.f32 %v2879, 0.35355338
  %v3800 = vmul.f32 %v2884, 0.35355338
  %v3801 = vmul.f32 %v2966, 0.35355338
  %v3802 = vmul.f32 %v2971, 0.35355338
  %v3803 = vmul.f32 %v3053, 0.35355338
  %v3804 = vmul.f32 %v3058, 0.35355338
  %v3805 = vmul.f32 %v3140, 0.35355338
  %v3806 = vmul.f32 %v3145, 0.35355338
  %v3807 = vmul.f32 %v3227, 0.35355338
  %v3808 = vmul.f32 %v3232, 0.35355338
  %v3809 = vmul.f32 %v3314, 0.35355338
  %v3810 = vmul.f32 %v3319, 0.35355338
  %v3811 = vmul.f32 %v3401, 0.35355338
  %v3812 = vmul.f32 %v3406, 0.35355338
  %v3813 = vmul.f32 %v3488, 0.35355338
  %v3814 = vmul.f32 %v3493, 0.35355338
  %v3815 = vmul.f32 %v3575, 0.35355338
  %v3816 = vmul.f32 %v3580, 0.35355338
  %v3817 = vmul.f32 %v3662, 0.35355338
  %v3818 = vmul.f32 %v3667, 0.35355338
  %v3819 = vmul.f32 %v3749, 0.35355338
  %v3820 = vmul.f32 %v3754, 0.35355338
  %v3821 = vld [vmem:[%s3] sm:$0xff]
  %v3822 = vld [vmem:[%s3 + $0x8] sm:$0xff]
  %s3823 = scalar_lea.vmem %s3, 16
  %v3824 = vld [vmem:[%s3823] sm:$0xff]
  %v3825 = vld [vmem:[%s3823 + $0x8] sm:$0xff]
  %s3826 = scalar_lea.vmem %s3, 32
  %v3827 = vld [vmem:[%s3826] sm:$0xff]
  %v3828 = vld [vmem:[%s3826 + $0x8] sm:$0xff]
  %s3829 = scalar_lea.vmem %s3, 48
  %v3830 = vld [vmem:[%s3829] sm:$0xff]
  %v3831 = vld [vmem:[%s3829 + $0x8] sm:$0xff]
  %v3832 = vadd.f32 %v3757, %v3821
  %v3833 = vadd.f32 %v3758, %v3822
  %v3834 = vadd.f32 %v3759, %v3821
  %v3835 = vadd.f32 %v3760, %v3822
  %v3836 = vadd.f32 %v3761, %v3821
  %v3837 = vadd.f32 %v3762, %v3822
  %v3838 = vadd.f32 %v3763, %v3821
  %v3839 = vadd.f32 %v3764, %v3822
  %v3840 = vadd.f32 %v3765, %v3821
  %v3841 = vadd.f32 %v3766, %v3822
  %v3842 = vadd.f32 %v3767, %v3821
  %v3843 = vadd.f32 %v3768, %v3822
  %v3844 = vadd.f32 %v3769, %v3821
  %v3845 = vadd.f32 %v3770, %v3822
  %v3846 = vadd.f32 %v3771, %v3821
  %v3847 = vadd.f32 %v3772, %v3822
  %v3848 = vadd.f32 %v3773, %v3824
  %v3849 = vadd.f32 %v3774, %v3825
  %v3850 = vadd.f32 %v3775, %v3824
  %v3851 = vadd.f32 %v3776, %v3825
  %v3852 = vadd.f32 %v3777, %v3824
  %v3853 = vadd.f32 %v3778, %v3825
  %v3854 = vadd.f32 %v3779, %v3824
  %v3855 = vadd.f32 %v3780, %v3825
  %v3856 = vadd.f32 %v3781, %v3824
  %v3857 = vadd.f32 %v3782, %v3825
  %v3858 = vadd.f32 %v3783, %v3824
  %v3859 = vadd.f32 %v3784, %v3825
  %v3860 = vadd.f32 %v3785, %v3824
  %v3861 = vadd.f32 %v3786, %v3825
  %v3862 = vadd.f32 %v3787, %v3824
  %v3863 = vadd.f32 %v3788, %v3825
  %v3864 = vadd.f32 %v3789, %v3827
  %v3865 = vadd.f32 %v3790, %v3828
  %v3866 = vadd.f32 %v3791, %v3827
  %v3867 = vadd.f32 %v3792, %v3828
  %v3868 = vadd.f32 %v3793, %v3827
  %v3869 = vadd.f32 %v3794, %v3828
  %v3870 = vadd.f32 %v3795, %v3827
  %v3871 = vadd.f32 %v3796, %v3828
  %v3872 = vadd.f32 %v3797, %v3827
  %v3873 = vadd.f32 %v3798, %v3828
  %v3874 = vadd.f32 %v3799, %v3827
  %v3875 = vadd.f32 %v3800, %v3828
  %v3876 = vadd.f32 %v3801, %v3827
  %v3877 = vadd.f32 %v3802, %v3828
  %v3878 = vadd.f32 %v3803, %v3827
  %v3879 = vadd.f32 %v3804, %v3828
  %v3880 = vadd.f32 %v3805, %v3830
  %v3881 = vadd.f32 %v3806, %v3831
  %v3882 = vadd.f32 %v3807, %v3830
  %v3883 = vadd.f32 %v3808, %v3831
  %v3884 = vadd.f32 %v3809, %v3830
  %v3885 = vadd.f32 %v3810, %v3831
  %v3886 = vadd.f32 %v3811, %v3830
  %v3887 = vadd.f32 %v3812, %v3831
  %v3888 = vadd.f32 %v3813, %v3830
  %v3889 = vadd.f32 %v3814, %v3831
  %v3890 = vadd.f32 %v3815, %v3830
  %v3891 = vadd.f32 %v3816, %v3831
  %v3892 = vadd.f32 %v3817, %v3830
  %v3893 = vadd.f32 %v3818, %v3831
  %v3894 = vadd.f32 %v3819, %v3830
  %v3895 = vadd.f32 %v3820, %v3831
  %vm3896 = vcmask 130048
  %v3897 = vsel %vm3896, %v3832, -inf
  %3898 = vmax.xlane.f32.xlu0 %v3897
  %v3899 = vpop.xlane.xlu0 %3898
  %v3900 = vsel %vm3896, %v3833, -inf
  %3901 = vmax.xlane.f32.xlu0 %v3900
  %v3902 = vpop.xlane.xlu0 %3901
  %v3903 = vsel %vm3896, %v3834, -inf
  %3904 = vmax.xlane.f32.xlu0 %v3903
  %v3905 = vpop.xlane.xlu0 %3904
  %v3906 = vsel %vm3896, %v3835, -inf
  %3907 = vmax.xlane.f32.xlu0 %v3906
  %v3908 = vpop.xlane.xlu0 %3907
  %v3909 = vsel %vm3896, %v3836, -inf
  %3910 = vmax.xlane.f32.xlu0 %v3909
  %v3911 = vpop.xlane.xlu0 %3910
  %v3912 = vsel %vm3896, %v3837, -inf
  %3913 = vmax.xlane.f32.xlu0 %v3912
  %v3914 = vpop.xlane.xlu0 %3913
  %v3915 = vsel %vm3896, %v3838, -inf
  %3916 = vmax.xlane.f32.xlu0 %v3915
  %v3917 = vpop.xlane.xlu0 %3916
  %v3918 = vsel %vm3896, %v3839, -inf
  %3919 = vmax.xlane.f32.xlu0 %v3918
  %v3920 = vpop.xlane.xlu0 %3919
  %v3921 = vsel %vm3896, %v3840, -inf
  %3922 = vmax.xlane.f32.xlu0 %v3921
  %v3923 = vpop.xlane.xlu0 %3922
  %v3924 = vsel %vm3896, %v3841, -inf
  %3925 = vmax.xlane.f32.xlu0 %v3924
  %v3926 = vpop.xlane.xlu0 %3925
  %v3927 = vsel %vm3896, %v3842, -inf
  %3928 = vmax.xlane.f32.xlu0 %v3927
  %v3929 = vpop.xlane.xlu0 %3928
  %v3930 = vsel %vm3896, %v3843, -inf
  %3931 = vmax.xlane.f32.xlu0 %v3930
  %v3932 = vpop.xlane.xlu0 %3931
  %v3933 = vsel %vm3896, %v3844, -inf
  %3934 = vmax.xlane.f32.xlu0 %v3933
  %v3935 = vpop.xlane.xlu0 %3934
  %v3936 = vsel %vm3896, %v3845, -inf
  %3937 = vmax.xlane.f32.xlu0 %v3936
  %v3938 = vpop.xlane.xlu0 %3937
  %v3939 = vsel %vm3896, %v3846, -inf
  %3940 = vmax.xlane.f32.xlu0 %v3939
  %v3941 = vpop.xlane.xlu0 %3940
  %v3942 = vsel %vm3896, %v3847, -inf
  %3943 = vmax.xlane.f32.xlu0 %v3942
  %v3944 = vpop.xlane.xlu0 %3943
  %v3945 = vsel %vm3896, %v3848, -inf
  %3946 = vmax.xlane.f32.xlu0 %v3945
  %v3947 = vpop.xlane.xlu0 %3946
  %v3948 = vsel %vm3896, %v3849, -inf
  %3949 = vmax.xlane.f32.xlu0 %v3948
  %v3950 = vpop.xlane.xlu0 %3949
  %v3951 = vsel %vm3896, %v3850, -inf
  %3952 = vmax.xlane.f32.xlu0 %v3951
  %v3953 = vpop.xlane.xlu0 %3952
  %v3954 = vsel %vm3896, %v3851, -inf
  %3955 = vmax.xlane.f32.xlu0 %v3954
  %v3956 = vpop.xlane.xlu0 %3955
  %v3957 = vsel %vm3896, %v3852, -inf
  %3958 = vmax.xlane.f32.xlu0 %v3957
  %v3959 = vpop.xlane.xlu0 %3958
  %v3960 = vsel %vm3896, %v3853, -inf
  %3961 = vmax.xlane.f32.xlu0 %v3960
  %v3962 = vpop.xlane.xlu0 %3961
  %v3963 = vsel %vm3896, %v3854, -inf
  %3964 = vmax.xlane.f32.xlu0 %v3963
  %v3965 = vpop.xlane.xlu0 %3964
  %v3966 = vsel %vm3896, %v3855, -inf
  %3967 = vmax.xlane.f32.xlu0 %v3966
  %v3968 = vpop.xlane.xlu0 %3967
  %v3969 = vsel %vm3896, %v3856, -inf
  %3970 = vmax.xlane.f32.xlu0 %v3969
  %v3971 = vpop.xlane.xlu0 %3970
  %v3972 = vsel %vm3896, %v3857, -inf
  %3973 = vmax.xlane.f32.xlu0 %v3972
  %v3974 = vpop.xlane.xlu0 %3973
  %v3975 = vsel %vm3896, %v3858, -inf
  %3976 = vmax.xlane.f32.xlu0 %v3975
  %v3977 = vpop.xlane.xlu0 %3976
  %v3978 = vsel %vm3896, %v3859, -inf
  %3979 = vmax.xlane.f32.xlu0 %v3978
  %v3980 = vpop.xlane.xlu0 %3979
  %v3981 = vsel %vm3896, %v3860, -inf
  %3982 = vmax.xlane.f32.xlu0 %v3981
  %v3983 = vpop.xlane.xlu0 %3982
  %v3984 = vsel %vm3896, %v3861, -inf
  %3985 = vmax.xlane.f32.xlu0 %v3984
  %v3986 = vpop.xlane.xlu0 %3985
  %v3987 = vsel %vm3896, %v3862, -inf
  %3988 = vmax.xlane.f32.xlu0 %v3987
  %v3989 = vpop.xlane.xlu0 %3988
  %v3990 = vsel %vm3896, %v3863, -inf
  %3991 = vmax.xlane.f32.xlu0 %v3990
  %v3992 = vpop.xlane.xlu0 %3991
  %v3993 = vsel %vm3896, %v3864, -inf
  %3994 = vmax.xlane.f32.xlu0 %v3993
  %v3995 = vpop.xlane.xlu0 %3994
  %v3996 = vsel %vm3896, %v3865, -inf
  %3997 = vmax.xlane.f32.xlu0 %v3996
  %v3998 = vpop.xlane.xlu0 %3997
  %v3999 = vsel %vm3896, %v3866, -inf
  %4000 = vmax.xlane.f32.xlu0 %v3999
  %v4001 = vpop.xlane.xlu0 %4000
  %v4002 = vsel %vm3896, %v3867, -inf
  %4003 = vmax.xlane.f32.xlu0 %v4002
  %v4004 = vpop.xlane.xlu0 %4003
  %v4005 = vsel %vm3896, %v3868, -inf
  %4006 = vmax.xlane.f32.xlu0 %v4005
  %v4007 = vpop.xlane.xlu0 %4006
  %v4008 = vsel %vm3896, %v3869, -inf
  %4009 = vmax.xlane.f32.xlu0 %v4008
  %v4010 = vpop.xlane.xlu0 %4009
  %v4011 = vsel %vm3896, %v3870, -inf
  %4012 = vmax.xlane.f32.xlu0 %v4011
  %v4013 = vpop.xlane.xlu0 %4012
  %v4014 = vsel %vm3896, %v3871, -inf
  %4015 = vmax.xlane.f32.xlu0 %v4014
  %v4016 = vpop.xlane.xlu0 %4015
  %v4017 = vsel %vm3896, %v3872, -inf
  %4018 = vmax.xlane.f32.xlu0 %v4017
  %v4019 = vpop.xlane.xlu0 %4018
  %v4020 = vsel %vm3896, %v3873, -inf
  %4021 = vmax.xlane.f32.xlu0 %v4020
  %v4022 = vpop.xlane.xlu0 %4021
  %v4023 = vsel %vm3896, %v3874, -inf
  %4024 = vmax.xlane.f32.xlu0 %v4023
  %v4025 = vpop.xlane.xlu0 %4024
  %v4026 = vsel %vm3896, %v3875, -inf
  %4027 = vmax.xlane.f32.xlu0 %v4026
  %v4028 = vpop.xlane.xlu0 %4027
  %v4029 = vsel %vm3896, %v3876, -inf
  %4030 = vmax.xlane.f32.xlu0 %v4029
  %v4031 = vpop.xlane.xlu0 %4030
  %v4032 = vsel %vm3896, %v3877, -inf
  %4033 = vmax.xlane.f32.xlu0 %v4032
  %v4034 = vpop.xlane.xlu0 %4033
  %v4035 = vsel %vm3896, %v3878, -inf
  %4036 = vmax.xlane.f32.xlu0 %v4035
  %v4037 = vpop.xlane.xlu0 %4036
  %v4038 = vsel %vm3896, %v3879, -inf
  %4039 = vmax.xlane.f32.xlu0 %v4038
  %v4040 = vpop.xlane.xlu0 %4039
  %v4041 = vsel %vm3896, %v3880, -inf
  %4042 = vmax.xlane.f32.xlu0 %v4041
  %v4043 = vpop.xlane.xlu0 %4042
  %v4044 = vsel %vm3896, %v3881, -inf
  %4045 = vmax.xlane.f32.xlu0 %v4044
  %v4046 = vpop.xlane.xlu0 %4045
  %v4047 = vsel %vm3896, %v3882, -inf
  %4048 = vmax.xlane.f32.xlu0 %v4047
  %v4049 = vpop.xlane.xlu0 %4048
  %v4050 = vsel %vm3896, %v3883, -inf
  %4051 = vmax.xlane.f32.xlu0 %v4050
  %v4052 = vpop.xlane.xlu0 %4051
  %v4053 = vsel %vm3896, %v3884, -inf
  %4054 = vmax.xlane.f32.xlu0 %v4053
  %v4055 = vpop.xlane.xlu0 %4054
  %v4056 = vsel %vm3896, %v3885, -inf
  %4057 = vmax.xlane.f32.xlu0 %v4056
  %v4058 = vpop.xlane.xlu0 %4057
  %v4059 = vsel %vm3896, %v3886, -inf
  %4060 = vmax.xlane.f32.xlu0 %v4059
  %v4061 = vpop.xlane.xlu0 %4060
  %v4062 = vsel %vm3896, %v3887, -inf
  %4063 = vmax.xlane.f32.xlu0 %v4062
  %v4064 = vpop.xlane.xlu0 %4063
  %v4065 = vsel %vm3896, %v3888, -inf
  %4066 = vmax.xlane.f32.xlu0 %v4065
  %v4067 = vpop.xlane.xlu0 %4066
  %v4068 = vsel %vm3896, %v3889, -inf
  %4069 = vmax.xlane.f32.xlu0 %v4068
  %v4070 = vpop.xlane.xlu0 %4069
  %v4071 = vsel %vm3896, %v3890, -inf
  %4072 = vmax.xlane.f32.xlu0 %v4071
  %v4073 = vpop.xlane.xlu0 %4072
  %v4074 = vsel %vm3896, %v3891, -inf
  %4075 = vmax.xlane.f32.xlu0 %v4074
  %v4076 = vpop.xlane.xlu0 %4075
  %v4077 = vsel %vm3896, %v3892, -inf
  %4078 = vmax.xlane.f32.xlu0 %v4077
  %v4079 = vpop.xlane.xlu0 %4078
  %v4080 = vsel %vm3896, %v3893, -inf
  %4081 = vmax.xlane.f32.xlu0 %v4080
  %v4082 = vpop.xlane.xlu0 %4081
  %v4083 = vsel %vm3896, %v3894, -inf
  %4084 = vmax.xlane.f32.xlu0 %v4083
  %v4085 = vpop.xlane.xlu0 %4084
  %v4086 = vsel %vm3896, %v3895, -inf
  %4087 = vmax.xlane.f32.xlu0 %v4086
  %v4088 = vpop.xlane.xlu0 %4087
  %v4089 = vsub.f32 %v3832, %v3899
  %v4090 = vsub.f32 %v3833, %v3902
  %v4091 = vsub.f32 %v3834, %v3905
  %v4092 = vsub.f32 %v3835, %v3908
  %v4093 = vsub.f32 %v3836, %v3911
  %v4094 = vsub.f32 %v3837, %v3914
  %v4095 = vsub.f32 %v3838, %v3917
  %v4096 = vsub.f32 %v3839, %v3920
  %v4097 = vsub.f32 %v3840, %v3923
  %v4098 = vsub.f32 %v3841, %v3926
  %v4099 = vsub.f32 %v3842, %v3929
  %v4100 = vsub.f32 %v3843, %v3932
  %v4101 = vsub.f32 %v3844, %v3935
  %v4102 = vsub.f32 %v3845, %v3938
  %v4103 = vsub.f32 %v3846, %v3941
  %v4104 = vsub.f32 %v3847, %v3944
  %v4105 = vsub.f32 %v3848, %v3947
  %v4106 = vsub.f32 %v3849, %v3950
  %v4107 = vsub.f32 %v3850, %v3953
  %v4108 = vsub.f32 %v3851, %v3956
  %v4109 = vsub.f32 %v3852, %v3959
  %v4110 = vsub.f32 %v3853, %v3962
  %v4111 = vsub.f32 %v3854, %v3965
  %v4112 = vsub.f32 %v3855, %v3968
  %v4113 = vsub.f32 %v3856, %v3971
  %v4114 = vsub.f32 %v3857, %v3974
  %v4115 = vsub.f32 %v3858, %v3977
  %v4116 = vsub.f32 %v3859, %v3980
  %v4117 = vsub.f32 %v3860, %v3983
  %v4118 = vsub.f32 %v3861, %v3986
  %v4119 = vsub.f32 %v3862, %v3989
  %v4120 = vsub.f32 %v3863, %v3992
  %v4121 = vsub.f32 %v3864, %v3995
  %v4122 = vsub.f32 %v3865, %v3998
  %v4123 = vsub.f32 %v3866, %v4001
  %v4124 = vsub.f32 %v3867, %v4004
  %v4125 = vsub.f32 %v3868, %v4007
  %v4126 = vsub.f32 %v3869, %v4010
  %v4127 = vsub.f32 %v3870, %v4013
  %v4128 = vsub.f32 %v3871, %v4016
  %v4129 = vsub.f32 %v3872, %v4019
  %v4130 = vsub.f32 %v3873, %v4022
  %v4131 = vsub.f32 %v3874, %v4025
  %v4132 = vsub.f32 %v3875, %v4028
  %v4133 = vsub.f32 %v3876, %v4031
  %v4134 = vsub.f32 %v3877, %v4034
  %v4135 = vsub.f32 %v3878, %v4037
  %v4136 = vsub.f32 %v3879, %v4040
  %v4137 = vsub.f32 %v3880, %v4043
  %v4138 = vsub.f32 %v3881, %v4046
  %v4139 = vsub.f32 %v3882, %v4049
  %v4140 = vsub.f32 %v3883, %v4052
  %v4141 = vsub.f32 %v3884, %v4055
  %v4142 = vsub.f32 %v3885, %v4058
  %v4143 = vsub.f32 %v3886, %v4061
  %v4144 = vsub.f32 %v3887, %v4064
  %v4145 = vsub.f32 %v3888, %v4067
  %v4146 = vsub.f32 %v3889, %v4070
  %v4147 = vsub.f32 %v3890, %v4073
  %v4148 = vsub.f32 %v3891, %v4076
  %v4149 = vsub.f32 %v3892, %v4079
  %v4150 = vsub.f32 %v3893, %v4082
  %v4151 = vsub.f32 %v3894, %v4085
  %v4152 = vsub.f32 %v3895, %v4088
  %v4153 = vmul.f32 %v4089, 1.442695
  %v4154 = vpow.pop %v4153
  %v4155 = vmul.f32 %v4090, 1.442695
  %v4156 = vpow.pop %v4155
  %v4157 = vmul.f32 %v4091, 1.442695
  %v4158 = vpow.pop %v4157
  %v4159 = vmul.f32 %v4092, 1.442695
  %v4160 = vpow.pop %v4159
  %v4161 = vmul.f32 %v4093, 1.442695
  %v4162 = vpow.pop %v4161
  %v4163 = vmul.f32 %v4094, 1.442695
  %v4164 = vpow.pop %v4163
  %v4165 = vmul.f32 %v4095, 1.442695
  %v4166 = vpow.pop %v4165
  %v4167 = vmul.f32 %v4096, 1.442695
  %v4168 = vpow.pop %v4167
  %v4169 = vmul.f32 %v4097, 1.442695
  %v4170 = vpow.pop %v4169
  %v4171 = vmul.f32 %v4098, 1.442695
  %v4172 = vpow.pop %v4171
  %v4173 = vmul.f32 %v4099, 1.442695
  %v4174 = vpow.pop %v4173
  %v4175 = vmul.f32 %v4100, 1.442695
  %v4176 = vpow.pop %v4175
  %v4177 = vmul.f32 %v4101, 1.442695
  %v4178 = vpow.pop %v4177
  %v4179 = vmul.f32 %v4102, 1.442695
  %v4180 = vpow.pop %v4179
  %v4181 = vmul.f32 %v4103, 1.442695
  %v4182 = vpow.pop %v4181
  %v4183 = vmul.f32 %v4104, 1.442695
  %v4184 = vpow.pop %v4183
  %v4185 = vmul.f32 %v4105, 1.442695
  %v4186 = vpow.pop %v4185
  %v4187 = vmul.f32 %v4106, 1.442695
  %v4188 = vpow.pop %v4187
  %v4189 = vmul.f32 %v4107, 1.442695
  %v4190 = vpow.pop %v4189
  %v4191 = vmul.f32 %v4108, 1.442695
  %v4192 = vpow.pop %v4191
  %v4193 = vmul.f32 %v4109, 1.442695
  %v4194 = vpow.pop %v4193
  %v4195 = vmul.f32 %v4110, 1.442695
  %v4196 = vpow.pop %v4195
  %v4197 = vmul.f32 %v4111, 1.442695
  %v4198 = vpow.pop %v4197
  %v4199 = vmul.f32 %v4112, 1.442695
  %v4200 = vpow.pop %v4199
  %v4201 = vmul.f32 %v4113, 1.442695
  %v4202 = vpow.pop %v4201
  %v4203 = vmul.f32 %v4114, 1.442695
  %v4204 = vpow.pop %v4203
  %v4205 = vmul.f32 %v4115, 1.442695
  %v4206 = vpow.pop %v4205
  %v4207 = vmul.f32 %v4116, 1.442695
  %v4208 = vpow.pop %v4207
  %v4209 = vmul.f32 %v4117, 1.442695
  %v4210 = vpow.pop %v4209
  %v4211 = vmul.f32 %v4118, 1.442695
  %v4212 = vpow.pop %v4211
  %v4213 = vmul.f32 %v4119, 1.442695
  %v4214 = vpow.pop %v4213
  %v4215 = vmul.f32 %v4120, 1.442695
  %v4216 = vpow.pop %v4215
  %v4217 = vmul.f32 %v4121, 1.442695
  %v4218 = vpow.pop %v4217
  %v4219 = vmul.f32 %v4122, 1.442695
  %v4220 = vpow.pop %v4219
  %v4221 = vmul.f32 %v4123, 1.442695
  %v4222 = vpow.pop %v4221
  %v4223 = vmul.f32 %v4124, 1.442695
  %v4224 = vpow.pop %v4223
  %v4225 = vmul.f32 %v4125, 1.442695
  %v4226 = vpow.pop %v4225
  %v4227 = vmul.f32 %v4126, 1.442695
  %v4228 = vpow.pop %v4227
  %v4229 = vmul.f32 %v4127, 1.442695
  %v4230 = vpow.pop %v4229
  %v4231 = vmul.f32 %v4128, 1.442695
  %v4232 = vpow.pop %v4231
  %v4233 = vmul.f32 %v4129, 1.442695
  %v4234 = vpow.pop %v4233
  %v4235 = vmul.f32 %v4130, 1.442695
  %v4236 = vpow.pop %v4235
  %v4237 = vmul.f32 %v4131, 1.442695
  %v4238 = vpow.pop %v4237
  %v4239 = vmul.f32 %v4132, 1.442695
  %v4240 = vpow.pop %v4239
  %v4241 = vmul.f32 %v4133, 1.442695
  %v4242 = vpow.pop %v4241
  %v4243 = vmul.f32 %v4134, 1.442695
  %v4244 = vpow.pop %v4243
  %v4245 = vmul.f32 %v4135, 1.442695
  %v4246 = vpow.pop %v4245
  %v4247 = vmul.f32 %v4136, 1.442695
  %v4248 = vpow.pop %v4247
  %v4249 = vmul.f32 %v4137, 1.442695
  %v4250 = vpow.pop %v4249
  %v4251 = vmul.f32 %v4138, 1.442695
  %v4252 = vpow.pop %v4251
  %v4253 = vmul.f32 %v4139, 1.442695
  %v4254 = vpow.pop %v4253
  %v4255 = vmul.f32 %v4140, 1.442695
  %v4256 = vpow.pop %v4255
  %v4257 = vmul.f32 %v4141, 1.442695
  %v4258 = vpow.pop %v4257
  %v4259 = vmul.f32 %v4142, 1.442695
  %v4260 = vpow.pop %v4259
  %v4261 = vmul.f32 %v4143, 1.442695
  %v4262 = vpow.pop %v4261
  %v4263 = vmul.f32 %v4144, 1.442695
  %v4264 = vpow.pop %v4263
  %v4265 = vmul.f32 %v4145, 1.442695
  %v4266 = vpow.pop %v4265
  %v4267 = vmul.f32 %v4146, 1.442695
  %v4268 = vpow.pop %v4267
  %v4269 = vmul.f32 %v4147, 1.442695
  %v4270 = vpow.pop %v4269
  %v4271 = vmul.f32 %v4148, 1.442695
  %v4272 = vpow.pop %v4271
  %v4273 = vmul.f32 %v4149, 1.442695
  %v4274 = vpow.pop %v4273
  %v4275 = vmul.f32 %v4150, 1.442695
  %v4276 = vpow.pop %v4275
  %v4277 = vmul.f32 %v4151, 1.442695
  %v4278 = vpow.pop %v4277
  %v4279 = vmul.f32 %v4152, 1.442695
  %v4280 = vpow.pop %v4279
  %v4281 = vsel %vm3896, %v4154, 0.0
  %4282 = vadd.xlane.f32.xlu0 %v4281
  %v4283 = vpop.xlane.xlu0 %4282
  %v4284 = vsel %vm3896, %v4156, 0.0
  %4285 = vadd.xlane.f32.xlu0 %v4284
  %v4286 = vpop.xlane.xlu0 %4285
  %v4287 = vsel %vm3896, %v4158, 0.0
  %4288 = vadd.xlane.f32.xlu0 %v4287
  %v4289 = vpop.xlane.xlu0 %4288
  %v4290 = vsel %vm3896, %v4160, 0.0
  %4291 = vadd.xlane.f32.xlu0 %v4290
  %v4292 = vpop.xlane.xlu0 %4291
  %v4293 = vsel %vm3896, %v4162, 0.0
  %4294 = vadd.xlane.f32.xlu0 %v4293
  %v4295 = vpop.xlane.xlu0 %4294
  %v4296 = vsel %vm3896, %v4164, 0.0
  %4297 = vadd.xlane.f32.xlu0 %v4296
  %v4298 = vpop.xlane.xlu0 %4297
  %v4299 = vsel %vm3896, %v4166, 0.0
  %4300 = vadd.xlane.f32.xlu0 %v4299
  %v4301 = vpop.xlane.xlu0 %4300
  %v4302 = vsel %vm3896, %v4168, 0.0
  %4303 = vadd.xlane.f32.xlu0 %v4302
  %v4304 = vpop.xlane.xlu0 %4303
  %v4305 = vsel %vm3896, %v4170, 0.0
  %4306 = vadd.xlane.f32.xlu0 %v4305
  %v4307 = vpop.xlane.xlu0 %4306
  %v4308 = vsel %vm3896, %v4172, 0.0
  %4309 = vadd.xlane.f32.xlu0 %v4308
  %v4310 = vpop.xlane.xlu0 %4309
  %v4311 = vsel %vm3896, %v4174, 0.0
  %4312 = vadd.xlane.f32.xlu0 %v4311
  %v4313 = vpop.xlane.xlu0 %4312
  %v4314 = vsel %vm3896, %v4176, 0.0
  %4315 = vadd.xlane.f32.xlu0 %v4314
  %v4316 = vpop.xlane.xlu0 %4315
  %v4317 = vsel %vm3896, %v4178, 0.0
  %4318 = vadd.xlane.f32.xlu0 %v4317
  %v4319 = vpop.xlane.xlu0 %4318
  %v4320 = vsel %vm3896, %v4180, 0.0
  %4321 = vadd.xlane.f32.xlu0 %v4320
  %v4322 = vpop.xlane.xlu0 %4321
  %v4323 = vsel %vm3896, %v4182, 0.0
  %4324 = vadd.xlane.f32.xlu0 %v4323
  %v4325 = vpop.xlane.xlu0 %4324
  %v4326 = vsel %vm3896, %v4184, 0.0
  %4327 = vadd.xlane.f32.xlu0 %v4326
  %v4328 = vpop.xlane.xlu0 %4327
  %v4329 = vsel %vm3896, %v4186, 0.0
  %4330 = vadd.xlane.f32.xlu0 %v4329
  %v4331 = vpop.xlane.xlu0 %4330
  %v4332 = vsel %vm3896, %v4188, 0.0
  %4333 = vadd.xlane.f32.xlu0 %v4332
  %v4334 = vpop.xlane.xlu0 %4333
  %v4335 = vsel %vm3896, %v4190, 0.0
  %4336 = vadd.xlane.f32.xlu0 %v4335
  %v4337 = vpop.xlane.xlu0 %4336
  %v4338 = vsel %vm3896, %v4192, 0.0
  %4339 = vadd.xlane.f32.xlu0 %v4338
  %v4340 = vpop.xlane.xlu0 %4339
  %v4341 = vsel %vm3896, %v4194, 0.0
  %4342 = vadd.xlane.f32.xlu0 %v4341
  %v4343 = vpop.xlane.xlu0 %4342
  %v4344 = vsel %vm3896, %v4196, 0.0
  %4345 = vadd.xlane.f32.xlu0 %v4344
  %v4346 = vpop.xlane.xlu0 %4345
  %v4347 = vsel %vm3896, %v4198, 0.0
  %4348 = vadd.xlane.f32.xlu0 %v4347
  %v4349 = vpop.xlane.xlu0 %4348
  %v4350 = vsel %vm3896, %v4200, 0.0
  %4351 = vadd.xlane.f32.xlu0 %v4350
  %v4352 = vpop.xlane.xlu0 %4351
  %v4353 = vsel %vm3896, %v4202, 0.0
  %4354 = vadd.xlane.f32.xlu0 %v4353
  %v4355 = vpop.xlane.xlu0 %4354
  %v4356 = vsel %vm3896, %v4204, 0.0
  %4357 = vadd.xlane.f32.xlu0 %v4356
  %v4358 = vpop.xlane.xlu0 %4357
  %v4359 = vsel %vm3896, %v4206, 0.0
  %4360 = vadd.xlane.f32.xlu0 %v4359
  %v4361 = vpop.xlane.xlu0 %4360
  %v4362 = vsel %vm3896, %v4208, 0.0
  %4363 = vadd.xlane.f32.xlu0 %v4362
  %v4364 = vpop.xlane.xlu0 %4363
  %v4365 = vsel %vm3896, %v4210, 0.0
  %4366 = vadd.xlane.f32.xlu0 %v4365
  %v4367 = vpop.xlane.xlu0 %4366
  %v4368 = vsel %vm3896, %v4212, 0.0
  %4369 = vadd.xlane.f32.xlu0 %v4368
  %v4370 = vpop.xlane.xlu0 %4369
  %v4371 = vsel %vm3896, %v4214, 0.0
  %4372 = vadd.xlane.f32.xlu0 %v4371
  %v4373 = vpop.xlane.xlu0 %4372
  %v4374 = vsel %vm3896, %v4216, 0.0
  %4375 = vadd.xlane.f32.xlu0 %v4374
  %v4376 = vpop.xlane.xlu0 %4375
  %v4377 = vsel %vm3896, %v4218, 0.0
  %4378 = vadd.xlane.f32.xlu0 %v4377
  %v4379 = vpop.xlane.xlu0 %4378
  %v4380 = vsel %vm3896, %v4220, 0.0
  %4381 = vadd.xlane.f32.xlu0 %v4380
  %v4382 = vpop.xlane.xlu0 %4381
  %v4383 = vsel %vm3896, %v4222, 0.0
  %4384 = vadd.xlane.f32.xlu0 %v4383
  %v4385 = vpop.xlane.xlu0 %4384
  %v4386 = vsel %vm3896, %v4224, 0.0
  %4387 = vadd.xlane.f32.xlu0 %v4386
  %v4388 = vpop.xlane.xlu0 %4387
  %v4389 = vsel %vm3896, %v4226, 0.0
  %4390 = vadd.xlane.f32.xlu0 %v4389
  %v4391 = vpop.xlane.xlu0 %4390
  %v4392 = vsel %vm3896, %v4228, 0.0
  %4393 = vadd.xlane.f32.xlu0 %v4392
  %v4394 = vpop.xlane.xlu0 %4393
  %v4395 = vsel %vm3896, %v4230, 0.0
  %4396 = vadd.xlane.f32.xlu0 %v4395
  %v4397 = vpop.xlane.xlu0 %4396
  %v4398 = vsel %vm3896, %v4232, 0.0
  %4399 = vadd.xlane.f32.xlu0 %v4398
  %v4400 = vpop.xlane.xlu0 %4399
  %v4401 = vsel %vm3896, %v4234, 0.0
  %4402 = vadd.xlane.f32.xlu0 %v4401
  %v4403 = vpop.xlane.xlu0 %4402
  %v4404 = vsel %vm3896, %v4236, 0.0
  %4405 = vadd.xlane.f32.xlu0 %v4404
  %v4406 = vpop.xlane.xlu0 %4405
  %v4407 = vsel %vm3896, %v4238, 0.0
  %4408 = vadd.xlane.f32.xlu0 %v4407
  %v4409 = vpop.xlane.xlu0 %4408
  %v4410 = vsel %vm3896, %v4240, 0.0
  %4411 = vadd.xlane.f32.xlu0 %v4410
  %v4412 = vpop.xlane.xlu0 %4411
  %v4413 = vsel %vm3896, %v4242, 0.0
  %4414 = vadd.xlane.f32.xlu0 %v4413
  %v4415 = vpop.xlane.xlu0 %4414
  %v4416 = vsel %vm3896, %v4244, 0.0
  %4417 = vadd.xlane.f32.xlu0 %v4416
  %v4418 = vpop.xlane.xlu0 %4417
  %v4419 = vsel %vm3896, %v4246, 0.0
  %4420 = vadd.xlane.f32.xlu0 %v4419
  %v4421 = vpop.xlane.xlu0 %4420
  %v4422 = vsel %vm3896, %v4248, 0.0
  %4423 = vadd.xlane.f32.xlu0 %v4422
  %v4424 = vpop.xlane.xlu0 %4423
  %v4425 = vsel %vm3896, %v4250, 0.0
  %4426 = vadd.xlane.f32.xlu0 %v4425
  %v4427 = vpop.xlane.xlu0 %4426
  %v4428 = vsel %vm3896, %v4252, 0.0
  %4429 = vadd.xlane.f32.xlu0 %v4428
  %v4430 = vpop.xlane.xlu0 %4429
  %v4431 = vsel %vm3896, %v4254, 0.0
  %4432 = vadd.xlane.f32.xlu0 %v4431
  %v4433 = vpop.xlane.xlu0 %4432
  %v4434 = vsel %vm3896, %v4256, 0.0
  %4435 = vadd.xlane.f32.xlu0 %v4434
  %v4436 = vpop.xlane.xlu0 %4435
  %v4437 = vsel %vm3896, %v4258, 0.0
  %4438 = vadd.xlane.f32.xlu0 %v4437
  %v4439 = vpop.xlane.xlu0 %4438
  %v4440 = vsel %vm3896, %v4260, 0.0
  %4441 = vadd.xlane.f32.xlu0 %v4440
  %v4442 = vpop.xlane.xlu0 %4441
  %v4443 = vsel %vm3896, %v4262, 0.0
  %4444 = vadd.xlane.f32.xlu0 %v4443
  %v4445 = vpop.xlane.xlu0 %4444
  %v4446 = vsel %vm3896, %v4264, 0.0
  %4447 = vadd.xlane.f32.xlu0 %v4446
  %v4448 = vpop.xlane.xlu0 %4447
  %v4449 = vsel %vm3896, %v4266, 0.0
  %4450 = vadd.xlane.f32.xlu0 %v4449
  %v4451 = vpop.xlane.xlu0 %4450
  %v4452 = vsel %vm3896, %v4268, 0.0
  %4453 = vadd.xlane.f32.xlu0 %v4452
  %v4454 = vpop.xlane.xlu0 %4453
  %v4455 = vsel %vm3896, %v4270, 0.0
  %4456 = vadd.xlane.f32.xlu0 %v4455
  %v4457 = vpop.xlane.xlu0 %4456
  %v4458 = vsel %vm3896, %v4272, 0.0
  %4459 = vadd.xlane.f32.xlu0 %v4458
  %v4460 = vpop.xlane.xlu0 %4459
  %v4461 = vsel %vm3896, %v4274, 0.0
  %4462 = vadd.xlane.f32.xlu0 %v4461
  %v4463 = vpop.xlane.xlu0 %4462
  %v4464 = vsel %vm3896, %v4276, 0.0
  %4465 = vadd.xlane.f32.xlu0 %v4464
  %v4466 = vpop.xlane.xlu0 %4465
  %v4467 = vsel %vm3896, %v4278, 0.0
  %4468 = vadd.xlane.f32.xlu0 %v4467
  %v4469 = vpop.xlane.xlu0 %4468
  %v4470 = vsel %vm3896, %v4280, 0.0
  %4471 = vadd.xlane.f32.xlu0 %v4470
  %v4472 = vpop.xlane.xlu0 %4471
  %v4473 = vrcp.pop %v4283
  %v4474 = vmul.f32 %v4154, %v4473
  %v4475 = vrcp.pop %v4286
  %v4476 = vmul.f32 %v4156, %v4475
  %v4477 = vrcp.pop %v4289
  %v4478 = vmul.f32 %v4158, %v4477
  %v4479 = vrcp.pop %v4292
  %v4480 = vmul.f32 %v4160, %v4479
  %v4481 = vrcp.pop %v4295
  %v4482 = vmul.f32 %v4162, %v4481
  %v4483 = vrcp.pop %v4298
  %v4484 = vmul.f32 %v4164, %v4483
  %v4485 = vrcp.pop %v4301
  %v4486 = vmul.f32 %v4166, %v4485
  %v4487 = vrcp.pop %v4304
  %v4488 = vmul.f32 %v4168, %v4487
  %v4489 = vrcp.pop %v4307
  %v4490 = vmul.f32 %v4170, %v4489
  %v4491 = vrcp.pop %v4310
  %v4492 = vmul.f32 %v4172, %v4491
  %v4493 = vrcp.pop %v4313
  %v4494 = vmul.f32 %v4174, %v4493
  %v4495 = vrcp.pop %v4316
  %v4496 = vmul.f32 %v4176, %v4495
  %v4497 = vrcp.pop %v4319
  %v4498 = vmul.f32 %v4178, %v4497
  %v4499 = vrcp.pop %v4322
  %v4500 = vmul.f32 %v4180, %v4499
  %v4501 = vrcp.pop %v4325
  %v4502 = vmul.f32 %v4182, %v4501
  %v4503 = vrcp.pop %v4328
  %v4504 = vmul.f32 %v4184, %v4503
  %v4505 = vrcp.pop %v4331
  %v4506 = vmul.f32 %v4186, %v4505
  %v4507 = vrcp.pop %v4334
  %v4508 = vmul.f32 %v4188, %v4507
  %v4509 = vrcp.pop %v4337
  %v4510 = vmul.f32 %v4190, %v4509
  %v4511 = vrcp.pop %v4340
  %v4512 = vmul.f32 %v4192, %v4511
  %v4513 = vrcp.pop %v4343
  %v4514 = vmul.f32 %v4194, %v4513
  %v4515 = vrcp.pop %v4346
  %v4516 = vmul.f32 %v4196, %v4515
  %v4517 = vrcp.pop %v4349
  %v4518 = vmul.f32 %v4198, %v4517
  %v4519 = vrcp.pop %v4352
  %v4520 = vmul.f32 %v4200, %v4519
  %v4521 = vrcp.pop %v4355
  %v4522 = vmul.f32 %v4202, %v4521
  %v4523 = vrcp.pop %v4358
  %v4524 = vmul.f32 %v4204, %v4523
  %v4525 = vrcp.pop %v4361
  %v4526 = vmul.f32 %v4206, %v4525
  %v4527 = vrcp.pop %v4364
  %v4528 = vmul.f32 %v4208, %v4527
  %v4529 = vrcp.pop %v4367
  %v4530 = vmul.f32 %v4210, %v4529
  %v4531 = vrcp.pop %v4370
  %v4532 = vmul.f32 %v4212, %v4531
  %v4533 = vrcp.pop %v4373
  %v4534 = vmul.f32 %v4214, %v4533
  %v4535 = vrcp.pop %v4376
  %v4536 = vmul.f32 %v4216, %v4535
  %v4537 = vrcp.pop %v4379
  %v4538 = vmul.f32 %v4218, %v4537
  %v4539 = vrcp.pop %v4382
  %v4540 = vmul.f32 %v4220, %v4539
  %v4541 = vrcp.pop %v4385
  %v4542 = vmul.f32 %v4222, %v4541
  %v4543 = vrcp.pop %v4388
  %v4544 = vmul.f32 %v4224, %v4543
  %v4545 = vrcp.pop %v4391
  %v4546 = vmul.f32 %v4226, %v4545
  %v4547 = vrcp.pop %v4394
  %v4548 = vmul.f32 %v4228, %v4547
  %v4549 = vrcp.pop %v4397
  %v4550 = vmul.f32 %v4230, %v4549
  %v4551 = vrcp.pop %v4400
  %v4552 = vmul.f32 %v4232, %v4551
  %v4553 = vrcp.pop %v4403
  %v4554 = vmul.f32 %v4234, %v4553
  %v4555 = vrcp.pop %v4406
  %v4556 = vmul.f32 %v4236, %v4555
  %v4557 = vrcp.pop %v4409
  %v4558 = vmul.f32 %v4238, %v4557
  %v4559 = vrcp.pop %v4412
  %v4560 = vmul.f32 %v4240, %v4559
  %v4561 = vrcp.pop %v4415
  %v4562 = vmul.f32 %v4242, %v4561
  %v4563 = vrcp.pop %v4418
  %v4564 = vmul.f32 %v4244, %v4563
  %v4565 = vrcp.pop %v4421
  %v4566 = vmul.f32 %v4246, %v4565
  %v4567 = vrcp.pop %v4424
  %v4568 = vmul.f32 %v4248, %v4567
  %v4569 = vrcp.pop %v4427
  %v4570 = vmul.f32 %v4250, %v4569
  %v4571 = vrcp.pop %v4430
  %v4572 = vmul.f32 %v4252, %v4571
  %v4573 = vrcp.pop %v4433
  %v4574 = vmul.f32 %v4254, %v4573
  %v4575 = vrcp.pop %v4436
  %v4576 = vmul.f32 %v4256, %v4575
  %v4577 = vrcp.pop %v4439
  %v4578 = vmul.f32 %v4258, %v4577
  %v4579 = vrcp.pop %v4442
  %v4580 = vmul.f32 %v4260, %v4579
  %v4581 = vrcp.pop %v4445
  %v4582 = vmul.f32 %v4262, %v4581
  %v4583 = vrcp.pop %v4448
  %v4584 = vmul.f32 %v4264, %v4583
  %v4585 = vrcp.pop %v4451
  %v4586 = vmul.f32 %v4266, %v4585
  %v4587 = vrcp.pop %v4454
  %v4588 = vmul.f32 %v4268, %v4587
  %v4589 = vrcp.pop %v4457
  %v4590 = vmul.f32 %v4270, %v4589
  %v4591 = vrcp.pop %v4460
  %v4592 = vmul.f32 %v4272, %v4591
  %v4593 = vrcp.pop %v4463
  %v4594 = vmul.f32 %v4274, %v4593
  %v4595 = vrcp.pop %v4466
  %v4596 = vmul.f32 %v4276, %v4595
  %v4597 = vrcp.pop %v4469
  %v4598 = vmul.f32 %v4278, %v4597
  %v4599 = vrcp.pop %v4472
  %v4600 = vmul.f32 %v4280, %v4599
  %4601 = vrot.lane.b32.xlu0 %v798, 64
  %v4602 = vpop.permute.xlu0 %4601
  %4603 = vrot.lane.b32.xlu0 %v801, 64
  %v4604 = vpop.permute.xlu0 %4603
  %v4608 = vsel %vm3896, %v4474, 0
  %v4611 = vsel %vm3896, %v4476, 0
  %4613 = vmatprep.subr.mxu0 0.0
  %4614 = vmatpush1.msra.mxu0 0.0
  %4615 = vmatprep.subr.mxu0 0.0
  %4616 = vmatpush1.msra.mxu0 0.0
  %4617 = vmatprep.subr.mxu0 0.0
  %4618 = vmatpush1.msra.mxu0 0.0
  %4619 = vmatprep.subr.mxu0 0.0
  %4620 = vmatpush1.msra.mxu0 0.0
  %4621 = vmatprep.subr.mxu0 0.0
  %4622 = vmatpush1.msra.mxu0 0.0
  %4623 = vmatprep.subr.mxu0 0.0
  %4624 = vmatpush1.msra.mxu0 0.0
  %4625 = vmatprep.subr.mxu0 0.0
  %4626 = vmatpush1.msra.mxu0 0.0
  %4627 = vmatprep.subr.mxu0 0.0
  %4628 = vmatpush1.msra.mxu0 0.0
  %4629 = vmatprep.subr.mxu0 0.0
  %4630 = vmatpush1.msra.mxu0 0.0
  %4631 = vmatprep.subr.mxu0 0.0
  %4632 = vmatpush1.msra.mxu0 0.0
  %4633 = vmatprep.subr.mxu0 0.0
  %4634 = vmatpush1.msra.mxu0 0.0
  %4635 = vmatprep.subr.mxu0 0.0
  %4636 = vmatpush1.msra.mxu0 0.0
  %4637 = vmatprep.subr.mxu0 0.0
  %4638 = vmatpush1.msra.mxu0 0.0
  %4639 = vmatprep.subr.mxu0 0.0
  %4640 = vmatpush1.msra.mxu0 0.0
  %4641 = vmatprep.subr.mxu0 0.0
  %4642 = vmatpush1.msra.mxu0 %v4604
  %4643 = vmatprep.subr.mxu0 0.0
  %4644 = vmatpush1.msra.mxu0 %v4602
  %4645 = vmatprep.subr.mxu0 0.0
  %4646 = vmatpush2.msra.mxu0 0.0
  %4647 = vmatprep.subr.mxu0 0.0
  %4648 = vmatpush2.msra.mxu0 0.0
  %4649 = vmatprep.subr.mxu0 0.0
  %4650 = vmatpush2.msra.mxu0 0.0
  %4651 = vmatprep.subr.mxu0 0.0
  %4652 = vmatpush2.msra.mxu0 0.0
  %4653 = vmatprep.subr.mxu0 0.0
  %4654 = vmatpush2.msra.mxu0 0.0
  %4655 = vmatprep.subr.mxu0 0.0
  %4656 = vmatpush2.msra.mxu0 0.0
  %4657 = vmatprep.subr.mxu0 0.0
  %4658 = vmatpush2.msra.mxu0 0.0
  %4659 = vmatprep.subr.mxu0 0.0
  %4660 = vmatpush2.msra.mxu0 0.0
  %4661 = vmatprep.subr.mxu0 0.0
  %4662 = vmatpush2.msra.mxu0 0.0
  %4663 = vmatprep.subr.mxu0 0.0
  %4664 = vmatpush2.msra.mxu0 0.0
  %4665 = vmatprep.subr.mxu0 0.0
  %4666 = vmatpush2.msra.mxu0 0.0
  %4667 = vmatprep.subr.mxu0 0.0
  %4668 = vmatpush2.msra.mxu0 0.0
  %4669 = vmatprep.subr.mxu0 0.0
  %4670 = vmatpush2.msra.mxu0 0.0
  %4671 = vmatprep.subr.mxu0 0.0
  %4672 = vmatpush2.msra.mxu0 0.0
  %4673 = vmatprep.subr.mxu0 0.0
  %4674 = vmatpush2.msra.mxu0 0.0
  %4675 = vmatprep.subr.mxu0 0.0
  %4676 = vmatpush2.msra.mxu0 0.0
  %4677 = vmatprep.mubr.f32.mxu0 0.0
  %4678 = vmatmul.mubr.f32.gmra.mxu0 %v4608
  %v4679 = vpop.f32.mrf.mxu0
  %v4680 = vadd.f32 0.0, %v4679
  %v4681 = vpop.f32.mrf.mxu0
  %4682 = vmatprep.mubr.f32.mxu0 0.0
  %4683 = vmatmul.mubr.f32.gmra.mxu0 %v4611
  %v4684 = vpop.f32.mrf.mxu0
  %v4685 = vadd.f32 0.0, %v4684
  %v4686 = vpop.f32.mrf.mxu0
  %4687 = vdwg.mxu0
  %4688 = vrot.lane.b32.xlu0 %v806, 64
  %v4689 = vpop.permute.xlu0 %4688
  %4690 = vrot.lane.b32.xlu0 %v809, 64
  %v4691 = vpop.permute.xlu0 %4690
  %v4695 = vsel %vm3896, %v4478, 0
  %v4698 = vsel %vm3896, %v4480, 0
  %4700 = vmatprep.subr.mxu0 0.0
  %4701 = vmatpush1.msra.mxu0 0.0
  %4702 = vmatprep.subr.mxu0 0.0
  %4703 = vmatpush1.msra.mxu0 0.0
  %4704 = vmatprep.subr.mxu0 0.0
  %4705 = vmatpush1.msra.mxu0 0.0
  %4706 = vmatprep.subr.mxu0 0.0
  %4707 = vmatpush1.msra.mxu0 0.0
  %4708 = vmatprep.subr.mxu0 0.0
  %4709 = vmatpush1.msra.mxu0 0.0
  %4710 = vmatprep.subr.mxu0 0.0
  %4711 = vmatpush1.msra.mxu0 0.0
  %4712 = vmatprep.subr.mxu0 0.0
  %4713 = vmatpush1.msra.mxu0 0.0
  %4714 = vmatprep.subr.mxu0 0.0
  %4715 = vmatpush1.msra.mxu0 0.0
  %4716 = vmatprep.subr.mxu0 0.0
  %4717 = vmatpush1.msra.mxu0 0.0
  %4718 = vmatprep.subr.mxu0 0.0
  %4719 = vmatpush1.msra.mxu0 0.0
  %4720 = vmatprep.subr.mxu0 0.0
  %4721 = vmatpush1.msra.mxu0 0.0
  %4722 = vmatprep.subr.mxu0 0.0
  %4723 = vmatpush1.msra.mxu0 0.0
  %4724 = vmatprep.subr.mxu0 0.0
  %4725 = vmatpush1.msra.mxu0 0.0
  %4726 = vmatprep.subr.mxu0 0.0
  %4727 = vmatpush1.msra.mxu0 0.0
  %4728 = vmatprep.subr.mxu0 0.0
  %4729 = vmatpush1.msra.mxu0 %v4691
  %4730 = vmatprep.subr.mxu0 0.0
  %4731 = vmatpush1.msra.mxu0 %v4689
  %4732 = vmatprep.subr.mxu0 0.0
  %4733 = vmatpush2.msra.mxu0 0.0
  %4734 = vmatprep.subr.mxu0 0.0
  %4735 = vmatpush2.msra.mxu0 0.0
  %4736 = vmatprep.subr.mxu0 0.0
  %4737 = vmatpush2.msra.mxu0 0.0
  %4738 = vmatprep.subr.mxu0 0.0
  %4739 = vmatpush2.msra.mxu0 0.0
  %4740 = vmatprep.subr.mxu0 0.0
  %4741 = vmatpush2.msra.mxu0 0.0
  %4742 = vmatprep.subr.mxu0 0.0
  %4743 = vmatpush2.msra.mxu0 0.0
  %4744 = vmatprep.subr.mxu0 0.0
  %4745 = vmatpush2.msra.mxu0 0.0
  %4746 = vmatprep.subr.mxu0 0.0
  %4747 = vmatpush2.msra.mxu0 0.0
  %4748 = vmatprep.subr.mxu0 0.0
  %4749 = vmatpush2.msra.mxu0 0.0
  %4750 = vmatprep.subr.mxu0 0.0
  %4751 = vmatpush2.msra.mxu0 0.0
  %4752 = vmatprep.subr.mxu0 0.0
  %4753 = vmatpush2.msra.mxu0 0.0
  %4754 = vmatprep.subr.mxu0 0.0
  %4755 = vmatpush2.msra.mxu0 0.0
  %4756 = vmatprep.subr.mxu0 0.0
  %4757 = vmatpush2.msra.mxu0 0.0
  %4758 = vmatprep.subr.mxu0 0.0
  %4759 = vmatpush2.msra.mxu0 0.0
  %4760 = vmatprep.subr.mxu0 0.0
  %4761 = vmatpush2.msra.mxu0 0.0
  %4762 = vmatprep.subr.mxu0 0.0
  %4763 = vmatpush2.msra.mxu0 0.0
  %4764 = vmatprep.mubr.f32.mxu0 0.0
  %4765 = vmatmul.mubr.f32.gmra.mxu0 %v4695
  %v4766 = vpop.f32.mrf.mxu0
  %v4767 = vadd.f32 0.0, %v4766
  %v4768 = vpop.f32.mrf.mxu0
  %4769 = vmatprep.mubr.f32.mxu0 0.0
  %4770 = vmatmul.mubr.f32.gmra.mxu0 %v4698
  %v4771 = vpop.f32.mrf.mxu0
  %v4772 = vadd.f32 0.0, %v4771
  %v4773 = vpop.f32.mrf.mxu0
  %4774 = vdwg.mxu0
  %4775 = vrot.lane.b32.xlu0 %v814, 64
  %v4776 = vpop.permute.xlu0 %4775
  %4777 = vrot.lane.b32.xlu0 %v817, 64
  %v4778 = vpop.permute.xlu0 %4777
  %v4782 = vsel %vm3896, %v4482, 0
  %v4785 = vsel %vm3896, %v4484, 0
  %4787 = vmatprep.subr.mxu0 0.0
  %4788 = vmatpush1.msra.mxu0 0.0
  %4789 = vmatprep.subr.mxu0 0.0
  %4790 = vmatpush1.msra.mxu0 0.0
  %4791 = vmatprep.subr.mxu0 0.0
  %4792 = vmatpush1.msra.mxu0 0.0
  %4793 = vmatprep.subr.mxu0 0.0
  %4794 = vmatpush1.msra.mxu0 0.0
  %4795 = vmatprep.subr.mxu0 0.0
  %4796 = vmatpush1.msra.mxu0 0.0
  %4797 = vmatprep.subr.mxu0 0.0
  %4798 = vmatpush1.msra.mxu0 0.0
  %4799 = vmatprep.subr.mxu0 0.0
  %4800 = vmatpush1.msra.mxu0 0.0
  %4801 = vmatprep.subr.mxu0 0.0
  %4802 = vmatpush1.msra.mxu0 0.0
  %4803 = vmatprep.subr.mxu0 0.0
  %4804 = vmatpush1.msra.mxu0 0.0
  %4805 = vmatprep.subr.mxu0 0.0
  %4806 = vmatpush1.msra.mxu0 0.0
  %4807 = vmatprep.subr.mxu0 0.0
  %4808 = vmatpush1.msra.mxu0 0.0
  %4809 = vmatprep.subr.mxu0 0.0
  %4810 = vmatpush1.msra.mxu0 0.0
  %4811 = vmatprep.subr.mxu0 0.0
  %4812 = vmatpush1.msra.mxu0 0.0
  %4813 = vmatprep.subr.mxu0 0.0
  %4814 = vmatpush1.msra.mxu0 0.0
  %4815 = vmatprep.subr.mxu0 0.0
  %4816 = vmatpush1.msra.mxu0 %v4778
  %4817 = vmatprep.subr.mxu0 0.0
  %4818 = vmatpush1.msra.mxu0 %v4776
  %4819 = vmatprep.subr.mxu0 0.0
  %4820 = vmatpush2.msra.mxu0 0.0
  %4821 = vmatprep.subr.mxu0 0.0
  %4822 = vmatpush2.msra.mxu0 0.0
  %4823 = vmatprep.subr.mxu0 0.0
  %4824 = vmatpush2.msra.mxu0 0.0
  %4825 = vmatprep.subr.mxu0 0.0
  %4826 = vmatpush2.msra.mxu0 0.0
  %4827 = vmatprep.subr.mxu0 0.0
  %4828 = vmatpush2.msra.mxu0 0.0
  %4829 = vmatprep.subr.mxu0 0.0
  %4830 = vmatpush2.msra.mxu0 0.0
  %4831 = vmatprep.subr.mxu0 0.0
  %4832 = vmatpush2.msra.mxu0 0.0
  %4833 = vmatprep.subr.mxu0 0.0
  %4834 = vmatpush2.msra.mxu0 0.0
  %4835 = vmatprep.subr.mxu0 0.0
  %4836 = vmatpush2.msra.mxu0 0.0
  %4837 = vmatprep.subr.mxu0 0.0
  %4838 = vmatpush2.msra.mxu0 0.0
  %4839 = vmatprep.subr.mxu0 0.0
  %4840 = vmatpush2.msra.mxu0 0.0
  %4841 = vmatprep.subr.mxu0 0.0
  %4842 = vmatpush2.msra.mxu0 0.0
  %4843 = vmatprep.subr.mxu0 0.0
  %4844 = vmatpush2.msra.mxu0 0.0
  %4845 = vmatprep.subr.mxu0 0.0
  %4846 = vmatpush2.msra.mxu0 0.0
  %4847 = vmatprep.subr.mxu0 0.0
  %4848 = vmatpush2.msra.mxu0 0.0
  %4849 = vmatprep.subr.mxu0 0.0
  %4850 = vmatpush2.msra.mxu0 0.0
  %4851 = vmatprep.mubr.f32.mxu0 0.0
  %4852 = vmatmul.mubr.f32.gmra.mxu0 %v4782
  %v4853 = vpop.f32.mrf.mxu0
  %v4854 = vadd.f32 0.0, %v4853
  %v4855 = vpop.f32.mrf.mxu0
  %4856 = vmatprep.mubr.f32.mxu0 0.0
  %4857 = vmatmul.mubr.f32.gmra.mxu0 %v4785
  %v4858 = vpop.f32.mrf.mxu0
  %v4859 = vadd.f32 0.0, %v4858
  %v4860 = vpop.f32.mrf.mxu0
  %4861 = vdwg.mxu0
  %4862 = vrot.lane.b32.xlu0 %v822, 64
  %v4863 = vpop.permute.xlu0 %4862
  %4864 = vrot.lane.b32.xlu0 %v825, 64
  %v4865 = vpop.permute.xlu0 %4864
  %v4869 = vsel %vm3896, %v4486, 0
  %v4872 = vsel %vm3896, %v4488, 0
  %4874 = vmatprep.subr.mxu0 0.0
  %4875 = vmatpush1.msra.mxu0 0.0
  %4876 = vmatprep.subr.mxu0 0.0
  %4877 = vmatpush1.msra.mxu0 0.0
  %4878 = vmatprep.subr.mxu0 0.0
  %4879 = vmatpush1.msra.mxu0 0.0
  %4880 = vmatprep.subr.mxu0 0.0
  %4881 = vmatpush1.msra.mxu0 0.0
  %4882 = vmatprep.subr.mxu0 0.0
  %4883 = vmatpush1.msra.mxu0 0.0
  %4884 = vmatprep.subr.mxu0 0.0
  %4885 = vmatpush1.msra.mxu0 0.0
  %4886 = vmatprep.subr.mxu0 0.0
  %4887 = vmatpush1.msra.mxu0 0.0
  %4888 = vmatprep.subr.mxu0 0.0
  %4889 = vmatpush1.msra.mxu0 0.0
  %4890 = vmatprep.subr.mxu0 0.0
  %4891 = vmatpush1.msra.mxu0 0.0
  %4892 = vmatprep.subr.mxu0 0.0
  %4893 = vmatpush1.msra.mxu0 0.0
  %4894 = vmatprep.subr.mxu0 0.0
  %4895 = vmatpush1.msra.mxu0 0.0
  %4896 = vmatprep.subr.mxu0 0.0
  %4897 = vmatpush1.msra.mxu0 0.0
  %4898 = vmatprep.subr.mxu0 0.0
  %4899 = vmatpush1.msra.mxu0 0.0
  %4900 = vmatprep.subr.mxu0 0.0
  %4901 = vmatpush1.msra.mxu0 0.0
  %4902 = vmatprep.subr.mxu0 0.0
  %4903 = vmatpush1.msra.mxu0 %v4865
  %4904 = vmatprep.subr.mxu0 0.0
  %4905 = vmatpush1.msra.mxu0 %v4863
  %4906 = vmatprep.subr.mxu0 0.0
  %4907 = vmatpush2.msra.mxu0 0.0
  %4908 = vmatprep.subr.mxu0 0.0
  %4909 = vmatpush2.msra.mxu0 0.0
  %4910 = vmatprep.subr.mxu0 0.0
  %4911 = vmatpush2.msra.mxu0 0.0
  %4912 = vmatprep.subr.mxu0 0.0
  %4913 = vmatpush2.msra.mxu0 0.0
  %4914 = vmatprep.subr.mxu0 0.0
  %4915 = vmatpush2.msra.mxu0 0.0
  %4916 = vmatprep.subr.mxu0 0.0
  %4917 = vmatpush2.msra.mxu0 0.0
  %4918 = vmatprep.subr.mxu0 0.0
  %4919 = vmatpush2.msra.mxu0 0.0
  %4920 = vmatprep.subr.mxu0 0.0
  %4921 = vmatpush2.msra.mxu0 0.0
  %4922 = vmatprep.subr.mxu0 0.0
  %4923 = vmatpush2.msra.mxu0 0.0
  %4924 = vmatprep.subr.mxu0 0.0
  %4925 = vmatpush2.msra.mxu0 0.0
  %4926 = vmatprep.subr.mxu0 0.0
  %4927 = vmatpush2.msra.mxu0 0.0
  %4928 = vmatprep.subr.mxu0 0.0
  %4929 = vmatpush2.msra.mxu0 0.0
  %4930 = vmatprep.subr.mxu0 0.0
  %4931 = vmatpush2.msra.mxu0 0.0
  %4932 = vmatprep.subr.mxu0 0.0
  %4933 = vmatpush2.msra.mxu0 0.0
  %4934 = vmatprep.subr.mxu0 0.0
  %4935 = vmatpush2.msra.mxu0 0.0
  %4936 = vmatprep.subr.mxu0 0.0
  %4937 = vmatpush2.msra.mxu0 0.0
  %4938 = vmatprep.mubr.f32.mxu0 0.0
  %4939 = vmatmul.mubr.f32.gmra.mxu0 %v4869
  %v4940 = vpop.f32.mrf.mxu0
  %v4941 = vadd.f32 0.0, %v4940
  %v4942 = vpop.f32.mrf.mxu0
  %4943 = vmatprep.mubr.f32.mxu0 0.0
  %4944 = vmatmul.mubr.f32.gmra.mxu0 %v4872
  %v4945 = vpop.f32.mrf.mxu0
  %v4946 = vadd.f32 0.0, %v4945
  %v4947 = vpop.f32.mrf.mxu0
  %4948 = vdwg.mxu0
  %4949 = vrot.lane.b32.xlu0 %v830, 64
  %v4950 = vpop.permute.xlu0 %4949
  %4951 = vrot.lane.b32.xlu0 %v833, 64
  %v4952 = vpop.permute.xlu0 %4951
  %v4956 = vsel %vm3896, %v4490, 0
  %v4959 = vsel %vm3896, %v4492, 0
  %4961 = vmatprep.subr.mxu0 0.0
  %4962 = vmatpush1.msra.mxu0 0.0
  %4963 = vmatprep.subr.mxu0 0.0
  %4964 = vmatpush1.msra.mxu0 0.0
  %4965 = vmatprep.subr.mxu0 0.0
  %4966 = vmatpush1.msra.mxu0 0.0
  %4967 = vmatprep.subr.mxu0 0.0
  %4968 = vmatpush1.msra.mxu0 0.0
  %4969 = vmatprep.subr.mxu0 0.0
  %4970 = vmatpush1.msra.mxu0 0.0
  %4971 = vmatprep.subr.mxu0 0.0
  %4972 = vmatpush1.msra.mxu0 0.0
  %4973 = vmatprep.subr.mxu0 0.0
  %4974 = vmatpush1.msra.mxu0 0.0
  %4975 = vmatprep.subr.mxu0 0.0
  %4976 = vmatpush1.msra.mxu0 0.0
  %4977 = vmatprep.subr.mxu0 0.0
  %4978 = vmatpush1.msra.mxu0 0.0
  %4979 = vmatprep.subr.mxu0 0.0
  %4980 = vmatpush1.msra.mxu0 0.0
  %4981 = vmatprep.subr.mxu0 0.0
  %4982 = vmatpush1.msra.mxu0 0.0
  %4983 = vmatprep.subr.mxu0 0.0
  %4984 = vmatpush1.msra.mxu0 0.0
  %4985 = vmatprep.subr.mxu0 0.0
  %4986 = vmatpush1.msra.mxu0 0.0
  %4987 = vmatprep.subr.mxu0 0.0
  %4988 = vmatpush1.msra.mxu0 0.0
  %4989 = vmatprep.subr.mxu0 0.0
  %4990 = vmatpush1.msra.mxu0 %v4952
  %4991 = vmatprep.subr.mxu0 0.0
  %4992 = vmatpush1.msra.mxu0 %v4950
  %4993 = vmatprep.subr.mxu0 0.0
  %4994 = vmatpush2.msra.mxu0 0.0
  %4995 = vmatprep.subr.mxu0 0.0
  %4996 = vmatpush2.msra.mxu0 0.0
  %4997 = vmatprep.subr.mxu0 0.0
  %4998 = vmatpush2.msra.mxu0 0.0
  %4999 = vmatprep.subr.mxu0 0.0
  %5000 = vmatpush2.msra.mxu0 0.0
  %5001 = vmatprep.subr.mxu0 0.0
  %5002 = vmatpush2.msra.mxu0 0.0
  %5003 = vmatprep.subr.mxu0 0.0
  %5004 = vmatpush2.msra.mxu0 0.0
  %5005 = vmatprep.subr.mxu0 0.0
  %5006 = vmatpush2.msra.mxu0 0.0
  %5007 = vmatprep.subr.mxu0 0.0
  %5008 = vmatpush2.msra.mxu0 0.0
  %5009 = vmatprep.subr.mxu0 0.0
  %5010 = vmatpush2.msra.mxu0 0.0
  %5011 = vmatprep.subr.mxu0 0.0
  %5012 = vmatpush2.msra.mxu0 0.0
  %5013 = vmatprep.subr.mxu0 0.0
  %5014 = vmatpush2.msra.mxu0 0.0
  %5015 = vmatprep.subr.mxu0 0.0
  %5016 = vmatpush2.msra.mxu0 0.0
  %5017 = vmatprep.subr.mxu0 0.0
  %5018 = vmatpush2.msra.mxu0 0.0
  %5019 = vmatprep.subr.mxu0 0.0
  %5020 = vmatpush2.msra.mxu0 0.0
  %5021 = vmatprep.subr.mxu0 0.0
  %5022 = vmatpush2.msra.mxu0 0.0
  %5023 = vmatprep.subr.mxu0 0.0
  %5024 = vmatpush2.msra.mxu0 0.0
  %5025 = vmatprep.mubr.f32.mxu0 0.0
  %5026 = vmatmul.mubr.f32.gmra.mxu0 %v4956
  %v5027 = vpop.f32.mrf.mxu0
  %v5028 = vadd.f32 0.0, %v5027
  %v5029 = vpop.f32.mrf.mxu0
  %5030 = vmatprep.mubr.f32.mxu0 0.0
  %5031 = vmatmul.mubr.f32.gmra.mxu0 %v4959
  %v5032 = vpop.f32.mrf.mxu0
  %v5033 = vadd.f32 0.0, %v5032
  %v5034 = vpop.f32.mrf.mxu0
  %5035 = vdwg.mxu0
  %5036 = vrot.lane.b32.xlu0 %v838, 64
  %v5037 = vpop.permute.xlu0 %5036
  %5038 = vrot.lane.b32.xlu0 %v841, 64
  %v5039 = vpop.permute.xlu0 %5038
  %v5043 = vsel %vm3896, %v4494, 0
  %v5046 = vsel %vm3896, %v4496, 0
  %5048 = vmatprep.subr.mxu0 0.0
  %5049 = vmatpush1.msra.mxu0 0.0
  %5050 = vmatprep.subr.mxu0 0.0
  %5051 = vmatpush1.msra.mxu0 0.0
  %5052 = vmatprep.subr.mxu0 0.0
  %5053 = vmatpush1.msra.mxu0 0.0
  %5054 = vmatprep.subr.mxu0 0.0
  %5055 = vmatpush1.msra.mxu0 0.0
  %5056 = vmatprep.subr.mxu0 0.0
  %5057 = vmatpush1.msra.mxu0 0.0
  %5058 = vmatprep.subr.mxu0 0.0
  %5059 = vmatpush1.msra.mxu0 0.0
  %5060 = vmatprep.subr.mxu0 0.0
  %5061 = vmatpush1.msra.mxu0 0.0
  %5062 = vmatprep.subr.mxu0 0.0
  %5063 = vmatpush1.msra.mxu0 0.0
  %5064 = vmatprep.subr.mxu0 0.0
  %5065 = vmatpush1.msra.mxu0 0.0
  %5066 = vmatprep.subr.mxu0 0.0
  %5067 = vmatpush1.msra.mxu0 0.0
  %5068 = vmatprep.subr.mxu0 0.0
  %5069 = vmatpush1.msra.mxu0 0.0
  %5070 = vmatprep.subr.mxu0 0.0
  %5071 = vmatpush1.msra.mxu0 0.0
  %5072 = vmatprep.subr.mxu0 0.0
  %5073 = vmatpush1.msra.mxu0 0.0
  %5074 = vmatprep.subr.mxu0 0.0
  %5075 = vmatpush1.msra.mxu0 0.0
  %5076 = vmatprep.subr.mxu0 0.0
  %5077 = vmatpush1.msra.mxu0 %v5039
  %5078 = vmatprep.subr.mxu0 0.0
  %5079 = vmatpush1.msra.mxu0 %v5037
  %5080 = vmatprep.subr.mxu0 0.0
  %5081 = vmatpush2.msra.mxu0 0.0
  %5082 = vmatprep.subr.mxu0 0.0
  %5083 = vmatpush2.msra.mxu0 0.0
  %5084 = vmatprep.subr.mxu0 0.0
  %5085 = vmatpush2.msra.mxu0 0.0
  %5086 = vmatprep.subr.mxu0 0.0
  %5087 = vmatpush2.msra.mxu0 0.0
  %5088 = vmatprep.subr.mxu0 0.0
  %5089 = vmatpush2.msra.mxu0 0.0
  %5090 = vmatprep.subr.mxu0 0.0
  %5091 = vmatpush2.msra.mxu0 0.0
  %5092 = vmatprep.subr.mxu0 0.0
  %5093 = vmatpush2.msra.mxu0 0.0
  %5094 = vmatprep.subr.mxu0 0.0
  %5095 = vmatpush2.msra.mxu0 0.0
  %5096 = vmatprep.subr.mxu0 0.0
  %5097 = vmatpush2.msra.mxu0 0.0
  %5098 = vmatprep.subr.mxu0 0.0
  %5099 = vmatpush2.msra.mxu0 0.0
  %5100 = vmatprep.subr.mxu0 0.0
  %5101 = vmatpush2.msra.mxu0 0.0
  %5102 = vmatprep.subr.mxu0 0.0
  %5103 = vmatpush2.msra.mxu0 0.0
  %5104 = vmatprep.subr.mxu0 0.0
  %5105 = vmatpush2.msra.mxu0 0.0
  %5106 = vmatprep.subr.mxu0 0.0
  %5107 = vmatpush2.msra.mxu0 0.0
  %5108 = vmatprep.subr.mxu0 0.0
  %5109 = vmatpush2.msra.mxu0 0.0
  %5110 = vmatprep.subr.mxu0 0.0
  %5111 = vmatpush2.msra.mxu0 0.0
  %5112 = vmatprep.mubr.f32.mxu0 0.0
  %5113 = vmatmul.mubr.f32.gmra.mxu0 %v5043
  %v5114 = vpop.f32.mrf.mxu0
  %v5115 = vadd.f32 0.0, %v5114
  %v5116 = vpop.f32.mrf.mxu0
  %5117 = vmatprep.mubr.f32.mxu0 0.0
  %5118 = vmatmul.mubr.f32.gmra.mxu0 %v5046
  %v5119 = vpop.f32.mrf.mxu0
  %v5120 = vadd.f32 0.0, %v5119
  %v5121 = vpop.f32.mrf.mxu0
  %5122 = vdwg.mxu0
  %5123 = vrot.lane.b32.xlu0 %v846, 64
  %v5124 = vpop.permute.xlu0 %5123
  %5125 = vrot.lane.b32.xlu0 %v849, 64
  %v5126 = vpop.permute.xlu0 %5125
  %v5130 = vsel %vm3896, %v4498, 0
  %v5133 = vsel %vm3896, %v4500, 0
  %5135 = vmatprep.subr.mxu0 0.0
  %5136 = vmatpush1.msra.mxu0 0.0
  %5137 = vmatprep.subr.mxu0 0.0
  %5138 = vmatpush1.msra.mxu0 0.0
  %5139 = vmatprep.subr.mxu0 0.0
  %5140 = vmatpush1.msra.mxu0 0.0
  %5141 = vmatprep.subr.mxu0 0.0
  %5142 = vmatpush1.msra.mxu0 0.0
  %5143 = vmatprep.subr.mxu0 0.0
  %5144 = vmatpush1.msra.mxu0 0.0
  %5145 = vmatprep.subr.mxu0 0.0
  %5146 = vmatpush1.msra.mxu0 0.0
  %5147 = vmatprep.subr.mxu0 0.0
  %5148 = vmatpush1.msra.mxu0 0.0
  %5149 = vmatprep.subr.mxu0 0.0
  %5150 = vmatpush1.msra.mxu0 0.0
  %5151 = vmatprep.subr.mxu0 0.0
  %5152 = vmatpush1.msra.mxu0 0.0
  %5153 = vmatprep.subr.mxu0 0.0
  %5154 = vmatpush1.msra.mxu0 0.0
  %5155 = vmatprep.subr.mxu0 0.0
  %5156 = vmatpush1.msra.mxu0 0.0
  %5157 = vmatprep.subr.mxu0 0.0
  %5158 = vmatpush1.msra.mxu0 0.0
  %5159 = vmatprep.subr.mxu0 0.0
  %5160 = vmatpush1.msra.mxu0 0.0
  %5161 = vmatprep.subr.mxu0 0.0
  %5162 = vmatpush1.msra.mxu0 0.0
  %5163 = vmatprep.subr.mxu0 0.0
  %5164 = vmatpush1.msra.mxu0 %v5126
  %5165 = vmatprep.subr.mxu0 0.0
  %5166 = vmatpush1.msra.mxu0 %v5124
  %5167 = vmatprep.subr.mxu0 0.0
  %5168 = vmatpush2.msra.mxu0 0.0
  %5169 = vmatprep.subr.mxu0 0.0
  %5170 = vmatpush2.msra.mxu0 0.0
  %5171 = vmatprep.subr.mxu0 0.0
  %5172 = vmatpush2.msra.mxu0 0.0
  %5173 = vmatprep.subr.mxu0 0.0
  %5174 = vmatpush2.msra.mxu0 0.0
  %5175 = vmatprep.subr.mxu0 0.0
  %5176 = vmatpush2.msra.mxu0 0.0
  %5177 = vmatprep.subr.mxu0 0.0
  %5178 = vmatpush2.msra.mxu0 0.0
  %5179 = vmatprep.subr.mxu0 0.0
  %5180 = vmatpush2.msra.mxu0 0.0
  %5181 = vmatprep.subr.mxu0 0.0
  %5182 = vmatpush2.msra.mxu0 0.0
  %5183 = vmatprep.subr.mxu0 0.0
  %5184 = vmatpush2.msra.mxu0 0.0
  %5185 = vmatprep.subr.mxu0 0.0
  %5186 = vmatpush2.msra.mxu0 0.0
  %5187 = vmatprep.subr.mxu0 0.0
  %5188 = vmatpush2.msra.mxu0 0.0
  %5189 = vmatprep.subr.mxu0 0.0
  %5190 = vmatpush2.msra.mxu0 0.0
  %5191 = vmatprep.subr.mxu0 0.0
  %5192 = vmatpush2.msra.mxu0 0.0
  %5193 = vmatprep.subr.mxu0 0.0
  %5194 = vmatpush2.msra.mxu0 0.0
  %5195 = vmatprep.subr.mxu0 0.0
  %5196 = vmatpush2.msra.mxu0 0.0
  %5197 = vmatprep.subr.mxu0 0.0
  %5198 = vmatpush2.msra.mxu0 0.0
  %5199 = vmatprep.mubr.f32.mxu0 0.0
  %5200 = vmatmul.mubr.f32.gmra.mxu0 %v5130
  %v5201 = vpop.f32.mrf.mxu0
  %v5202 = vadd.f32 0.0, %v5201
  %v5203 = vpop.f32.mrf.mxu0
  %5204 = vmatprep.mubr.f32.mxu0 0.0
  %5205 = vmatmul.mubr.f32.gmra.mxu0 %v5133
  %v5206 = vpop.f32.mrf.mxu0
  %v5207 = vadd.f32 0.0, %v5206
  %v5208 = vpop.f32.mrf.mxu0
  %5209 = vdwg.mxu0
  %5210 = vrot.lane.b32.xlu0 %v854, 64
  %v5211 = vpop.permute.xlu0 %5210
  %5212 = vrot.lane.b32.xlu0 %v857, 64
  %v5213 = vpop.permute.xlu0 %5212
  %v5217 = vsel %vm3896, %v4502, 0
  %v5220 = vsel %vm3896, %v4504, 0
  %5222 = vmatprep.subr.mxu0 0.0
  %5223 = vmatpush1.msra.mxu0 0.0
  %5224 = vmatprep.subr.mxu0 0.0
  %5225 = vmatpush1.msra.mxu0 0.0
  %5226 = vmatprep.subr.mxu0 0.0
  %5227 = vmatpush1.msra.mxu0 0.0
  %5228 = vmatprep.subr.mxu0 0.0
  %5229 = vmatpush1.msra.mxu0 0.0
  %5230 = vmatprep.subr.mxu0 0.0
  %5231 = vmatpush1.msra.mxu0 0.0
  %5232 = vmatprep.subr.mxu0 0.0
  %5233 = vmatpush1.msra.mxu0 0.0
  %5234 = vmatprep.subr.mxu0 0.0
  %5235 = vmatpush1.msra.mxu0 0.0
  %5236 = vmatprep.subr.mxu0 0.0
  %5237 = vmatpush1.msra.mxu0 0.0
  %5238 = vmatprep.subr.mxu0 0.0
  %5239 = vmatpush1.msra.mxu0 0.0
  %5240 = vmatprep.subr.mxu0 0.0
  %5241 = vmatpush1.msra.mxu0 0.0
  %5242 = vmatprep.subr.mxu0 0.0
  %5243 = vmatpush1.msra.mxu0 0.0
  %5244 = vmatprep.subr.mxu0 0.0
  %5245 = vmatpush1.msra.mxu0 0.0
  %5246 = vmatprep.subr.mxu0 0.0
  %5247 = vmatpush1.msra.mxu0 0.0
  %5248 = vmatprep.subr.mxu0 0.0
  %5249 = vmatpush1.msra.mxu0 0.0
  %5250 = vmatprep.subr.mxu0 0.0
  %5251 = vmatpush1.msra.mxu0 %v5213
  %5252 = vmatprep.subr.mxu0 0.0
  %5253 = vmatpush1.msra.mxu0 %v5211
  %5254 = vmatprep.subr.mxu0 0.0
  %5255 = vmatpush2.msra.mxu0 0.0
  %5256 = vmatprep.subr.mxu0 0.0
  %5257 = vmatpush2.msra.mxu0 0.0
  %5258 = vmatprep.subr.mxu0 0.0
  %5259 = vmatpush2.msra.mxu0 0.0
  %5260 = vmatprep.subr.mxu0 0.0
  %5261 = vmatpush2.msra.mxu0 0.0
  %5262 = vmatprep.subr.mxu0 0.0
  %5263 = vmatpush2.msra.mxu0 0.0
  %5264 = vmatprep.subr.mxu0 0.0
  %5265 = vmatpush2.msra.mxu0 0.0
  %5266 = vmatprep.subr.mxu0 0.0
  %5267 = vmatpush2.msra.mxu0 0.0
  %5268 = vmatprep.subr.mxu0 0.0
  %5269 = vmatpush2.msra.mxu0 0.0
  %5270 = vmatprep.subr.mxu0 0.0
  %5271 = vmatpush2.msra.mxu0 0.0
  %5272 = vmatprep.subr.mxu0 0.0
  %5273 = vmatpush2.msra.mxu0 0.0
  %5274 = vmatprep.subr.mxu0 0.0
  %5275 = vmatpush2.msra.mxu0 0.0
  %5276 = vmatprep.subr.mxu0 0.0
  %5277 = vmatpush2.msra.mxu0 0.0
  %5278 = vmatprep.subr.mxu0 0.0
  %5279 = vmatpush2.msra.mxu0 0.0
  %5280 = vmatprep.subr.mxu0 0.0
  %5281 = vmatpush2.msra.mxu0 0.0
  %5282 = vmatprep.subr.mxu0 0.0
  %5283 = vmatpush2.msra.mxu0 0.0
  %5284 = vmatprep.subr.mxu0 0.0
  %5285 = vmatpush2.msra.mxu0 0.0
  %5286 = vmatprep.mubr.f32.mxu0 0.0
  %5287 = vmatmul.mubr.f32.gmra.mxu0 %v5217
  %v5288 = vpop.f32.mrf.mxu0
  %v5289 = vadd.f32 0.0, %v5288
  %v5290 = vpop.f32.mrf.mxu0
  %5291 = vmatprep.mubr.f32.mxu0 0.0
  %5292 = vmatmul.mubr.f32.gmra.mxu0 %v5220
  %v5293 = vpop.f32.mrf.mxu0
  %v5294 = vadd.f32 0.0, %v5293
  %v5295 = vpop.f32.mrf.mxu0
  %5296 = vdwg.mxu0
  %5297 = vrot.lane.b32.xlu0 %v877, 64
  %v5298 = vpop.permute.xlu0 %5297
  %5299 = vrot.lane.b32.xlu0 %v879, 64
  %v5300 = vpop.permute.xlu0 %5299
  %v5304 = vsel %vm3896, %v4506, 0
  %v5307 = vsel %vm3896, %v4508, 0
  %5309 = vmatprep.subr.mxu0 0.0
  %5310 = vmatpush1.msra.mxu0 0.0
  %5311 = vmatprep.subr.mxu0 0.0
  %5312 = vmatpush1.msra.mxu0 0.0
  %5313 = vmatprep.subr.mxu0 0.0
  %5314 = vmatpush1.msra.mxu0 0.0
  %5315 = vmatprep.subr.mxu0 0.0
  %5316 = vmatpush1.msra.mxu0 0.0
  %5317 = vmatprep.subr.mxu0 0.0
  %5318 = vmatpush1.msra.mxu0 0.0
  %5319 = vmatprep.subr.mxu0 0.0
  %5320 = vmatpush1.msra.mxu0 0.0
  %5321 = vmatprep.subr.mxu0 0.0
  %5322 = vmatpush1.msra.mxu0 0.0
  %5323 = vmatprep.subr.mxu0 0.0
  %5324 = vmatpush1.msra.mxu0 0.0
  %5325 = vmatprep.subr.mxu0 0.0
  %5326 = vmatpush1.msra.mxu0 0.0
  %5327 = vmatprep.subr.mxu0 0.0
  %5328 = vmatpush1.msra.mxu0 0.0
  %5329 = vmatprep.subr.mxu0 0.0
  %5330 = vmatpush1.msra.mxu0 0.0
  %5331 = vmatprep.subr.mxu0 0.0
  %5332 = vmatpush1.msra.mxu0 0.0
  %5333 = vmatprep.subr.mxu0 0.0
  %5334 = vmatpush1.msra.mxu0 0.0
  %5335 = vmatprep.subr.mxu0 0.0
  %5336 = vmatpush1.msra.mxu0 0.0
  %5337 = vmatprep.subr.mxu0 0.0
  %5338 = vmatpush1.msra.mxu0 %v5300
  %5339 = vmatprep.subr.mxu0 0.0
  %5340 = vmatpush1.msra.mxu0 %v5298
  %5341 = vmatprep.subr.mxu0 0.0
  %5342 = vmatpush2.msra.mxu0 0.0
  %5343 = vmatprep.subr.mxu0 0.0
  %5344 = vmatpush2.msra.mxu0 0.0
  %5345 = vmatprep.subr.mxu0 0.0
  %5346 = vmatpush2.msra.mxu0 0.0
  %5347 = vmatprep.subr.mxu0 0.0
  %5348 = vmatpush2.msra.mxu0 0.0
  %5349 = vmatprep.subr.mxu0 0.0
  %5350 = vmatpush2.msra.mxu0 0.0
  %5351 = vmatprep.subr.mxu0 0.0
  %5352 = vmatpush2.msra.mxu0 0.0
  %5353 = vmatprep.subr.mxu0 0.0
  %5354 = vmatpush2.msra.mxu0 0.0
  %5355 = vmatprep.subr.mxu0 0.0
  %5356 = vmatpush2.msra.mxu0 0.0
  %5357 = vmatprep.subr.mxu0 0.0
  %5358 = vmatpush2.msra.mxu0 0.0
  %5359 = vmatprep.subr.mxu0 0.0
  %5360 = vmatpush2.msra.mxu0 0.0
  %5361 = vmatprep.subr.mxu0 0.0
  %5362 = vmatpush2.msra.mxu0 0.0
  %5363 = vmatprep.subr.mxu0 0.0
  %5364 = vmatpush2.msra.mxu0 0.0
  %5365 = vmatprep.subr.mxu0 0.0
  %5366 = vmatpush2.msra.mxu0 0.0
  %5367 = vmatprep.subr.mxu0 0.0
  %5368 = vmatpush2.msra.mxu0 0.0
  %5369 = vmatprep.subr.mxu0 0.0
  %5370 = vmatpush2.msra.mxu0 0.0
  %5371 = vmatprep.subr.mxu0 0.0
  %5372 = vmatpush2.msra.mxu0 0.0
  %5373 = vmatprep.mubr.f32.mxu0 0.0
  %5374 = vmatmul.mubr.f32.gmra.mxu0 %v5304
  %v5375 = vpop.f32.mrf.mxu0
  %v5376 = vadd.f32 0.0, %v5375
  %v5377 = vpop.f32.mrf.mxu0
  %5378 = vmatprep.mubr.f32.mxu0 0.0
  %5379 = vmatmul.mubr.f32.gmra.mxu0 %v5307
  %v5380 = vpop.f32.mrf.mxu0
  %v5381 = vadd.f32 0.0, %v5380
  %v5382 = vpop.f32.mrf.mxu0
  %5383 = vdwg.mxu0
  %5384 = vrot.lane.b32.xlu0 %v881, 64
  %v5385 = vpop.permute.xlu0 %5384
  %5386 = vrot.lane.b32.xlu0 %v883, 64
  %v5387 = vpop.permute.xlu0 %5386
  %v5391 = vsel %vm3896, %v4510, 0
  %v5394 = vsel %vm3896, %v4512, 0
  %5396 = vmatprep.subr.mxu0 0.0
  %5397 = vmatpush1.msra.mxu0 0.0
  %5398 = vmatprep.subr.mxu0 0.0
  %5399 = vmatpush1.msra.mxu0 0.0
  %5400 = vmatprep.subr.mxu0 0.0
  %5401 = vmatpush1.msra.mxu0 0.0
  %5402 = vmatprep.subr.mxu0 0.0
  %5403 = vmatpush1.msra.mxu0 0.0
  %5404 = vmatprep.subr.mxu0 0.0
  %5405 = vmatpush1.msra.mxu0 0.0
  %5406 = vmatprep.subr.mxu0 0.0
  %5407 = vmatpush1.msra.mxu0 0.0
  %5408 = vmatprep.subr.mxu0 0.0
  %5409 = vmatpush1.msra.mxu0 0.0
  %5410 = vmatprep.subr.mxu0 0.0
  %5411 = vmatpush1.msra.mxu0 0.0
  %5412 = vmatprep.subr.mxu0 0.0
  %5413 = vmatpush1.msra.mxu0 0.0
  %5414 = vmatprep.subr.mxu0 0.0
  %5415 = vmatpush1.msra.mxu0 0.0
  %5416 = vmatprep.subr.mxu0 0.0
  %5417 = vmatpush1.msra.mxu0 0.0
  %5418 = vmatprep.subr.mxu0 0.0
  %5419 = vmatpush1.msra.mxu0 0.0
  %5420 = vmatprep.subr.mxu0 0.0
  %5421 = vmatpush1.msra.mxu0 0.0
  %5422 = vmatprep.subr.mxu0 0.0
  %5423 = vmatpush1.msra.mxu0 0.0
  %5424 = vmatprep.subr.mxu0 0.0
  %5425 = vmatpush1.msra.mxu0 %v5387
  %5426 = vmatprep.subr.mxu0 0.0
  %5427 = vmatpush1.msra.mxu0 %v5385
  %5428 = vmatprep.subr.mxu0 0.0
  %5429 = vmatpush2.msra.mxu0 0.0
  %5430 = vmatprep.subr.mxu0 0.0
  %5431 = vmatpush2.msra.mxu0 0.0
  %5432 = vmatprep.subr.mxu0 0.0
  %5433 = vmatpush2.msra.mxu0 0.0
  %5434 = vmatprep.subr.mxu0 0.0
  %5435 = vmatpush2.msra.mxu0 0.0
  %5436 = vmatprep.subr.mxu0 0.0
  %5437 = vmatpush2.msra.mxu0 0.0
  %5438 = vmatprep.subr.mxu0 0.0
  %5439 = vmatpush2.msra.mxu0 0.0
  %5440 = vmatprep.subr.mxu0 0.0
  %5441 = vmatpush2.msra.mxu0 0.0
  %5442 = vmatprep.subr.mxu0 0.0
  %5443 = vmatpush2.msra.mxu0 0.0
  %5444 = vmatprep.subr.mxu0 0.0
  %5445 = vmatpush2.msra.mxu0 0.0
  %5446 = vmatprep.subr.mxu0 0.0
  %5447 = vmatpush2.msra.mxu0 0.0
  %5448 = vmatprep.subr.mxu0 0.0
  %5449 = vmatpush2.msra.mxu0 0.0
  %5450 = vmatprep.subr.mxu0 0.0
  %5451 = vmatpush2.msra.mxu0 0.0
  %5452 = vmatprep.subr.mxu0 0.0
  %5453 = vmatpush2.msra.mxu0 0.0
  %5454 = vmatprep.subr.mxu0 0.0
  %5455 = vmatpush2.msra.mxu0 0.0
  %5456 = vmatprep.subr.mxu0 0.0
  %5457 = vmatpush2.msra.mxu0 0.0
  %5458 = vmatprep.subr.mxu0 0.0
  %5459 = vmatpush2.msra.mxu0 0.0
  %5460 = vmatprep.mubr.f32.mxu0 0.0
  %5461 = vmatmul.mubr.f32.gmra.mxu0 %v5391
  %v5462 = vpop.f32.mrf.mxu0
  %v5463 = vadd.f32 0.0, %v5462
  %v5464 = vpop.f32.mrf.mxu0
  %5465 = vmatprep.mubr.f32.mxu0 0.0
  %5466 = vmatmul.mubr.f32.gmra.mxu0 %v5394
  %v5467 = vpop.f32.mrf.mxu0
  %v5468 = vadd.f32 0.0, %v5467
  %v5469 = vpop.f32.mrf.mxu0
  %5470 = vdwg.mxu0
  %5471 = vrot.lane.b32.xlu0 %v885, 64
  %v5472 = vpop.permute.xlu0 %5471
  %5473 = vrot.lane.b32.xlu0 %v887, 64
  %v5474 = vpop.permute.xlu0 %5473
  %v5478 = vsel %vm3896, %v4514, 0
  %v5481 = vsel %vm3896, %v4516, 0
  %5483 = vmatprep.subr.mxu0 0.0
  %5484 = vmatpush1.msra.mxu0 0.0
  %5485 = vmatprep.subr.mxu0 0.0
  %5486 = vmatpush1.msra.mxu0 0.0
  %5487 = vmatprep.subr.mxu0 0.0
  %5488 = vmatpush1.msra.mxu0 0.0
  %5489 = vmatprep.subr.mxu0 0.0
  %5490 = vmatpush1.msra.mxu0 0.0
  %5491 = vmatprep.subr.mxu0 0.0
  %5492 = vmatpush1.msra.mxu0 0.0
  %5493 = vmatprep.subr.mxu0 0.0
  %5494 = vmatpush1.msra.mxu0 0.0
  %5495 = vmatprep.subr.mxu0 0.0
  %5496 = vmatpush1.msra.mxu0 0.0
  %5497 = vmatprep.subr.mxu0 0.0
  %5498 = vmatpush1.msra.mxu0 0.0
  %5499 = vmatprep.subr.mxu0 0.0
  %5500 = vmatpush1.msra.mxu0 0.0
  %5501 = vmatprep.subr.mxu0 0.0
  %5502 = vmatpush1.msra.mxu0 0.0
  %5503 = vmatprep.subr.mxu0 0.0
  %5504 = vmatpush1.msra.mxu0 0.0
  %5505 = vmatprep.subr.mxu0 0.0
  %5506 = vmatpush1.msra.mxu0 0.0
  %5507 = vmatprep.subr.mxu0 0.0
  %5508 = vmatpush1.msra.mxu0 0.0
  %5509 = vmatprep.subr.mxu0 0.0
  %5510 = vmatpush1.msra.mxu0 0.0
  %5511 = vmatprep.subr.mxu0 0.0
  %5512 = vmatpush1.msra.mxu0 %v5474
  %5513 = vmatprep.subr.mxu0 0.0
  %5514 = vmatpush1.msra.mxu0 %v5472
  %5515 = vmatprep.subr.mxu0 0.0
  %5516 = vmatpush2.msra.mxu0 0.0
  %5517 = vmatprep.subr.mxu0 0.0
  %5518 = vmatpush2.msra.mxu0 0.0
  %5519 = vmatprep.subr.mxu0 0.0
  %5520 = vmatpush2.msra.mxu0 0.0
  %5521 = vmatprep.subr.mxu0 0.0
  %5522 = vmatpush2.msra.mxu0 0.0
  %5523 = vmatprep.subr.mxu0 0.0
  %5524 = vmatpush2.msra.mxu0 0.0
  %5525 = vmatprep.subr.mxu0 0.0
  %5526 = vmatpush2.msra.mxu0 0.0
  %5527 = vmatprep.subr.mxu0 0.0
  %5528 = vmatpush2.msra.mxu0 0.0
  %5529 = vmatprep.subr.mxu0 0.0
  %5530 = vmatpush2.msra.mxu0 0.0
  %5531 = vmatprep.subr.mxu0 0.0
  %5532 = vmatpush2.msra.mxu0 0.0
  %5533 = vmatprep.subr.mxu0 0.0
  %5534 = vmatpush2.msra.mxu0 0.0
  %5535 = vmatprep.subr.mxu0 0.0
  %5536 = vmatpush2.msra.mxu0 0.0
  %5537 = vmatprep.subr.mxu0 0.0
  %5538 = vmatpush2.msra.mxu0 0.0
  %5539 = vmatprep.subr.mxu0 0.0
  %5540 = vmatpush2.msra.mxu0 0.0
  %5541 = vmatprep.subr.mxu0 0.0
  %5542 = vmatpush2.msra.mxu0 0.0
  %5543 = vmatprep.subr.mxu0 0.0
  %5544 = vmatpush2.msra.mxu0 0.0
  %5545 = vmatprep.subr.mxu0 0.0
  %5546 = vmatpush2.msra.mxu0 0.0
  %5547 = vmatprep.mubr.f32.mxu0 0.0
  %5548 = vmatmul.mubr.f32.gmra.mxu0 %v5478
  %v5549 = vpop.f32.mrf.mxu0
  %v5550 = vadd.f32 0.0, %v5549
  %v5551 = vpop.f32.mrf.mxu0
  %5552 = vmatprep.mubr.f32.mxu0 0.0
  %5553 = vmatmul.mubr.f32.gmra.mxu0 %v5481
  %v5554 = vpop.f32.mrf.mxu0
  %v5555 = vadd.f32 0.0, %v5554
  %v5556 = vpop.f32.mrf.mxu0
  %5557 = vdwg.mxu0
  %5558 = vrot.lane.b32.xlu0 %v889, 64
  %v5559 = vpop.permute.xlu0 %5558
  %5560 = vrot.lane.b32.xlu0 %v891, 64
  %v5561 = vpop.permute.xlu0 %5560
  %v5565 = vsel %vm3896, %v4518, 0
  %v5568 = vsel %vm3896, %v4520, 0
  %5570 = vmatprep.subr.mxu0 0.0
  %5571 = vmatpush1.msra.mxu0 0.0
  %5572 = vmatprep.subr.mxu0 0.0
  %5573 = vmatpush1.msra.mxu0 0.0
  %5574 = vmatprep.subr.mxu0 0.0
  %5575 = vmatpush1.msra.mxu0 0.0
  %5576 = vmatprep.subr.mxu0 0.0
  %5577 = vmatpush1.msra.mxu0 0.0
  %5578 = vmatprep.subr.mxu0 0.0
  %5579 = vmatpush1.msra.mxu0 0.0
  %5580 = vmatprep.subr.mxu0 0.0
  %5581 = vmatpush1.msra.mxu0 0.0
  %5582 = vmatprep.subr.mxu0 0.0
  %5583 = vmatpush1.msra.mxu0 0.0
  %5584 = vmatprep.subr.mxu0 0.0
  %5585 = vmatpush1.msra.mxu0 0.0
  %5586 = vmatprep.subr.mxu0 0.0
  %5587 = vmatpush1.msra.mxu0 0.0
  %5588 = vmatprep.subr.mxu0 0.0
  %5589 = vmatpush1.msra.mxu0 0.0
  %5590 = vmatprep.subr.mxu0 0.0
  %5591 = vmatpush1.msra.mxu0 0.0
  %5592 = vmatprep.subr.mxu0 0.0
  %5593 = vmatpush1.msra.mxu0 0.0
  %5594 = vmatprep.subr.mxu0 0.0
  %5595 = vmatpush1.msra.mxu0 0.0
  %5596 = vmatprep.subr.mxu0 0.0
  %5597 = vmatpush1.msra.mxu0 0.0
  %5598 = vmatprep.subr.mxu0 0.0
  %5599 = vmatpush1.msra.mxu0 %v5561
  %5600 = vmatprep.subr.mxu0 0.0
  %5601 = vmatpush1.msra.mxu0 %v5559
  %5602 = vmatprep.subr.mxu0 0.0
  %5603 = vmatpush2.msra.mxu0 0.0
  %5604 = vmatprep.subr.mxu0 0.0
  %5605 = vmatpush2.msra.mxu0 0.0
  %5606 = vmatprep.subr.mxu0 0.0
  %5607 = vmatpush2.msra.mxu0 0.0
  %5608 = vmatprep.subr.mxu0 0.0
  %5609 = vmatpush2.msra.mxu0 0.0
  %5610 = vmatprep.subr.mxu0 0.0
  %5611 = vmatpush2.msra.mxu0 0.0
  %5612 = vmatprep.subr.mxu0 0.0
  %5613 = vmatpush2.msra.mxu0 0.0
  %5614 = vmatprep.subr.mxu0 0.0
  %5615 = vmatpush2.msra.mxu0 0.0
  %5616 = vmatprep.subr.mxu0 0.0
  %5617 = vmatpush2.msra.mxu0 0.0
  %5618 = vmatprep.subr.mxu0 0.0
  %5619 = vmatpush2.msra.mxu0 0.0
  %5620 = vmatprep.subr.mxu0 0.0
  %5621 = vmatpush2.msra.mxu0 0.0
  %5622 = vmatprep.subr.mxu0 0.0
  %5623 = vmatpush2.msra.mxu0 0.0
  %5624 = vmatprep.subr.mxu0 0.0
  %5625 = vmatpush2.msra.mxu0 0.0
  %5626 = vmatprep.subr.mxu0 0.0
  %5627 = vmatpush2.msra.mxu0 0.0
  %5628 = vmatprep.subr.mxu0 0.0
  %5629 = vmatpush2.msra.mxu0 0.0
  %5630 = vmatprep.subr.mxu0 0.0
  %5631 = vmatpush2.msra.mxu0 0.0
  %5632 = vmatprep.subr.mxu0 0.0
  %5633 = vmatpush2.msra.mxu0 0.0
  %5634 = vmatprep.mubr.f32.mxu0 0.0
  %5635 = vmatmul.mubr.f32.gmra.mxu0 %v5565
  %v5636 = vpop.f32.mrf.mxu0
  %v5637 = vadd.f32 0.0, %v5636
  %v5638 = vpop.f32.mrf.mxu0
  %5639 = vmatprep.mubr.f32.mxu0 0.0
  %5640 = vmatmul.mubr.f32.gmra.mxu0 %v5568
  %v5641 = vpop.f32.mrf.mxu0
  %v5642 = vadd.f32 0.0, %v5641
  %v5643 = vpop.f32.mrf.mxu0
  %5644 = vdwg.mxu0
  %5645 = vrot.lane.b32.xlu0 %v893, 64
  %v5646 = vpop.permute.xlu0 %5645
  %5647 = vrot.lane.b32.xlu0 %v895, 64
  %v5648 = vpop.permute.xlu0 %5647
  %v5652 = vsel %vm3896, %v4522, 0
  %v5655 = vsel %vm3896, %v4524, 0
  %5657 = vmatprep.subr.mxu0 0.0
  %5658 = vmatpush1.msra.mxu0 0.0
  %5659 = vmatprep.subr.mxu0 0.0
  %5660 = vmatpush1.msra.mxu0 0.0
  %5661 = vmatprep.subr.mxu0 0.0
  %5662 = vmatpush1.msra.mxu0 0.0
  %5663 = vmatprep.subr.mxu0 0.0
  %5664 = vmatpush1.msra.mxu0 0.0
  %5665 = vmatprep.subr.mxu0 0.0
  %5666 = vmatpush1.msra.mxu0 0.0
  %5667 = vmatprep.subr.mxu0 0.0
  %5668 = vmatpush1.msra.mxu0 0.0
  %5669 = vmatprep.subr.mxu0 0.0
  %5670 = vmatpush1.msra.mxu0 0.0
  %5671 = vmatprep.subr.mxu0 0.0
  %5672 = vmatpush1.msra.mxu0 0.0
  %5673 = vmatprep.subr.mxu0 0.0
  %5674 = vmatpush1.msra.mxu0 0.0
  %5675 = vmatprep.subr.mxu0 0.0
  %5676 = vmatpush1.msra.mxu0 0.0
  %5677 = vmatprep.subr.mxu0 0.0
  %5678 = vmatpush1.msra.mxu0 0.0
  %5679 = vmatprep.subr.mxu0 0.0
  %5680 = vmatpush1.msra.mxu0 0.0
  %5681 = vmatprep.subr.mxu0 0.0
  %5682 = vmatpush1.msra.mxu0 0.0
  %5683 = vmatprep.subr.mxu0 0.0
  %5684 = vmatpush1.msra.mxu0 0.0
  %5685 = vmatprep.subr.mxu0 0.0
  %5686 = vmatpush1.msra.mxu0 %v5648
  %5687 = vmatprep.subr.mxu0 0.0
  %5688 = vmatpush1.msra.mxu0 %v5646
  %5689 = vmatprep.subr.mxu0 0.0
  %5690 = vmatpush2.msra.mxu0 0.0
  %5691 = vmatprep.subr.mxu0 0.0
  %5692 = vmatpush2.msra.mxu0 0.0
  %5693 = vmatprep.subr.mxu0 0.0
  %5694 = vmatpush2.msra.mxu0 0.0
  %5695 = vmatprep.subr.mxu0 0.0
  %5696 = vmatpush2.msra.mxu0 0.0
  %5697 = vmatprep.subr.mxu0 0.0
  %5698 = vmatpush2.msra.mxu0 0.0
  %5699 = vmatprep.subr.mxu0 0.0
  %5700 = vmatpush2.msra.mxu0 0.0
  %5701 = vmatprep.subr.mxu0 0.0
  %5702 = vmatpush2.msra.mxu0 0.0
  %5703 = vmatprep.subr.mxu0 0.0
  %5704 = vmatpush2.msra.mxu0 0.0
  %5705 = vmatprep.subr.mxu0 0.0
  %5706 = vmatpush2.msra.mxu0 0.0
  %5707 = vmatprep.subr.mxu0 0.0
  %5708 = vmatpush2.msra.mxu0 0.0
  %5709 = vmatprep.subr.mxu0 0.0
  %5710 = vmatpush2.msra.mxu0 0.0
  %5711 = vmatprep.subr.mxu0 0.0
  %5712 = vmatpush2.msra.mxu0 0.0
  %5713 = vmatprep.subr.mxu0 0.0
  %5714 = vmatpush2.msra.mxu0 0.0
  %5715 = vmatprep.subr.mxu0 0.0
  %5716 = vmatpush2.msra.mxu0 0.0
  %5717 = vmatprep.subr.mxu0 0.0
  %5718 = vmatpush2.msra.mxu0 0.0
  %5719 = vmatprep.subr.mxu0 0.0
  %5720 = vmatpush2.msra.mxu0 0.0
  %5721 = vmatprep.mubr.f32.mxu0 0.0
  %5722 = vmatmul.mubr.f32.gmra.mxu0 %v5652
  %v5723 = vpop.f32.mrf.mxu0
  %v5724 = vadd.f32 0.0, %v5723
  %v5725 = vpop.f32.mrf.mxu0
  %5726 = vmatprep.mubr.f32.mxu0 0.0
  %5727 = vmatmul.mubr.f32.gmra.mxu0 %v5655
  %v5728 = vpop.f32.mrf.mxu0
  %v5729 = vadd.f32 0.0, %v5728
  %v5730 = vpop.f32.mrf.mxu0
  %5731 = vdwg.mxu0
  %5732 = vrot.lane.b32.xlu0 %v897, 64
  %v5733 = vpop.permute.xlu0 %5732
  %5734 = vrot.lane.b32.xlu0 %v899, 64
  %v5735 = vpop.permute.xlu0 %5734
  %v5739 = vsel %vm3896, %v4526, 0
  %v5742 = vsel %vm3896, %v4528, 0
  %5744 = vmatprep.subr.mxu0 0.0
  %5745 = vmatpush1.msra.mxu0 0.0
  %5746 = vmatprep.subr.mxu0 0.0
  %5747 = vmatpush1.msra.mxu0 0.0
  %5748 = vmatprep.subr.mxu0 0.0
  %5749 = vmatpush1.msra.mxu0 0.0
  %5750 = vmatprep.subr.mxu0 0.0
  %5751 = vmatpush1.msra.mxu0 0.0
  %5752 = vmatprep.subr.mxu0 0.0
  %5753 = vmatpush1.msra.mxu0 0.0
  %5754 = vmatprep.subr.mxu0 0.0
  %5755 = vmatpush1.msra.mxu0 0.0
  %5756 = vmatprep.subr.mxu0 0.0
  %5757 = vmatpush1.msra.mxu0 0.0
  %5758 = vmatprep.subr.mxu0 0.0
  %5759 = vmatpush1.msra.mxu0 0.0
  %5760 = vmatprep.subr.mxu0 0.0
  %5761 = vmatpush1.msra.mxu0 0.0
  %5762 = vmatprep.subr.mxu0 0.0
  %5763 = vmatpush1.msra.mxu0 0.0
  %5764 = vmatprep.subr.mxu0 0.0
  %5765 = vmatpush1.msra.mxu0 0.0
  %5766 = vmatprep.subr.mxu0 0.0
  %5767 = vmatpush1.msra.mxu0 0.0
  %5768 = vmatprep.subr.mxu0 0.0
  %5769 = vmatpush1.msra.mxu0 0.0
  %5770 = vmatprep.subr.mxu0 0.0
  %5771 = vmatpush1.msra.mxu0 0.0
  %5772 = vmatprep.subr.mxu0 0.0
  %5773 = vmatpush1.msra.mxu0 %v5735
  %5774 = vmatprep.subr.mxu0 0.0
  %5775 = vmatpush1.msra.mxu0 %v5733
  %5776 = vmatprep.subr.mxu0 0.0
  %5777 = vmatpush2.msra.mxu0 0.0
  %5778 = vmatprep.subr.mxu0 0.0
  %5779 = vmatpush2.msra.mxu0 0.0
  %5780 = vmatprep.subr.mxu0 0.0
  %5781 = vmatpush2.msra.mxu0 0.0
  %5782 = vmatprep.subr.mxu0 0.0
  %5783 = vmatpush2.msra.mxu0 0.0
  %5784 = vmatprep.subr.mxu0 0.0
  %5785 = vmatpush2.msra.mxu0 0.0
  %5786 = vmatprep.subr.mxu0 0.0
  %5787 = vmatpush2.msra.mxu0 0.0
  %5788 = vmatprep.subr.mxu0 0.0
  %5789 = vmatpush2.msra.mxu0 0.0
  %5790 = vmatprep.subr.mxu0 0.0
  %5791 = vmatpush2.msra.mxu0 0.0
  %5792 = vmatprep.subr.mxu0 0.0
  %5793 = vmatpush2.msra.mxu0 0.0
  %5794 = vmatprep.subr.mxu0 0.0
  %5795 = vmatpush2.msra.mxu0 0.0
  %5796 = vmatprep.subr.mxu0 0.0
  %5797 = vmatpush2.msra.mxu0 0.0
  %5798 = vmatprep.subr.mxu0 0.0
  %5799 = vmatpush2.msra.mxu0 0.0
  %5800 = vmatprep.subr.mxu0 0.0
  %5801 = vmatpush2.msra.mxu0 0.0
  %5802 = vmatprep.subr.mxu0 0.0
  %5803 = vmatpush2.msra.mxu0 0.0
  %5804 = vmatprep.subr.mxu0 0.0
  %5805 = vmatpush2.msra.mxu0 0.0
  %5806 = vmatprep.subr.mxu0 0.0
  %5807 = vmatpush2.msra.mxu0 0.0
  %5808 = vmatprep.mubr.f32.mxu0 0.0
  %5809 = vmatmul.mubr.f32.gmra.mxu0 %v5739
  %v5810 = vpop.f32.mrf.mxu0
  %v5811 = vadd.f32 0.0, %v5810
  %v5812 = vpop.f32.mrf.mxu0
  %5813 = vmatprep.mubr.f32.mxu0 0.0
  %5814 = vmatmul.mubr.f32.gmra.mxu0 %v5742
  %v5815 = vpop.f32.mrf.mxu0
  %v5816 = vadd.f32 0.0, %v5815
  %v5817 = vpop.f32.mrf.mxu0
  %5818 = vdwg.mxu0
  %5819 = vrot.lane.b32.xlu0 %v901, 64
  %v5820 = vpop.permute.xlu0 %5819
  %5821 = vrot.lane.b32.xlu0 %v903, 64
  %v5822 = vpop.permute.xlu0 %5821
  %v5826 = vsel %vm3896, %v4530, 0
  %v5829 = vsel %vm3896, %v4532, 0
  %5831 = vmatprep.subr.mxu0 0.0
  %5832 = vmatpush1.msra.mxu0 0.0
  %5833 = vmatprep.subr.mxu0 0.0
  %5834 = vmatpush1.msra.mxu0 0.0
  %5835 = vmatprep.subr.mxu0 0.0
  %5836 = vmatpush1.msra.mxu0 0.0
  %5837 = vmatprep.subr.mxu0 0.0
  %5838 = vmatpush1.msra.mxu0 0.0
  %5839 = vmatprep.subr.mxu0 0.0
  %5840 = vmatpush1.msra.mxu0 0.0
  %5841 = vmatprep.subr.mxu0 0.0
  %5842 = vmatpush1.msra.mxu0 0.0
  %5843 = vmatprep.subr.mxu0 0.0
  %5844 = vmatpush1.msra.mxu0 0.0
  %5845 = vmatprep.subr.mxu0 0.0
  %5846 = vmatpush1.msra.mxu0 0.0
  %5847 = vmatprep.subr.mxu0 0.0
  %5848 = vmatpush1.msra.mxu0 0.0
  %5849 = vmatprep.subr.mxu0 0.0
  %5850 = vmatpush1.msra.mxu0 0.0
  %5851 = vmatprep.subr.mxu0 0.0
  %5852 = vmatpush1.msra.mxu0 0.0
  %5853 = vmatprep.subr.mxu0 0.0
  %5854 = vmatpush1.msra.mxu0 0.0
  %5855 = vmatprep.subr.mxu0 0.0
  %5856 = vmatpush1.msra.mxu0 0.0
  %5857 = vmatprep.subr.mxu0 0.0
  %5858 = vmatpush1.msra.mxu0 0.0
  %5859 = vmatprep.subr.mxu0 0.0
  %5860 = vmatpush1.msra.mxu0 %v5822
  %5861 = vmatprep.subr.mxu0 0.0
  %5862 = vmatpush1.msra.mxu0 %v5820
  %5863 = vmatprep.subr.mxu0 0.0
  %5864 = vmatpush2.msra.mxu0 0.0
  %5865 = vmatprep.subr.mxu0 0.0
  %5866 = vmatpush2.msra.mxu0 0.0
  %5867 = vmatprep.subr.mxu0 0.0
  %5868 = vmatpush2.msra.mxu0 0.0
  %5869 = vmatprep.subr.mxu0 0.0
  %5870 = vmatpush2.msra.mxu0 0.0
  %5871 = vmatprep.subr.mxu0 0.0
  %5872 = vmatpush2.msra.mxu0 0.0
  %5873 = vmatprep.subr.mxu0 0.0
  %5874 = vmatpush2.msra.mxu0 0.0
  %5875 = vmatprep.subr.mxu0 0.0
  %5876 = vmatpush2.msra.mxu0 0.0
  %5877 = vmatprep.subr.mxu0 0.0
  %5878 = vmatpush2.msra.mxu0 0.0
  %5879 = vmatprep.subr.mxu0 0.0
  %5880 = vmatpush2.msra.mxu0 0.0
  %5881 = vmatprep.subr.mxu0 0.0
  %5882 = vmatpush2.msra.mxu0 0.0
  %5883 = vmatprep.subr.mxu0 0.0
  %5884 = vmatpush2.msra.mxu0 0.0
  %5885 = vmatprep.subr.mxu0 0.0
  %5886 = vmatpush2.msra.mxu0 0.0
  %5887 = vmatprep.subr.mxu0 0.0
  %5888 = vmatpush2.msra.mxu0 0.0
  %5889 = vmatprep.subr.mxu0 0.0
  %5890 = vmatpush2.msra.mxu0 0.0
  %5891 = vmatprep.subr.mxu0 0.0
  %5892 = vmatpush2.msra.mxu0 0.0
  %5893 = vmatprep.subr.mxu0 0.0
  %5894 = vmatpush2.msra.mxu0 0.0
  %5895 = vmatprep.mubr.f32.mxu0 0.0
  %5896 = vmatmul.mubr.f32.gmra.mxu0 %v5826
  %v5897 = vpop.f32.mrf.mxu0
  %v5898 = vadd.f32 0.0, %v5897
  %v5899 = vpop.f32.mrf.mxu0
  %5900 = vmatprep.mubr.f32.mxu0 0.0
  %5901 = vmatmul.mubr.f32.gmra.mxu0 %v5829
  %v5902 = vpop.f32.mrf.mxu0
  %v5903 = vadd.f32 0.0, %v5902
  %v5904 = vpop.f32.mrf.mxu0
  %5905 = vdwg.mxu0
  %5906 = vrot.lane.b32.xlu0 %v905, 64
  %v5907 = vpop.permute.xlu0 %5906
  %5908 = vrot.lane.b32.xlu0 %v907, 64
  %v5909 = vpop.permute.xlu0 %5908
  %v5913 = vsel %vm3896, %v4534, 0
  %v5916 = vsel %vm3896, %v4536, 0
  %5918 = vmatprep.subr.mxu0 0.0
  %5919 = vmatpush1.msra.mxu0 0.0
  %5920 = vmatprep.subr.mxu0 0.0
  %5921 = vmatpush1.msra.mxu0 0.0
  %5922 = vmatprep.subr.mxu0 0.0
  %5923 = vmatpush1.msra.mxu0 0.0
  %5924 = vmatprep.subr.mxu0 0.0
  %5925 = vmatpush1.msra.mxu0 0.0
  %5926 = vmatprep.subr.mxu0 0.0
  %5927 = vmatpush1.msra.mxu0 0.0
  %5928 = vmatprep.subr.mxu0 0.0
  %5929 = vmatpush1.msra.mxu0 0.0
  %5930 = vmatprep.subr.mxu0 0.0
  %5931 = vmatpush1.msra.mxu0 0.0
  %5932 = vmatprep.subr.mxu0 0.0
  %5933 = vmatpush1.msra.mxu0 0.0
  %5934 = vmatprep.subr.mxu0 0.0
  %5935 = vmatpush1.msra.mxu0 0.0
  %5936 = vmatprep.subr.mxu0 0.0
  %5937 = vmatpush1.msra.mxu0 0.0
  %5938 = vmatprep.subr.mxu0 0.0
  %5939 = vmatpush1.msra.mxu0 0.0
  %5940 = vmatprep.subr.mxu0 0.0
  %5941 = vmatpush1.msra.mxu0 0.0
  %5942 = vmatprep.subr.mxu0 0.0
  %5943 = vmatpush1.msra.mxu0 0.0
  %5944 = vmatprep.subr.mxu0 0.0
  %5945 = vmatpush1.msra.mxu0 0.0
  %5946 = vmatprep.subr.mxu0 0.0
  %5947 = vmatpush1.msra.mxu0 %v5909
  %5948 = vmatprep.subr.mxu0 0.0
  %5949 = vmatpush1.msra.mxu0 %v5907
  %5950 = vmatprep.subr.mxu0 0.0
  %5951 = vmatpush2.msra.mxu0 0.0
  %5952 = vmatprep.subr.mxu0 0.0
  %5953 = vmatpush2.msra.mxu0 0.0
  %5954 = vmatprep.subr.mxu0 0.0
  %5955 = vmatpush2.msra.mxu0 0.0
  %5956 = vmatprep.subr.mxu0 0.0
  %5957 = vmatpush2.msra.mxu0 0.0
  %5958 = vmatprep.subr.mxu0 0.0
  %5959 = vmatpush2.msra.mxu0 0.0
  %5960 = vmatprep.subr.mxu0 0.0
  %5961 = vmatpush2.msra.mxu0 0.0
  %5962 = vmatprep.subr.mxu0 0.0
  %5963 = vmatpush2.msra.mxu0 0.0
  %5964 = vmatprep.subr.mxu0 0.0
  %5965 = vmatpush2.msra.mxu0 0.0
  %5966 = vmatprep.subr.mxu0 0.0
  %5967 = vmatpush2.msra.mxu0 0.0
  %5968 = vmatprep.subr.mxu0 0.0
  %5969 = vmatpush2.msra.mxu0 0.0
  %5970 = vmatprep.subr.mxu0 0.0
  %5971 = vmatpush2.msra.mxu0 0.0
  %5972 = vmatprep.subr.mxu0 0.0
  %5973 = vmatpush2.msra.mxu0 0.0
  %5974 = vmatprep.subr.mxu0 0.0
  %5975 = vmatpush2.msra.mxu0 0.0
  %5976 = vmatprep.subr.mxu0 0.0
  %5977 = vmatpush2.msra.mxu0 0.0
  %5978 = vmatprep.subr.mxu0 0.0
  %5979 = vmatpush2.msra.mxu0 0.0
  %5980 = vmatprep.subr.mxu0 0.0
  %5981 = vmatpush2.msra.mxu0 0.0
  %5982 = vmatprep.mubr.f32.mxu0 0.0
  %5983 = vmatmul.mubr.f32.gmra.mxu0 %v5913
  %v5984 = vpop.f32.mrf.mxu0
  %v5985 = vadd.f32 0.0, %v5984
  %v5986 = vpop.f32.mrf.mxu0
  %5987 = vmatprep.mubr.f32.mxu0 0.0
  %5988 = vmatmul.mubr.f32.gmra.mxu0 %v5916
  %v5989 = vpop.f32.mrf.mxu0
  %v5990 = vadd.f32 0.0, %v5989
  %v5991 = vpop.f32.mrf.mxu0
  %5992 = vdwg.mxu0
  %5993 = vrot.lane.b32.xlu0 %v909, 64
  %v5994 = vpop.permute.xlu0 %5993
  %5995 = vrot.lane.b32.xlu0 %v911, 64
  %v5996 = vpop.permute.xlu0 %5995
  %v6000 = vsel %vm3896, %v4538, 0
  %v6003 = vsel %vm3896, %v4540, 0
  %6005 = vmatprep.subr.mxu0 0.0
  %6006 = vmatpush1.msra.mxu0 0.0
  %6007 = vmatprep.subr.mxu0 0.0
  %6008 = vmatpush1.msra.mxu0 0.0
  %6009 = vmatprep.subr.mxu0 0.0
  %6010 = vmatpush1.msra.mxu0 0.0
  %6011 = vmatprep.subr.mxu0 0.0
  %6012 = vmatpush1.msra.mxu0 0.0
  %6013 = vmatprep.subr.mxu0 0.0
  %6014 = vmatpush1.msra.mxu0 0.0
  %6015 = vmatprep.subr.mxu0 0.0
  %6016 = vmatpush1.msra.mxu0 0.0
  %6017 = vmatprep.subr.mxu0 0.0
  %6018 = vmatpush1.msra.mxu0 0.0
  %6019 = vmatprep.subr.mxu0 0.0
  %6020 = vmatpush1.msra.mxu0 0.0
  %6021 = vmatprep.subr.mxu0 0.0
  %6022 = vmatpush1.msra.mxu0 0.0
  %6023 = vmatprep.subr.mxu0 0.0
  %6024 = vmatpush1.msra.mxu0 0.0
  %6025 = vmatprep.subr.mxu0 0.0
  %6026 = vmatpush1.msra.mxu0 0.0
  %6027 = vmatprep.subr.mxu0 0.0
  %6028 = vmatpush1.msra.mxu0 0.0
  %6029 = vmatprep.subr.mxu0 0.0
  %6030 = vmatpush1.msra.mxu0 0.0
  %6031 = vmatprep.subr.mxu0 0.0
  %6032 = vmatpush1.msra.mxu0 0.0
  %6033 = vmatprep.subr.mxu0 0.0
  %6034 = vmatpush1.msra.mxu0 %v5996
  %6035 = vmatprep.subr.mxu0 0.0
  %6036 = vmatpush1.msra.mxu0 %v5994
  %6037 = vmatprep.subr.mxu0 0.0
  %6038 = vmatpush2.msra.mxu0 0.0
  %6039 = vmatprep.subr.mxu0 0.0
  %6040 = vmatpush2.msra.mxu0 0.0
  %6041 = vmatprep.subr.mxu0 0.0
  %6042 = vmatpush2.msra.mxu0 0.0
  %6043 = vmatprep.subr.mxu0 0.0
  %6044 = vmatpush2.msra.mxu0 0.0
  %6045 = vmatprep.subr.mxu0 0.0
  %6046 = vmatpush2.msra.mxu0 0.0
  %6047 = vmatprep.subr.mxu0 0.0
  %6048 = vmatpush2.msra.mxu0 0.0
  %6049 = vmatprep.subr.mxu0 0.0
  %6050 = vmatpush2.msra.mxu0 0.0
  %6051 = vmatprep.subr.mxu0 0.0
  %6052 = vmatpush2.msra.mxu0 0.0
  %6053 = vmatprep.subr.mxu0 0.0
  %6054 = vmatpush2.msra.mxu0 0.0
  %6055 = vmatprep.subr.mxu0 0.0
  %6056 = vmatpush2.msra.mxu0 0.0
  %6057 = vmatprep.subr.mxu0 0.0
  %6058 = vmatpush2.msra.mxu0 0.0
  %6059 = vmatprep.subr.mxu0 0.0
  %6060 = vmatpush2.msra.mxu0 0.0
  %6061 = vmatprep.subr.mxu0 0.0
  %6062 = vmatpush2.msra.mxu0 0.0
  %6063 = vmatprep.subr.mxu0 0.0
  %6064 = vmatpush2.msra.mxu0 0.0
  %6065 = vmatprep.subr.mxu0 0.0
  %6066 = vmatpush2.msra.mxu0 0.0
  %6067 = vmatprep.subr.mxu0 0.0
  %6068 = vmatpush2.msra.mxu0 0.0
  %6069 = vmatprep.mubr.f32.mxu0 0.0
  %6070 = vmatmul.mubr.f32.gmra.mxu0 %v6000
  %v6071 = vpop.f32.mrf.mxu0
  %v6072 = vadd.f32 0.0, %v6071
  %v6073 = vpop.f32.mrf.mxu0
  %6074 = vmatprep.mubr.f32.mxu0 0.0
  %6075 = vmatmul.mubr.f32.gmra.mxu0 %v6003
  %v6076 = vpop.f32.mrf.mxu0
  %v6077 = vadd.f32 0.0, %v6076
  %v6078 = vpop.f32.mrf.mxu0
  %6079 = vdwg.mxu0
  %6080 = vrot.lane.b32.xlu0 %v913, 64
  %v6081 = vpop.permute.xlu0 %6080
  %6082 = vrot.lane.b32.xlu0 %v915, 64
  %v6083 = vpop.permute.xlu0 %6082
  %v6087 = vsel %vm3896, %v4542, 0
  %v6090 = vsel %vm3896, %v4544, 0
  %6092 = vmatprep.subr.mxu0 0.0
  %6093 = vmatpush1.msra.mxu0 0.0
  %6094 = vmatprep.subr.mxu0 0.0
  %6095 = vmatpush1.msra.mxu0 0.0
  %6096 = vmatprep.subr.mxu0 0.0
  %6097 = vmatpush1.msra.mxu0 0.0
  %6098 = vmatprep.subr.mxu0 0.0
  %6099 = vmatpush1.msra.mxu0 0.0
  %6100 = vmatprep.subr.mxu0 0.0
  %6101 = vmatpush1.msra.mxu0 0.0
  %6102 = vmatprep.subr.mxu0 0.0
  %6103 = vmatpush1.msra.mxu0 0.0
  %6104 = vmatprep.subr.mxu0 0.0
  %6105 = vmatpush1.msra.mxu0 0.0
  %6106 = vmatprep.subr.mxu0 0.0
  %6107 = vmatpush1.msra.mxu0 0.0
  %6108 = vmatprep.subr.mxu0 0.0
  %6109 = vmatpush1.msra.mxu0 0.0
  %6110 = vmatprep.subr.mxu0 0.0
  %6111 = vmatpush1.msra.mxu0 0.0
  %6112 = vmatprep.subr.mxu0 0.0
  %6113 = vmatpush1.msra.mxu0 0.0
  %6114 = vmatprep.subr.mxu0 0.0
  %6115 = vmatpush1.msra.mxu0 0.0
  %6116 = vmatprep.subr.mxu0 0.0
  %6117 = vmatpush1.msra.mxu0 0.0
  %6118 = vmatprep.subr.mxu0 0.0
  %6119 = vmatpush1.msra.mxu0 0.0
  %6120 = vmatprep.subr.mxu0 0.0
  %6121 = vmatpush1.msra.mxu0 %v6083
  %6122 = vmatprep.subr.mxu0 0.0
  %6123 = vmatpush1.msra.mxu0 %v6081
  %6124 = vmatprep.subr.mxu0 0.0
  %6125 = vmatpush2.msra.mxu0 0.0
  %6126 = vmatprep.subr.mxu0 0.0
  %6127 = vmatpush2.msra.mxu0 0.0
  %6128 = vmatprep.subr.mxu0 0.0
  %6129 = vmatpush2.msra.mxu0 0.0
  %6130 = vmatprep.subr.mxu0 0.0
  %6131 = vmatpush2.msra.mxu0 0.0
  %6132 = vmatprep.subr.mxu0 0.0
  %6133 = vmatpush2.msra.mxu0 0.0
  %6134 = vmatprep.subr.mxu0 0.0
  %6135 = vmatpush2.msra.mxu0 0.0
  %6136 = vmatprep.subr.mxu0 0.0
  %6137 = vmatpush2.msra.mxu0 0.0
  %6138 = vmatprep.subr.mxu0 0.0
  %6139 = vmatpush2.msra.mxu0 0.0
  %6140 = vmatprep.subr.mxu0 0.0
  %6141 = vmatpush2.msra.mxu0 0.0
  %6142 = vmatprep.subr.mxu0 0.0
  %6143 = vmatpush2.msra.mxu0 0.0
  %6144 = vmatprep.subr.mxu0 0.0
  %6145 = vmatpush2.msra.mxu0 0.0
  %6146 = vmatprep.subr.mxu0 0.0
  %6147 = vmatpush2.msra.mxu0 0.0
  %6148 = vmatprep.subr.mxu0 0.0
  %6149 = vmatpush2.msra.mxu0 0.0
  %6150 = vmatprep.subr.mxu0 0.0
  %6151 = vmatpush2.msra.mxu0 0.0
  %6152 = vmatprep.subr.mxu0 0.0
  %6153 = vmatpush2.msra.mxu0 0.0
  %6154 = vmatprep.subr.mxu0 0.0
  %6155 = vmatpush2.msra.mxu0 0.0
  %6156 = vmatprep.mubr.f32.mxu0 0.0
  %6157 = vmatmul.mubr.f32.gmra.mxu0 %v6087
  %v6158 = vpop.f32.mrf.mxu0
  %v6159 = vadd.f32 0.0, %v6158
  %v6160 = vpop.f32.mrf.mxu0
  %6161 = vmatprep.mubr.f32.mxu0 0.0
  %6162 = vmatmul.mubr.f32.gmra.mxu0 %v6090
  %v6163 = vpop.f32.mrf.mxu0
  %v6164 = vadd.f32 0.0, %v6163
  %v6165 = vpop.f32.mrf.mxu0
  %6166 = vdwg.mxu0
  %6167 = vrot.lane.b32.xlu0 %v917, 64
  %v6168 = vpop.permute.xlu0 %6167
  %6169 = vrot.lane.b32.xlu0 %v919, 64
  %v6170 = vpop.permute.xlu0 %6169
  %v6174 = vsel %vm3896, %v4546, 0
  %v6177 = vsel %vm3896, %v4548, 0
  %6179 = vmatprep.subr.mxu0 0.0
  %6180 = vmatpush1.msra.mxu0 0.0
  %6181 = vmatprep.subr.mxu0 0.0
  %6182 = vmatpush1.msra.mxu0 0.0
  %6183 = vmatprep.subr.mxu0 0.0
  %6184 = vmatpush1.msra.mxu0 0.0
  %6185 = vmatprep.subr.mxu0 0.0
  %6186 = vmatpush1.msra.mxu0 0.0
  %6187 = vmatprep.subr.mxu0 0.0
  %6188 = vmatpush1.msra.mxu0 0.0
  %6189 = vmatprep.subr.mxu0 0.0
  %6190 = vmatpush1.msra.mxu0 0.0
  %6191 = vmatprep.subr.mxu0 0.0
  %6192 = vmatpush1.msra.mxu0 0.0
  %6193 = vmatprep.subr.mxu0 0.0
  %6194 = vmatpush1.msra.mxu0 0.0
  %6195 = vmatprep.subr.mxu0 0.0
  %6196 = vmatpush1.msra.mxu0 0.0
  %6197 = vmatprep.subr.mxu0 0.0
  %6198 = vmatpush1.msra.mxu0 0.0
  %6199 = vmatprep.subr.mxu0 0.0
  %6200 = vmatpush1.msra.mxu0 0.0
  %6201 = vmatprep.subr.mxu0 0.0
  %6202 = vmatpush1.msra.mxu0 0.0
  %6203 = vmatprep.subr.mxu0 0.0
  %6204 = vmatpush1.msra.mxu0 0.0
  %6205 = vmatprep.subr.mxu0 0.0
  %6206 = vmatpush1.msra.mxu0 0.0
  %6207 = vmatprep.subr.mxu0 0.0
  %6208 = vmatpush1.msra.mxu0 %v6170
  %6209 = vmatprep.subr.mxu0 0.0
  %6210 = vmatpush1.msra.mxu0 %v6168
  %6211 = vmatprep.subr.mxu0 0.0
  %6212 = vmatpush2.msra.mxu0 0.0
  %6213 = vmatprep.subr.mxu0 0.0
  %6214 = vmatpush2.msra.mxu0 0.0
  %6215 = vmatprep.subr.mxu0 0.0
  %6216 = vmatpush2.msra.mxu0 0.0
  %6217 = vmatprep.subr.mxu0 0.0
  %6218 = vmatpush2.msra.mxu0 0.0
  %6219 = vmatprep.subr.mxu0 0.0
  %6220 = vmatpush2.msra.mxu0 0.0
  %6221 = vmatprep.subr.mxu0 0.0
  %6222 = vmatpush2.msra.mxu0 0.0
  %6223 = vmatprep.subr.mxu0 0.0
  %6224 = vmatpush2.msra.mxu0 0.0
  %6225 = vmatprep.subr.mxu0 0.0
  %6226 = vmatpush2.msra.mxu0 0.0
  %6227 = vmatprep.subr.mxu0 0.0
  %6228 = vmatpush2.msra.mxu0 0.0
  %6229 = vmatprep.subr.mxu0 0.0
  %6230 = vmatpush2.msra.mxu0 0.0
  %6231 = vmatprep.subr.mxu0 0.0
  %6232 = vmatpush2.msra.mxu0 0.0
  %6233 = vmatprep.subr.mxu0 0.0
  %6234 = vmatpush2.msra.mxu0 0.0
  %6235 = vmatprep.subr.mxu0 0.0
  %6236 = vmatpush2.msra.mxu0 0.0
  %6237 = vmatprep.subr.mxu0 0.0
  %6238 = vmatpush2.msra.mxu0 0.0
  %6239 = vmatprep.subr.mxu0 0.0
  %6240 = vmatpush2.msra.mxu0 0.0
  %6241 = vmatprep.subr.mxu0 0.0
  %6242 = vmatpush2.msra.mxu0 0.0
  %6243 = vmatprep.mubr.f32.mxu0 0.0
  %6244 = vmatmul.mubr.f32.gmra.mxu0 %v6174
  %v6245 = vpop.f32.mrf.mxu0
  %v6246 = vadd.f32 0.0, %v6245
  %v6247 = vpop.f32.mrf.mxu0
  %6248 = vmatprep.mubr.f32.mxu0 0.0
  %6249 = vmatmul.mubr.f32.gmra.mxu0 %v6177
  %v6250 = vpop.f32.mrf.mxu0
  %v6251 = vadd.f32 0.0, %v6250
  %v6252 = vpop.f32.mrf.mxu0
  %6253 = vdwg.mxu0
  %6254 = vrot.lane.b32.xlu0 %v921, 64
  %v6255 = vpop.permute.xlu0 %6254
  %6256 = vrot.lane.b32.xlu0 %v923, 64
  %v6257 = vpop.permute.xlu0 %6256
  %v6261 = vsel %vm3896, %v4550, 0
  %v6264 = vsel %vm3896, %v4552, 0
  %6266 = vmatprep.subr.mxu0 0.0
  %6267 = vmatpush1.msra.mxu0 0.0
  %6268 = vmatprep.subr.mxu0 0.0
  %6269 = vmatpush1.msra.mxu0 0.0
  %6270 = vmatprep.subr.mxu0 0.0
  %6271 = vmatpush1.msra.mxu0 0.0
  %6272 = vmatprep.subr.mxu0 0.0
  %6273 = vmatpush1.msra.mxu0 0.0
  %6274 = vmatprep.subr.mxu0 0.0
  %6275 = vmatpush1.msra.mxu0 0.0
  %6276 = vmatprep.subr.mxu0 0.0
  %6277 = vmatpush1.msra.mxu0 0.0
  %6278 = vmatprep.subr.mxu0 0.0
  %6279 = vmatpush1.msra.mxu0 0.0
  %6280 = vmatprep.subr.mxu0 0.0
  %6281 = vmatpush1.msra.mxu0 0.0
  %6282 = vmatprep.subr.mxu0 0.0
  %6283 = vmatpush1.msra.mxu0 0.0
  %6284 = vmatprep.subr.mxu0 0.0
  %6285 = vmatpush1.msra.mxu0 0.0
  %6286 = vmatprep.subr.mxu0 0.0
  %6287 = vmatpush1.msra.mxu0 0.0
  %6288 = vmatprep.subr.mxu0 0.0
  %6289 = vmatpush1.msra.mxu0 0.0
  %6290 = vmatprep.subr.mxu0 0.0
  %6291 = vmatpush1.msra.mxu0 0.0
  %6292 = vmatprep.subr.mxu0 0.0
  %6293 = vmatpush1.msra.mxu0 0.0
  %6294 = vmatprep.subr.mxu0 0.0
  %6295 = vmatpush1.msra.mxu0 %v6257
  %6296 = vmatprep.subr.mxu0 0.0
  %6297 = vmatpush1.msra.mxu0 %v6255
  %6298 = vmatprep.subr.mxu0 0.0
  %6299 = vmatpush2.msra.mxu0 0.0
  %6300 = vmatprep.subr.mxu0 0.0
  %6301 = vmatpush2.msra.mxu0 0.0
  %6302 = vmatprep.subr.mxu0 0.0
  %6303 = vmatpush2.msra.mxu0 0.0
  %6304 = vmatprep.subr.mxu0 0.0
  %6305 = vmatpush2.msra.mxu0 0.0
  %6306 = vmatprep.subr.mxu0 0.0
  %6307 = vmatpush2.msra.mxu0 0.0
  %6308 = vmatprep.subr.mxu0 0.0
  %6309 = vmatpush2.msra.mxu0 0.0
  %6310 = vmatprep.subr.mxu0 0.0
  %6311 = vmatpush2.msra.mxu0 0.0
  %6312 = vmatprep.subr.mxu0 0.0
  %6313 = vmatpush2.msra.mxu0 0.0
  %6314 = vmatprep.subr.mxu0 0.0
  %6315 = vmatpush2.msra.mxu0 0.0
  %6316 = vmatprep.subr.mxu0 0.0
  %6317 = vmatpush2.msra.mxu0 0.0
  %6318 = vmatprep.subr.mxu0 0.0
  %6319 = vmatpush2.msra.mxu0 0.0
  %6320 = vmatprep.subr.mxu0 0.0
  %6321 = vmatpush2.msra.mxu0 0.0
  %6322 = vmatprep.subr.mxu0 0.0
  %6323 = vmatpush2.msra.mxu0 0.0
  %6324 = vmatprep.subr.mxu0 0.0
  %6325 = vmatpush2.msra.mxu0 0.0
  %6326 = vmatprep.subr.mxu0 0.0
  %6327 = vmatpush2.msra.mxu0 0.0
  %6328 = vmatprep.subr.mxu0 0.0
  %6329 = vmatpush2.msra.mxu0 0.0
  %6330 = vmatprep.mubr.f32.mxu0 0.0
  %6331 = vmatmul.mubr.f32.gmra.mxu0 %v6261
  %v6332 = vpop.f32.mrf.mxu0
  %v6333 = vadd.f32 0.0, %v6332
  %v6334 = vpop.f32.mrf.mxu0
  %6335 = vmatprep.mubr.f32.mxu0 0.0
  %6336 = vmatmul.mubr.f32.gmra.mxu0 %v6264
  %v6337 = vpop.f32.mrf.mxu0
  %v6338 = vadd.f32 0.0, %v6337
  %v6339 = vpop.f32.mrf.mxu0
  %6340 = vdwg.mxu0
  %6341 = vrot.lane.b32.xlu0 %v925, 64
  %v6342 = vpop.permute.xlu0 %6341
  %6343 = vrot.lane.b32.xlu0 %v927, 64
  %v6344 = vpop.permute.xlu0 %6343
  %v6348 = vsel %vm3896, %v4554, 0
  %v6351 = vsel %vm3896, %v4556, 0
  %6353 = vmatprep.subr.mxu0 0.0
  %6354 = vmatpush1.msra.mxu0 0.0
  %6355 = vmatprep.subr.mxu0 0.0
  %6356 = vmatpush1.msra.mxu0 0.0
  %6357 = vmatprep.subr.mxu0 0.0
  %6358 = vmatpush1.msra.mxu0 0.0
  %6359 = vmatprep.subr.mxu0 0.0
  %6360 = vmatpush1.msra.mxu0 0.0
  %6361 = vmatprep.subr.mxu0 0.0
  %6362 = vmatpush1.msra.mxu0 0.0
  %6363 = vmatprep.subr.mxu0 0.0
  %6364 = vmatpush1.msra.mxu0 0.0
  %6365 = vmatprep.subr.mxu0 0.0
  %6366 = vmatpush1.msra.mxu0 0.0
  %6367 = vmatprep.subr.mxu0 0.0
  %6368 = vmatpush1.msra.mxu0 0.0
  %6369 = vmatprep.subr.mxu0 0.0
  %6370 = vmatpush1.msra.mxu0 0.0
  %6371 = vmatprep.subr.mxu0 0.0
  %6372 = vmatpush1.msra.mxu0 0.0
  %6373 = vmatprep.subr.mxu0 0.0
  %6374 = vmatpush1.msra.mxu0 0.0
  %6375 = vmatprep.subr.mxu0 0.0
  %6376 = vmatpush1.msra.mxu0 0.0
  %6377 = vmatprep.subr.mxu0 0.0
  %6378 = vmatpush1.msra.mxu0 0.0
  %6379 = vmatprep.subr.mxu0 0.0
  %6380 = vmatpush1.msra.mxu0 0.0
  %6381 = vmatprep.subr.mxu0 0.0
  %6382 = vmatpush1.msra.mxu0 %v6344
  %6383 = vmatprep.subr.mxu0 0.0
  %6384 = vmatpush1.msra.mxu0 %v6342
  %6385 = vmatprep.subr.mxu0 0.0
  %6386 = vmatpush2.msra.mxu0 0.0
  %6387 = vmatprep.subr.mxu0 0.0
  %6388 = vmatpush2.msra.mxu0 0.0
  %6389 = vmatprep.subr.mxu0 0.0
  %6390 = vmatpush2.msra.mxu0 0.0
  %6391 = vmatprep.subr.mxu0 0.0
  %6392 = vmatpush2.msra.mxu0 0.0
  %6393 = vmatprep.subr.mxu0 0.0
  %6394 = vmatpush2.msra.mxu0 0.0
  %6395 = vmatprep.subr.mxu0 0.0
  %6396 = vmatpush2.msra.mxu0 0.0
  %6397 = vmatprep.subr.mxu0 0.0
  %6398 = vmatpush2.msra.mxu0 0.0
  %6399 = vmatprep.subr.mxu0 0.0
  %6400 = vmatpush2.msra.mxu0 0.0
  %6401 = vmatprep.subr.mxu0 0.0
  %6402 = vmatpush2.msra.mxu0 0.0
  %6403 = vmatprep.subr.mxu0 0.0
  %6404 = vmatpush2.msra.mxu0 0.0
  %6405 = vmatprep.subr.mxu0 0.0
  %6406 = vmatpush2.msra.mxu0 0.0
  %6407 = vmatprep.subr.mxu0 0.0
  %6408 = vmatpush2.msra.mxu0 0.0
  %6409 = vmatprep.subr.mxu0 0.0
  %6410 = vmatpush2.msra.mxu0 0.0
  %6411 = vmatprep.subr.mxu0 0.0
  %6412 = vmatpush2.msra.mxu0 0.0
  %6413 = vmatprep.subr.mxu0 0.0
  %6414 = vmatpush2.msra.mxu0 0.0
  %6415 = vmatprep.subr.mxu0 0.0
  %6416 = vmatpush2.msra.mxu0 0.0
  %6417 = vmatprep.mubr.f32.mxu0 0.0
  %6418 = vmatmul.mubr.f32.gmra.mxu0 %v6348
  %v6419 = vpop.f32.mrf.mxu0
  %v6420 = vadd.f32 0.0, %v6419
  %v6421 = vpop.f32.mrf.mxu0
  %6422 = vmatprep.mubr.f32.mxu0 0.0
  %6423 = vmatmul.mubr.f32.gmra.mxu0 %v6351
  %v6424 = vpop.f32.mrf.mxu0
  %v6425 = vadd.f32 0.0, %v6424
  %v6426 = vpop.f32.mrf.mxu0
  %6427 = vdwg.mxu0
  %6428 = vrot.lane.b32.xlu0 %v929, 64
  %v6429 = vpop.permute.xlu0 %6428
  %6430 = vrot.lane.b32.xlu0 %v931, 64
  %v6431 = vpop.permute.xlu0 %6430
  %v6435 = vsel %vm3896, %v4558, 0
  %v6438 = vsel %vm3896, %v4560, 0
  %6440 = vmatprep.subr.mxu0 0.0
  %6441 = vmatpush1.msra.mxu0 0.0
  %6442 = vmatprep.subr.mxu0 0.0
  %6443 = vmatpush1.msra.mxu0 0.0
  %6444 = vmatprep.subr.mxu0 0.0
  %6445 = vmatpush1.msra.mxu0 0.0
  %6446 = vmatprep.subr.mxu0 0.0
  %6447 = vmatpush1.msra.mxu0 0.0
  %6448 = vmatprep.subr.mxu0 0.0
  %6449 = vmatpush1.msra.mxu0 0.0
  %6450 = vmatprep.subr.mxu0 0.0
  %6451 = vmatpush1.msra.mxu0 0.0
  %6452 = vmatprep.subr.mxu0 0.0
  %6453 = vmatpush1.msra.mxu0 0.0
  %6454 = vmatprep.subr.mxu0 0.0
  %6455 = vmatpush1.msra.mxu0 0.0
  %6456 = vmatprep.subr.mxu0 0.0
  %6457 = vmatpush1.msra.mxu0 0.0
  %6458 = vmatprep.subr.mxu0 0.0
  %6459 = vmatpush1.msra.mxu0 0.0
  %6460 = vmatprep.subr.mxu0 0.0
  %6461 = vmatpush1.msra.mxu0 0.0
  %6462 = vmatprep.subr.mxu0 0.0
  %6463 = vmatpush1.msra.mxu0 0.0
  %6464 = vmatprep.subr.mxu0 0.0
  %6465 = vmatpush1.msra.mxu0 0.0
  %6466 = vmatprep.subr.mxu0 0.0
  %6467 = vmatpush1.msra.mxu0 0.0
  %6468 = vmatprep.subr.mxu0 0.0
  %6469 = vmatpush1.msra.mxu0 %v6431
  %6470 = vmatprep.subr.mxu0 0.0
  %6471 = vmatpush1.msra.mxu0 %v6429
  %6472 = vmatprep.subr.mxu0 0.0
  %6473 = vmatpush2.msra.mxu0 0.0
  %6474 = vmatprep.subr.mxu0 0.0
  %6475 = vmatpush2.msra.mxu0 0.0
  %6476 = vmatprep.subr.mxu0 0.0
  %6477 = vmatpush2.msra.mxu0 0.0
  %6478 = vmatprep.subr.mxu0 0.0
  %6479 = vmatpush2.msra.mxu0 0.0
  %6480 = vmatprep.subr.mxu0 0.0
  %6481 = vmatpush2.msra.mxu0 0.0
  %6482 = vmatprep.subr.mxu0 0.0
  %6483 = vmatpush2.msra.mxu0 0.0
  %6484 = vmatprep.subr.mxu0 0.0
  %6485 = vmatpush2.msra.mxu0 0.0
  %6486 = vmatprep.subr.mxu0 0.0
  %6487 = vmatpush2.msra.mxu0 0.0
  %6488 = vmatprep.subr.mxu0 0.0
  %6489 = vmatpush2.msra.mxu0 0.0
  %6490 = vmatprep.subr.mxu0 0.0
  %6491 = vmatpush2.msra.mxu0 0.0
  %6492 = vmatprep.subr.mxu0 0.0
  %6493 = vmatpush2.msra.mxu0 0.0
  %6494 = vmatprep.subr.mxu0 0.0
  %6495 = vmatpush2.msra.mxu0 0.0
  %6496 = vmatprep.subr.mxu0 0.0
  %6497 = vmatpush2.msra.mxu0 0.0
  %6498 = vmatprep.subr.mxu0 0.0
  %6499 = vmatpush2.msra.mxu0 0.0
  %6500 = vmatprep.subr.mxu0 0.0
  %6501 = vmatpush2.msra.mxu0 0.0
  %6502 = vmatprep.subr.mxu0 0.0
  %6503 = vmatpush2.msra.mxu0 0.0
  %6504 = vmatprep.mubr.f32.mxu0 0.0
  %6505 = vmatmul.mubr.f32.gmra.mxu0 %v6435
  %v6506 = vpop.f32.mrf.mxu0
  %v6507 = vadd.f32 0.0, %v6506
  %v6508 = vpop.f32.mrf.mxu0
  %6509 = vmatprep.mubr.f32.mxu0 0.0
  %6510 = vmatmul.mubr.f32.gmra.mxu0 %v6438
  %v6511 = vpop.f32.mrf.mxu0
  %v6512 = vadd.f32 0.0, %v6511
  %v6513 = vpop.f32.mrf.mxu0
  %6514 = vdwg.mxu0
  %6515 = vrot.lane.b32.xlu0 %v933, 64
  %v6516 = vpop.permute.xlu0 %6515
  %6517 = vrot.lane.b32.xlu0 %v935, 64
  %v6518 = vpop.permute.xlu0 %6517
  %v6522 = vsel %vm3896, %v4562, 0
  %v6525 = vsel %vm3896, %v4564, 0
  %6527 = vmatprep.subr.mxu0 0.0
  %6528 = vmatpush1.msra.mxu0 0.0
  %6529 = vmatprep.subr.mxu0 0.0
  %6530 = vmatpush1.msra.mxu0 0.0
  %6531 = vmatprep.subr.mxu0 0.0
  %6532 = vmatpush1.msra.mxu0 0.0
  %6533 = vmatprep.subr.mxu0 0.0
  %6534 = vmatpush1.msra.mxu0 0.0
  %6535 = vmatprep.subr.mxu0 0.0
  %6536 = vmatpush1.msra.mxu0 0.0
  %6537 = vmatprep.subr.mxu0 0.0
  %6538 = vmatpush1.msra.mxu0 0.0
  %6539 = vmatprep.subr.mxu0 0.0
  %6540 = vmatpush1.msra.mxu0 0.0
  %6541 = vmatprep.subr.mxu0 0.0
  %6542 = vmatpush1.msra.mxu0 0.0
  %6543 = vmatprep.subr.mxu0 0.0
  %6544 = vmatpush1.msra.mxu0 0.0
  %6545 = vmatprep.subr.mxu0 0.0
  %6546 = vmatpush1.msra.mxu0 0.0
  %6547 = vmatprep.subr.mxu0 0.0
  %6548 = vmatpush1.msra.mxu0 0.0
  %6549 = vmatprep.subr.mxu0 0.0
  %6550 = vmatpush1.msra.mxu0 0.0
  %6551 = vmatprep.subr.mxu0 0.0
  %6552 = vmatpush1.msra.mxu0 0.0
  %6553 = vmatprep.subr.mxu0 0.0
  %6554 = vmatpush1.msra.mxu0 0.0
  %6555 = vmatprep.subr.mxu0 0.0
  %6556 = vmatpush1.msra.mxu0 %v6518
  %6557 = vmatprep.subr.mxu0 0.0
  %6558 = vmatpush1.msra.mxu0 %v6516
  %6559 = vmatprep.subr.mxu0 0.0
  %6560 = vmatpush2.msra.mxu0 0.0
  %6561 = vmatprep.subr.mxu0 0.0
  %6562 = vmatpush2.msra.mxu0 0.0
  %6563 = vmatprep.subr.mxu0 0.0
  %6564 = vmatpush2.msra.mxu0 0.0
  %6565 = vmatprep.subr.mxu0 0.0
  %6566 = vmatpush2.msra.mxu0 0.0
  %6567 = vmatprep.subr.mxu0 0.0
  %6568 = vmatpush2.msra.mxu0 0.0
  %6569 = vmatprep.subr.mxu0 0.0
  %6570 = vmatpush2.msra.mxu0 0.0
  %6571 = vmatprep.subr.mxu0 0.0
  %6572 = vmatpush2.msra.mxu0 0.0
  %6573 = vmatprep.subr.mxu0 0.0
  %6574 = vmatpush2.msra.mxu0 0.0
  %6575 = vmatprep.subr.mxu0 0.0
  %6576 = vmatpush2.msra.mxu0 0.0
  %6577 = vmatprep.subr.mxu0 0.0
  %6578 = vmatpush2.msra.mxu0 0.0
  %6579 = vmatprep.subr.mxu0 0.0
  %6580 = vmatpush2.msra.mxu0 0.0
  %6581 = vmatprep.subr.mxu0 0.0
  %6582 = vmatpush2.msra.mxu0 0.0
  %6583 = vmatprep.subr.mxu0 0.0
  %6584 = vmatpush2.msra.mxu0 0.0
  %6585 = vmatprep.subr.mxu0 0.0
  %6586 = vmatpush2.msra.mxu0 0.0
  %6587 = vmatprep.subr.mxu0 0.0
  %6588 = vmatpush2.msra.mxu0 0.0
  %6589 = vmatprep.subr.mxu0 0.0
  %6590 = vmatpush2.msra.mxu0 0.0
  %6591 = vmatprep.mubr.f32.mxu0 0.0
  %6592 = vmatmul.mubr.f32.gmra.mxu0 %v6522
  %v6593 = vpop.f32.mrf.mxu0
  %v6594 = vadd.f32 0.0, %v6593
  %v6595 = vpop.f32.mrf.mxu0
  %6596 = vmatprep.mubr.f32.mxu0 0.0
  %6597 = vmatmul.mubr.f32.gmra.mxu0 %v6525
  %v6598 = vpop.f32.mrf.mxu0
  %v6599 = vadd.f32 0.0, %v6598
  %v6600 = vpop.f32.mrf.mxu0
  %6601 = vdwg.mxu0
  %6602 = vrot.lane.b32.xlu0 %v937, 64
  %v6603 = vpop.permute.xlu0 %6602
  %6604 = vrot.lane.b32.xlu0 %v939, 64
  %v6605 = vpop.permute.xlu0 %6604
  %v6609 = vsel %vm3896, %v4566, 0
  %v6612 = vsel %vm3896, %v4568, 0
  %6614 = vmatprep.subr.mxu0 0.0
  %6615 = vmatpush1.msra.mxu0 0.0
  %6616 = vmatprep.subr.mxu0 0.0
  %6617 = vmatpush1.msra.mxu0 0.0
  %6618 = vmatprep.subr.mxu0 0.0
  %6619 = vmatpush1.msra.mxu0 0.0
  %6620 = vmatprep.subr.mxu0 0.0
  %6621 = vmatpush1.msra.mxu0 0.0
  %6622 = vmatprep.subr.mxu0 0.0
  %6623 = vmatpush1.msra.mxu0 0.0
  %6624 = vmatprep.subr.mxu0 0.0
  %6625 = vmatpush1.msra.mxu0 0.0
  %6626 = vmatprep.subr.mxu0 0.0
  %6627 = vmatpush1.msra.mxu0 0.0
  %6628 = vmatprep.subr.mxu0 0.0
  %6629 = vmatpush1.msra.mxu0 0.0
  %6630 = vmatprep.subr.mxu0 0.0
  %6631 = vmatpush1.msra.mxu0 0.0
  %6632 = vmatprep.subr.mxu0 0.0
  %6633 = vmatpush1.msra.mxu0 0.0
  %6634 = vmatprep.subr.mxu0 0.0
  %6635 = vmatpush1.msra.mxu0 0.0
  %6636 = vmatprep.subr.mxu0 0.0
  %6637 = vmatpush1.msra.mxu0 0.0
  %6638 = vmatprep.subr.mxu0 0.0
  %6639 = vmatpush1.msra.mxu0 0.0
  %6640 = vmatprep.subr.mxu0 0.0
  %6641 = vmatpush1.msra.mxu0 0.0
  %6642 = vmatprep.subr.mxu0 0.0
  %6643 = vmatpush1.msra.mxu0 %v6605
  %6644 = vmatprep.subr.mxu0 0.0
  %6645 = vmatpush1.msra.mxu0 %v6603
  %6646 = vmatprep.subr.mxu0 0.0
  %6647 = vmatpush2.msra.mxu0 0.0
  %6648 = vmatprep.subr.mxu0 0.0
  %6649 = vmatpush2.msra.mxu0 0.0
  %6650 = vmatprep.subr.mxu0 0.0
  %6651 = vmatpush2.msra.mxu0 0.0
  %6652 = vmatprep.subr.mxu0 0.0
  %6653 = vmatpush2.msra.mxu0 0.0
  %6654 = vmatprep.subr.mxu0 0.0
  %6655 = vmatpush2.msra.mxu0 0.0
  %6656 = vmatprep.subr.mxu0 0.0
  %6657 = vmatpush2.msra.mxu0 0.0
  %6658 = vmatprep.subr.mxu0 0.0
  %6659 = vmatpush2.msra.mxu0 0.0
  %6660 = vmatprep.subr.mxu0 0.0
  %6661 = vmatpush2.msra.mxu0 0.0
  %6662 = vmatprep.subr.mxu0 0.0
  %6663 = vmatpush2.msra.mxu0 0.0
  %6664 = vmatprep.subr.mxu0 0.0
  %6665 = vmatpush2.msra.mxu0 0.0
  %6666 = vmatprep.subr.mxu0 0.0
  %6667 = vmatpush2.msra.mxu0 0.0
  %6668 = vmatprep.subr.mxu0 0.0
  %6669 = vmatpush2.msra.mxu0 0.0
  %6670 = vmatprep.subr.mxu0 0.0
  %6671 = vmatpush2.msra.mxu0 0.0
  %6672 = vmatprep.subr.mxu0 0.0
  %6673 = vmatpush2.msra.mxu0 0.0
  %6674 = vmatprep.subr.mxu0 0.0
  %6675 = vmatpush2.msra.mxu0 0.0
  %6676 = vmatprep.subr.mxu0 0.0
  %6677 = vmatpush2.msra.mxu0 0.0
  %6678 = vmatprep.mubr.f32.mxu0 0.0
  %6679 = vmatmul.mubr.f32.gmra.mxu0 %v6609
  %v6680 = vpop.f32.mrf.mxu0
  %v6681 = vadd.f32 0.0, %v6680
  %v6682 = vpop.f32.mrf.mxu0
  %6683 = vmatprep.mubr.f32.mxu0 0.0
  %6684 = vmatmul.mubr.f32.gmra.mxu0 %v6612
  %v6685 = vpop.f32.mrf.mxu0
  %v6686 = vadd.f32 0.0, %v6685
  %v6687 = vpop.f32.mrf.mxu0
  %6688 = vdwg.mxu0
  %6689 = vrot.lane.b32.xlu0 %v941, 64
  %v6690 = vpop.permute.xlu0 %6689
  %6691 = vrot.lane.b32.xlu0 %v943, 64
  %v6692 = vpop.permute.xlu0 %6691
  %v6696 = vsel %vm3896, %v4570, 0
  %v6699 = vsel %vm3896, %v4572, 0
  %6701 = vmatprep.subr.mxu0 0.0
  %6702 = vmatpush1.msra.mxu0 0.0
  %6703 = vmatprep.subr.mxu0 0.0
  %6704 = vmatpush1.msra.mxu0 0.0
  %6705 = vmatprep.subr.mxu0 0.0
  %6706 = vmatpush1.msra.mxu0 0.0
  %6707 = vmatprep.subr.mxu0 0.0
  %6708 = vmatpush1.msra.mxu0 0.0
  %6709 = vmatprep.subr.mxu0 0.0
  %6710 = vmatpush1.msra.mxu0 0.0
  %6711 = vmatprep.subr.mxu0 0.0
  %6712 = vmatpush1.msra.mxu0 0.0
  %6713 = vmatprep.subr.mxu0 0.0
  %6714 = vmatpush1.msra.mxu0 0.0
  %6715 = vmatprep.subr.mxu0 0.0
  %6716 = vmatpush1.msra.mxu0 0.0
  %6717 = vmatprep.subr.mxu0 0.0
  %6718 = vmatpush1.msra.mxu0 0.0
  %6719 = vmatprep.subr.mxu0 0.0
  %6720 = vmatpush1.msra.mxu0 0.0
  %6721 = vmatprep.subr.mxu0 0.0
  %6722 = vmatpush1.msra.mxu0 0.0
  %6723 = vmatprep.subr.mxu0 0.0
  %6724 = vmatpush1.msra.mxu0 0.0
  %6725 = vmatprep.subr.mxu0 0.0
  %6726 = vmatpush1.msra.mxu0 0.0
  %6727 = vmatprep.subr.mxu0 0.0
  %6728 = vmatpush1.msra.mxu0 0.0
  %6729 = vmatprep.subr.mxu0 0.0
  %6730 = vmatpush1.msra.mxu0 %v6692
  %6731 = vmatprep.subr.mxu0 0.0
  %6732 = vmatpush1.msra.mxu0 %v6690
  %6733 = vmatprep.subr.mxu0 0.0
  %6734 = vmatpush2.msra.mxu0 0.0
  %6735 = vmatprep.subr.mxu0 0.0
  %6736 = vmatpush2.msra.mxu0 0.0
  %6737 = vmatprep.subr.mxu0 0.0
  %6738 = vmatpush2.msra.mxu0 0.0
  %6739 = vmatprep.subr.mxu0 0.0
  %6740 = vmatpush2.msra.mxu0 0.0
  %6741 = vmatprep.subr.mxu0 0.0
  %6742 = vmatpush2.msra.mxu0 0.0
  %6743 = vmatprep.subr.mxu0 0.0
  %6744 = vmatpush2.msra.mxu0 0.0
  %6745 = vmatprep.subr.mxu0 0.0
  %6746 = vmatpush2.msra.mxu0 0.0
  %6747 = vmatprep.subr.mxu0 0.0
  %6748 = vmatpush2.msra.mxu0 0.0
  %6749 = vmatprep.subr.mxu0 0.0
  %6750 = vmatpush2.msra.mxu0 0.0
  %6751 = vmatprep.subr.mxu0 0.0
  %6752 = vmatpush2.msra.mxu0 0.0
  %6753 = vmatprep.subr.mxu0 0.0
  %6754 = vmatpush2.msra.mxu0 0.0
  %6755 = vmatprep.subr.mxu0 0.0
  %6756 = vmatpush2.msra.mxu0 0.0
  %6757 = vmatprep.subr.mxu0 0.0
  %6758 = vmatpush2.msra.mxu0 0.0
  %6759 = vmatprep.subr.mxu0 0.0
  %6760 = vmatpush2.msra.mxu0 0.0
  %6761 = vmatprep.subr.mxu0 0.0
  %6762 = vmatpush2.msra.mxu0 0.0
  %6763 = vmatprep.subr.mxu0 0.0
  %6764 = vmatpush2.msra.mxu0 0.0
  %6765 = vmatprep.mubr.f32.mxu0 0.0
  %6766 = vmatmul.mubr.f32.gmra.mxu0 %v6696
  %v6767 = vpop.f32.mrf.mxu0
  %v6768 = vadd.f32 0.0, %v6767
  %v6769 = vpop.f32.mrf.mxu0
  %6770 = vmatprep.mubr.f32.mxu0 0.0
  %6771 = vmatmul.mubr.f32.gmra.mxu0 %v6699
  %v6772 = vpop.f32.mrf.mxu0
  %v6773 = vadd.f32 0.0, %v6772
  %v6774 = vpop.f32.mrf.mxu0
  %6775 = vdwg.mxu0
  %6776 = vrot.lane.b32.xlu0 %v945, 64
  %v6777 = vpop.permute.xlu0 %6776
  %6778 = vrot.lane.b32.xlu0 %v947, 64
  %v6779 = vpop.permute.xlu0 %6778
  %v6783 = vsel %vm3896, %v4574, 0
  %v6786 = vsel %vm3896, %v4576, 0
  %6788 = vmatprep.subr.mxu0 0.0
  %6789 = vmatpush1.msra.mxu0 0.0
  %6790 = vmatprep.subr.mxu0 0.0
  %6791 = vmatpush1.msra.mxu0 0.0
  %6792 = vmatprep.subr.mxu0 0.0
  %6793 = vmatpush1.msra.mxu0 0.0
  %6794 = vmatprep.subr.mxu0 0.0
  %6795 = vmatpush1.msra.mxu0 0.0
  %6796 = vmatprep.subr.mxu0 0.0
  %6797 = vmatpush1.msra.mxu0 0.0
  %6798 = vmatprep.subr.mxu0 0.0
  %6799 = vmatpush1.msra.mxu0 0.0
  %6800 = vmatprep.subr.mxu0 0.0
  %6801 = vmatpush1.msra.mxu0 0.0
  %6802 = vmatprep.subr.mxu0 0.0
  %6803 = vmatpush1.msra.mxu0 0.0
  %6804 = vmatprep.subr.mxu0 0.0
  %6805 = vmatpush1.msra.mxu0 0.0
  %6806 = vmatprep.subr.mxu0 0.0
  %6807 = vmatpush1.msra.mxu0 0.0
  %6808 = vmatprep.subr.mxu0 0.0
  %6809 = vmatpush1.msra.mxu0 0.0
  %6810 = vmatprep.subr.mxu0 0.0
  %6811 = vmatpush1.msra.mxu0 0.0
  %6812 = vmatprep.subr.mxu0 0.0
  %6813 = vmatpush1.msra.mxu0 0.0
  %6814 = vmatprep.subr.mxu0 0.0
  %6815 = vmatpush1.msra.mxu0 0.0
  %6816 = vmatprep.subr.mxu0 0.0
  %6817 = vmatpush1.msra.mxu0 %v6779
  %6818 = vmatprep.subr.mxu0 0.0
  %6819 = vmatpush1.msra.mxu0 %v6777
  %6820 = vmatprep.subr.mxu0 0.0
  %6821 = vmatpush2.msra.mxu0 0.0
  %6822 = vmatprep.subr.mxu0 0.0
  %6823 = vmatpush2.msra.mxu0 0.0
  %6824 = vmatprep.subr.mxu0 0.0
  %6825 = vmatpush2.msra.mxu0 0.0
  %6826 = vmatprep.subr.mxu0 0.0
  %6827 = vmatpush2.msra.mxu0 0.0
  %6828 = vmatprep.subr.mxu0 0.0
  %6829 = vmatpush2.msra.mxu0 0.0
  %6830 = vmatprep.subr.mxu0 0.0
  %6831 = vmatpush2.msra.mxu0 0.0
  %6832 = vmatprep.subr.mxu0 0.0
  %6833 = vmatpush2.msra.mxu0 0.0
  %6834 = vmatprep.subr.mxu0 0.0
  %6835 = vmatpush2.msra.mxu0 0.0
  %6836 = vmatprep.subr.mxu0 0.0
  %6837 = vmatpush2.msra.mxu0 0.0
  %6838 = vmatprep.subr.mxu0 0.0
  %6839 = vmatpush2.msra.mxu0 0.0
  %6840 = vmatprep.subr.mxu0 0.0
  %6841 = vmatpush2.msra.mxu0 0.0
  %6842 = vmatprep.subr.mxu0 0.0
  %6843 = vmatpush2.msra.mxu0 0.0
  %6844 = vmatprep.subr.mxu0 0.0
  %6845 = vmatpush2.msra.mxu0 0.0
  %6846 = vmatprep.subr.mxu0 0.0
  %6847 = vmatpush2.msra.mxu0 0.0
  %6848 = vmatprep.subr.mxu0 0.0
  %6849 = vmatpush2.msra.mxu0 0.0
  %6850 = vmatprep.subr.mxu0 0.0
  %6851 = vmatpush2.msra.mxu0 0.0
  %6852 = vmatprep.mubr.f32.mxu0 0.0
  %6853 = vmatmul.mubr.f32.gmra.mxu0 %v6783
  %v6854 = vpop.f32.mrf.mxu0
  %v6855 = vadd.f32 0.0, %v6854
  %v6856 = vpop.f32.mrf.mxu0
  %6857 = vmatprep.mubr.f32.mxu0 0.0
  %6858 = vmatmul.mubr.f32.gmra.mxu0 %v6786
  %v6859 = vpop.f32.mrf.mxu0
  %v6860 = vadd.f32 0.0, %v6859
  %v6861 = vpop.f32.mrf.mxu0
  %6862 = vdwg.mxu0
  %6863 = vrot.lane.b32.xlu0 %v949, 64
  %v6864 = vpop.permute.xlu0 %6863
  %6865 = vrot.lane.b32.xlu0 %v951, 64
  %v6866 = vpop.permute.xlu0 %6865
  %v6870 = vsel %vm3896, %v4578, 0
  %v6873 = vsel %vm3896, %v4580, 0
  %6875 = vmatprep.subr.mxu0 0.0
  %6876 = vmatpush1.msra.mxu0 0.0
  %6877 = vmatprep.subr.mxu0 0.0
  %6878 = vmatpush1.msra.mxu0 0.0
  %6879 = vmatprep.subr.mxu0 0.0
  %6880 = vmatpush1.msra.mxu0 0.0
  %6881 = vmatprep.subr.mxu0 0.0
  %6882 = vmatpush1.msra.mxu0 0.0
  %6883 = vmatprep.subr.mxu0 0.0
  %6884 = vmatpush1.msra.mxu0 0.0
  %6885 = vmatprep.subr.mxu0 0.0
  %6886 = vmatpush1.msra.mxu0 0.0
  %6887 = vmatprep.subr.mxu0 0.0
  %6888 = vmatpush1.msra.mxu0 0.0
  %6889 = vmatprep.subr.mxu0 0.0
  %6890 = vmatpush1.msra.mxu0 0.0
  %6891 = vmatprep.subr.mxu0 0.0
  %6892 = vmatpush1.msra.mxu0 0.0
  %6893 = vmatprep.subr.mxu0 0.0
  %6894 = vmatpush1.msra.mxu0 0.0
  %6895 = vmatprep.subr.mxu0 0.0
  %6896 = vmatpush1.msra.mxu0 0.0
  %6897 = vmatprep.subr.mxu0 0.0
  %6898 = vmatpush1.msra.mxu0 0.0
  %6899 = vmatprep.subr.mxu0 0.0
  %6900 = vmatpush1.msra.mxu0 0.0
  %6901 = vmatprep.subr.mxu0 0.0
  %6902 = vmatpush1.msra.mxu0 0.0
  %6903 = vmatprep.subr.mxu0 0.0
  %6904 = vmatpush1.msra.mxu0 %v6866
  %6905 = vmatprep.subr.mxu0 0.0
  %6906 = vmatpush1.msra.mxu0 %v6864
  %6907 = vmatprep.subr.mxu0 0.0
  %6908 = vmatpush2.msra.mxu0 0.0
  %6909 = vmatprep.subr.mxu0 0.0
  %6910 = vmatpush2.msra.mxu0 0.0
  %6911 = vmatprep.subr.mxu0 0.0
  %6912 = vmatpush2.msra.mxu0 0.0
  %6913 = vmatprep.subr.mxu0 0.0
  %6914 = vmatpush2.msra.mxu0 0.0
  %6915 = vmatprep.subr.mxu0 0.0
  %6916 = vmatpush2.msra.mxu0 0.0
  %6917 = vmatprep.subr.mxu0 0.0
  %6918 = vmatpush2.msra.mxu0 0.0
  %6919 = vmatprep.subr.mxu0 0.0
  %6920 = vmatpush2.msra.mxu0 0.0
  %6921 = vmatprep.subr.mxu0 0.0
  %6922 = vmatpush2.msra.mxu0 0.0
  %6923 = vmatprep.subr.mxu0 0.0
  %6924 = vmatpush2.msra.mxu0 0.0
  %6925 = vmatprep.subr.mxu0 0.0
  %6926 = vmatpush2.msra.mxu0 0.0
  %6927 = vmatprep.subr.mxu0 0.0
  %6928 = vmatpush2.msra.mxu0 0.0
  %6929 = vmatprep.subr.mxu0 0.0
  %6930 = vmatpush2.msra.mxu0 0.0
  %6931 = vmatprep.subr.mxu0 0.0
  %6932 = vmatpush2.msra.mxu0 0.0
  %6933 = vmatprep.subr.mxu0 0.0
  %6934 = vmatpush2.msra.mxu0 0.0
  %6935 = vmatprep.subr.mxu0 0.0
  %6936 = vmatpush2.msra.mxu0 0.0
  %6937 = vmatprep.subr.mxu0 0.0
  %6938 = vmatpush2.msra.mxu0 0.0
  %6939 = vmatprep.mubr.f32.mxu0 0.0
  %6940 = vmatmul.mubr.f32.gmra.mxu0 %v6870
  %v6941 = vpop.f32.mrf.mxu0
  %v6942 = vadd.f32 0.0, %v6941
  %v6943 = vpop.f32.mrf.mxu0
  %6944 = vmatprep.mubr.f32.mxu0 0.0
  %6945 = vmatmul.mubr.f32.gmra.mxu0 %v6873
  %v6946 = vpop.f32.mrf.mxu0
  %v6947 = vadd.f32 0.0, %v6946
  %v6948 = vpop.f32.mrf.mxu0
  %6949 = vdwg.mxu0
  %6950 = vrot.lane.b32.xlu0 %v953, 64
  %v6951 = vpop.permute.xlu0 %6950
  %6952 = vrot.lane.b32.xlu0 %v955, 64
  %v6953 = vpop.permute.xlu0 %6952
  %v6957 = vsel %vm3896, %v4582, 0
  %v6960 = vsel %vm3896, %v4584, 0
  %6962 = vmatprep.subr.mxu0 0.0
  %6963 = vmatpush1.msra.mxu0 0.0
  %6964 = vmatprep.subr.mxu0 0.0
  %6965 = vmatpush1.msra.mxu0 0.0
  %6966 = vmatprep.subr.mxu0 0.0
  %6967 = vmatpush1.msra.mxu0 0.0
  %6968 = vmatprep.subr.mxu0 0.0
  %6969 = vmatpush1.msra.mxu0 0.0
  %6970 = vmatprep.subr.mxu0 0.0
  %6971 = vmatpush1.msra.mxu0 0.0
  %6972 = vmatprep.subr.mxu0 0.0
  %6973 = vmatpush1.msra.mxu0 0.0
  %6974 = vmatprep.subr.mxu0 0.0
  %6975 = vmatpush1.msra.mxu0 0.0
  %6976 = vmatprep.subr.mxu0 0.0
  %6977 = vmatpush1.msra.mxu0 0.0
  %6978 = vmatprep.subr.mxu0 0.0
  %6979 = vmatpush1.msra.mxu0 0.0
  %6980 = vmatprep.subr.mxu0 0.0
  %6981 = vmatpush1.msra.mxu0 0.0
  %6982 = vmatprep.subr.mxu0 0.0
  %6983 = vmatpush1.msra.mxu0 0.0
  %6984 = vmatprep.subr.mxu0 0.0
  %6985 = vmatpush1.msra.mxu0 0.0
  %6986 = vmatprep.subr.mxu0 0.0
  %6987 = vmatpush1.msra.mxu0 0.0
  %6988 = vmatprep.subr.mxu0 0.0
  %6989 = vmatpush1.msra.mxu0 0.0
  %6990 = vmatprep.subr.mxu0 0.0
  %6991 = vmatpush1.msra.mxu0 %v6953
  %6992 = vmatprep.subr.mxu0 0.0
  %6993 = vmatpush1.msra.mxu0 %v6951
  %6994 = vmatprep.subr.mxu0 0.0
  %6995 = vmatpush2.msra.mxu0 0.0
  %6996 = vmatprep.subr.mxu0 0.0
  %6997 = vmatpush2.msra.mxu0 0.0
  %6998 = vmatprep.subr.mxu0 0.0
  %6999 = vmatpush2.msra.mxu0 0.0
  %7000 = vmatprep.subr.mxu0 0.0
  %7001 = vmatpush2.msra.mxu0 0.0
  %7002 = vmatprep.subr.mxu0 0.0
  %7003 = vmatpush2.msra.mxu0 0.0
  %7004 = vmatprep.subr.mxu0 0.0
  %7005 = vmatpush2.msra.mxu0 0.0
  %7006 = vmatprep.subr.mxu0 0.0
  %7007 = vmatpush2.msra.mxu0 0.0
  %7008 = vmatprep.subr.mxu0 0.0
  %7009 = vmatpush2.msra.mxu0 0.0
  %7010 = vmatprep.subr.mxu0 0.0
  %7011 = vmatpush2.msra.mxu0 0.0
  %7012 = vmatprep.subr.mxu0 0.0
  %7013 = vmatpush2.msra.mxu0 0.0
  %7014 = vmatprep.subr.mxu0 0.0
  %7015 = vmatpush2.msra.mxu0 0.0
  %7016 = vmatprep.subr.mxu0 0.0
  %7017 = vmatpush2.msra.mxu0 0.0
  %7018 = vmatprep.subr.mxu0 0.0
  %7019 = vmatpush2.msra.mxu0 0.0
  %7020 = vmatprep.subr.mxu0 0.0
  %7021 = vmatpush2.msra.mxu0 0.0
  %7022 = vmatprep.subr.mxu0 0.0
  %7023 = vmatpush2.msra.mxu0 0.0
  %7024 = vmatprep.subr.mxu0 0.0
  %7025 = vmatpush2.msra.mxu0 0.0
  %7026 = vmatprep.mubr.f32.mxu0 0.0
  %7027 = vmatmul.mubr.f32.gmra.mxu0 %v6957
  %v7028 = vpop.f32.mrf.mxu0
  %v7029 = vadd.f32 0.0, %v7028
  %v7030 = vpop.f32.mrf.mxu0
  %7031 = vmatprep.mubr.f32.mxu0 0.0
  %7032 = vmatmul.mubr.f32.gmra.mxu0 %v6960
  %v7033 = vpop.f32.mrf.mxu0
  %v7034 = vadd.f32 0.0, %v7033
  %v7035 = vpop.f32.mrf.mxu0
  %7036 = vdwg.mxu0
  %7037 = vrot.lane.b32.xlu0 %v957, 64
  %v7038 = vpop.permute.xlu0 %7037
  %7039 = vrot.lane.b32.xlu0 %v959, 64
  %v7040 = vpop.permute.xlu0 %7039
  %v7044 = vsel %vm3896, %v4586, 0
  %v7047 = vsel %vm3896, %v4588, 0
  %7049 = vmatprep.subr.mxu0 0.0
  %7050 = vmatpush1.msra.mxu0 0.0
  %7051 = vmatprep.subr.mxu0 0.0
  %7052 = vmatpush1.msra.mxu0 0.0
  %7053 = vmatprep.subr.mxu0 0.0
  %7054 = vmatpush1.msra.mxu0 0.0
  %7055 = vmatprep.subr.mxu0 0.0
  %7056 = vmatpush1.msra.mxu0 0.0
  %7057 = vmatprep.subr.mxu0 0.0
  %7058 = vmatpush1.msra.mxu0 0.0
  %7059 = vmatprep.subr.mxu0 0.0
  %7060 = vmatpush1.msra.mxu0 0.0
  %7061 = vmatprep.subr.mxu0 0.0
  %7062 = vmatpush1.msra.mxu0 0.0
  %7063 = vmatprep.subr.mxu0 0.0
  %7064 = vmatpush1.msra.mxu0 0.0
  %7065 = vmatprep.subr.mxu0 0.0
  %7066 = vmatpush1.msra.mxu0 0.0
  %7067 = vmatprep.subr.mxu0 0.0
  %7068 = vmatpush1.msra.mxu0 0.0
  %7069 = vmatprep.subr.mxu0 0.0
  %7070 = vmatpush1.msra.mxu0 0.0
  %7071 = vmatprep.subr.mxu0 0.0
  %7072 = vmatpush1.msra.mxu0 0.0
  %7073 = vmatprep.subr.mxu0 0.0
  %7074 = vmatpush1.msra.mxu0 0.0
  %7075 = vmatprep.subr.mxu0 0.0
  %7076 = vmatpush1.msra.mxu0 0.0
  %7077 = vmatprep.subr.mxu0 0.0
  %7078 = vmatpush1.msra.mxu0 %v7040
  %7079 = vmatprep.subr.mxu0 0.0
  %7080 = vmatpush1.msra.mxu0 %v7038
  %7081 = vmatprep.subr.mxu0 0.0
  %7082 = vmatpush2.msra.mxu0 0.0
  %7083 = vmatprep.subr.mxu0 0.0
  %7084 = vmatpush2.msra.mxu0 0.0
  %7085 = vmatprep.subr.mxu0 0.0
  %7086 = vmatpush2.msra.mxu0 0.0
  %7087 = vmatprep.subr.mxu0 0.0
  %7088 = vmatpush2.msra.mxu0 0.0
  %7089 = vmatprep.subr.mxu0 0.0
  %7090 = vmatpush2.msra.mxu0 0.0
  %7091 = vmatprep.subr.mxu0 0.0
  %7092 = vmatpush2.msra.mxu0 0.0
  %7093 = vmatprep.subr.mxu0 0.0
  %7094 = vmatpush2.msra.mxu0 0.0
  %7095 = vmatprep.subr.mxu0 0.0
  %7096 = vmatpush2.msra.mxu0 0.0
  %7097 = vmatprep.subr.mxu0 0.0
  %7098 = vmatpush2.msra.mxu0 0.0
  %7099 = vmatprep.subr.mxu0 0.0
  %7100 = vmatpush2.msra.mxu0 0.0
  %7101 = vmatprep.subr.mxu0 0.0
  %7102 = vmatpush2.msra.mxu0 0.0
  %7103 = vmatprep.subr.mxu0 0.0
  %7104 = vmatpush2.msra.mxu0 0.0
  %7105 = vmatprep.subr.mxu0 0.0
  %7106 = vmatpush2.msra.mxu0 0.0
  %7107 = vmatprep.subr.mxu0 0.0
  %7108 = vmatpush2.msra.mxu0 0.0
  %7109 = vmatprep.subr.mxu0 0.0
  %7110 = vmatpush2.msra.mxu0 0.0
  %7111 = vmatprep.subr.mxu0 0.0
  %7112 = vmatpush2.msra.mxu0 0.0
  %7113 = vmatprep.mubr.f32.mxu0 0.0
  %7114 = vmatmul.mubr.f32.gmra.mxu0 %v7044
  %v7115 = vpop.f32.mrf.mxu0
  %v7116 = vadd.f32 0.0, %v7115
  %v7117 = vpop.f32.mrf.mxu0
  %7118 = vmatprep.mubr.f32.mxu0 0.0
  %7119 = vmatmul.mubr.f32.gmra.mxu0 %v7047
  %v7120 = vpop.f32.mrf.mxu0
  %v7121 = vadd.f32 0.0, %v7120
  %v7122 = vpop.f32.mrf.mxu0
  %7123 = vdwg.mxu0
  %7124 = vrot.lane.b32.xlu0 %v961, 64
  %v7125 = vpop.permute.xlu0 %7124
  %7126 = vrot.lane.b32.xlu0 %v963, 64
  %v7127 = vpop.permute.xlu0 %7126
  %v7131 = vsel %vm3896, %v4590, 0
  %v7134 = vsel %vm3896, %v4592, 0
  %7136 = vmatprep.subr.mxu0 0.0
  %7137 = vmatpush1.msra.mxu0 0.0
  %7138 = vmatprep.subr.mxu0 0.0
  %7139 = vmatpush1.msra.mxu0 0.0
  %7140 = vmatprep.subr.mxu0 0.0
  %7141 = vmatpush1.msra.mxu0 0.0
  %7142 = vmatprep.subr.mxu0 0.0
  %7143 = vmatpush1.msra.mxu0 0.0
  %7144 = vmatprep.subr.mxu0 0.0
  %7145 = vmatpush1.msra.mxu0 0.0
  %7146 = vmatprep.subr.mxu0 0.0
  %7147 = vmatpush1.msra.mxu0 0.0
  %7148 = vmatprep.subr.mxu0 0.0
  %7149 = vmatpush1.msra.mxu0 0.0
  %7150 = vmatprep.subr.mxu0 0.0
  %7151 = vmatpush1.msra.mxu0 0.0
  %7152 = vmatprep.subr.mxu0 0.0
  %7153 = vmatpush1.msra.mxu0 0.0
  %7154 = vmatprep.subr.mxu0 0.0
  %7155 = vmatpush1.msra.mxu0 0.0
  %7156 = vmatprep.subr.mxu0 0.0
  %7157 = vmatpush1.msra.mxu0 0.0
  %7158 = vmatprep.subr.mxu0 0.0
  %7159 = vmatpush1.msra.mxu0 0.0
  %7160 = vmatprep.subr.mxu0 0.0
  %7161 = vmatpush1.msra.mxu0 0.0
  %7162 = vmatprep.subr.mxu0 0.0
  %7163 = vmatpush1.msra.mxu0 0.0
  %7164 = vmatprep.subr.mxu0 0.0
  %7165 = vmatpush1.msra.mxu0 %v7127
  %7166 = vmatprep.subr.mxu0 0.0
  %7167 = vmatpush1.msra.mxu0 %v7125
  %7168 = vmatprep.subr.mxu0 0.0
  %7169 = vmatpush2.msra.mxu0 0.0
  %7170 = vmatprep.subr.mxu0 0.0
  %7171 = vmatpush2.msra.mxu0 0.0
  %7172 = vmatprep.subr.mxu0 0.0
  %7173 = vmatpush2.msra.mxu0 0.0
  %7174 = vmatprep.subr.mxu0 0.0
  %7175 = vmatpush2.msra.mxu0 0.0
  %7176 = vmatprep.subr.mxu0 0.0
  %7177 = vmatpush2.msra.mxu0 0.0
  %7178 = vmatprep.subr.mxu0 0.0
  %7179 = vmatpush2.msra.mxu0 0.0
  %7180 = vmatprep.subr.mxu0 0.0
  %7181 = vmatpush2.msra.mxu0 0.0
  %7182 = vmatprep.subr.mxu0 0.0
  %7183 = vmatpush2.msra.mxu0 0.0
  %7184 = vmatprep.subr.mxu0 0.0
  %7185 = vmatpush2.msra.mxu0 0.0
  %7186 = vmatprep.subr.mxu0 0.0
  %7187 = vmatpush2.msra.mxu0 0.0
  %7188 = vmatprep.subr.mxu0 0.0
  %7189 = vmatpush2.msra.mxu0 0.0
  %7190 = vmatprep.subr.mxu0 0.0
  %7191 = vmatpush2.msra.mxu0 0.0
  %7192 = vmatprep.subr.mxu0 0.0
  %7193 = vmatpush2.msra.mxu0 0.0
  %7194 = vmatprep.subr.mxu0 0.0
  %7195 = vmatpush2.msra.mxu0 0.0
  %7196 = vmatprep.subr.mxu0 0.0
  %7197 = vmatpush2.msra.mxu0 0.0
  %7198 = vmatprep.subr.mxu0 0.0
  %7199 = vmatpush2.msra.mxu0 0.0
  %7200 = vmatprep.mubr.f32.mxu0 0.0
  %7201 = vmatmul.mubr.f32.gmra.mxu0 %v7131
  %v7202 = vpop.f32.mrf.mxu0
  %v7203 = vadd.f32 0.0, %v7202
  %v7204 = vpop.f32.mrf.mxu0
  %7205 = vmatprep.mubr.f32.mxu0 0.0
  %7206 = vmatmul.mubr.f32.gmra.mxu0 %v7134
  %v7207 = vpop.f32.mrf.mxu0
  %v7208 = vadd.f32 0.0, %v7207
  %v7209 = vpop.f32.mrf.mxu0
  %7210 = vdwg.mxu0
  %7211 = vrot.lane.b32.xlu0 %v965, 64
  %v7212 = vpop.permute.xlu0 %7211
  %7213 = vrot.lane.b32.xlu0 %v967, 64
  %v7214 = vpop.permute.xlu0 %7213
  %v7218 = vsel %vm3896, %v4594, 0
  %v7221 = vsel %vm3896, %v4596, 0
  %7223 = vmatprep.subr.mxu0 0.0
  %7224 = vmatpush1.msra.mxu0 0.0
  %7225 = vmatprep.subr.mxu0 0.0
  %7226 = vmatpush1.msra.mxu0 0.0
  %7227 = vmatprep.subr.mxu0 0.0
  %7228 = vmatpush1.msra.mxu0 0.0
  %7229 = vmatprep.subr.mxu0 0.0
  %7230 = vmatpush1.msra.mxu0 0.0
  %7231 = vmatprep.subr.mxu0 0.0
  %7232 = vmatpush1.msra.mxu0 0.0
  %7233 = vmatprep.subr.mxu0 0.0
  %7234 = vmatpush1.msra.mxu0 0.0
  %7235 = vmatprep.subr.mxu0 0.0
  %7236 = vmatpush1.msra.mxu0 0.0
  %7237 = vmatprep.subr.mxu0 0.0
  %7238 = vmatpush1.msra.mxu0 0.0
  %7239 = vmatprep.subr.mxu0 0.0
  %7240 = vmatpush1.msra.mxu0 0.0
  %7241 = vmatprep.subr.mxu0 0.0
  %7242 = vmatpush1.msra.mxu0 0.0
  %7243 = vmatprep.subr.mxu0 0.0
  %7244 = vmatpush1.msra.mxu0 0.0
  %7245 = vmatprep.subr.mxu0 0.0
  %7246 = vmatpush1.msra.mxu0 0.0
  %7247 = vmatprep.subr.mxu0 0.0
  %7248 = vmatpush1.msra.mxu0 0.0
  %7249 = vmatprep.subr.mxu0 0.0
  %7250 = vmatpush1.msra.mxu0 0.0
  %7251 = vmatprep.subr.mxu0 0.0
  %7252 = vmatpush1.msra.mxu0 %v7214
  %7253 = vmatprep.subr.mxu0 0.0
  %7254 = vmatpush1.msra.mxu0 %v7212
  %7255 = vmatprep.subr.mxu0 0.0
  %7256 = vmatpush2.msra.mxu0 0.0
  %7257 = vmatprep.subr.mxu0 0.0
  %7258 = vmatpush2.msra.mxu0 0.0
  %7259 = vmatprep.subr.mxu0 0.0
  %7260 = vmatpush2.msra.mxu0 0.0
  %7261 = vmatprep.subr.mxu0 0.0
  %7262 = vmatpush2.msra.mxu0 0.0
  %7263 = vmatprep.subr.mxu0 0.0
  %7264 = vmatpush2.msra.mxu0 0.0
  %7265 = vmatprep.subr.mxu0 0.0
  %7266 = vmatpush2.msra.mxu0 0.0
  %7267 = vmatprep.subr.mxu0 0.0
  %7268 = vmatpush2.msra.mxu0 0.0
  %7269 = vmatprep.subr.mxu0 0.0
  %7270 = vmatpush2.msra.mxu0 0.0
  %7271 = vmatprep.subr.mxu0 0.0
  %7272 = vmatpush2.msra.mxu0 0.0
  %7273 = vmatprep.subr.mxu0 0.0
  %7274 = vmatpush2.msra.mxu0 0.0
  %7275 = vmatprep.subr.mxu0 0.0
  %7276 = vmatpush2.msra.mxu0 0.0
  %7277 = vmatprep.subr.mxu0 0.0
  %7278 = vmatpush2.msra.mxu0 0.0
  %7279 = vmatprep.subr.mxu0 0.0
  %7280 = vmatpush2.msra.mxu0 0.0
  %7281 = vmatprep.subr.mxu0 0.0
  %7282 = vmatpush2.msra.mxu0 0.0
  %7283 = vmatprep.subr.mxu0 0.0
  %7284 = vmatpush2.msra.mxu0 0.0
  %7285 = vmatprep.subr.mxu0 0.0
  %7286 = vmatpush2.msra.mxu0 0.0
  %7287 = vmatprep.mubr.f32.mxu0 0.0
  %7288 = vmatmul.mubr.f32.gmra.mxu0 %v7218
  %v7289 = vpop.f32.mrf.mxu0
  %v7290 = vadd.f32 0.0, %v7289
  %v7291 = vpop.f32.mrf.mxu0
  %7292 = vmatprep.mubr.f32.mxu0 0.0
  %7293 = vmatmul.mubr.f32.gmra.mxu0 %v7221
  %v7294 = vpop.f32.mrf.mxu0
  %v7295 = vadd.f32 0.0, %v7294
  %v7296 = vpop.f32.mrf.mxu0
  %7297 = vdwg.mxu0
  %7298 = vrot.lane.b32.xlu0 %v969, 64
  %v7299 = vpop.permute.xlu0 %7298
  %7300 = vrot.lane.b32.xlu0 %v971, 64
  %v7301 = vpop.permute.xlu0 %7300
  %v7305 = vsel %vm3896, %v4598, 0
  %v7308 = vsel %vm3896, %v4600, 0
  %7310 = vmatprep.subr.mxu0 0.0
  %7311 = vmatpush1.msra.mxu0 0.0
  %7312 = vmatprep.subr.mxu0 0.0
  %7313 = vmatpush1.msra.mxu0 0.0
  %7314 = vmatprep.subr.mxu0 0.0
  %7315 = vmatpush1.msra.mxu0 0.0
  %7316 = vmatprep.subr.mxu0 0.0
  %7317 = vmatpush1.msra.mxu0 0.0
  %7318 = vmatprep.subr.mxu0 0.0
  %7319 = vmatpush1.msra.mxu0 0.0
  %7320 = vmatprep.subr.mxu0 0.0
  %7321 = vmatpush1.msra.mxu0 0.0
  %7322 = vmatprep.subr.mxu0 0.0
  %7323 = vmatpush1.msra.mxu0 0.0
  %7324 = vmatprep.subr.mxu0 0.0
  %7325 = vmatpush1.msra.mxu0 0.0
  %7326 = vmatprep.subr.mxu0 0.0
  %7327 = vmatpush1.msra.mxu0 0.0
  %7328 = vmatprep.subr.mxu0 0.0
  %7329 = vmatpush1.msra.mxu0 0.0
  %7330 = vmatprep.subr.mxu0 0.0
  %7331 = vmatpush1.msra.mxu0 0.0
  %7332 = vmatprep.subr.mxu0 0.0
  %7333 = vmatpush1.msra.mxu0 0.0
  %7334 = vmatprep.subr.mxu0 0.0
  %7335 = vmatpush1.msra.mxu0 0.0
  %7336 = vmatprep.subr.mxu0 0.0
  %7337 = vmatpush1.msra.mxu0 0.0
  %7338 = vmatprep.subr.mxu0 0.0
  %7339 = vmatpush1.msra.mxu0 %v7301
  %7340 = vmatprep.subr.mxu0 0.0
  %7341 = vmatpush1.msra.mxu0 %v7299
  %7342 = vmatprep.subr.mxu0 0.0
  %7343 = vmatpush2.msra.mxu0 0.0
  %7344 = vmatprep.subr.mxu0 0.0
  %7345 = vmatpush2.msra.mxu0 0.0
  %7346 = vmatprep.subr.mxu0 0.0
  %7347 = vmatpush2.msra.mxu0 0.0
  %7348 = vmatprep.subr.mxu0 0.0
  %7349 = vmatpush2.msra.mxu0 0.0
  %7350 = vmatprep.subr.mxu0 0.0
  %7351 = vmatpush2.msra.mxu0 0.0
  %7352 = vmatprep.subr.mxu0 0.0
  %7353 = vmatpush2.msra.mxu0 0.0
  %7354 = vmatprep.subr.mxu0 0.0
  %7355 = vmatpush2.msra.mxu0 0.0
  %7356 = vmatprep.subr.mxu0 0.0
  %7357 = vmatpush2.msra.mxu0 0.0
  %7358 = vmatprep.subr.mxu0 0.0
  %7359 = vmatpush2.msra.mxu0 0.0
  %7360 = vmatprep.subr.mxu0 0.0
  %7361 = vmatpush2.msra.mxu0 0.0
  %7362 = vmatprep.subr.mxu0 0.0
  %7363 = vmatpush2.msra.mxu0 0.0
  %7364 = vmatprep.subr.mxu0 0.0
  %7365 = vmatpush2.msra.mxu0 0.0
  %7366 = vmatprep.subr.mxu0 0.0
  %7367 = vmatpush2.msra.mxu0 0.0
  %7368 = vmatprep.subr.mxu0 0.0
  %7369 = vmatpush2.msra.mxu0 0.0
  %7370 = vmatprep.subr.mxu0 0.0
  %7371 = vmatpush2.msra.mxu0 0.0
  %7372 = vmatprep.subr.mxu0 0.0
  %7373 = vmatpush2.msra.mxu0 0.0
  %7374 = vmatprep.mubr.f32.mxu0 0.0
  %7375 = vmatmul.mubr.f32.gmra.mxu0 %v7305
  %v7376 = vpop.f32.mrf.mxu0
  %v7377 = vadd.f32 0.0, %v7376
  %v7378 = vpop.f32.mrf.mxu0
  %7379 = vmatprep.mubr.f32.mxu0 0.0
  %7380 = vmatmul.mubr.f32.gmra.mxu0 %v7308
  %v7381 = vpop.f32.mrf.mxu0
  %v7382 = vadd.f32 0.0, %v7381
  %v7383 = vpop.f32.mrf.mxu0
  %7384 = vdwg.mxu0
  %7401 = vrot.lane.b32.xlu0 %v5376, 8
  %v7402 = vpop.permute.xlu0 %7401
  %7403 = vrot.lane.b32.xlu0 %v5381, 8
  %v7404 = vpop.permute.xlu0 %7403
  %7405 = vrot.lane.b32.xlu0 %v5463, 8
  %v7406 = vpop.permute.xlu0 %7405
  %7407 = vrot.lane.b32.xlu0 %v5468, 8
  %v7408 = vpop.permute.xlu0 %7407
  %7409 = vrot.lane.b32.xlu0 %v5550, 8
  %v7410 = vpop.permute.xlu0 %7409
  %7411 = vrot.lane.b32.xlu0 %v5555, 8
  %v7412 = vpop.permute.xlu0 %7411
  %7413 = vrot.lane.b32.xlu0 %v5637, 8
  %v7414 = vpop.permute.xlu0 %7413
  %7415 = vrot.lane.b32.xlu0 %v5642, 8
  %v7416 = vpop.permute.xlu0 %7415
  %7417 = vrot.lane.b32.xlu0 %v5724, 8
  %v7418 = vpop.permute.xlu0 %7417
  %7419 = vrot.lane.b32.xlu0 %v5729, 8
  %v7420 = vpop.permute.xlu0 %7419
  %7421 = vrot.lane.b32.xlu0 %v5811, 8
  %v7422 = vpop.permute.xlu0 %7421
  %7423 = vrot.lane.b32.xlu0 %v5816, 8
  %v7424 = vpop.permute.xlu0 %7423
  %7425 = vrot.lane.b32.xlu0 %v5898, 8
  %v7426 = vpop.permute.xlu0 %7425
  %7427 = vrot.lane.b32.xlu0 %v5903, 8
  %v7428 = vpop.permute.xlu0 %7427
  %7429 = vrot.lane.b32.xlu0 %v5985, 8
  %v7430 = vpop.permute.xlu0 %7429
  %7431 = vrot.lane.b32.xlu0 %v5990, 8
  %v7432 = vpop.permute.xlu0 %7431
  %7465 = vrot.lane.b32.xlu0 %v6072, 16
  %v7466 = vpop.permute.xlu0 %7465
  %7467 = vrot.lane.b32.xlu0 %v6077, 16
  %v7468 = vpop.permute.xlu0 %7467
  %7469 = vrot.lane.b32.xlu0 %v6159, 16
  %v7470 = vpop.permute.xlu0 %7469
  %7471 = vrot.lane.b32.xlu0 %v6164, 16
  %v7472 = vpop.permute.xlu0 %7471
  %7473 = vrot.lane.b32.xlu0 %v6246, 16
  %v7474 = vpop.permute.xlu0 %7473
  %7475 = vrot.lane.b32.xlu0 %v6251, 16
  %v7476 = vpop.permute.xlu0 %7475
  %7477 = vrot.lane.b32.xlu0 %v6333, 16
  %v7478 = vpop.permute.xlu0 %7477
  %7479 = vrot.lane.b32.xlu0 %v6338, 16
  %v7480 = vpop.permute.xlu0 %7479
  %7481 = vrot.lane.b32.xlu0 %v6420, 16
  %v7482 = vpop.permute.xlu0 %7481
  %7483 = vrot.lane.b32.xlu0 %v6425, 16
  %v7484 = vpop.permute.xlu0 %7483
  %7485 = vrot.lane.b32.xlu0 %v6507, 16
  %v7486 = vpop.permute.xlu0 %7485
  %7487 = vrot.lane.b32.xlu0 %v6512, 16
  %v7488 = vpop.permute.xlu0 %7487
  %7489 = vrot.lane.b32.xlu0 %v6594, 16
  %v7490 = vpop.permute.xlu0 %7489
  %7491 = vrot.lane.b32.xlu0 %v6599, 16
  %v7492 = vpop.permute.xlu0 %7491
  %7493 = vrot.lane.b32.xlu0 %v6681, 16
  %v7494 = vpop.permute.xlu0 %7493
  %7495 = vrot.lane.b32.xlu0 %v6686, 16
  %v7496 = vpop.permute.xlu0 %7495
  %7529 = vrot.lane.b32.xlu0 %v6768, 24
  %v7530 = vpop.permute.xlu0 %7529
  %7531 = vrot.lane.b32.xlu0 %v6773, 24
  %v7532 = vpop.permute.xlu0 %7531
  %7533 = vrot.lane.b32.xlu0 %v6855, 24
  %v7534 = vpop.permute.xlu0 %7533
  %7535 = vrot.lane.b32.xlu0 %v6860, 24
  %v7536 = vpop.permute.xlu0 %7535
  %7537 = vrot.lane.b32.xlu0 %v6942, 24
  %v7538 = vpop.permute.xlu0 %7537
  %7539 = vrot.lane.b32.xlu0 %v6947, 24
  %v7540 = vpop.permute.xlu0 %7539
  %7541 = vrot.lane.b32.xlu0 %v7029, 24
  %v7542 = vpop.permute.xlu0 %7541
  %7543 = vrot.lane.b32.xlu0 %v7034, 24
  %v7544 = vpop.permute.xlu0 %7543
  %7545 = vrot.lane.b32.xlu0 %v7116, 24
  %v7546 = vpop.permute.xlu0 %7545
  %7547 = vrot.lane.b32.xlu0 %v7121, 24
  %v7548 = vpop.permute.xlu0 %7547
  %7549 = vrot.lane.b32.xlu0 %v7203, 24
  %v7550 = vpop.permute.xlu0 %7549
  %7551 = vrot.lane.b32.xlu0 %v7208, 24
  %v7552 = vpop.permute.xlu0 %7551
  %7553 = vrot.lane.b32.xlu0 %v7290, 24
  %v7554 = vpop.permute.xlu0 %7553
  %7555 = vrot.lane.b32.xlu0 %v7295, 24
  %v7556 = vpop.permute.xlu0 %7555
  %7557 = vrot.lane.b32.xlu0 %v7377, 24
  %v7558 = vpop.permute.xlu0 %7557
  %7559 = vrot.lane.b32.xlu0 %v7382, 24
  %v7560 = vpop.permute.xlu0 %7559
  %v7577 = vsel %vm976, %v4680, %v7402
  %v7578 = vsel %vm976, %v4685, %v7404
  %v7579 = vsel %vm976, %v4767, %v7406
  %v7580 = vsel %vm976, %v4772, %v7408
  %v7581 = vsel %vm976, %v4854, %v7410
  %v7582 = vsel %vm976, %v4859, %v7412
  %v7583 = vsel %vm976, %v4941, %v7414
  %v7584 = vsel %vm976, %v4946, %v7416
  %v7585 = vsel %vm976, %v5028, %v7418
  %v7586 = vsel %vm976, %v5033, %v7420
  %v7587 = vsel %vm976, %v5115, %v7422
  %v7588 = vsel %vm976, %v5120, %v7424
  %v7589 = vsel %vm976, %v5202, %v7426
  %v7590 = vsel %vm976, %v5207, %v7428
  %v7591 = vsel %vm976, %v5289, %v7430
  %v7592 = vsel %vm976, %v5294, %v7432
  %v7593 = vsel %vm3896, %v7577, %v7466
  %v7594 = vsel %vm3896, %v7578, %v7468
  %v7595 = vsel %vm3896, %v7579, %v7470
  %v7596 = vsel %vm3896, %v7580, %v7472
  %v7597 = vsel %vm3896, %v7581, %v7474
  %v7598 = vsel %vm3896, %v7582, %v7476
  %v7599 = vsel %vm3896, %v7583, %v7478
  %v7600 = vsel %vm3896, %v7584, %v7480
  %v7601 = vsel %vm3896, %v7585, %v7482
  %v7602 = vsel %vm3896, %v7586, %v7484
  %v7603 = vsel %vm3896, %v7587, %v7486
  %v7604 = vsel %vm3896, %v7588, %v7488
  %v7605 = vsel %vm3896, %v7589, %v7490
  %v7606 = vsel %vm3896, %v7590, %v7492
  %v7607 = vsel %vm3896, %v7591, %v7494
  %v7608 = vsel %vm3896, %v7592, %v7496
  %vm7609 = vcmask 195584
  %v7610 = vsel %vm7609, %v7593, %v7530
  %v7611 = vsel %vm7609, %v7594, %v7532
  %v7612 = vsel %vm7609, %v7595, %v7534
  %v7613 = vsel %vm7609, %v7596, %v7536
  %v7614 = vsel %vm7609, %v7597, %v7538
  %v7615 = vsel %vm7609, %v7598, %v7540
  %v7616 = vsel %vm7609, %v7599, %v7542
  %v7617 = vsel %vm7609, %v7600, %v7544
  %v7618 = vsel %vm7609, %v7601, %v7546
  %v7619 = vsel %vm7609, %v7602, %v7548
  %v7620 = vsel %vm7609, %v7603, %v7550
  %v7621 = vsel %vm7609, %v7604, %v7552
  %v7622 = vsel %vm7609, %v7605, %v7554
  %v7623 = vsel %vm7609, %v7606, %v7556
  %v7624 = vsel %vm7609, %v7607, %v7558
  %v7625 = vsel %vm7609, %v7608, %v7560
  %v7626 = vld [vmem:[%s4] sm:$0xff]
  %v7627 = vld [vmem:[%s4 + $0x8] sm:$0xff]
  %v7628 = vld [vmem:[%s4 + $0x10] sm:$0xff]
  %v7629 = vld [vmem:[%s4 + $0x18] sm:$0xff]
  %v7631 = vsel %vm210, %v7610, 0
  %v7634 = vsel %vm210, %v7611, 0
  %v7637 = vsel %vm210, %v7612, 0
  %v7640 = vsel %vm210, %v7613, 0
  %v7643 = vsel %vm210, %v7614, 0
  %v7646 = vsel %vm210, %v7615, 0
  %v7649 = vsel %vm210, %v7616, 0
  %v7652 = vsel %vm210, %v7617, 0
  %v7655 = vsel %vm210, %v7618, 0
  %v7658 = vsel %vm210, %v7619, 0
  %v7661 = vsel %vm210, %v7620, 0
  %v7664 = vsel %vm210, %v7621, 0
  %v7667 = vsel %vm210, %v7622, 0
  %v7670 = vsel %vm210, %v7623, 0
  %v7673 = vsel %vm210, %v7624, 0
  %v7676 = vsel %vm210, %v7625, 0
  %7678 = vmatprep.subr.mxu0 0.0
  %7679 = vmatpush1.msra.mxu0 0.0
  %7680 = vmatprep.subr.mxu0 0.0
  %7681 = vmatpush1.msra.mxu0 0.0
  %7682 = vmatprep.subr.mxu0 0.0
  %7683 = vmatpush1.msra.mxu0 0.0
  %7684 = vmatprep.subr.mxu0 0.0
  %7685 = vmatpush1.msra.mxu0 0.0
  %7686 = vmatprep.subr.mxu0 0.0
  %7687 = vmatpush1.msra.mxu0 0.0
  %7688 = vmatprep.subr.mxu0 0.0
  %7689 = vmatpush1.msra.mxu0 0.0
  %7690 = vmatprep.subr.mxu0 0.0
  %7691 = vmatpush1.msra.mxu0 0.0
  %7692 = vmatprep.subr.mxu0 0.0
  %7693 = vmatpush1.msra.mxu0 0.0
  %7694 = vmatprep.subr.mxu0 0.0
  %7695 = vmatpush1.msra.mxu0 0.0
  %7696 = vmatprep.subr.mxu0 0.0
  %7697 = vmatpush1.msra.mxu0 0.0
  %7698 = vmatprep.subr.mxu0 0.0
  %7699 = vmatpush1.msra.mxu0 0.0
  %7700 = vmatprep.subr.mxu0 0.0
  %7701 = vmatpush1.msra.mxu0 0.0
  %7702 = vmatprep.subr.mxu0 0.0
  %7703 = vmatpush1.msra.mxu0 %v7629
  %7704 = vmatprep.subr.mxu0 0.0
  %7705 = vmatpush1.msra.mxu0 %v7628
  %7706 = vmatprep.subr.mxu0 0.0
  %7707 = vmatpush1.msra.mxu0 %v7627
  %7708 = vmatprep.subr.mxu0 0.0
  %7709 = vmatpush1.msra.mxu0 %v7626
  %7710 = vmatprep.subr.mxu0 0.0
  %7711 = vmatpush2.msra.mxu0 0.0
  %7712 = vmatprep.subr.mxu0 0.0
  %7713 = vmatpush2.msra.mxu0 0.0
  %7714 = vmatprep.subr.mxu0 0.0
  %7715 = vmatpush2.msra.mxu0 0.0
  %7716 = vmatprep.subr.mxu0 0.0
  %7717 = vmatpush2.msra.mxu0 0.0
  %7718 = vmatprep.subr.mxu0 0.0
  %7719 = vmatpush2.msra.mxu0 0.0
  %7720 = vmatprep.subr.mxu0 0.0
  %7721 = vmatpush2.msra.mxu0 0.0
  %7722 = vmatprep.subr.mxu0 0.0
  %7723 = vmatpush2.msra.mxu0 0.0
  %7724 = vmatprep.subr.mxu0 0.0
  %7725 = vmatpush2.msra.mxu0 0.0
  %7726 = vmatprep.subr.mxu0 0.0
  %7727 = vmatpush2.msra.mxu0 0.0
  %7728 = vmatprep.subr.mxu0 0.0
  %7729 = vmatpush2.msra.mxu0 0.0
  %7730 = vmatprep.subr.mxu0 0.0
  %7731 = vmatpush2.msra.mxu0 0.0
  %7732 = vmatprep.subr.mxu0 0.0
  %7733 = vmatpush2.msra.mxu0 0.0
  %7734 = vmatprep.subr.mxu0 0.0
  %7735 = vmatpush2.msra.mxu0 0.0
  %7736 = vmatprep.subr.mxu0 0.0
  %7737 = vmatpush2.msra.mxu0 0.0
  %7738 = vmatprep.subr.mxu0 0.0
  %7739 = vmatpush2.msra.mxu0 0.0
  %7740 = vmatprep.subr.mxu0 0.0
  %7741 = vmatpush2.msra.mxu0 0.0
  %7742 = vmatprep.mubr.f32.mxu0 0.0
  %7743 = vmatmul.mubr.f32.gmra.mxu0 %v7631
  %v7744 = vpop.f32.mrf.mxu0
  %v7745 = vadd.f32 0.0, %v7744
  %v7746 = vpop.f32.mrf.mxu0
  %7747 = vmatprep.mubr.f32.mxu0 0.0
  %7748 = vmatmul.mubr.f32.gmra.mxu0 %v7634
  %v7749 = vpop.f32.mrf.mxu0
  %v7750 = vadd.f32 0.0, %v7749
  %v7751 = vpop.f32.mrf.mxu0
  %7752 = vmatprep.mubr.f32.mxu0 0.0
  %7753 = vmatmul.mubr.f32.gmra.mxu0 %v7637
  %v7754 = vpop.f32.mrf.mxu0
  %v7755 = vadd.f32 0.0, %v7754
  %v7756 = vpop.f32.mrf.mxu0
  %7757 = vmatprep.mubr.f32.mxu0 0.0
  %7758 = vmatmul.mubr.f32.gmra.mxu0 %v7640
  %v7759 = vpop.f32.mrf.mxu0
  %v7760 = vadd.f32 0.0, %v7759
  %v7761 = vpop.f32.mrf.mxu0
  %7762 = vmatprep.mubr.f32.mxu0 0.0
  %7763 = vmatmul.mubr.f32.gmra.mxu0 %v7643
  %v7764 = vpop.f32.mrf.mxu0
  %v7765 = vadd.f32 0.0, %v7764
  %v7766 = vpop.f32.mrf.mxu0
  %7767 = vmatprep.mubr.f32.mxu0 0.0
  %7768 = vmatmul.mubr.f32.gmra.mxu0 %v7646
  %v7769 = vpop.f32.mrf.mxu0
  %v7770 = vadd.f32 0.0, %v7769
  %v7771 = vpop.f32.mrf.mxu0
  %7772 = vmatprep.mubr.f32.mxu0 0.0
  %7773 = vmatmul.mubr.f32.gmra.mxu0 %v7649
  %v7774 = vpop.f32.mrf.mxu0
  %v7775 = vadd.f32 0.0, %v7774
  %v7776 = vpop.f32.mrf.mxu0
  %7777 = vmatprep.mubr.f32.mxu0 0.0
  %7778 = vmatmul.mubr.f32.gmra.mxu0 %v7652
  %v7779 = vpop.f32.mrf.mxu0
  %v7780 = vadd.f32 0.0, %v7779
  %v7781 = vpop.f32.mrf.mxu0
  %7782 = vmatprep.mubr.f32.mxu0 0.0
  %7783 = vmatmul.mubr.f32.gmra.mxu0 %v7655
  %v7784 = vpop.f32.mrf.mxu0
  %v7785 = vadd.f32 0.0, %v7784
  %v7786 = vpop.f32.mrf.mxu0
  %7787 = vmatprep.mubr.f32.mxu0 0.0
  %7788 = vmatmul.mubr.f32.gmra.mxu0 %v7658
  %v7789 = vpop.f32.mrf.mxu0
  %v7790 = vadd.f32 0.0, %v7789
  %v7791 = vpop.f32.mrf.mxu0
  %7792 = vmatprep.mubr.f32.mxu0 0.0
  %7793 = vmatmul.mubr.f32.gmra.mxu0 %v7661
  %v7794 = vpop.f32.mrf.mxu0
  %v7795 = vadd.f32 0.0, %v7794
  %v7796 = vpop.f32.mrf.mxu0
  %7797 = vmatprep.mubr.f32.mxu0 0.0
  %7798 = vmatmul.mubr.f32.gmra.mxu0 %v7664
  %v7799 = vpop.f32.mrf.mxu0
  %v7800 = vadd.f32 0.0, %v7799
  %v7801 = vpop.f32.mrf.mxu0
  %7802 = vmatprep.mubr.f32.mxu0 0.0
  %7803 = vmatmul.mubr.f32.gmra.mxu0 %v7667
  %v7804 = vpop.f32.mrf.mxu0
  %v7805 = vadd.f32 0.0, %v7804
  %v7806 = vpop.f32.mrf.mxu0
  %7807 = vmatprep.mubr.f32.mxu0 0.0
  %7808 = vmatmul.mubr.f32.gmra.mxu0 %v7670
  %v7809 = vpop.f32.mrf.mxu0
  %v7810 = vadd.f32 0.0, %v7809
  %v7811 = vpop.f32.mrf.mxu0
  %7812 = vmatprep.mubr.f32.mxu0 0.0
  %7813 = vmatmul.mubr.f32.gmra.mxu0 %v7673
  %v7814 = vpop.f32.mrf.mxu0
  %v7815 = vadd.f32 0.0, %v7814
  %v7816 = vpop.f32.mrf.mxu0
  %7817 = vmatprep.mubr.f32.mxu0 0.0
  %7818 = vmatmul.mubr.f32.gmra.mxu0 %v7676
  %v7819 = vpop.f32.mrf.mxu0
  %v7820 = vadd.f32 0.0, %v7819
  %v7821 = vpop.f32.mrf.mxu0
  %7822 = vdwg.mxu0
  %v7823 = vadd.f32 %v444, %v7745
  %v7824 = vadd.f32 %v445, %v7750
  %v7825 = vadd.f32 %v446, %v7755
  %v7826 = vadd.f32 %v447, %v7760
  %v7827 = vadd.f32 %v448, %v7765
  %v7828 = vadd.f32 %v449, %v7770
  %v7829 = vadd.f32 %v450, %v7775
  %v7830 = vadd.f32 %v451, %v7780
  %v7831 = vadd.f32 %v452, %v7785
  %v7832 = vadd.f32 %v453, %v7790
  %v7833 = vadd.f32 %v454, %v7795
  %v7834 = vadd.f32 %v455, %v7800
  %v7835 = vadd.f32 %v456, %v7805
  %v7836 = vadd.f32 %v457, %v7810
  %v7837 = vadd.f32 %v458, %v7815
  %v7838 = vadd.f32 %v459, %v7820
  %v7839 = vld [vmem:[%s8 + $0x6] sm:$0x1]
  %v7840 = vlaneseq
  %v7841 = vshrl.u32 %v7840, 7
  %v7842 = vsub.s32 0, %v7841
  %v7843 = vrot.slane %v7839, %v7842
  %v7844 = vadd.f32 %v7823, %v7843
  %v7845 = vadd.f32 %v7824, %v7843
  %v7846 = vadd.f32 %v7825, %v7843
  %v7847 = vadd.f32 %v7826, %v7843
  %v7848 = vadd.f32 %v7827, %v7843
  %v7849 = vadd.f32 %v7828, %v7843
  %v7850 = vadd.f32 %v7829, %v7843
  %v7851 = vadd.f32 %v7830, %v7843
  %v7852 = vadd.f32 %v7831, %v7843
  %v7853 = vadd.f32 %v7832, %v7843
  %v7854 = vadd.f32 %v7833, %v7843
  %v7855 = vadd.f32 %v7834, %v7843
  %v7856 = vadd.f32 %v7835, %v7843
  %v7857 = vadd.f32 %v7836, %v7843
  %v7858 = vadd.f32 %v7837, %v7843
  %v7859 = vadd.f32 %v7838, %v7843
  %v7860 = vld [vmem:[%s8 + $0x7] sm:$0x1]
  %v7861 = vld [vmem:[%s8 + $0x8] sm:$0x1]
  %v7862 = vsel %vm210, %v7844, 0.0
  %7863 = vadd.xlane.f32.xlu0 %v7862
  %v7864 = vpop.xlane.xlu0 %7863
  %v7865 = vsel %vm210, %v7845, 0.0
  %7866 = vadd.xlane.f32.xlu0 %v7865
  %v7867 = vpop.xlane.xlu0 %7866
  %v7868 = vsel %vm210, %v7846, 0.0
  %7869 = vadd.xlane.f32.xlu0 %v7868
  %v7870 = vpop.xlane.xlu0 %7869
  %v7871 = vsel %vm210, %v7847, 0.0
  %7872 = vadd.xlane.f32.xlu0 %v7871
  %v7873 = vpop.xlane.xlu0 %7872
  %v7874 = vsel %vm210, %v7848, 0.0
  %7875 = vadd.xlane.f32.xlu0 %v7874
  %v7876 = vpop.xlane.xlu0 %7875
  %v7877 = vsel %vm210, %v7849, 0.0
  %7878 = vadd.xlane.f32.xlu0 %v7877
  %v7879 = vpop.xlane.xlu0 %7878
  %v7880 = vsel %vm210, %v7850, 0.0
  %7881 = vadd.xlane.f32.xlu0 %v7880
  %v7882 = vpop.xlane.xlu0 %7881
  %v7883 = vsel %vm210, %v7851, 0.0
  %7884 = vadd.xlane.f32.xlu0 %v7883
  %v7885 = vpop.xlane.xlu0 %7884
  %v7886 = vsel %vm210, %v7852, 0.0
  %7887 = vadd.xlane.f32.xlu0 %v7886
  %v7888 = vpop.xlane.xlu0 %7887
  %v7889 = vsel %vm210, %v7853, 0.0
  %7890 = vadd.xlane.f32.xlu0 %v7889
  %v7891 = vpop.xlane.xlu0 %7890
  %v7892 = vsel %vm210, %v7854, 0.0
  %7893 = vadd.xlane.f32.xlu0 %v7892
  %v7894 = vpop.xlane.xlu0 %7893
  %v7895 = vsel %vm210, %v7855, 0.0
  %7896 = vadd.xlane.f32.xlu0 %v7895
  %v7897 = vpop.xlane.xlu0 %7896
  %v7898 = vsel %vm210, %v7856, 0.0
  %7899 = vadd.xlane.f32.xlu0 %v7898
  %v7900 = vpop.xlane.xlu0 %7899
  %v7901 = vsel %vm210, %v7857, 0.0
  %7902 = vadd.xlane.f32.xlu0 %v7901
  %v7903 = vpop.xlane.xlu0 %7902
  %v7904 = vsel %vm210, %v7858, 0.0
  %7905 = vadd.xlane.f32.xlu0 %v7904
  %v7906 = vpop.xlane.xlu0 %7905
  %v7907 = vsel %vm210, %v7859, 0.0
  %7908 = vadd.xlane.f32.xlu0 %v7907
  %v7909 = vpop.xlane.xlu0 %7908
  %v7910 = vmul.f32 %v7864, %v259
  %v7911 = vmul.f32 %v7867, %v259
  %v7912 = vmul.f32 %v7870, %v259
  %v7913 = vmul.f32 %v7873, %v259
  %v7914 = vmul.f32 %v7876, %v259
  %v7915 = vmul.f32 %v7879, %v259
  %v7916 = vmul.f32 %v7882, %v259
  %v7917 = vmul.f32 %v7885, %v259
  %v7918 = vmul.f32 %v7888, %v259
  %v7919 = vmul.f32 %v7891, %v259
  %v7920 = vmul.f32 %v7894, %v259
  %v7921 = vmul.f32 %v7897, %v259
  %v7922 = vmul.f32 %v7900, %v259
  %v7923 = vmul.f32 %v7903, %v259
  %v7924 = vmul.f32 %v7906, %v259
  %v7925 = vmul.f32 %v7909, %v259
  %v7926 = vsub.f32 %v7844, %v7910
  %v7927 = vsub.f32 %v7845, %v7911
  %v7928 = vsub.f32 %v7846, %v7912
  %v7929 = vsub.f32 %v7847, %v7913
  %v7930 = vsub.f32 %v7848, %v7914
  %v7931 = vsub.f32 %v7849, %v7915
  %v7932 = vsub.f32 %v7850, %v7916
  %v7933 = vsub.f32 %v7851, %v7917
  %v7934 = vsub.f32 %v7852, %v7918
  %v7935 = vsub.f32 %v7853, %v7919
  %v7936 = vsub.f32 %v7854, %v7920
  %v7937 = vsub.f32 %v7855, %v7921
  %v7938 = vsub.f32 %v7856, %v7922
  %v7939 = vsub.f32 %v7857, %v7923
  %v7940 = vsub.f32 %v7858, %v7924
  %v7941 = vsub.f32 %v7859, %v7925
  %v7942 = vmul.f32 %v7926, %v7926
  %v7943 = vmul.f32 %v7927, %v7927
  %v7944 = vmul.f32 %v7928, %v7928
  %v7945 = vmul.f32 %v7929, %v7929
  %v7946 = vmul.f32 %v7930, %v7930
  %v7947 = vmul.f32 %v7931, %v7931
  %v7948 = vmul.f32 %v7932, %v7932
  %v7949 = vmul.f32 %v7933, %v7933
  %v7950 = vmul.f32 %v7934, %v7934
  %v7951 = vmul.f32 %v7935, %v7935
  %v7952 = vmul.f32 %v7936, %v7936
  %v7953 = vmul.f32 %v7937, %v7937
  %v7954 = vmul.f32 %v7938, %v7938
  %v7955 = vmul.f32 %v7939, %v7939
  %v7956 = vmul.f32 %v7940, %v7940
  %v7957 = vmul.f32 %v7941, %v7941
  %v7958 = vsel %vm210, %v7942, 0.0
  %7959 = vadd.xlane.f32.xlu0 %v7958
  %v7960 = vpop.xlane.xlu0 %7959
  %v7961 = vsel %vm210, %v7943, 0.0
  %7962 = vadd.xlane.f32.xlu0 %v7961
  %v7963 = vpop.xlane.xlu0 %7962
  %v7964 = vsel %vm210, %v7944, 0.0
  %7965 = vadd.xlane.f32.xlu0 %v7964
  %v7966 = vpop.xlane.xlu0 %7965
  %v7967 = vsel %vm210, %v7945, 0.0
  %7968 = vadd.xlane.f32.xlu0 %v7967
  %v7969 = vpop.xlane.xlu0 %7968
  %v7970 = vsel %vm210, %v7946, 0.0
  %7971 = vadd.xlane.f32.xlu0 %v7970
  %v7972 = vpop.xlane.xlu0 %7971
  %v7973 = vsel %vm210, %v7947, 0.0
  %7974 = vadd.xlane.f32.xlu0 %v7973
  %v7975 = vpop.xlane.xlu0 %7974
  %v7976 = vsel %vm210, %v7948, 0.0
  %7977 = vadd.xlane.f32.xlu0 %v7976
  %v7978 = vpop.xlane.xlu0 %7977
  %v7979 = vsel %vm210, %v7949, 0.0
  %7980 = vadd.xlane.f32.xlu0 %v7979
  %v7981 = vpop.xlane.xlu0 %7980
  %v7982 = vsel %vm210, %v7950, 0.0
  %7983 = vadd.xlane.f32.xlu0 %v7982
  %v7984 = vpop.xlane.xlu0 %7983
  %v7985 = vsel %vm210, %v7951, 0.0
  %7986 = vadd.xlane.f32.xlu0 %v7985
  %v7987 = vpop.xlane.xlu0 %7986
  %v7988 = vsel %vm210, %v7952, 0.0
  %7989 = vadd.xlane.f32.xlu0 %v7988
  %v7990 = vpop.xlane.xlu0 %7989
  %v7991 = vsel %vm210, %v7953, 0.0
  %7992 = vadd.xlane.f32.xlu0 %v7991
  %v7993 = vpop.xlane.xlu0 %7992
  %v7994 = vsel %vm210, %v7954, 0.0
  %7995 = vadd.xlane.f32.xlu0 %v7994
  %v7996 = vpop.xlane.xlu0 %7995
  %v7997 = vsel %vm210, %v7955, 0.0
  %7998 = vadd.xlane.f32.xlu0 %v7997
  %v7999 = vpop.xlane.xlu0 %7998
  %v8000 = vsel %vm210, %v7956, 0.0
  %8001 = vadd.xlane.f32.xlu0 %v8000
  %v8002 = vpop.xlane.xlu0 %8001
  %v8003 = vsel %vm210, %v7957, 0.0
  %8004 = vadd.xlane.f32.xlu0 %v8003
  %v8005 = vpop.xlane.xlu0 %8004
  %v8006 = vmul.f32 %v7960, %v259
  %v8007 = vmul.f32 %v7963, %v259
  %v8008 = vmul.f32 %v7966, %v259
  %v8009 = vmul.f32 %v7969, %v259
  %v8010 = vmul.f32 %v7972, %v259
  %v8011 = vmul.f32 %v7975, %v259
  %v8012 = vmul.f32 %v7978, %v259
  %v8013 = vmul.f32 %v7981, %v259
  %v8014 = vmul.f32 %v7984, %v259
  %v8015 = vmul.f32 %v7987, %v259
  %v8016 = vmul.f32 %v7990, %v259
  %v8017 = vmul.f32 %v7993, %v259
  %v8018 = vmul.f32 %v7996, %v259
  %v8019 = vmul.f32 %v7999, %v259
  %v8020 = vmul.f32 %v8002, %v259
  %v8021 = vmul.f32 %v8005, %v259
  %v8022 = vadd.f32 %v8006, 1e-05
  %v8023 = vadd.f32 %v8007, 1e-05
  %v8024 = vadd.f32 %v8008, 1e-05
  %v8025 = vadd.f32 %v8009, 1e-05
  %v8026 = vadd.f32 %v8010, 1e-05
  %v8027 = vadd.f32 %v8011, 1e-05
  %v8028 = vadd.f32 %v8012, 1e-05
  %v8029 = vadd.f32 %v8013, 1e-05
  %v8030 = vadd.f32 %v8014, 1e-05
  %v8031 = vadd.f32 %v8015, 1e-05
  %v8032 = vadd.f32 %v8016, 1e-05
  %v8033 = vadd.f32 %v8017, 1e-05
  %v8034 = vadd.f32 %v8018, 1e-05
  %v8035 = vadd.f32 %v8019, 1e-05
  %v8036 = vadd.f32 %v8020, 1e-05
  %v8037 = vadd.f32 %v8021, 1e-05
  %v8038 = vrsqrt.pop %v8022
  %v8039 = vrsqrt.pop %v8023
  %v8040 = vrsqrt.pop %v8024
  %v8041 = vrsqrt.pop %v8025
  %v8042 = vrsqrt.pop %v8026
  %v8043 = vrsqrt.pop %v8027
  %v8044 = vrsqrt.pop %v8028
  %v8045 = vrsqrt.pop %v8029
  %v8046 = vrsqrt.pop %v8030
  %v8047 = vrsqrt.pop %v8031
  %v8048 = vrsqrt.pop %v8032
  %v8049 = vrsqrt.pop %v8033
  %v8050 = vrsqrt.pop %v8034
  %v8051 = vrsqrt.pop %v8035
  %v8052 = vrsqrt.pop %v8036
  %v8053 = vrsqrt.pop %v8037
  %v8054 = vmul.f32 %v7926, %v8038
  %v8055 = vmul.f32 %v7927, %v8039
  %v8056 = vmul.f32 %v7928, %v8040
  %v8057 = vmul.f32 %v7929, %v8041
  %v8058 = vmul.f32 %v7930, %v8042
  %v8059 = vmul.f32 %v7931, %v8043
  %v8060 = vmul.f32 %v7932, %v8044
  %v8061 = vmul.f32 %v7933, %v8045
  %v8062 = vmul.f32 %v7934, %v8046
  %v8063 = vmul.f32 %v7935, %v8047
  %v8064 = vmul.f32 %v7936, %v8048
  %v8065 = vmul.f32 %v7937, %v8049
  %v8066 = vmul.f32 %v7938, %v8050
  %v8067 = vmul.f32 %v7939, %v8051
  %v8068 = vmul.f32 %v7940, %v8052
  %v8069 = vmul.f32 %v7941, %v8053
  %v8070 = vlaneseq
  %v8071 = vshrl.u32 %v8070, 7
  %v8072 = vsub.s32 0, %v8071
  %v8073 = vrot.slane %v7860, %v8072
  %v8074 = vmul.f32 %v8054, %v8073
  %v8075 = vmul.f32 %v8055, %v8073
  %v8076 = vmul.f32 %v8056, %v8073
  %v8077 = vmul.f32 %v8057, %v8073
  %v8078 = vmul.f32 %v8058, %v8073
  %v8079 = vmul.f32 %v8059, %v8073
  %v8080 = vmul.f32 %v8060, %v8073
  %v8081 = vmul.f32 %v8061, %v8073
  %v8082 = vmul.f32 %v8062, %v8073
  %v8083 = vmul.f32 %v8063, %v8073
  %v8084 = vmul.f32 %v8064, %v8073
  %v8085 = vmul.f32 %v8065, %v8073
  %v8086 = vmul.f32 %v8066, %v8073
  %v8087 = vmul.f32 %v8067, %v8073
  %v8088 = vmul.f32 %v8068, %v8073
  %v8089 = vmul.f32 %v8069, %v8073
  %v8090 = vlaneseq
  %v8091 = vshrl.u32 %v8090, 7
  %v8092 = vsub.s32 0, %v8091
  %v8093 = vrot.slane %v7861, %v8092
  %v8094 = vadd.f32 %v8074, %v8093
  %v8095 = vadd.f32 %v8075, %v8093
  %v8096 = vadd.f32 %v8076, %v8093
  %v8097 = vadd.f32 %v8077, %v8093
  %v8098 = vadd.f32 %v8078, %v8093
  %v8099 = vadd.f32 %v8079, %v8093
  %v8100 = vadd.f32 %v8080, %v8093
  %v8101 = vadd.f32 %v8081, %v8093
  %v8102 = vadd.f32 %v8082, %v8093
  %v8103 = vadd.f32 %v8083, %v8093
  %v8104 = vadd.f32 %v8084, %v8093
  %v8105 = vadd.f32 %v8085, %v8093
  %v8106 = vadd.f32 %v8086, %v8093
  %v8107 = vadd.f32 %v8087, %v8093
  %v8108 = vadd.f32 %v8088, %v8093
  %v8109 = vadd.f32 %v8089, %v8093
  %v8110 = vld [vmem:[%s5] sm:$0xf]
  %v8111 = vld [vmem:[%s5 + $0x4] sm:$0xf]
  %v8112 = vld [vmem:[%s5 + $0x8] sm:$0xf]
  %v8113 = vld [vmem:[%s5 + $0xc] sm:$0xf]
  %v8114 = vpack.c.bf16 %v8095, %v8094
  %v8115 = vpack.c.bf16 %v8097, %v8096
  %v8116 = vpack.c.bf16 %v8099, %v8098
  %v8117 = vpack.c.bf16 %v8101, %v8100
  %v8118 = vpack.c.bf16 %v8103, %v8102
  %v8119 = vpack.c.bf16 %v8105, %v8104
  %v8120 = vpack.c.bf16 %v8107, %v8106
  %v8121 = vpack.c.bf16 %v8109, %v8108
  %v8122 = vld [vmem:[%s8 + $0x9] sm:$0x1]
  %v8123 = vlaneseq
  %v8124 = vshrl.u32 %v8123, 7
  %v8125 = vsub.s32 0, %v8124
  %v8126 = vrot.slane %v8122, %v8125
  %v8131 = vunpack.c.l.b16 %v8110
  %v8132 = vunpack.c.l.b16 %v8111
  %v8133 = vunpack.c.l.b16 %v8112
  %v8134 = vunpack.c.l.b16 %v8113
  %v8135 = vpack.c.b16 %v8132, %v8131
  %v8136 = vpack.c.b16 %v8134, %v8133
  %v8140 = vsel %vm210, %v8114, 0
  %v8143 = vsel %vm210, %v8115, 0
  %v8146 = vsel %vm210, %v8116, 0
  %v8149 = vsel %vm210, %v8117, 0
  %v8152 = vsel %vm210, %v8118, 0
  %v8155 = vsel %vm210, %v8119, 0
  %v8158 = vsel %vm210, %v8120, 0
  %v8161 = vsel %vm210, %v8121, 0
  %8163 = vmatprep.subr.bf16.mxu0 0
  %8164 = vmatpush1.bf16.msra.mxu0 0
  %8165 = vmatprep.subr.bf16.mxu0 0
  %8166 = vmatpush1.bf16.msra.mxu0 0
  %8167 = vmatprep.subr.bf16.mxu0 0
  %8168 = vmatpush1.bf16.msra.mxu0 0
  %8169 = vmatprep.subr.bf16.mxu0 0
  %8170 = vmatpush1.bf16.msra.mxu0 0
  %8171 = vmatprep.subr.bf16.mxu0 0
  %8172 = vmatpush1.bf16.msra.mxu0 0
  %8173 = vmatprep.subr.bf16.mxu0 0
  %8174 = vmatpush1.bf16.msra.mxu0 0
  %8175 = vmatprep.subr.bf16.mxu0 0
  %8176 = vmatpush1.bf16.msra.mxu0 %v8136
  %8177 = vmatprep.subr.bf16.mxu0 0
  %8178 = vmatpush1.bf16.msra.mxu0 %v8135
  %8179 = vmatprep.subr.bf16.mxu0 0
  %8180 = vmatpush2.bf16.msra.mxu0 0
  %8181 = vmatprep.subr.bf16.mxu0 0
  %8182 = vmatpush2.bf16.msra.mxu0 0
  %8183 = vmatprep.subr.bf16.mxu0 0
  %8184 = vmatpush2.bf16.msra.mxu0 0
  %8185 = vmatprep.subr.bf16.mxu0 0
  %8186 = vmatpush2.bf16.msra.mxu0 0
  %8187 = vmatprep.subr.bf16.mxu0 0
  %8188 = vmatpush2.bf16.msra.mxu0 0
  %8189 = vmatprep.subr.bf16.mxu0 0
  %8190 = vmatpush2.bf16.msra.mxu0 0
  %8191 = vmatprep.subr.bf16.mxu0 0
  %8192 = vmatpush2.bf16.msra.mxu0 0
  %8193 = vmatprep.subr.bf16.mxu0 0
  %8194 = vmatpush2.bf16.msra.mxu0 0
  %8195 = vmatprep.mubr.bf16.mxu0 0
  %8196 = vmatmul.mubr.bf16.gmra.mxu0 %v8140
  %v8197 = vpop.f32.mrf.mxu0
  %v8198 = vadd.f32 %v8126, %v8197
  %v8199 = vpop.f32.mrf.mxu0
  %v8200 = vpop.f32.mrf.mxu0
  %v8201 = vadd.f32 %v8126, %v8200
  %v8202 = vpop.f32.mrf.mxu0
  %8203 = vmatprep.mubr.bf16.mxu0 0
  %8204 = vmatmul.mubr.bf16.gmra.mxu0 %v8143
  %v8205 = vpop.f32.mrf.mxu0
  %v8206 = vadd.f32 %v8126, %v8205
  %v8207 = vpop.f32.mrf.mxu0
  %v8208 = vpop.f32.mrf.mxu0
  %v8209 = vadd.f32 %v8126, %v8208
  %v8210 = vpop.f32.mrf.mxu0
  %8211 = vmatprep.mubr.bf16.mxu0 0
  %8212 = vmatmul.mubr.bf16.gmra.mxu0 %v8146
  %v8213 = vpop.f32.mrf.mxu0
  %v8214 = vadd.f32 %v8126, %v8213
  %v8215 = vpop.f32.mrf.mxu0
  %v8216 = vpop.f32.mrf.mxu0
  %v8217 = vadd.f32 %v8126, %v8216
  %v8218 = vpop.f32.mrf.mxu0
  %8219 = vmatprep.mubr.bf16.mxu0 0
  %8220 = vmatmul.mubr.bf16.gmra.mxu0 %v8149
  %v8221 = vpop.f32.mrf.mxu0
  %v8222 = vadd.f32 %v8126, %v8221
  %v8223 = vpop.f32.mrf.mxu0
  %v8224 = vpop.f32.mrf.mxu0
  %v8225 = vadd.f32 %v8126, %v8224
  %v8226 = vpop.f32.mrf.mxu0
  %8227 = vmatprep.mubr.bf16.mxu0 0
  %8228 = vmatmul.mubr.bf16.gmra.mxu0 %v8152
  %v8229 = vpop.f32.mrf.mxu0
  %v8230 = vadd.f32 %v8126, %v8229
  %v8231 = vpop.f32.mrf.mxu0
  %v8232 = vpop.f32.mrf.mxu0
  %v8233 = vadd.f32 %v8126, %v8232
  %v8234 = vpop.f32.mrf.mxu0
  %8235 = vmatprep.mubr.bf16.mxu0 0
  %8236 = vmatmul.mubr.bf16.gmra.mxu0 %v8155
  %v8237 = vpop.f32.mrf.mxu0
  %v8238 = vadd.f32 %v8126, %v8237
  %v8239 = vpop.f32.mrf.mxu0
  %v8240 = vpop.f32.mrf.mxu0
  %v8241 = vadd.f32 %v8126, %v8240
  %v8242 = vpop.f32.mrf.mxu0
  %8243 = vmatprep.mubr.bf16.mxu0 0
  %8244 = vmatmul.mubr.bf16.gmra.mxu0 %v8158
  %v8245 = vpop.f32.mrf.mxu0
  %v8246 = vadd.f32 %v8126, %v8245
  %v8247 = vpop.f32.mrf.mxu0
  %v8248 = vpop.f32.mrf.mxu0
  %v8249 = vadd.f32 %v8126, %v8248
  %v8250 = vpop.f32.mrf.mxu0
  %8251 = vmatprep.mubr.bf16.mxu0 0
  %8252 = vmatmul.mubr.bf16.gmra.mxu0 %v8161
  %v8253 = vpop.f32.mrf.mxu0
  %v8254 = vadd.f32 %v8126, %v8253
  %v8255 = vpop.f32.mrf.mxu0
  %v8256 = vpop.f32.mrf.mxu0
  %v8257 = vadd.f32 %v8126, %v8256
  %v8258 = vpop.f32.mrf.mxu0
  %8259 = vdwg.mxu0
  %v8260 = vmul.f32 %v8198, %v8198
  %v8261 = vmul.f32 %v8201, %v8201
  %v8262 = vmul.f32 %v8206, %v8206
  %v8263 = vmul.f32 %v8209, %v8209
  %v8264 = vmul.f32 %v8214, %v8214
  %v8265 = vmul.f32 %v8217, %v8217
  %v8266 = vmul.f32 %v8222, %v8222
  %v8267 = vmul.f32 %v8225, %v8225
  %v8268 = vmul.f32 %v8230, %v8230
  %v8269 = vmul.f32 %v8233, %v8233
  %v8270 = vmul.f32 %v8238, %v8238
  %v8271 = vmul.f32 %v8241, %v8241
  %v8272 = vmul.f32 %v8246, %v8246
  %v8273 = vmul.f32 %v8249, %v8249
  %v8274 = vmul.f32 %v8254, %v8254
  %v8275 = vmul.f32 %v8257, %v8257
  %v8276 = vmul.f32 %v8198, %v8260
  %v8277 = vmul.f32 %v8201, %v8261
  %v8278 = vmul.f32 %v8206, %v8262
  %v8279 = vmul.f32 %v8209, %v8263
  %v8280 = vmul.f32 %v8214, %v8264
  %v8281 = vmul.f32 %v8217, %v8265
  %v8282 = vmul.f32 %v8222, %v8266
  %v8283 = vmul.f32 %v8225, %v8267
  %v8284 = vmul.f32 %v8230, %v8268
  %v8285 = vmul.f32 %v8233, %v8269
  %v8286 = vmul.f32 %v8238, %v8270
  %v8287 = vmul.f32 %v8241, %v8271
  %v8288 = vmul.f32 %v8246, %v8272
  %v8289 = vmul.f32 %v8249, %v8273
  %v8290 = vmul.f32 %v8254, %v8274
  %v8291 = vmul.f32 %v8257, %v8275
  %v8292 = vmul.f32 %v8276, 0.044715
  %v8293 = vmul.f32 %v8277, 0.044715
  %v8294 = vmul.f32 %v8278, 0.044715
  %v8295 = vmul.f32 %v8279, 0.044715
  %v8296 = vmul.f32 %v8280, 0.044715
  %v8297 = vmul.f32 %v8281, 0.044715
  %v8298 = vmul.f32 %v8282, 0.044715
  %v8299 = vmul.f32 %v8283, 0.044715
  %v8300 = vmul.f32 %v8284, 0.044715
  %v8301 = vmul.f32 %v8285, 0.044715
  %v8302 = vmul.f32 %v8286, 0.044715
  %v8303 = vmul.f32 %v8287, 0.044715
  %v8304 = vmul.f32 %v8288, 0.044715
  %v8305 = vmul.f32 %v8289, 0.044715
  %v8306 = vmul.f32 %v8290, 0.044715
  %v8307 = vmul.f32 %v8291, 0.044715
  %v8308 = vadd.f32 %v8198, %v8292
  %v8309 = vadd.f32 %v8201, %v8293
  %v8310 = vadd.f32 %v8206, %v8294
  %v8311 = vadd.f32 %v8209, %v8295
  %v8312 = vadd.f32 %v8214, %v8296
  %v8313 = vadd.f32 %v8217, %v8297
  %v8314 = vadd.f32 %v8222, %v8298
  %v8315 = vadd.f32 %v8225, %v8299
  %v8316 = vadd.f32 %v8230, %v8300
  %v8317 = vadd.f32 %v8233, %v8301
  %v8318 = vadd.f32 %v8238, %v8302
  %v8319 = vadd.f32 %v8241, %v8303
  %v8320 = vadd.f32 %v8246, %v8304
  %v8321 = vadd.f32 %v8249, %v8305
  %v8322 = vadd.f32 %v8254, %v8306
  %v8323 = vadd.f32 %v8257, %v8307
  %v8324 = vmul.f32 %v8308, 0.7978846
  %v8325 = vmul.f32 %v8309, 0.7978846
  %v8326 = vmul.f32 %v8310, 0.7978846
  %v8327 = vmul.f32 %v8311, 0.7978846
  %v8328 = vmul.f32 %v8312, 0.7978846
  %v8329 = vmul.f32 %v8313, 0.7978846
  %v8330 = vmul.f32 %v8314, 0.7978846
  %v8331 = vmul.f32 %v8315, 0.7978846
  %v8332 = vmul.f32 %v8316, 0.7978846
  %v8333 = vmul.f32 %v8317, 0.7978846
  %v8334 = vmul.f32 %v8318, 0.7978846
  %v8335 = vmul.f32 %v8319, 0.7978846
  %v8336 = vmul.f32 %v8320, 0.7978846
  %v8337 = vmul.f32 %v8321, 0.7978846
  %v8338 = vmul.f32 %v8322, 0.7978846
  %v8339 = vmul.f32 %v8323, 0.7978846
  %v8340 = vtanh.pop %v8324
  %v8341 = vtanh.pop %v8325
  %v8342 = vtanh.pop %v8326
  %v8343 = vtanh.pop %v8327
  %v8344 = vtanh.pop %v8328
  %v8345 = vtanh.pop %v8329
  %v8346 = vtanh.pop %v8330
  %v8347 = vtanh.pop %v8331
  %v8348 = vtanh.pop %v8332
  %v8349 = vtanh.pop %v8333
  %v8350 = vtanh.pop %v8334
  %v8351 = vtanh.pop %v8335
  %v8352 = vtanh.pop %v8336
  %v8353 = vtanh.pop %v8337
  %v8354 = vtanh.pop %v8338
  %v8355 = vtanh.pop %v8339
  %v8356 = vadd.f32 %v8340, 1.0
  %v8357 = vadd.f32 %v8341, 1.0
  %v8358 = vadd.f32 %v8342, 1.0
  %v8359 = vadd.f32 %v8343, 1.0
  %v8360 = vadd.f32 %v8344, 1.0
  %v8361 = vadd.f32 %v8345, 1.0
  %v8362 = vadd.f32 %v8346, 1.0
  %v8363 = vadd.f32 %v8347, 1.0
  %v8364 = vadd.f32 %v8348, 1.0
  %v8365 = vadd.f32 %v8349, 1.0
  %v8366 = vadd.f32 %v8350, 1.0
  %v8367 = vadd.f32 %v8351, 1.0
  %v8368 = vadd.f32 %v8352, 1.0
  %v8369 = vadd.f32 %v8353, 1.0
  %v8370 = vadd.f32 %v8354, 1.0
  %v8371 = vadd.f32 %v8355, 1.0
  %v8372 = vmul.f32 %v8356, 0.5
  %v8373 = vmul.f32 %v8357, 0.5
  %v8374 = vmul.f32 %v8358, 0.5
  %v8375 = vmul.f32 %v8359, 0.5
  %v8376 = vmul.f32 %v8360, 0.5
  %v8377 = vmul.f32 %v8361, 0.5
  %v8378 = vmul.f32 %v8362, 0.5
  %v8379 = vmul.f32 %v8363, 0.5
  %v8380 = vmul.f32 %v8364, 0.5
  %v8381 = vmul.f32 %v8365, 0.5
  %v8382 = vmul.f32 %v8366, 0.5
  %v8383 = vmul.f32 %v8367, 0.5
  %v8384 = vmul.f32 %v8368, 0.5
  %v8385 = vmul.f32 %v8369, 0.5
  %v8386 = vmul.f32 %v8370, 0.5
  %v8387 = vmul.f32 %v8371, 0.5
  %v8388 = vmul.f32 %v8198, %v8372
  %v8389 = vmul.f32 %v8201, %v8373
  %v8390 = vmul.f32 %v8206, %v8374
  %v8391 = vmul.f32 %v8209, %v8375
  %v8392 = vmul.f32 %v8214, %v8376
  %v8393 = vmul.f32 %v8217, %v8377
  %v8394 = vmul.f32 %v8222, %v8378
  %v8395 = vmul.f32 %v8225, %v8379
  %v8396 = vmul.f32 %v8230, %v8380
  %v8397 = vmul.f32 %v8233, %v8381
  %v8398 = vmul.f32 %v8238, %v8382
  %v8399 = vmul.f32 %v8241, %v8383
  %v8400 = vmul.f32 %v8246, %v8384
  %v8401 = vmul.f32 %v8249, %v8385
  %v8402 = vmul.f32 %v8254, %v8386
  %v8403 = vmul.f32 %v8257, %v8387
  %v8404 = vld [vmem:[%s6] sm:$0xf]
  %v8405 = vld [vmem:[%s6 + $0x4] sm:$0xf]
  %v8406 = vld [vmem:[%s6 + $0x8] sm:$0xf]
  %v8407 = vld [vmem:[%s6 + $0xc] sm:$0xf]
  %v8408 = vld [vmem:[%s6 + $0x10] sm:$0xf]
  %v8409 = vld [vmem:[%s6 + $0x14] sm:$0xf]
  %v8410 = vld [vmem:[%s6 + $0x18] sm:$0xf]
  %v8411 = vld [vmem:[%s6 + $0x1c] sm:$0xf]
  %v8412 = vld [vmem:[%s6 + $0x20] sm:$0xf]
  %v8413 = vld [vmem:[%s6 + $0x24] sm:$0xf]
  %v8414 = vld [vmem:[%s6 + $0x28] sm:$0xf]
  %v8415 = vld [vmem:[%s6 + $0x2c] sm:$0xf]
  %v8416 = vld [vmem:[%s6 + $0x30] sm:$0xf]
  %v8417 = vld [vmem:[%s6 + $0x34] sm:$0xf]
  %v8418 = vld [vmem:[%s6 + $0x38] sm:$0xf]
  %v8419 = vld [vmem:[%s6 + $0x3c] sm:$0xf]
  %v8420 = vpack.c.bf16 %v8389, %v8388
  %v8421 = vpack.c.bf16 %v8391, %v8390
  %v8422 = vpack.c.bf16 %v8393, %v8392
  %v8423 = vpack.c.bf16 %v8395, %v8394
  %v8424 = vpack.c.bf16 %v8397, %v8396
  %v8425 = vpack.c.bf16 %v8399, %v8398
  %v8426 = vpack.c.bf16 %v8401, %v8400
  %v8427 = vpack.c.bf16 %v8403, %v8402
  %v8444 = vunpack.c.l.b16 %v8404
  %v8445 = vunpack.c.l.b16 %v8405
  %v8446 = vunpack.c.l.b16 %v8406
  %v8447 = vunpack.c.l.b16 %v8407
  %v8448 = vunpack.c.l.b16 %v8408
  %v8449 = vunpack.c.l.b16 %v8409
  %v8450 = vunpack.c.l.b16 %v8410
  %v8451 = vunpack.c.l.b16 %v8411
  %v8452 = vunpack.c.l.b16 %v8412
  %v8453 = vunpack.c.l.b16 %v8413
  %v8454 = vunpack.c.l.b16 %v8414
  %v8455 = vunpack.c.l.b16 %v8415
  %v8456 = vunpack.c.l.b16 %v8416
  %v8457 = vunpack.c.l.b16 %v8417
  %v8458 = vunpack.c.l.b16 %v8418
  %v8459 = vunpack.c.l.b16 %v8419
  %v8460 = vpack.c.b16 %v8445, %v8444
  %v8461 = vpack.c.b16 %v8447, %v8446
  %v8462 = vpack.c.b16 %v8449, %v8448
  %v8463 = vpack.c.b16 %v8451, %v8450
  %v8464 = vpack.c.b16 %v8453, %v8452
  %v8465 = vpack.c.b16 %v8455, %v8454
  %v8466 = vpack.c.b16 %v8457, %v8456
  %v8467 = vpack.c.b16 %v8459, %v8458
  %8476 = vmatprep.subr.bf16.mxu0 0
  %8477 = vmatpush1.bf16.msra.mxu0 %v8467
  %8478 = vmatprep.subr.bf16.mxu0 0
  %8479 = vmatpush1.bf16.msra.mxu0 %v8466
  %8480 = vmatprep.subr.bf16.mxu0 0
  %8481 = vmatpush1.bf16.msra.mxu0 %v8465
  %8482 = vmatprep.subr.bf16.mxu0 0
  %8483 = vmatpush1.bf16.msra.mxu0 %v8464
  %8484 = vmatprep.subr.bf16.mxu0 0
  %8485 = vmatpush1.bf16.msra.mxu0 %v8463
  %8486 = vmatprep.subr.bf16.mxu0 0
  %8487 = vmatpush1.bf16.msra.mxu0 %v8462
  %8488 = vmatprep.subr.bf16.mxu0 0
  %8489 = vmatpush1.bf16.msra.mxu0 %v8461
  %8490 = vmatprep.subr.bf16.mxu0 0
  %8491 = vmatpush1.bf16.msra.mxu0 %v8460
  %8492 = vmatprep.subr.bf16.mxu0 0
  %8493 = vmatpush2.bf16.msra.mxu0 0
  %8494 = vmatprep.subr.bf16.mxu0 0
  %8495 = vmatpush2.bf16.msra.mxu0 0
  %8496 = vmatprep.subr.bf16.mxu0 0
  %8497 = vmatpush2.bf16.msra.mxu0 0
  %8498 = vmatprep.subr.bf16.mxu0 0
  %8499 = vmatpush2.bf16.msra.mxu0 0
  %8500 = vmatprep.subr.bf16.mxu0 0
  %8501 = vmatpush2.bf16.msra.mxu0 0
  %8502 = vmatprep.subr.bf16.mxu0 0
  %8503 = vmatpush2.bf16.msra.mxu0 0
  %8504 = vmatprep.subr.bf16.mxu0 0
  %8505 = vmatpush2.bf16.msra.mxu0 0
  %8506 = vmatprep.subr.bf16.mxu0 0
  %8507 = vmatpush2.bf16.msra.mxu0 0
  %8508 = vmatprep.mubr.bf16.mxu0 0
  %8509 = vmatmul.mubr.bf16.gmra.mxu0 %v8420
  %v8510 = vpop.f32.mrf.mxu0
  %v8511 = vadd.f32 0.0, %v8510
  %v8512 = vpop.f32.mrf.mxu0
  %v8513 = vpop.f32.mrf.mxu0
  %v8514 = vadd.f32 0.0, %v8513
  %v8515 = vpop.f32.mrf.mxu0
  %8516 = vmatprep.mubr.bf16.mxu0 0
  %8517 = vmatmul.mubr.bf16.gmra.mxu0 %v8421
  %v8518 = vpop.f32.mrf.mxu0
  %v8519 = vadd.f32 0.0, %v8518
  %v8520 = vpop.f32.mrf.mxu0
  %v8521 = vpop.f32.mrf.mxu0
  %v8522 = vadd.f32 0.0, %v8521
  %v8523 = vpop.f32.mrf.mxu0
  %8524 = vmatprep.mubr.bf16.mxu0 0
  %8525 = vmatmul.mubr.bf16.gmra.mxu0 %v8422
  %v8526 = vpop.f32.mrf.mxu0
  %v8527 = vadd.f32 0.0, %v8526
  %v8528 = vpop.f32.mrf.mxu0
  %v8529 = vpop.f32.mrf.mxu0
  %v8530 = vadd.f32 0.0, %v8529
  %v8531 = vpop.f32.mrf.mxu0
  %8532 = vmatprep.mubr.bf16.mxu0 0
  %8533 = vmatmul.mubr.bf16.gmra.mxu0 %v8423
  %v8534 = vpop.f32.mrf.mxu0
  %v8535 = vadd.f32 0.0, %v8534
  %v8536 = vpop.f32.mrf.mxu0
  %v8537 = vpop.f32.mrf.mxu0
  %v8538 = vadd.f32 0.0, %v8537
  %v8539 = vpop.f32.mrf.mxu0
  %8540 = vmatprep.mubr.bf16.mxu0 0
  %8541 = vmatmul.mubr.bf16.gmra.mxu0 %v8424
  %v8542 = vpop.f32.mrf.mxu0
  %v8543 = vadd.f32 0.0, %v8542
  %v8544 = vpop.f32.mrf.mxu0
  %v8545 = vpop.f32.mrf.mxu0
  %v8546 = vadd.f32 0.0, %v8545
  %v8547 = vpop.f32.mrf.mxu0
  %8548 = vmatprep.mubr.bf16.mxu0 0
  %8549 = vmatmul.mubr.bf16.gmra.mxu0 %v8425
  %v8550 = vpop.f32.mrf.mxu0
  %v8551 = vadd.f32 0.0, %v8550
  %v8552 = vpop.f32.mrf.mxu0
  %v8553 = vpop.f32.mrf.mxu0
  %v8554 = vadd.f32 0.0, %v8553
  %v8555 = vpop.f32.mrf.mxu0
  %8556 = vmatprep.mubr.bf16.mxu0 0
  %8557 = vmatmul.mubr.bf16.gmra.mxu0 %v8426
  %v8558 = vpop.f32.mrf.mxu0
  %v8559 = vadd.f32 0.0, %v8558
  %v8560 = vpop.f32.mrf.mxu0
  %v8561 = vpop.f32.mrf.mxu0
  %v8562 = vadd.f32 0.0, %v8561
  %v8563 = vpop.f32.mrf.mxu0
  %8564 = vmatprep.mubr.bf16.mxu0 0
  %8565 = vmatmul.mubr.bf16.gmra.mxu0 %v8427
  %v8566 = vpop.f32.mrf.mxu0
  %v8567 = vadd.f32 0.0, %v8566
  %v8568 = vpop.f32.mrf.mxu0
  %v8569 = vpop.f32.mrf.mxu0
  %v8570 = vadd.f32 0.0, %v8569
  %v8571 = vpop.f32.mrf.mxu0
  %8572 = vdwg.mxu0
  %v8573 = vadd.f32 %v7844, %v8511
  %v8574 = vadd.f32 %v7845, %v8514
  %v8575 = vadd.f32 %v7846, %v8519
  %v8576 = vadd.f32 %v7847, %v8522
  %v8577 = vadd.f32 %v7848, %v8527
  %v8578 = vadd.f32 %v7849, %v8530
  %v8579 = vadd.f32 %v7850, %v8535
  %v8580 = vadd.f32 %v7851, %v8538
  %v8581 = vadd.f32 %v7852, %v8543
  %v8582 = vadd.f32 %v7853, %v8546
  %v8583 = vadd.f32 %v7854, %v8551
  %v8584 = vadd.f32 %v7855, %v8554
  %v8585 = vadd.f32 %v7856, %v8559
  %v8586 = vadd.f32 %v7857, %v8562
  %v8587 = vadd.f32 %v7858, %v8567
  %v8588 = vadd.f32 %v7859, %v8570
  %v8589 = vld [vmem:[%s8 + $0xa] sm:$0x1]
  %v8590 = vlaneseq
  %v8591 = vshrl.u32 %v8590, 7
  %v8592 = vsub.s32 0, %v8591
  %v8593 = vrot.slane %v8589, %v8592
  %v8594 = vadd.f32 %v8573, %v8593
  %v8595 = vadd.f32 %v8574, %v8593
  %v8596 = vadd.f32 %v8575, %v8593
  %v8597 = vadd.f32 %v8576, %v8593
  %v8598 = vadd.f32 %v8577, %v8593
  %v8599 = vadd.f32 %v8578, %v8593
  %v8600 = vadd.f32 %v8579, %v8593
  %v8601 = vadd.f32 %v8580, %v8593
  %v8602 = vadd.f32 %v8581, %v8593
  %v8603 = vadd.f32 %v8582, %v8593
  %v8604 = vadd.f32 %v8583, %v8593
  %v8605 = vadd.f32 %v8584, %v8593
  %v8606 = vadd.f32 %v8585, %v8593
  %v8607 = vadd.f32 %v8586, %v8593
  %v8608 = vadd.f32 %v8587, %v8593
  %v8609 = vadd.f32 %v8588, %v8593
  %v8610 = vld [vmem:[%s8 + $0xb] sm:$0x1]
  %v8611 = vld [vmem:[%s8 + $0xc] sm:$0x1]
  %v8612 = vsel %vm210, %v8594, 0.0
  %8613 = vadd.xlane.f32.xlu0 %v8612
  %v8614 = vpop.xlane.xlu0 %8613
  %v8615 = vsel %vm210, %v8595, 0.0
  %8616 = vadd.xlane.f32.xlu0 %v8615
  %v8617 = vpop.xlane.xlu0 %8616
  %v8618 = vsel %vm210, %v8596, 0.0
  %8619 = vadd.xlane.f32.xlu0 %v8618
  %v8620 = vpop.xlane.xlu0 %8619
  %v8621 = vsel %vm210, %v8597, 0.0
  %8622 = vadd.xlane.f32.xlu0 %v8621
  %v8623 = vpop.xlane.xlu0 %8622
  %v8624 = vsel %vm210, %v8598, 0.0
  %8625 = vadd.xlane.f32.xlu0 %v8624
  %v8626 = vpop.xlane.xlu0 %8625
  %v8627 = vsel %vm210, %v8599, 0.0
  %8628 = vadd.xlane.f32.xlu0 %v8627
  %v8629 = vpop.xlane.xlu0 %8628
  %v8630 = vsel %vm210, %v8600, 0.0
  %8631 = vadd.xlane.f32.xlu0 %v8630
  %v8632 = vpop.xlane.xlu0 %8631
  %v8633 = vsel %vm210, %v8601, 0.0
  %8634 = vadd.xlane.f32.xlu0 %v8633
  %v8635 = vpop.xlane.xlu0 %8634
  %v8636 = vsel %vm210, %v8602, 0.0
  %8637 = vadd.xlane.f32.xlu0 %v8636
  %v8638 = vpop.xlane.xlu0 %8637
  %v8639 = vsel %vm210, %v8603, 0.0
  %8640 = vadd.xlane.f32.xlu0 %v8639
  %v8641 = vpop.xlane.xlu0 %8640
  %v8642 = vsel %vm210, %v8604, 0.0
  %8643 = vadd.xlane.f32.xlu0 %v8642
  %v8644 = vpop.xlane.xlu0 %8643
  %v8645 = vsel %vm210, %v8605, 0.0
  %8646 = vadd.xlane.f32.xlu0 %v8645
  %v8647 = vpop.xlane.xlu0 %8646
  %v8648 = vsel %vm210, %v8606, 0.0
  %8649 = vadd.xlane.f32.xlu0 %v8648
  %v8650 = vpop.xlane.xlu0 %8649
  %v8651 = vsel %vm210, %v8607, 0.0
  %8652 = vadd.xlane.f32.xlu0 %v8651
  %v8653 = vpop.xlane.xlu0 %8652
  %v8654 = vsel %vm210, %v8608, 0.0
  %8655 = vadd.xlane.f32.xlu0 %v8654
  %v8656 = vpop.xlane.xlu0 %8655
  %v8657 = vsel %vm210, %v8609, 0.0
  %8658 = vadd.xlane.f32.xlu0 %v8657
  %v8659 = vpop.xlane.xlu0 %8658
  %v8660 = vmul.f32 %v8614, %v259
  %v8661 = vmul.f32 %v8617, %v259
  %v8662 = vmul.f32 %v8620, %v259
  %v8663 = vmul.f32 %v8623, %v259
  %v8664 = vmul.f32 %v8626, %v259
  %v8665 = vmul.f32 %v8629, %v259
  %v8666 = vmul.f32 %v8632, %v259
  %v8667 = vmul.f32 %v8635, %v259
  %v8668 = vmul.f32 %v8638, %v259
  %v8669 = vmul.f32 %v8641, %v259
  %v8670 = vmul.f32 %v8644, %v259
  %v8671 = vmul.f32 %v8647, %v259
  %v8672 = vmul.f32 %v8650, %v259
  %v8673 = vmul.f32 %v8653, %v259
  %v8674 = vmul.f32 %v8656, %v259
  %v8675 = vmul.f32 %v8659, %v259
  %v8676 = vsub.f32 %v8594, %v8660
  %v8677 = vsub.f32 %v8595, %v8661
  %v8678 = vsub.f32 %v8596, %v8662
  %v8679 = vsub.f32 %v8597, %v8663
  %v8680 = vsub.f32 %v8598, %v8664
  %v8681 = vsub.f32 %v8599, %v8665
  %v8682 = vsub.f32 %v8600, %v8666
  %v8683 = vsub.f32 %v8601, %v8667
  %v8684 = vsub.f32 %v8602, %v8668
  %v8685 = vsub.f32 %v8603, %v8669
  %v8686 = vsub.f32 %v8604, %v8670
  %v8687 = vsub.f32 %v8605, %v8671
  %v8688 = vsub.f32 %v8606, %v8672
  %v8689 = vsub.f32 %v8607, %v8673
  %v8690 = vsub.f32 %v8608, %v8674
  %v8691 = vsub.f32 %v8609, %v8675
  %v8692 = vmul.f32 %v8676, %v8676
  %v8693 = vmul.f32 %v8677, %v8677
  %v8694 = vmul.f32 %v8678, %v8678
  %v8695 = vmul.f32 %v8679, %v8679
  %v8696 = vmul.f32 %v8680, %v8680
  %v8697 = vmul.f32 %v8681, %v8681
  %v8698 = vmul.f32 %v8682, %v8682
  %v8699 = vmul.f32 %v8683, %v8683
  %v8700 = vmul.f32 %v8684, %v8684
  %v8701 = vmul.f32 %v8685, %v8685
  %v8702 = vmul.f32 %v8686, %v8686
  %v8703 = vmul.f32 %v8687, %v8687
  %v8704 = vmul.f32 %v8688, %v8688
  %v8705 = vmul.f32 %v8689, %v8689
  %v8706 = vmul.f32 %v8690, %v8690
  %v8707 = vmul.f32 %v8691, %v8691
  %v8708 = vsel %vm210, %v8692, 0.0
  %8709 = vadd.xlane.f32.xlu0 %v8708
  %v8710 = vpop.xlane.xlu0 %8709
  %v8711 = vsel %vm210, %v8693, 0.0
  %8712 = vadd.xlane.f32.xlu0 %v8711
  %v8713 = vpop.xlane.xlu0 %8712
  %v8714 = vsel %vm210, %v8694, 0.0
  %8715 = vadd.xlane.f32.xlu0 %v8714
  %v8716 = vpop.xlane.xlu0 %8715
  %v8717 = vsel %vm210, %v8695, 0.0
  %8718 = vadd.xlane.f32.xlu0 %v8717
  %v8719 = vpop.xlane.xlu0 %8718
  %v8720 = vsel %vm210, %v8696, 0.0
  %8721 = vadd.xlane.f32.xlu0 %v8720
  %v8722 = vpop.xlane.xlu0 %8721
  %v8723 = vsel %vm210, %v8697, 0.0
  %8724 = vadd.xlane.f32.xlu0 %v8723
  %v8725 = vpop.xlane.xlu0 %8724
  %v8726 = vsel %vm210, %v8698, 0.0
  %8727 = vadd.xlane.f32.xlu0 %v8726
  %v8728 = vpop.xlane.xlu0 %8727
  %v8729 = vsel %vm210, %v8699, 0.0
  %8730 = vadd.xlane.f32.xlu0 %v8729
  %v8731 = vpop.xlane.xlu0 %8730
  %v8732 = vsel %vm210, %v8700, 0.0
  %8733 = vadd.xlane.f32.xlu0 %v8732
  %v8734 = vpop.xlane.xlu0 %8733
  %v8735 = vsel %vm210, %v8701, 0.0
  %8736 = vadd.xlane.f32.xlu0 %v8735
  %v8737 = vpop.xlane.xlu0 %8736
  %v8738 = vsel %vm210, %v8702, 0.0
  %8739 = vadd.xlane.f32.xlu0 %v8738
  %v8740 = vpop.xlane.xlu0 %8739
  %v8741 = vsel %vm210, %v8703, 0.0
  %8742 = vadd.xlane.f32.xlu0 %v8741
  %v8743 = vpop.xlane.xlu0 %8742
  %v8744 = vsel %vm210, %v8704, 0.0
  %8745 = vadd.xlane.f32.xlu0 %v8744
  %v8746 = vpop.xlane.xlu0 %8745
  %v8747 = vsel %vm210, %v8705, 0.0
  %8748 = vadd.xlane.f32.xlu0 %v8747
  %v8749 = vpop.xlane.xlu0 %8748
  %v8750 = vsel %vm210, %v8706, 0.0
  %8751 = vadd.xlane.f32.xlu0 %v8750
  %v8752 = vpop.xlane.xlu0 %8751
  %v8753 = vsel %vm210, %v8707, 0.0
  %8754 = vadd.xlane.f32.xlu0 %v8753
  %v8755 = vpop.xlane.xlu0 %8754
  %v8756 = vmul.f32 %v8710, %v259
  %v8757 = vmul.f32 %v8713, %v259
  %v8758 = vmul.f32 %v8716, %v259
  %v8759 = vmul.f32 %v8719, %v259
  %v8760 = vmul.f32 %v8722, %v259
  %v8761 = vmul.f32 %v8725, %v259
  %v8762 = vmul.f32 %v8728, %v259
  %v8763 = vmul.f32 %v8731, %v259
  %v8764 = vmul.f32 %v8734, %v259
  %v8765 = vmul.f32 %v8737, %v259
  %v8766 = vmul.f32 %v8740, %v259
  %v8767 = vmul.f32 %v8743, %v259
  %v8768 = vmul.f32 %v8746, %v259
  %v8769 = vmul.f32 %v8749, %v259
  %v8770 = vmul.f32 %v8752, %v259
  %v8771 = vmul.f32 %v8755, %v259
  %v8772 = vadd.f32 %v8756, 1e-05
  %v8773 = vadd.f32 %v8757, 1e-05
  %v8774 = vadd.f32 %v8758, 1e-05
  %v8775 = vadd.f32 %v8759, 1e-05
  %v8776 = vadd.f32 %v8760, 1e-05
  %v8777 = vadd.f32 %v8761, 1e-05
  %v8778 = vadd.f32 %v8762, 1e-05
  %v8779 = vadd.f32 %v8763, 1e-05
  %v8780 = vadd.f32 %v8764, 1e-05
  %v8781 = vadd.f32 %v8765, 1e-05
  %v8782 = vadd.f32 %v8766, 1e-05
  %v8783 = vadd.f32 %v8767, 1e-05
  %v8784 = vadd.f32 %v8768, 1e-05
  %v8785 = vadd.f32 %v8769, 1e-05
  %v8786 = vadd.f32 %v8770, 1e-05
  %v8787 = vadd.f32 %v8771, 1e-05
  %v8788 = vrsqrt.pop %v8772
  %v8789 = vrsqrt.pop %v8773
  %v8790 = vrsqrt.pop %v8774
  %v8791 = vrsqrt.pop %v8775
  %v8792 = vrsqrt.pop %v8776
  %v8793 = vrsqrt.pop %v8777
  %v8794 = vrsqrt.pop %v8778
  %v8795 = vrsqrt.pop %v8779
  %v8796 = vrsqrt.pop %v8780
  %v8797 = vrsqrt.pop %v8781
  %v8798 = vrsqrt.pop %v8782
  %v8799 = vrsqrt.pop %v8783
  %v8800 = vrsqrt.pop %v8784
  %v8801 = vrsqrt.pop %v8785
  %v8802 = vrsqrt.pop %v8786
  %v8803 = vrsqrt.pop %v8787
  %v8804 = vmul.f32 %v8676, %v8788
  %v8805 = vmul.f32 %v8677, %v8789
  %v8806 = vmul.f32 %v8678, %v8790
  %v8807 = vmul.f32 %v8679, %v8791
  %v8808 = vmul.f32 %v8680, %v8792
  %v8809 = vmul.f32 %v8681, %v8793
  %v8810 = vmul.f32 %v8682, %v8794
  %v8811 = vmul.f32 %v8683, %v8795
  %v8812 = vmul.f32 %v8684, %v8796
  %v8813 = vmul.f32 %v8685, %v8797
  %v8814 = vmul.f32 %v8686, %v8798
  %v8815 = vmul.f32 %v8687, %v8799
  %v8816 = vmul.f32 %v8688, %v8800
  %v8817 = vmul.f32 %v8689, %v8801
  %v8818 = vmul.f32 %v8690, %v8802
  %v8819 = vmul.f32 %v8691, %v8803
  %v8820 = vlaneseq
  %v8821 = vshrl.u32 %v8820, 7
  %v8822 = vsub.s32 0, %v8821
  %v8823 = vrot.slane %v8610, %v8822
  %v8824 = vmul.f32 %v8804, %v8823
  %v8825 = vmul.f32 %v8805, %v8823
  %v8826 = vmul.f32 %v8806, %v8823
  %v8827 = vmul.f32 %v8807, %v8823
  %v8828 = vmul.f32 %v8808, %v8823
  %v8829 = vmul.f32 %v8809, %v8823
  %v8830 = vmul.f32 %v8810, %v8823
  %v8831 = vmul.f32 %v8811, %v8823
  %v8832 = vmul.f32 %v8812, %v8823
  %v8833 = vmul.f32 %v8813, %v8823
  %v8834 = vmul.f32 %v8814, %v8823
  %v8835 = vmul.f32 %v8815, %v8823
  %v8836 = vmul.f32 %v8816, %v8823
  %v8837 = vmul.f32 %v8817, %v8823
  %v8838 = vmul.f32 %v8818, %v8823
  %v8839 = vmul.f32 %v8819, %v8823
  %v8840 = vlaneseq
  %v8841 = vshrl.u32 %v8840, 7
  %v8842 = vsub.s32 0, %v8841
  %v8843 = vrot.slane %v8611, %v8842
  %v8844 = vadd.f32 %v8824, %v8843
  %v8845 = vadd.f32 %v8825, %v8843
  %v8846 = vadd.f32 %v8826, %v8843
  %v8847 = vadd.f32 %v8827, %v8843
  %v8848 = vadd.f32 %v8828, %v8843
  %v8849 = vadd.f32 %v8829, %v8843
  %v8850 = vadd.f32 %v8830, %v8843
  %v8851 = vadd.f32 %v8831, %v8843
  %v8852 = vadd.f32 %v8832, %v8843
  %v8853 = vadd.f32 %v8833, %v8843
  %v8854 = vadd.f32 %v8834, %v8843
  %v8855 = vadd.f32 %v8835, %v8843
  %v8856 = vadd.f32 %v8836, %v8843
  %v8857 = vadd.f32 %v8837, %v8843
  %v8858 = vadd.f32 %v8838, %v8843
  %v8859 = vadd.f32 %v8839, %v8843
  %v8860 = vsel %vm210, %v8844, 0.0
  %v8861 = vsel %vm210, %v8845, 0.0
  %v8862 = vadd.f32 %v8860, %v8861
  %v8863 = vrot.slane %v8862, 4
  %v8864 = vadd.f32 %v8862, %v8863
  %v8865 = vrot.slane %v8864, 2
  %v8866 = vadd.f32 %v8864, %v8865
  %v8867 = vrot.slane %v8866, 1
  %v8868 = vadd.f32 %v8866, %v8867
  %v8869 = vsel %vm210, %v8846, 0.0
  %v8870 = vsel %vm210, %v8847, 0.0
  %v8871 = vadd.f32 %v8869, %v8870
  %v8872 = vrot.slane %v8871, 4
  %v8873 = vadd.f32 %v8871, %v8872
  %v8874 = vrot.slane %v8873, 2
  %v8875 = vadd.f32 %v8873, %v8874
  %v8876 = vrot.slane %v8875, 1
  %v8877 = vadd.f32 %v8875, %v8876
  %v8878 = vsel %vm210, %v8848, 0.0
  %v8879 = vsel %vm210, %v8849, 0.0
  %v8880 = vadd.f32 %v8878, %v8879
  %v8881 = vrot.slane %v8880, 4
  %v8882 = vadd.f32 %v8880, %v8881
  %v8883 = vrot.slane %v8882, 2
  %v8884 = vadd.f32 %v8882, %v8883
  %v8885 = vrot.slane %v8884, 1
  %v8886 = vadd.f32 %v8884, %v8885
  %v8887 = vsel %vm210, %v8850, 0.0
  %v8888 = vsel %vm210, %v8851, 0.0
  %v8889 = vadd.f32 %v8887, %v8888
  %v8890 = vrot.slane %v8889, 4
  %v8891 = vadd.f32 %v8889, %v8890
  %v8892 = vrot.slane %v8891, 2
  %v8893 = vadd.f32 %v8891, %v8892
  %v8894 = vrot.slane %v8893, 1
  %v8895 = vadd.f32 %v8893, %v8894
  %v8896 = vsel %vm210, %v8852, 0.0
  %v8897 = vsel %vm210, %v8853, 0.0
  %v8898 = vadd.f32 %v8896, %v8897
  %v8899 = vrot.slane %v8898, 4
  %v8900 = vadd.f32 %v8898, %v8899
  %v8901 = vrot.slane %v8900, 2
  %v8902 = vadd.f32 %v8900, %v8901
  %v8903 = vrot.slane %v8902, 1
  %v8904 = vadd.f32 %v8902, %v8903
  %v8905 = vsel %vm210, %v8854, 0.0
  %v8906 = vsel %vm210, %v8855, 0.0
  %v8907 = vadd.f32 %v8905, %v8906
  %v8908 = vrot.slane %v8907, 4
  %v8909 = vadd.f32 %v8907, %v8908
  %v8910 = vrot.slane %v8909, 2
  %v8911 = vadd.f32 %v8909, %v8910
  %v8912 = vrot.slane %v8911, 1
  %v8913 = vadd.f32 %v8911, %v8912
  %v8914 = vsel %vm210, %v8856, 0.0
  %v8915 = vsel %vm210, %v8857, 0.0
  %v8916 = vadd.f32 %v8914, %v8915
  %v8917 = vrot.slane %v8916, 4
  %v8918 = vadd.f32 %v8916, %v8917
  %v8919 = vrot.slane %v8918, 2
  %v8920 = vadd.f32 %v8918, %v8919
  %v8921 = vrot.slane %v8920, 1
  %v8922 = vadd.f32 %v8920, %v8921
  %v8923 = vsel %vm210, %v8858, 0.0
  %v8924 = vsel %vm210, %v8859, 0.0
  %v8925 = vadd.f32 %v8923, %v8924
  %v8926 = vrot.slane %v8925, 4
  %v8927 = vadd.f32 %v8925, %v8926
  %v8928 = vrot.slane %v8927, 2
  %v8929 = vadd.f32 %v8927, %v8928
  %v8930 = vrot.slane %v8929, 1
  %v8931 = vadd.f32 %v8929, %v8930
  %v8932 = vrcp.pop 16.0
  %v8933 = vmul.f32 %v8868, %v8932
  %v8934 = vmul.f32 %v8877, %v8932
  %v8935 = vmul.f32 %v8886, %v8932
  %v8936 = vmul.f32 %v8895, %v8932
  %v8937 = vmul.f32 %v8904, %v8932
  %v8938 = vmul.f32 %v8913, %v8932
  %v8939 = vmul.f32 %v8922, %v8932
  %v8940 = vmul.f32 %v8931, %v8932
  %v8941 = vld [vmem:[%s7] sm:$0xf]
  %v8942 = vld [vmem:[%s7 + $0x4] sm:$0xf]
  %v8943 = vld [vmem:[%s7 + $0x8] sm:$0xf]
  %v8944 = vld [vmem:[%s7 + $0xc] sm:$0xf]
  %v8945 = vpack.c.bf16 %v8933, %v8933
  %v8946 = vpack.c.bf16 %v8934, %v8934
  %v8947 = vpack.c.bf16 %v8935, %v8935
  %v8948 = vpack.c.bf16 %v8936, %v8936
  %v8949 = vpack.c.bf16 %v8937, %v8937
  %v8950 = vpack.c.bf16 %v8938, %v8938
  %v8951 = vpack.c.bf16 %v8939, %v8939
  %v8952 = vpack.c.bf16 %v8940, %v8940
  %v8953 = vld [vmem:[%s8 + $0xd] sm:$0x1]
  %v8954 = vlaneseq
  %v8955 = vshrl.u32 %v8954, 7
  %v8956 = vsub.s32 0, %v8955
  %v8957 = vrot.slane %v8953, %v8956
  %v8966 = vunpack.c.l.b16 %v8945
  %v8967 = vunpack.c.l.b16 %v8946
  %v8968 = vunpack.c.l.b16 %v8947
  %v8969 = vunpack.c.l.b16 %v8948
  %v8970 = vunpack.c.l.b16 %v8949
  %v8971 = vunpack.c.l.b16 %v8950
  %v8972 = vunpack.c.l.b16 %v8951
  %v8973 = vunpack.c.l.b16 %v8952
  %vm8974 = vcmask 1041409
  %v8975 = vsel %vm8974, %v8967, %v8966
  %vm8976 = vcmask 1042434
  %v8977 = vsel %vm8976, %v8968, %v8975
  %vm8978 = vcmask 1043459
  %v8979 = vsel %vm8978, %v8969, %v8977
  %vm8980 = vcmask 1044484
  %v8981 = vsel %vm8980, %v8970, %v8979
  %vm8982 = vcmask 1045509
  %v8983 = vsel %vm8982, %v8971, %v8981
  %vm8984 = vcmask 1046534
  %v8985 = vsel %vm8984, %v8972, %v8983
  %vm8986 = vcmask 1047559
  %v8987 = vsel %vm8986, %v8973, %v8985
  %v8988 = vpack.c.b16 %v8987, %v8987
  %v8993 = vunpack.c.l.b16 %v8941
  %v8994 = vunpack.c.l.b16 %v8942
  %v8995 = vunpack.c.l.b16 %v8943
  %v8996 = vunpack.c.l.b16 %v8944
  %v8997 = vpack.c.b16 %v8994, %v8993
  %v8998 = vpack.c.b16 %v8996, %v8995
  %v9002 = vsel %vm210, %v8988, 0
  %9004 = vmatprep.subr.bf16.mxu0 0
  %9005 = vmatpush1.bf16.msra.mxu0 0
  %9006 = vmatprep.subr.bf16.mxu0 0
  %9007 = vmatpush1.bf16.msra.mxu0 0
  %9008 = vmatprep.subr.bf16.mxu0 0
  %9009 = vmatpush1.bf16.msra.mxu0 0
  %9010 = vmatprep.subr.bf16.mxu0 0
  %9011 = vmatpush1.bf16.msra.mxu0 0
  %9012 = vmatprep.subr.bf16.mxu0 0
  %9013 = vmatpush1.bf16.msra.mxu0 0
  %9014 = vmatprep.subr.bf16.mxu0 0
  %9015 = vmatpush1.bf16.msra.mxu0 0
  %9016 = vmatprep.subr.bf16.mxu0 0
  %9017 = vmatpush1.bf16.msra.mxu0 %v8998
  %9018 = vmatprep.subr.bf16.mxu0 0
  %9019 = vmatpush1.bf16.msra.mxu0 %v8997
  %9020 = vmatprep.subr.bf16.mxu0 0
  %9021 = vmatpush2.bf16.msra.mxu0 0
  %9022 = vmatprep.subr.bf16.mxu0 0
  %9023 = vmatpush2.bf16.msra.mxu0 0
  %9024 = vmatprep.subr.bf16.mxu0 0
  %9025 = vmatpush2.bf16.msra.mxu0 0
  %9026 = vmatprep.subr.bf16.mxu0 0
  %9027 = vmatpush2.bf16.msra.mxu0 0
  %9028 = vmatprep.subr.bf16.mxu0 0
  %9029 = vmatpush2.bf16.msra.mxu0 0
  %9030 = vmatprep.subr.bf16.mxu0 0
  %9031 = vmatpush2.bf16.msra.mxu0 0
  %9032 = vmatprep.subr.bf16.mxu0 0
  %9033 = vmatpush2.bf16.msra.mxu0 0
  %9034 = vmatprep.subr.bf16.mxu0 0
  %9035 = vmatpush2.bf16.msra.mxu0 0
  %9036 = vmatprep.mubr.bf16.mxu0 0
  %9037 = vmatmul.mubr.bf16.gmra.mxu0 %v9002
  %v9038 = vpop.f32.mrf.mxu0
  %v9039 = vadd.f32 %v8957, %v9038
  %v9040 = vpop.f32.mrf.mxu0
  %v9041 = vpop.f32.mrf.mxu0
  %v9042 = vpop.f32.mrf.mxu0
  %9043 = vdwg.mxu0
  %9044 = vst [vmem:[%s9] sm:$0xff] %v9039
  // Predicated region
  $region38: #{swin_video_forward.1} parent=0 // pred_check
    _
  $region39: #{swin_video_forward.1} parent=0 // pred_check_branch
    %9046 = sbr.rel (0) target = $region41
  $region40: #{swin_video_forward.1} parent=0 // pred_region
    _
  $region41: #{swin_video_forward.1} parent=0 // pred_fallthru
    _
  // Predicated region
  $region42: #{swin_video_forward.1} parent=0 // pred_check
    _
  $region43: #{swin_video_forward.1} parent=0 // pred_check_branch
    %9048 = sbr.rel (0) target = $region45
  $region44: #{swin_video_forward.1} parent=0 // pred_region
    _
  $region45: #{swin_video_forward.1} parent=0 // pred_fallthru
    _

</llo_original>
